<compile_context>
chip_gen: v6e
topology: v6e:2x2x1
jax: 0.10.0
libtpu: 0.0.40
codegen_flags: <defaults>
</compile_context>

<pallas_src>
import math

import jax
import jax.numpy as jnp
from jax.experimental import pallas as pl
from jax.experimental.pallas import tpu as pltpu

LANES = 128          # TPU lane width -> channel padding target
NEG_INF = -1e30      # finite "-inf" for maxpool halo (avoids 0 * inf NaNs in padded lanes)


# ---------------------------------------------------------------------------
# Fused Pallas kernel (one image per grid step)
# ---------------------------------------------------------------------------

def _stem_block_kernel(x_ref, w1_ref, s1_ref, b1_ref, wdw_ref,
                       s2a_ref, b2a_ref, s2p_ref, b2p_ref,
                       w3a_ref, w3p_ref, out_ref, apad_scr, ypad_scr):
    """Fused StemBlock forward for one image.

    x_ref   : (1, H+2, W+2, CIN_PAD) bf16  spatially pre-padded input
    w1_ref  : (9, CIN_PAD, CPAD)     bf16  stem_1 3x3 conv weight, one slab per tap
    s1/b1   : (1, CPAD)              f32   folded BN(C) (stem_1_1 pre-activation)
    wdw_ref : (9, 1, CPAD)           f32   depthwise 3x3 weight per tap
    s2a/b2a : (1, CPAD)              f32   folded BN(2C), depthwise half
    s2p/b2p : (1, CPAD)              f32   folded BN(2C), maxpool half
    w3a/w3p : (CPAD, CPAD)           bf16  stem_3 1x1 conv, split by concat half
    out_ref : (1, H, W, CPAD)        f32
    apad_scr, ypad_scr : (H+2, W+2, CPAD) f32 VMEM halo scratch
    """
    _, H, W, CPAD = out_ref.shape
    HW = H * W
    CIN_PAD = x_ref.shape[3]

    # ---- stem_1: dense 3x3 conv = 9 accumulated MXU matmuls (bf16 in, f32 acc) ----
    y = jnp.zeros((HW, CPAD), jnp.float32)
    for tap in range(9):
        dy, dx = tap // 3, tap % 3
        patch = x_ref[0, dy:dy + H, dx:dx + W, :].reshape(HW, CIN_PAD)
        y = y + jnp.dot(patch, w1_ref[tap], preferred_element_type=jnp.float32)

    # ---- build halos in VMEM: zero-padded ReLU(BN1(y)) and (-inf)-padded y ----
    a_act = jnp.maximum(y * s1_ref[...] + b1_ref[...], 0.0)            # f32 epilogue
    apad_scr[...] = jnp.zeros(apad_scr.shape, jnp.float32)
    apad_scr[1:H + 1, 1:W + 1, :] = a_act.reshape(H, W, CPAD)
    ypad_scr[...] = jnp.full(ypad_scr.shape, NEG_INF, jnp.float32)
    ypad_scr[1:H + 1, 1:W + 1, :] = y.reshape(H, W, CPAD)

    # ---- depthwise 3x3 conv (VPU) + 3x3/s1/p1 maxpool, fused tap loop ----
    a2 = jnp.zeros((HW, CPAD), jnp.float32)
    pmax = jnp.full((HW, CPAD), NEG_INF, jnp.float32)
    for tap in range(9):
        dy, dx = tap // 3, tap % 3
        a_sl = apad_scr[dy:dy + H, dx:dx + W, :].reshape(HW, CPAD)
        y_sl = ypad_scr[dy:dy + H, dx:dx + W, :].reshape(HW, CPAD)
        a2 = a2 + a_sl * wdw_ref[tap]
        pmax = jnp.maximum(pmax, y_sl)

    # ---- stem_3: BN(2C)+ReLU per half, split 1x1 conv (MXU), residual add ----
    ta = jnp.maximum(a2 * s2a_ref[...] + b2a_ref[...], 0.0).astype(jnp.bfloat16)
    tp = jnp.maximum(pmax * s2p_ref[...] + b2p_ref[...], 0.0).astype(jnp.bfloat16)
    z = jnp.dot(ta, w3a_ref[...], preferred_element_type=jnp.float32)
    z = z + jnp.dot(tp, w3p_ref[...], preferred_element_type=jnp.float32)
    out_ref[...] = (z + y).reshape(1, H, W, CPAD)


# ---------------------------------------------------------------------------
# Host-side wrapper: layout / padding / weight packing + pallas_call
# ---------------------------------------------------------------------------

def _round_up(v, m):
    return (v + m - 1) // m * m


def _fold_bn(bn, eps=1e-5):
    gamma, beta, mean, var = bn
    scale = gamma / jnp.sqrt(var + eps)
    return scale, beta - mean * scale


def _pad_lanes(v, cpad):
    pad = [(0, 0)] * (v.ndim - 1) + [(0, cpad - v.shape[-1])]
    return jnp.pad(v, pad)


def stem_block_forward(x_nchw, params, *, num_init_features=32):
    N, CIN, H, W = x_nchw.shape
    C = num_init_features
    CPAD = _round_up(C, LANES)
    CIN_PAD = _round_up(CIN, LANES)
    HP, WP = H + 2, W + 2

    # NCHW -> NHWC, lane-pad channels, halo-pad spatial, cast to bf16 for the MXU.
    x = jnp.transpose(x_nchw, (0, 2, 3, 1)).astype(jnp.float32)
    x = jnp.pad(x, ((0, 0), (1, 1), (1, 1), (0, CIN_PAD - CIN)))
    x = x.astype(jnp.bfloat16)

    # stem_1 conv weight: (C, CIN, 3, 3) -> (9, CIN_PAD, CPAD) bf16
    w1 = jnp.transpose(params['w1'], (2, 3, 1, 0)).reshape(9, CIN, C)
    w1 = jnp.pad(w1, ((0, 0), (0, CIN_PAD - CIN), (0, CPAD - C))).astype(jnp.bfloat16)
    # BN(C) of stem_1_1 (pre-activation); padded lanes get scale/shift = 0.
    s1, b1 = _fold_bn(params['bn1'])
    s1 = _pad_lanes(s1, CPAD).reshape(1, CPAD)
    b1 = _pad_lanes(b1, CPAD).reshape(1, CPAD)
    # depthwise conv weight: (C, 1, 3, 3) -> (9, 1, CPAD) f32 (VPU path stays f32)
    wdw = jnp.transpose(params['wdw'][:, 0], (1, 2, 0)).reshape(9, 1, C)
    wdw = _pad_lanes(wdw, CPAD).astype(jnp.float32)
    # BN(2C) of stem_3 (pre-activation), split into depthwise / maxpool halves.
    s2, b2 = _fold_bn(params['bn2'])
    s2a = _pad_lanes(s2[:C], CPAD).reshape(1, CPAD)
    b2a = _pad_lanes(b2[:C], CPAD).reshape(1, CPAD)
    s2p = _pad_lanes(s2[C:], CPAD).reshape(1, CPAD)
    b2p = _pad_lanes(b2[C:], CPAD).reshape(1, CPAD)
    # stem_3 1x1 conv: (C, 2C, 1, 1) -> (2C, C), split by concat half, lane-pad.
    w3 = jnp.transpose(params['w3'][:, :, 0, 0])                       # (2C, C)
    w3a = jnp.pad(w3[:C], ((0, CPAD - C), (0, CPAD - C))).astype(jnp.bfloat16)
    w3p = jnp.pad(w3[C:], ((0, CPAD - C), (0, CPAD - C))).astype(jnp.bfloat16)

    inputs = (x, w1, s1, b1, wdw, s2a, b2a, s2p, b2p, w3a, w3p)

    def _full(shape):
        return lambda n, _r=len(shape): (0,) * _r

    in_specs = [pl.BlockSpec((1, HP, WP, CIN_PAD), lambda n: (n, 0, 0, 0))]
    in_specs += [pl.BlockSpec(a.shape, _full(a.shape)) for a in inputs[1:]]
    out_specs = pl.BlockSpec((1, H, W, CPAD), lambda n: (n, 0, 0, 0))

    flops = 2 * N * H * W * (9 * CIN_PAD * CPAD + 9 * CPAD + 2 * CPAD * CPAD)
    bytes_accessed = int(sum(int(a.size) * a.dtype.itemsize for a in inputs)
                         + N * H * W * CPAD * 4)

    out = pl.pallas_call(
        _stem_block_kernel,
        out_shape=jax.ShapeDtypeStruct((N, H, W, CPAD), jnp.float32),
        grid_spec=pltpu.PrefetchScalarGridSpec(
            num_scalar_prefetch=0,
            grid=(N,),
            in_specs=in_specs,
            out_specs=out_specs,
            scratch_shapes=[pltpu.VMEM((HP, WP, CPAD), jnp.float32),
                            pltpu.VMEM((HP, WP, CPAD), jnp.float32)]),
        compiler_params=pltpu.CompilerParams(
            dimension_semantics=("parallel",),
            vmem_limit_bytes=32 * 1024 * 1024),
        cost_estimate=pl.CostEstimate(flops=flops, transcendentals=0,
                                      bytes_accessed=bytes_accessed),
    )(*inputs)

    out = out[..., :C]                              # drop lane padding
    return jnp.transpose(out, (0, 3, 1, 2))         # back to NCHW


# ---------------------------------------------------------------------------
# Deterministic parameter construction (mirrors the PyTorch module __init__)
# ---------------------------------------------------------------------------

def _conv_weight(key, oc, ic, kh, kw):
    bound = math.sqrt(6.0 / (ic * kh * kw))         # kaiming_uniform-like
    return jax.random.uniform(key, (oc, ic, kh, kw), jnp.float32, -bound, bound)


def _bn_params(key, c):
    k1, k2, k3, k4 = jax.random.split(key, 4)
    gamma = 1.0 + 0.1 * jax.random.normal(k1, (c,), jnp.float32)
    beta = 0.1 * jax.random.normal(k2, (c,), jnp.float32)
    mean = 0.1 * jax.random.normal(k3, (c,), jnp.float32)
    var = 1.0 + 0.1 * jnp.abs(jax.random.normal(k4, (c,), jnp.float32))
    return (gamma, beta, mean, var)


def build_params(key, *, inp=3, num_init_features=32):
    C = num_init_features
    k = jax.random.split(key, 5)
    return {
        'w1': _conv_weight(k[0], C, inp, 3, 3),       # stem_1 (conv only, in_planes==3)
        'bn1': _bn_params(k[1], C),                   # stem_1_1 pre-act BN
        'wdw': _conv_weight(k[2], C, 1, 3, 3),        # stem_1_1 depthwise conv
        'bn2': _bn_params(k[3], 2 * C),               # stem_3 pre-act BN
        'w3': _conv_weight(k[4], C, 2 * C, 1, 1),     # stem_3 1x1 conv
    }


# ---------------------------------------------------------------------------
# Plain-JAX reference (eval-mode BN) for a numerical cross-check
# ---------------------------------------------------------------------------

def stem_block_reference(x_nchw, params, *, num_init_features=32, eps=1e-5):
    C = num_init_features
    x = x_nchw.astype(jnp.float32)

    def conv(v, w, padding, groups=1):
        return jax.lax.conv_general_dilated(
            v, w, window_strides=(1, 1),
            padding=[(padding, padding), (padding, padding)],
            dimension_numbers=('NCHW', 'OIHW', 'NCHW'),
            feature_group_count=groups)

    def bn(v, p):
        gamma, beta, mean, var = p
        s = gamma / jnp.sqrt(var + eps)
        sh = beta - mean * s
        return v * s[None, :, None, None] + sh[None, :, None, None]

    y = conv(x, params['w1'], padding=1)                                     # stem_1
    a = conv(jax.nn.relu(bn(y, params['bn1'])), params['wdw'],
             padding=1, groups=C)                                            # stem_1_1
    p = jax.lax.reduce_window(y, -jnp.inf, jax.lax.max,
                              window_dimensions=(1, 1, 3, 3),
                              window_strides=(1, 1, 1, 1),
                              padding=[(0, 0), (0, 0), (1, 1), (1, 1)])      # stem_2p
    cat = jnp.concatenate([a, p], axis=1)
    z = conv(jax.nn.relu(bn(cat, params['bn2'])), params['w3'], padding=0)   # stem_3
    return z + y


# ---------------------------------------------------------------------------
# Main
# ---------------------------------------------------------------------------

if __name__ == "__main__":
    key = jax.random.PRNGKey(0)
    kx, kp = jax.random.split(key)
    N, INP, H, W = 2, 3, 16, 16
    C = 32                                    # num_init_features (module default)

    x = jax.random.normal(kx, (N, INP, H, W), jnp.float32)   # NCHW, like PyTorch
    params = build_params(kp, inp=INP, num_init_features=C)

    out = jax.block_until_ready(stem_block_forward(x, params, num_init_features=C))
    assert out.shape == (N, C, H, W), out.shape
    assert bool(jnp.all(jnp.isfinite(out))), "non-finite output"

    ref = jax.block_until_ready(stem_block_reference(x, params, num_init_features=C))
    max_err = float(jnp.max(jnp.abs(out - ref)))
    mean_err = float(jnp.mean(jnp.abs(out - ref)))
    # bf16 MXU inputs vs f32 reference -> loose tolerance.
    assert max_err < 0.5 and mean_err < 0.05, (max_err, mean_err)

    print("KERNEL_OK")
</pallas_src>

<mosaic_0001>
module attributes {stable_mosaic.version = 11 : i64} {
  func.func @_stem_block_kernel(%arg0: i32, %arg1: memref<1x18x18x128xbf16, #tpu.memory_space<vmem>>, %arg2: memref<9x128x128xbf16, #tpu.memory_space<vmem>>, %arg3: memref<1x128xf32, #tpu.memory_space<vmem>>, %arg4: memref<1x128xf32, #tpu.memory_space<vmem>>, %arg5: memref<9x1x128xf32, #tpu.memory_space<vmem>>, %arg6: memref<1x128xf32, #tpu.memory_space<vmem>>, %arg7: memref<1x128xf32, #tpu.memory_space<vmem>>, %arg8: memref<1x128xf32, #tpu.memory_space<vmem>>, %arg9: memref<1x128xf32, #tpu.memory_space<vmem>>, %arg10: memref<128x128xbf16, #tpu.memory_space<vmem>>, %arg11: memref<128x128xbf16, #tpu.memory_space<vmem>>, %arg12: memref<1x16x16x128xf32, #tpu.memory_space<vmem>>, %arg13: memref<18x18x128xf32, #tpu.memory_space<vmem>>, %arg14: memref<18x18x128xf32, #tpu.memory_space<vmem>>) attributes {dimension_semantics = [#tpu.dimension_semantics<parallel>], iteration_bounds = array<i64: 2>, scalar_prefetch = 0 : i64, scratch_operands = 2 : i64, tpu.core_type = #tpu.core_type<tc>, window_params = [{transform_indices = @transform_0, window_bounds = array<i64: 1, 18, 18, 128>}, {pipeline_mode = #tpu.pipeline_mode<synchronous>, transform_indices = @transform_1, window_bounds = array<i64: 9, 128, 128>}, {pipeline_mode = #tpu.pipeline_mode<synchronous>, transform_indices = @transform_2, window_bounds = array<i64: 1, 128>}, {pipeline_mode = #tpu.pipeline_mode<synchronous>, transform_indices = @transform_3, window_bounds = array<i64: 1, 128>}, {pipeline_mode = #tpu.pipeline_mode<synchronous>, transform_indices = @transform_4, window_bounds = array<i64: 9, 1, 128>}, {pipeline_mode = #tpu.pipeline_mode<synchronous>, transform_indices = @transform_5, window_bounds = array<i64: 1, 128>}, {pipeline_mode = #tpu.pipeline_mode<synchronous>, transform_indices = @transform_6, window_bounds = array<i64: 1, 128>}, {pipeline_mode = #tpu.pipeline_mode<synchronous>, transform_indices = @transform_7, window_bounds = array<i64: 1, 128>}, {pipeline_mode = #tpu.pipeline_mode<synchronous>, transform_indices = @transform_8, window_bounds = array<i64: 1, 128>}, {pipeline_mode = #tpu.pipeline_mode<synchronous>, transform_indices = @transform_9, window_bounds = array<i64: 128, 128>}, {pipeline_mode = #tpu.pipeline_mode<synchronous>, transform_indices = @transform_10, window_bounds = array<i64: 128, 128>}, {transform_indices = @transform_11, window_bounds = array<i64: 1, 16, 16, 128>}]} {
    %cst = arith.constant 0.000000e+00 : f32
    %0 = vector.broadcast %cst : f32 to vector<256x128xf32>
    %c0 = arith.constant 0 : index
    %c0_0 = arith.constant 0 : index
    %c0_1 = arith.constant 0 : index
    %c0_2 = arith.constant 0 : index
    %1 = vector.load %arg1[%c0, %c0_0, %c0_1, %c0_2] : memref<1x18x18x128xbf16, #tpu.memory_space<vmem>>, vector<1x16x16x128xbf16>
    %2 = vector.shape_cast %1 : vector<1x16x16x128xbf16> to vector<16x16x128xbf16>
    %3 = vector.shape_cast %2 : vector<16x16x128xbf16> to vector<256x128xbf16>
    %c0_3 = arith.constant 0 : index
    %c0_4 = arith.constant 0 : index
    %c0_5 = arith.constant 0 : index
    %4 = vector.load %arg2[%c0_3, %c0_4, %c0_5] : memref<9x128x128xbf16, #tpu.memory_space<vmem>>, vector<1x128x128xbf16>
    %5 = vector.shape_cast %4 : vector<1x128x128xbf16> to vector<128x128xbf16>
    %cst_6 = arith.constant dense<0.000000e+00> : vector<256x128xf32>
    %6 = tpu.matmul %3, %5, %cst_6 {dimension_numbers = #tpu.dot_dimension_numbers<[1], [0], [0], [1], [0, 0, 1, 1], [], []>} : vector<256x128xbf16>, vector<128x128xbf16>, vector<256x128xf32> -> vector<256x128xf32>
    %7 = arith.addf %0, %6 : vector<256x128xf32>
    %c0_7 = arith.constant 0 : index
    %c0_8 = arith.constant 0 : index
    %c1 = arith.constant 1 : index
    %c0_9 = arith.constant 0 : index
    %8 = vector.load %arg1[%c0_7, %c0_8, %c1, %c0_9] : memref<1x18x18x128xbf16, #tpu.memory_space<vmem>>, vector<1x16x16x128xbf16>
    %9 = vector.shape_cast %8 : vector<1x16x16x128xbf16> to vector<16x16x128xbf16>
    %10 = vector.shape_cast %9 : vector<16x16x128xbf16> to vector<256x128xbf16>
    %c1_10 = arith.constant 1 : index
    %c0_11 = arith.constant 0 : index
    %c0_12 = arith.constant 0 : index
    %11 = vector.load %arg2[%c1_10, %c0_11, %c0_12] : memref<9x128x128xbf16, #tpu.memory_space<vmem>>, vector<1x128x128xbf16>
    %12 = vector.shape_cast %11 : vector<1x128x128xbf16> to vector<128x128xbf16>
    %cst_13 = arith.constant dense<0.000000e+00> : vector<256x128xf32>
    %13 = tpu.matmul %10, %12, %cst_13 {dimension_numbers = #tpu.dot_dimension_numbers<[1], [0], [0], [1], [0, 0, 1, 1], [], []>} : vector<256x128xbf16>, vector<128x128xbf16>, vector<256x128xf32> -> vector<256x128xf32>
    %14 = arith.addf %7, %13 : vector<256x128xf32>
    %c0_14 = arith.constant 0 : index
    %c0_15 = arith.constant 0 : index
    %c2 = arith.constant 2 : index
    %c0_16 = arith.constant 0 : index
    %15 = vector.load %arg1[%c0_14, %c0_15, %c2, %c0_16] : memref<1x18x18x128xbf16, #tpu.memory_space<vmem>>, vector<1x16x16x128xbf16>
    %16 = vector.shape_cast %15 : vector<1x16x16x128xbf16> to vector<16x16x128xbf16>
    %17 = vector.shape_cast %16 : vector<16x16x128xbf16> to vector<256x128xbf16>
    %c2_17 = arith.constant 2 : index
    %c0_18 = arith.constant 0 : index
    %c0_19 = arith.constant 0 : index
    %18 = vector.load %arg2[%c2_17, %c0_18, %c0_19] : memref<9x128x128xbf16, #tpu.memory_space<vmem>>, vector<1x128x128xbf16>
    %19 = vector.shape_cast %18 : vector<1x128x128xbf16> to vector<128x128xbf16>
    %cst_20 = arith.constant dense<0.000000e+00> : vector<256x128xf32>
    %20 = tpu.matmul %17, %19, %cst_20 {dimension_numbers = #tpu.dot_dimension_numbers<[1], [0], [0], [1], [0, 0, 1, 1], [], []>} : vector<256x128xbf16>, vector<128x128xbf16>, vector<256x128xf32> -> vector<256x128xf32>
    %21 = arith.addf %14, %20 : vector<256x128xf32>
    %c0_21 = arith.constant 0 : index
    %c1_22 = arith.constant 1 : index
    %c0_23 = arith.constant 0 : index
    %c0_24 = arith.constant 0 : index
    %22 = vector.load %arg1[%c0_21, %c1_22, %c0_23, %c0_24] : memref<1x18x18x128xbf16, #tpu.memory_space<vmem>>, vector<1x16x16x128xbf16>
    %23 = vector.shape_cast %22 : vector<1x16x16x128xbf16> to vector<16x16x128xbf16>
    %24 = vector.shape_cast %23 : vector<16x16x128xbf16> to vector<256x128xbf16>
    %c3 = arith.constant 3 : index
    %c0_25 = arith.constant 0 : index
    %c0_26 = arith.constant 0 : index
    %25 = vector.load %arg2[%c3, %c0_25, %c0_26] : memref<9x128x128xbf16, #tpu.memory_space<vmem>>, vector<1x128x128xbf16>
    %26 = vector.shape_cast %25 : vector<1x128x128xbf16> to vector<128x128xbf16>
    %cst_27 = arith.constant dense<0.000000e+00> : vector<256x128xf32>
    %27 = tpu.matmul %24, %26, %cst_27 {dimension_numbers = #tpu.dot_dimension_numbers<[1], [0], [0], [1], [0, 0, 1, 1], [], []>} : vector<256x128xbf16>, vector<128x128xbf16>, vector<256x128xf32> -> vector<256x128xf32>
    %28 = arith.addf %21, %27 : vector<256x128xf32>
    %c0_28 = arith.constant 0 : index
    %c1_29 = arith.constant 1 : index
    %c1_30 = arith.constant 1 : index
    %c0_31 = arith.constant 0 : index
    %29 = vector.load %arg1[%c0_28, %c1_29, %c1_30, %c0_31] : memref<1x18x18x128xbf16, #tpu.memory_space<vmem>>, vector<1x16x16x128xbf16>
    %30 = vector.shape_cast %29 : vector<1x16x16x128xbf16> to vector<16x16x128xbf16>
    %31 = vector.shape_cast %30 : vector<16x16x128xbf16> to vector<256x128xbf16>
    %c4 = arith.constant 4 : index
    %c0_32 = arith.constant 0 : index
    %c0_33 = arith.constant 0 : index
    %32 = vector.load %arg2[%c4, %c0_32, %c0_33] : memref<9x128x128xbf16, #tpu.memory_space<vmem>>, vector<1x128x128xbf16>
    %33 = vector.shape_cast %32 : vector<1x128x128xbf16> to vector<128x128xbf16>
    %cst_34 = arith.constant dense<0.000000e+00> : vector<256x128xf32>
    %34 = tpu.matmul %31, %33, %cst_34 {dimension_numbers = #tpu.dot_dimension_numbers<[1], [0], [0], [1], [0, 0, 1, 1], [], []>} : vector<256x128xbf16>, vector<128x128xbf16>, vector<256x128xf32> -> vector<256x128xf32>
    %35 = arith.addf %28, %34 : vector<256x128xf32>
    %c0_35 = arith.constant 0 : index
    %c1_36 = arith.constant 1 : index
    %c2_37 = arith.constant 2 : index
    %c0_38 = arith.constant 0 : index
    %36 = vector.load %arg1[%c0_35, %c1_36, %c2_37, %c0_38] : memref<1x18x18x128xbf16, #tpu.memory_space<vmem>>, vector<1x16x16x128xbf16>
    %37 = vector.shape_cast %36 : vector<1x16x16x128xbf16> to vector<16x16x128xbf16>
    %38 = vector.shape_cast %37 : vector<16x16x128xbf16> to vector<256x128xbf16>
    %c5 = arith.constant 5 : index
    %c0_39 = arith.constant 0 : index
    %c0_40 = arith.constant 0 : index
    %39 = vector.load %arg2[%c5, %c0_39, %c0_40] : memref<9x128x128xbf16, #tpu.memory_space<vmem>>, vector<1x128x128xbf16>
    %40 = vector.shape_cast %39 : vector<1x128x128xbf16> to vector<128x128xbf16>
    %cst_41 = arith.constant dense<0.000000e+00> : vector<256x128xf32>
    %41 = tpu.matmul %38, %40, %cst_41 {dimension_numbers = #tpu.dot_dimension_numbers<[1], [0], [0], [1], [0, 0, 1, 1], [], []>} : vector<256x128xbf16>, vector<128x128xbf16>, vector<256x128xf32> -> vector<256x128xf32>
    %42 = arith.addf %35, %41 : vector<256x128xf32>
    %c0_42 = arith.constant 0 : index
    %c2_43 = arith.constant 2 : index
    %c0_44 = arith.constant 0 : index
    %c0_45 = arith.constant 0 : index
    %43 = vector.load %arg1[%c0_42, %c2_43, %c0_44, %c0_45] : memref<1x18x18x128xbf16, #tpu.memory_space<vmem>>, vector<1x16x16x128xbf16>
    %44 = vector.shape_cast %43 : vector<1x16x16x128xbf16> to vector<16x16x128xbf16>
    %45 = vector.shape_cast %44 : vector<16x16x128xbf16> to vector<256x128xbf16>
    %c6 = arith.constant 6 : index
    %c0_46 = arith.constant 0 : index
    %c0_47 = arith.constant 0 : index
    %46 = vector.load %arg2[%c6, %c0_46, %c0_47] : memref<9x128x128xbf16, #tpu.memory_space<vmem>>, vector<1x128x128xbf16>
    %47 = vector.shape_cast %46 : vector<1x128x128xbf16> to vector<128x128xbf16>
    %cst_48 = arith.constant dense<0.000000e+00> : vector<256x128xf32>
    %48 = tpu.matmul %45, %47, %cst_48 {dimension_numbers = #tpu.dot_dimension_numbers<[1], [0], [0], [1], [0, 0, 1, 1], [], []>} : vector<256x128xbf16>, vector<128x128xbf16>, vector<256x128xf32> -> vector<256x128xf32>
    %49 = arith.addf %42, %48 : vector<256x128xf32>
    %c0_49 = arith.constant 0 : index
    %c2_50 = arith.constant 2 : index
    %c1_51 = arith.constant 1 : index
    %c0_52 = arith.constant 0 : index
    %50 = vector.load %arg1[%c0_49, %c2_50, %c1_51, %c0_52] : memref<1x18x18x128xbf16, #tpu.memory_space<vmem>>, vector<1x16x16x128xbf16>
    %51 = vector.shape_cast %50 : vector<1x16x16x128xbf16> to vector<16x16x128xbf16>
    %52 = vector.shape_cast %51 : vector<16x16x128xbf16> to vector<256x128xbf16>
    %c7 = arith.constant 7 : index
    %c0_53 = arith.constant 0 : index
    %c0_54 = arith.constant 0 : index
    %53 = vector.load %arg2[%c7, %c0_53, %c0_54] : memref<9x128x128xbf16, #tpu.memory_space<vmem>>, vector<1x128x128xbf16>
    %54 = vector.shape_cast %53 : vector<1x128x128xbf16> to vector<128x128xbf16>
    %cst_55 = arith.constant dense<0.000000e+00> : vector<256x128xf32>
    %55 = tpu.matmul %52, %54, %cst_55 {dimension_numbers = #tpu.dot_dimension_numbers<[1], [0], [0], [1], [0, 0, 1, 1], [], []>} : vector<256x128xbf16>, vector<128x128xbf16>, vector<256x128xf32> -> vector<256x128xf32>
    %56 = arith.addf %49, %55 : vector<256x128xf32>
    %c0_56 = arith.constant 0 : index
    %c2_57 = arith.constant 2 : index
    %c2_58 = arith.constant 2 : index
    %c0_59 = arith.constant 0 : index
    %57 = vector.load %arg1[%c0_56, %c2_57, %c2_58, %c0_59] : memref<1x18x18x128xbf16, #tpu.memory_space<vmem>>, vector<1x16x16x128xbf16>
    %58 = vector.shape_cast %57 : vector<1x16x16x128xbf16> to vector<16x16x128xbf16>
    %59 = vector.shape_cast %58 : vector<16x16x128xbf16> to vector<256x128xbf16>
    %c8 = arith.constant 8 : index
    %c0_60 = arith.constant 0 : index
    %c0_61 = arith.constant 0 : index
    %60 = vector.load %arg2[%c8, %c0_60, %c0_61] : memref<9x128x128xbf16, #tpu.memory_space<vmem>>, vector<1x128x128xbf16>
    %61 = vector.shape_cast %60 : vector<1x128x128xbf16> to vector<128x128xbf16>
    %cst_62 = arith.constant dense<0.000000e+00> : vector<256x128xf32>
    %62 = tpu.matmul %59, %61, %cst_62 {dimension_numbers = #tpu.dot_dimension_numbers<[1], [0], [0], [1], [0, 0, 1, 1], [], []>} : vector<256x128xbf16>, vector<128x128xbf16>, vector<256x128xf32> -> vector<256x128xf32>
    %63 = arith.addf %56, %62 : vector<256x128xf32>
    %c0_63 = arith.constant 0 : index
    %c0_64 = arith.constant 0 : index
    %64 = vector.load %arg3[%c0_63, %c0_64] : memref<1x128xf32, #tpu.memory_space<vmem>>, vector<1x128xf32>
    %65 = vector.broadcast %64 : vector<1x128xf32> to vector<256x128xf32>
    %66 = arith.mulf %63, %65 : vector<256x128xf32>
    %c0_65 = arith.constant 0 : index
    %c0_66 = arith.constant 0 : index
    %67 = vector.load %arg4[%c0_65, %c0_66] : memref<1x128xf32, #tpu.memory_space<vmem>>, vector<1x128xf32>
    %68 = vector.broadcast %67 : vector<1x128xf32> to vector<256x128xf32>
    %69 = arith.addf %66, %68 : vector<256x128xf32>
    %cst_67 = arith.constant 0.000000e+00 : f32
    %70 = vector.broadcast %cst_67 : f32 to vector<256x128xf32>
    %71 = arith.maximumf %69, %70 : vector<256x128xf32>
    %cst_68 = arith.constant 0.000000e+00 : f32
    %72 = vector.broadcast %cst_68 : f32 to vector<18x18x128xf32>
    %c0_69 = arith.constant 0 : index
    %c0_70 = arith.constant 0 : index
    %c0_71 = arith.constant 0 : index
    %73 = vector.load %arg13[%c0_69, %c0_70, %c0_71] : memref<18x18x128xf32, #tpu.memory_space<vmem>>, vector<18x18x128xf32>
    tpu.vector_store %arg13[%c0_69, %c0_70, %c0_71], %72 {strides = array<i32>} : memref<18x18x128xf32, #tpu.memory_space<vmem>>, vector<18x18x128xf32>,
    %74 = vector.shape_cast %71 : vector<256x128xf32> to vector<16x16x128xf32>
    %c1_72 = arith.constant 1 : index
    %c1_73 = arith.constant 1 : index
    %c0_74 = arith.constant 0 : index
    %75 = vector.load %arg13[%c1_72, %c1_73, %c0_74] : memref<18x18x128xf32, #tpu.memory_space<vmem>>, vector<16x16x128xf32>
    tpu.vector_store %arg13[%c1_72, %c1_73, %c0_74], %74 {strides = array<i32>} : memref<18x18x128xf32, #tpu.memory_space<vmem>>, vector<16x16x128xf32>,
    %cst_75 = arith.constant -1.000000e+30 : f32
    %76 = vector.broadcast %cst_75 : f32 to vector<18x18x128xf32>
    %c0_76 = arith.constant 0 : index
    %c0_77 = arith.constant 0 : index
    %c0_78 = arith.constant 0 : index
    %77 = vector.load %arg14[%c0_76, %c0_77, %c0_78] : memref<18x18x128xf32, #tpu.memory_space<vmem>>, vector<18x18x128xf32>
    tpu.vector_store %arg14[%c0_76, %c0_77, %c0_78], %76 {strides = array<i32>} : memref<18x18x128xf32, #tpu.memory_space<vmem>>, vector<18x18x128xf32>,
    %78 = vector.shape_cast %63 : vector<256x128xf32> to vector<16x16x128xf32>
    %c1_79 = arith.constant 1 : index
    %c1_80 = arith.constant 1 : index
    %c0_81 = arith.constant 0 : index
    %79 = vector.load %arg14[%c1_79, %c1_80, %c0_81] : memref<18x18x128xf32, #tpu.memory_space<vmem>>, vector<16x16x128xf32>
    tpu.vector_store %arg14[%c1_79, %c1_80, %c0_81], %78 {strides = array<i32>} : memref<18x18x128xf32, #tpu.memory_space<vmem>>, vector<16x16x128xf32>,
    %cst_82 = arith.constant 0.000000e+00 : f32
    %80 = vector.broadcast %cst_82 : f32 to vector<256x128xf32>
    %cst_83 = arith.constant -1.000000e+30 : f32
    %81 = vector.broadcast %cst_83 : f32 to vector<256x128xf32>
    %c0_84 = arith.constant 0 : index
    %c0_85 = arith.constant 0 : index
    %c0_86 = arith.constant 0 : index
    %82 = vector.load %arg13[%c0_84, %c0_85, %c0_86] : memref<18x18x128xf32, #tpu.memory_space<vmem>>, vector<16x16x128xf32>
    %83 = vector.shape_cast %82 : vector<16x16x128xf32> to vector<256x128xf32>
    %c0_87 = arith.constant 0 : index
    %c0_88 = arith.constant 0 : index
    %c0_89 = arith.constant 0 : index
    %84 = vector.load %arg14[%c0_87, %c0_88, %c0_89] : memref<18x18x128xf32, #tpu.memory_space<vmem>>, vector<16x16x128xf32>
    %85 = vector.shape_cast %84 : vector<16x16x128xf32> to vector<256x128xf32>
    %c0_90 = arith.constant 0 : index
    %c0_91 = arith.constant 0 : index
    %c0_92 = arith.constant 0 : index
    %86 = vector.load %arg5[%c0_90, %c0_91, %c0_92] : memref<9x1x128xf32, #tpu.memory_space<vmem>>, vector<1x1x128xf32>
    %87 = vector.shape_cast %86 : vector<1x1x128xf32> to vector<1x128xf32>
    %88 = vector.broadcast %87 : vector<1x128xf32> to vector<256x128xf32>
    %89 = arith.mulf %83, %88 : vector<256x128xf32>
    %90 = arith.addf %80, %89 : vector<256x128xf32>
    %91 = arith.maximumf %81, %85 : vector<256x128xf32>
    %c0_93 = arith.constant 0 : index
    %c1_94 = arith.constant 1 : index
    %c0_95 = arith.constant 0 : index
    %92 = vector.load %arg13[%c0_93, %c1_94, %c0_95] : memref<18x18x128xf32, #tpu.memory_space<vmem>>, vector<16x16x128xf32>
    %93 = vector.shape_cast %92 : vector<16x16x128xf32> to vector<256x128xf32>
    %c0_96 = arith.constant 0 : index
    %c1_97 = arith.constant 1 : index
    %c0_98 = arith.constant 0 : index
    %94 = vector.load %arg14[%c0_96, %c1_97, %c0_98] : memref<18x18x128xf32, #tpu.memory_space<vmem>>, vector<16x16x128xf32>
    %95 = vector.shape_cast %94 : vector<16x16x128xf32> to vector<256x128xf32>
    %c1_99 = arith.constant 1 : index
    %c0_100 = arith.constant 0 : index
    %c0_101 = arith.constant 0 : index
    %96 = vector.load %arg5[%c1_99, %c0_100, %c0_101] : memref<9x1x128xf32, #tpu.memory_space<vmem>>, vector<1x1x128xf32>
    %97 = vector.shape_cast %96 : vector<1x1x128xf32> to vector<1x128xf32>
    %98 = vector.broadcast %97 : vector<1x128xf32> to vector<256x128xf32>
    %99 = arith.mulf %93, %98 : vector<256x128xf32>
    %100 = arith.addf %90, %99 : vector<256x128xf32>
    %101 = arith.maximumf %91, %95 : vector<256x128xf32>
    %c0_102 = arith.constant 0 : index
    %c2_103 = arith.constant 2 : index
    %c0_104 = arith.constant 0 : index
    %102 = vector.load %arg13[%c0_102, %c2_103, %c0_104] : memref<18x18x128xf32, #tpu.memory_space<vmem>>, vector<16x16x128xf32>
    %103 = vector.shape_cast %102 : vector<16x16x128xf32> to vector<256x128xf32>
    %c0_105 = arith.constant 0 : index
    %c2_106 = arith.constant 2 : index
    %c0_107 = arith.constant 0 : index
    %104 = vector.load %arg14[%c0_105, %c2_106, %c0_107] : memref<18x18x128xf32, #tpu.memory_space<vmem>>, vector<16x16x128xf32>
    %105 = vector.shape_cast %104 : vector<16x16x128xf32> to vector<256x128xf32>
    %c2_108 = arith.constant 2 : index
    %c0_109 = arith.constant 0 : index
    %c0_110 = arith.constant 0 : index
    %106 = vector.load %arg5[%c2_108, %c0_109, %c0_110] : memref<9x1x128xf32, #tpu.memory_space<vmem>>, vector<1x1x128xf32>
    %107 = vector.shape_cast %106 : vector<1x1x128xf32> to vector<1x128xf32>
    %108 = vector.broadcast %107 : vector<1x128xf32> to vector<256x128xf32>
    %109 = arith.mulf %103, %108 : vector<256x128xf32>
    %110 = arith.addf %100, %109 : vector<256x128xf32>
    %111 = arith.maximumf %101, %105 : vector<256x128xf32>
    %c1_111 = arith.constant 1 : index
    %c0_112 = arith.constant 0 : index
    %c0_113 = arith.constant 0 : index
    %112 = vector.load %arg13[%c1_111, %c0_112, %c0_113] : memref<18x18x128xf32, #tpu.memory_space<vmem>>, vector<16x16x128xf32>
    %113 = vector.shape_cast %112 : vector<16x16x128xf32> to vector<256x128xf32>
    %c1_114 = arith.constant 1 : index
    %c0_115 = arith.constant 0 : index
    %c0_116 = arith.constant 0 : index
    %114 = vector.load %arg14[%c1_114, %c0_115, %c0_116] : memref<18x18x128xf32, #tpu.memory_space<vmem>>, vector<16x16x128xf32>
    %115 = vector.shape_cast %114 : vector<16x16x128xf32> to vector<256x128xf32>
    %c3_117 = arith.constant 3 : index
    %c0_118 = arith.constant 0 : index
    %c0_119 = arith.constant 0 : index
    %116 = vector.load %arg5[%c3_117, %c0_118, %c0_119] : memref<9x1x128xf32, #tpu.memory_space<vmem>>, vector<1x1x128xf32>
    %117 = vector.shape_cast %116 : vector<1x1x128xf32> to vector<1x128xf32>
    %118 = vector.broadcast %117 : vector<1x128xf32> to vector<256x128xf32>
    %119 = arith.mulf %113, %118 : vector<256x128xf32>
    %120 = arith.addf %110, %119 : vector<256x128xf32>
    %121 = arith.maximumf %111, %115 : vector<256x128xf32>
    %c1_120 = arith.constant 1 : index
    %c1_121 = arith.constant 1 : index
    %c0_122 = arith.constant 0 : index
    %122 = vector.load %arg13[%c1_120, %c1_121, %c0_122] : memref<18x18x128xf32, #tpu.memory_space<vmem>>, vector<16x16x128xf32>
    %123 = vector.shape_cast %122 : vector<16x16x128xf32> to vector<256x128xf32>
    %c1_123 = arith.constant 1 : index
    %c1_124 = arith.constant 1 : index
    %c0_125 = arith.constant 0 : index
    %124 = vector.load %arg14[%c1_123, %c1_124, %c0_125] : memref<18x18x128xf32, #tpu.memory_space<vmem>>, vector<16x16x128xf32>
    %125 = vector.shape_cast %124 : vector<16x16x128xf32> to vector<256x128xf32>
    %c4_126 = arith.constant 4 : index
    %c0_127 = arith.constant 0 : index
    %c0_128 = arith.constant 0 : index
    %126 = vector.load %arg5[%c4_126, %c0_127, %c0_128] : memref<9x1x128xf32, #tpu.memory_space<vmem>>, vector<1x1x128xf32>
    %127 = vector.shape_cast %126 : vector<1x1x128xf32> to vector<1x128xf32>
    %128 = vector.broadcast %127 : vector<1x128xf32> to vector<256x128xf32>
    %129 = arith.mulf %123, %128 : vector<256x128xf32>
    %130 = arith.addf %120, %129 : vector<256x128xf32>
    %131 = arith.maximumf %121, %125 : vector<256x128xf32>
    %c1_129 = arith.constant 1 : index
    %c2_130 = arith.constant 2 : index
    %c0_131 = arith.constant 0 : index
    %132 = vector.load %arg13[%c1_129, %c2_130, %c0_131] : memref<18x18x128xf32, #tpu.memory_space<vmem>>, vector<16x16x128xf32>
    %133 = vector.shape_cast %132 : vector<16x16x128xf32> to vector<256x128xf32>
    %c1_132 = arith.constant 1 : index
    %c2_133 = arith.constant 2 : index
    %c0_134 = arith.constant 0 : index
    %134 = vector.load %arg14[%c1_132, %c2_133, %c0_134] : memref<18x18x128xf32, #tpu.memory_space<vmem>>, vector<16x16x128xf32>
    %135 = vector.shape_cast %134 : vector<16x16x128xf32> to vector<256x128xf32>
    %c5_135 = arith.constant 5 : index
    %c0_136 = arith.constant 0 : index
    %c0_137 = arith.constant 0 : index
    %136 = vector.load %arg5[%c5_135, %c0_136, %c0_137] : memref<9x1x128xf32, #tpu.memory_space<vmem>>, vector<1x1x128xf32>
    %137 = vector.shape_cast %136 : vector<1x1x128xf32> to vector<1x128xf32>
    %138 = vector.broadcast %137 : vector<1x128xf32> to vector<256x128xf32>
    %139 = arith.mulf %133, %138 : vector<256x128xf32>
    %140 = arith.addf %130, %139 : vector<256x128xf32>
    %141 = arith.maximumf %131, %135 : vector<256x128xf32>
    %c2_138 = arith.constant 2 : index
    %c0_139 = arith.constant 0 : index
    %c0_140 = arith.constant 0 : index
    %142 = vector.load %arg13[%c2_138, %c0_139, %c0_140] : memref<18x18x128xf32, #tpu.memory_space<vmem>>, vector<16x16x128xf32>
    %143 = vector.shape_cast %142 : vector<16x16x128xf32> to vector<256x128xf32>
    %c2_141 = arith.constant 2 : index
    %c0_142 = arith.constant 0 : index
    %c0_143 = arith.constant 0 : index
    %144 = vector.load %arg14[%c2_141, %c0_142, %c0_143] : memref<18x18x128xf32, #tpu.memory_space<vmem>>, vector<16x16x128xf32>
    %145 = vector.shape_cast %144 : vector<16x16x128xf32> to vector<256x128xf32>
    %c6_144 = arith.constant 6 : index
    %c0_145 = arith.constant 0 : index
    %c0_146 = arith.constant 0 : index
    %146 = vector.load %arg5[%c6_144, %c0_145, %c0_146] : memref<9x1x128xf32, #tpu.memory_space<vmem>>, vector<1x1x128xf32>
    %147 = vector.shape_cast %146 : vector<1x1x128xf32> to vector<1x128xf32>
    %148 = vector.broadcast %147 : vector<1x128xf32> to vector<256x128xf32>
    %149 = arith.mulf %143, %148 : vector<256x128xf32>
    %150 = arith.addf %140, %149 : vector<256x128xf32>
    %151 = arith.maximumf %141, %145 : vector<256x128xf32>
    %c2_147 = arith.constant 2 : index
    %c1_148 = arith.constant 1 : index
    %c0_149 = arith.constant 0 : index
    %152 = vector.load %arg13[%c2_147, %c1_148, %c0_149] : memref<18x18x128xf32, #tpu.memory_space<vmem>>, vector<16x16x128xf32>
    %153 = vector.shape_cast %152 : vector<16x16x128xf32> to vector<256x128xf32>
    %c2_150 = arith.constant 2 : index
    %c1_151 = arith.constant 1 : index
    %c0_152 = arith.constant 0 : index
    %154 = vector.load %arg14[%c2_150, %c1_151, %c0_152] : memref<18x18x128xf32, #tpu.memory_space<vmem>>, vector<16x16x128xf32>
    %155 = vector.shape_cast %154 : vector<16x16x128xf32> to vector<256x128xf32>
    %c7_153 = arith.constant 7 : index
    %c0_154 = arith.constant 0 : index
    %c0_155 = arith.constant 0 : index
    %156 = vector.load %arg5[%c7_153, %c0_154, %c0_155] : memref<9x1x128xf32, #tpu.memory_space<vmem>>, vector<1x1x128xf32>
    %157 = vector.shape_cast %156 : vector<1x1x128xf32> to vector<1x128xf32>
    %158 = vector.broadcast %157 : vector<1x128xf32> to vector<256x128xf32>
    %159 = arith.mulf %153, %158 : vector<256x128xf32>
    %160 = arith.addf %150, %159 : vector<256x128xf32>
    %161 = arith.maximumf %151, %155 : vector<256x128xf32>
    %c2_156 = arith.constant 2 : index
    %c2_157 = arith.constant 2 : index
    %c0_158 = arith.constant 0 : index
    %162 = vector.load %arg13[%c2_156, %c2_157, %c0_158] : memref<18x18x128xf32, #tpu.memory_space<vmem>>, vector<16x16x128xf32>
    %163 = vector.shape_cast %162 : vector<16x16x128xf32> to vector<256x128xf32>
    %c2_159 = arith.constant 2 : index
    %c2_160 = arith.constant 2 : index
    %c0_161 = arith.constant 0 : index
    %164 = vector.load %arg14[%c2_159, %c2_160, %c0_161] : memref<18x18x128xf32, #tpu.memory_space<vmem>>, vector<16x16x128xf32>
    %165 = vector.shape_cast %164 : vector<16x16x128xf32> to vector<256x128xf32>
    %c8_162 = arith.constant 8 : index
    %c0_163 = arith.constant 0 : index
    %c0_164 = arith.constant 0 : index
    %166 = vector.load %arg5[%c8_162, %c0_163, %c0_164] : memref<9x1x128xf32, #tpu.memory_space<vmem>>, vector<1x1x128xf32>
    %167 = vector.shape_cast %166 : vector<1x1x128xf32> to vector<1x128xf32>
    %168 = vector.broadcast %167 : vector<1x128xf32> to vector<256x128xf32>
    %169 = arith.mulf %163, %168 : vector<256x128xf32>
    %170 = arith.addf %160, %169 : vector<256x128xf32>
    %171 = arith.maximumf %161, %165 : vector<256x128xf32>
    %c0_165 = arith.constant 0 : index
    %c0_166 = arith.constant 0 : index
    %172 = vector.load %arg6[%c0_165, %c0_166] : memref<1x128xf32, #tpu.memory_space<vmem>>, vector<1x128xf32>
    %173 = vector.broadcast %172 : vector<1x128xf32> to vector<256x128xf32>
    %174 = arith.mulf %170, %173 : vector<256x128xf32>
    %c0_167 = arith.constant 0 : index
    %c0_168 = arith.constant 0 : index
    %175 = vector.load %arg7[%c0_167, %c0_168] : memref<1x128xf32, #tpu.memory_space<vmem>>, vector<1x128xf32>
    %176 = vector.broadcast %175 : vector<1x128xf32> to vector<256x128xf32>
    %177 = arith.addf %174, %176 : vector<256x128xf32>
    %cst_169 = arith.constant 0.000000e+00 : f32
    %178 = vector.broadcast %cst_169 : f32 to vector<256x128xf32>
    %179 = arith.maximumf %177, %178 : vector<256x128xf32>
    %180 = arith.truncf %179 : vector<256x128xf32> to vector<256x128xbf16>
    %c0_170 = arith.constant 0 : index
    %c0_171 = arith.constant 0 : index
    %181 = vector.load %arg8[%c0_170, %c0_171] : memref<1x128xf32, #tpu.memory_space<vmem>>, vector<1x128xf32>
    %182 = vector.broadcast %181 : vector<1x128xf32> to vector<256x128xf32>
    %183 = arith.mulf %171, %182 : vector<256x128xf32>
    %c0_172 = arith.constant 0 : index
    %c0_173 = arith.constant 0 : index
    %184 = vector.load %arg9[%c0_172, %c0_173] : memref<1x128xf32, #tpu.memory_space<vmem>>, vector<1x128xf32>
    %185 = vector.broadcast %184 : vector<1x128xf32> to vector<256x128xf32>
    %186 = arith.addf %183, %185 : vector<256x128xf32>
    %cst_174 = arith.constant 0.000000e+00 : f32
    %187 = vector.broadcast %cst_174 : f32 to vector<256x128xf32>
    %188 = arith.maximumf %186, %187 : vector<256x128xf32>
    %189 = arith.truncf %188 : vector<256x128xf32> to vector<256x128xbf16>
    %c0_175 = arith.constant 0 : index
    %c0_176 = arith.constant 0 : index
    %190 = vector.load %arg10[%c0_175, %c0_176] : memref<128x128xbf16, #tpu.memory_space<vmem>>, vector<128x128xbf16>
    %cst_177 = arith.constant dense<0.000000e+00> : vector<256x128xf32>
    %191 = tpu.matmul %180, %190, %cst_177 {dimension_numbers = #tpu.dot_dimension_numbers<[1], [0], [0], [1], [0, 0, 1, 1], [], []>} : vector<256x128xbf16>, vector<128x128xbf16>, vector<256x128xf32> -> vector<256x128xf32>
    %c0_178 = arith.constant 0 : index
    %c0_179 = arith.constant 0 : index
    %192 = vector.load %arg11[%c0_178, %c0_179] : memref<128x128xbf16, #tpu.memory_space<vmem>>, vector<128x128xbf16>
    %cst_180 = arith.constant dense<0.000000e+00> : vector<256x128xf32>
    %193 = tpu.matmul %189, %192, %cst_180 {dimension_numbers = #tpu.dot_dimension_numbers<[1], [0], [0], [1], [0, 0, 1, 1], [], []>} : vector<256x128xbf16>, vector<128x128xbf16>, vector<256x128xf32> -> vector<256x128xf32>
    %194 = arith.addf %191, %193 : vector<256x128xf32>
    %195 = arith.addf %194, %63 : vector<256x128xf32>
    %196 = vector.shape_cast %195 : vector<256x128xf32> to vector<1x16x16x128xf32>
    %c0_181 = arith.constant 0 : index
    %c0_182 = arith.constant 0 : index
    %c0_183 = arith.constant 0 : index
    %c0_184 = arith.constant 0 : index
    %197 = vector.load %arg12[%c0_181, %c0_182, %c0_183, %c0_184] : memref<1x16x16x128xf32, #tpu.memory_space<vmem>>, vector<1x16x16x128xf32>
    tpu.vector_store %arg12[%c0_181, %c0_182, %c0_183, %c0_184], %196 {strides = array<i32>} : memref<1x16x16x128xf32, #tpu.memory_space<vmem>>, vector<1x16x16x128xf32>,
    return
  }
  func.func @transform_0(%arg0: i32) -> (i32, i32, i32, i32) {
    %c0_i32 = arith.constant 0 : i32
    %c0_i32_0 = arith.constant 0 : i32
    %c0_i32_1 = arith.constant 0 : i32
    %c0_i32_2 = arith.constant 0 : i32
    return %arg0, %c0_i32, %c0_i32_0, %c0_i32_1 : i32, i32, i32, i32
  }
  func.func @transform_1(%arg0: i32) -> (i32, i32, i32) {
    %c0_i32 = arith.constant 0 : i32
    %c0_i32_0 = arith.constant 0 : i32
    %c0_i32_1 = arith.constant 0 : i32
    %c0_i32_2 = arith.constant 0 : i32
    return %c0_i32, %c0_i32_0, %c0_i32_1 : i32, i32, i32
  }
  func.func @transform_2(%arg0: i32) -> (i32, i32) {
    %c0_i32 = arith.constant 0 : i32
    %c0_i32_0 = arith.constant 0 : i32
    %c0_i32_1 = arith.constant 0 : i32
    return %c0_i32, %c0_i32_0 : i32, i32
  }
  func.func @transform_3(%arg0: i32) -> (i32, i32) {
    %c0_i32 = arith.constant 0 : i32
    %c0_i32_0 = arith.constant 0 : i32
    %c0_i32_1 = arith.constant 0 : i32
    return %c0_i32, %c0_i32_0 : i32, i32
  }
  func.func @transform_4(%arg0: i32) -> (i32, i32, i32) {
    %c0_i32 = arith.constant 0 : i32
    %c0_i32_0 = arith.constant 0 : i32
    %c0_i32_1 = arith.constant 0 : i32
    %c0_i32_2 = arith.constant 0 : i32
    return %c0_i32, %c0_i32_0, %c0_i32_1 : i32, i32, i32
  }
  func.func @transform_5(%arg0: i32) -> (i32, i32) {
    %c0_i32 = arith.constant 0 : i32
    %c0_i32_0 = arith.constant 0 : i32
    %c0_i32_1 = arith.constant 0 : i32
    return %c0_i32, %c0_i32_0 : i32, i32
  }
  func.func @transform_6(%arg0: i32) -> (i32, i32) {
    %c0_i32 = arith.constant 0 : i32
    %c0_i32_0 = arith.constant 0 : i32
    %c0_i32_1 = arith.constant 0 : i32
    return %c0_i32, %c0_i32_0 : i32, i32
  }
  func.func @transform_7(%arg0: i32) -> (i32, i32) {
    %c0_i32 = arith.constant 0 : i32
    %c0_i32_0 = arith.constant 0 : i32
    %c0_i32_1 = arith.constant 0 : i32
    return %c0_i32, %c0_i32_0 : i32, i32
  }
  func.func @transform_8(%arg0: i32) -> (i32, i32) {
    %c0_i32 = arith.constant 0 : i32
    %c0_i32_0 = arith.constant 0 : i32
    %c0_i32_1 = arith.constant 0 : i32
    return %c0_i32, %c0_i32_0 : i32, i32
  }
  func.func @transform_9(%arg0: i32) -> (i32, i32) {
    %c0_i32 = arith.constant 0 : i32
    %c0_i32_0 = arith.constant 0 : i32
    %c0_i32_1 = arith.constant 0 : i32
    return %c0_i32, %c0_i32_0 : i32, i32
  }
  func.func @transform_10(%arg0: i32) -> (i32, i32) {
    %c0_i32 = arith.constant 0 : i32
    %c0_i32_0 = arith.constant 0 : i32
    %c0_i32_1 = arith.constant 0 : i32
    return %c0_i32, %c0_i32_0 : i32, i32
  }
  func.func @transform_11(%arg0: i32) -> (i32, i32, i32, i32) {
    %c0_i32 = arith.constant 0 : i32
    %c0_i32_0 = arith.constant 0 : i32
    %c0_i32_1 = arith.constant 0 : i32
    %c0_i32_2 = arith.constant 0 : i32
    return %arg0, %c0_i32, %c0_i32_0, %c0_i32_1 : i32, i32, i32, i32
  }
}

</mosaic_0001>

<llo_original>
// kernel: tpu_custom_call.1
$region0: #{tpu_custom_call.1}
  #allocation0 [shape = 'u32[]', space=smem, size = 0x4, offset = 0x4, fixed_abs, tag = 'smem constant byte address 0x4 - core index']
  #allocation1 [shape = 'u32[144,128]{1,0:T(1,128)}', space=vmem, size = 0x12000, scoped, tag = 'internal scratch']
  #allocation2 [shape = 'f32[18,18,128]{2,1,0:T(8,128)}', space=vmem, size = 0x36000, scoped, tag = 'scratch operand']
  #allocation3 [shape = 'f32[18,18,128]{2,1,0:T(8,128)}', space=vmem, size = 0x36000, scoped, tag = 'scratch operand']
  %s0 = inlined_call_operand.vmem [shape: bf16[2,18,18,128], index: 0, kind: input, shape index: {}]
  %s1 = inlined_call_operand.vmem [shape: bf16[9,128,128], index: 1, kind: input, shape index: {}]
  %s2 = inlined_call_operand.vmem [shape: f32[1,128], index: 2, kind: input, shape index: {}]
  %s3 = inlined_call_operand.vmem [shape: f32[1,128], index: 3, kind: input, shape index: {}]
  %s4 = inlined_call_operand.vmem [shape: f32[9,1,128], index: 4, kind: input, shape index: {}]
  %s5 = inlined_call_operand.vmem [shape: f32[1,128], index: 5, kind: input, shape index: {}]
  %s6 = inlined_call_operand.vmem [shape: f32[1,128], index: 6, kind: input, shape index: {}]
  %s7 = inlined_call_operand.vmem [shape: f32[1,128], index: 7, kind: input, shape index: {}]
  %s8 = inlined_call_operand.vmem [shape: f32[1,128], index: 8, kind: input, shape index: {}]
  %s9 = inlined_call_operand.vmem [shape: bf16[128,128], index: 9, kind: input, shape index: {}]
  %s10 = inlined_call_operand.vmem [shape: bf16[128,128], index: 10, kind: input, shape index: {}]
  %s11 = inlined_call_operand.hbm [shape: f32[2,16,16,128], index: 11, kind: output, shape index: {}]
  %s12 = sld [smem:[#allocation0]]
  $region77: #{tpu_custom_call.1} parent=0
    _
  %s14 = ssub.s32 1, %s12
  %s15 = scalar_select 0, %s14, %s12
  $region1: #{tpu_custom_call.1} parent=0
    #allocation4 [shape = 'u8[262144]{0}', space=vmem, size = 0x40000, scoped, tag = 'output window, operand 0']
    #allocation5 [shape = 's32[2]{0}', space=sflag, size = 0x8, scoped, tag = 'scoped memory for tpu_custom_call.1']
    %16 = vsyncpa [#allocation5], 0
    %s17 = scalar_lea.sflag [#allocation5], 1
    %18 = vsyncpa %s17, 0
    loop: start=0, step=1, limit=4
    $region2: #{tpu_custom_call.1} parent=1 // loop_pre_header
      _
    $region3: #{tpu_custom_call.1} parent=1 // loop_header
      %s20 = sphi 0, %s24
      %p21 = scmp.ge.s32.totalorder %s20, 4
      %s30 = sphi 0, %s32
      %s33 = sphi 0, %s30
      %s34 = sphi 0, %s33
      %s50 = sphi 0, %s34
      %s54 = sphi 0, %s54
      %s56 = sphi 0, %s54
      %s57 = sphi 0, %s56
      %s71 = sphi 0, %s57
      %s75 = sphi 0, %s75
      %s77 = sphi 0, %s75
      %s78 = sphi 0, %s77
      %s92 = sphi 0, %s78
      %s96 = sphi 0, %s96
      %s98 = sphi 0, %s96
      %s99 = sphi 0, %s98
      %s113 = sphi 0, %s99
      %s117 = sphi 0, %s117
      %s119 = sphi 0, %s117
      %s120 = sphi 0, %s119
      %s134 = sphi 0, %s120
      %s138 = sphi 0, %s138
      %s140 = sphi 0, %s138
      %s141 = sphi 0, %s140
      %s155 = sphi 0, %s141
      %s159 = sphi 0, %s159
      %s161 = sphi 0, %s159
      %s162 = sphi 0, %s161
      %s176 = sphi 0, %s162
      %s180 = sphi 0, %s180
      %s182 = sphi 0, %s180
      %s183 = sphi 0, %s182
      %s197 = sphi 0, %s183
      %s201 = sphi 0, %s201
      %s203 = sphi 0, %s201
      %s204 = sphi 0, %s203
      %s218 = sphi 0, %s204
      %s222 = sphi 0, %s222
      %s224 = sphi 0, %s222
      %s225 = sphi 0, %s224
      %s239 = sphi 0, %s225
      %s243 = sphi 0, %s243
      %s245 = sphi 0, %s243
      %s246 = sphi 0, %s245
      %s260 = sphi 0, %s246
      %s266 = sphi 0, %s268
      %s269 = sphi 0, %s266
      %s270 = sphi 0, %s269
      %s286 = sphi 0, %s270
    $region4: #{tpu_custom_call.1} parent=1 // loop_header_branch
      %23 = sbr.rel (%p21) target = $region8
    $region5: #{tpu_custom_call.1} parent=1 // loop_body
      %s25 = ssub.s32 %s20, 1
      %s26 = ssub.s32 %s20, 2
      %s27 = sadd.s32 %s20, 1
      %s28 = ssub.s32 %s20, %s27
      %p29 = scmp.eq.s32.totalorder %s28, 0
      %s31 = sadd.s32 %s30, 1
      %s32 = scalar_select %p29, %s30, %s31
      %p35 = pneg %p29
      %p36 = scmp.eq.s32.totalorder %s20, 1
      %p37 = por %p35, %p36
      %p38 = scmp.ne.s32.totalorder %s30, %s33
      %p39 = scmp.eq.s32.totalorder %s20, 0
      %p40 = por %p38, %p39
      %p41 = scmp.ne.s32.totalorder %s30, %s33
      %p42 = scmp.eq.s32.totalorder %s25, 1
      %p43 = por %p41, %p42
      %p44 = scmp.ne.s32.totalorder %s33, %s34
      %p45 = scmp.eq.s32.totalorder %s25, 0
      %p46 = por %p44, %p45
      %p47 = scmp.ne.s32.totalorder %s33, %s34
      %p48 = scmp.eq.s32.totalorder %s26, 1
      %p49 = por %p47, %p48
      %p51 = scmp.ne.s32.totalorder %s34, %s50
      %p52 = scmp.eq.s32.totalorder %s26, 0
      %p53 = por %p51, %p52
      %s55 = sadd.s32 %s54, 1
      %p58 = scmp.eq.s32.totalorder %s20, 1
      %p59 = scmp.ne.s32.totalorder %s54, %s56
      %p60 = scmp.eq.s32.totalorder %s20, 0
      %p61 = por %p59, %p60
      %p62 = scmp.ne.s32.totalorder %s54, %s56
      %p63 = scmp.eq.s32.totalorder %s25, 1
      %p64 = por %p62, %p63
      %p65 = scmp.ne.s32.totalorder %s56, %s57
      %p66 = scmp.eq.s32.totalorder %s25, 0
      %p67 = por %p65, %p66
      %p68 = scmp.ne.s32.totalorder %s56, %s57
      %p69 = scmp.eq.s32.totalorder %s26, 1
      %p70 = por %p68, %p69
      %p72 = scmp.ne.s32.totalorder %s57, %s71
      %p73 = scmp.eq.s32.totalorder %s26, 0
      %p74 = por %p72, %p73
      %s76 = sadd.s32 %s75, 1
      %p79 = scmp.eq.s32.totalorder %s20, 1
      %p80 = scmp.ne.s32.totalorder %s75, %s77
      %p81 = scmp.eq.s32.totalorder %s20, 0
      %p82 = por %p80, %p81
      %p83 = scmp.ne.s32.totalorder %s75, %s77
      %p84 = scmp.eq.s32.totalorder %s25, 1
      %p85 = por %p83, %p84
      %p86 = scmp.ne.s32.totalorder %s77, %s78
      %p87 = scmp.eq.s32.totalorder %s25, 0
      %p88 = por %p86, %p87
      %p89 = scmp.ne.s32.totalorder %s77, %s78
      %p90 = scmp.eq.s32.totalorder %s26, 1
      %p91 = por %p89, %p90
      %p93 = scmp.ne.s32.totalorder %s78, %s92
      %p94 = scmp.eq.s32.totalorder %s26, 0
      %p95 = por %p93, %p94
      %s97 = sadd.s32 %s96, 1
      %p100 = scmp.eq.s32.totalorder %s20, 1
      %p101 = scmp.ne.s32.totalorder %s96, %s98
      %p102 = scmp.eq.s32.totalorder %s20, 0
      %p103 = por %p101, %p102
      %p104 = scmp.ne.s32.totalorder %s96, %s98
      %p105 = scmp.eq.s32.totalorder %s25, 1
      %p106 = por %p104, %p105
      %p107 = scmp.ne.s32.totalorder %s98, %s99
      %p108 = scmp.eq.s32.totalorder %s25, 0
      %p109 = por %p107, %p108
      %p110 = scmp.ne.s32.totalorder %s98, %s99
      %p111 = scmp.eq.s32.totalorder %s26, 1
      %p112 = por %p110, %p111
      %p114 = scmp.ne.s32.totalorder %s99, %s113
      %p115 = scmp.eq.s32.totalorder %s26, 0
      %p116 = por %p114, %p115
      %s118 = sadd.s32 %s117, 1
      %p121 = scmp.eq.s32.totalorder %s20, 1
      %p122 = scmp.ne.s32.totalorder %s117, %s119
      %p123 = scmp.eq.s32.totalorder %s20, 0
      %p124 = por %p122, %p123
      %p125 = scmp.ne.s32.totalorder %s117, %s119
      %p126 = scmp.eq.s32.totalorder %s25, 1
      %p127 = por %p125, %p126
      %p128 = scmp.ne.s32.totalorder %s119, %s120
      %p129 = scmp.eq.s32.totalorder %s25, 0
      %p130 = por %p128, %p129
      %p131 = scmp.ne.s32.totalorder %s119, %s120
      %p132 = scmp.eq.s32.totalorder %s26, 1
      %p133 = por %p131, %p132
      %p135 = scmp.ne.s32.totalorder %s120, %s134
      %p136 = scmp.eq.s32.totalorder %s26, 0
      %p137 = por %p135, %p136
      %s139 = sadd.s32 %s138, 1
      %p142 = scmp.eq.s32.totalorder %s20, 1
      %p143 = scmp.ne.s32.totalorder %s138, %s140
      %p144 = scmp.eq.s32.totalorder %s20, 0
      %p145 = por %p143, %p144
      %p146 = scmp.ne.s32.totalorder %s138, %s140
      %p147 = scmp.eq.s32.totalorder %s25, 1
      %p148 = por %p146, %p147
      %p149 = scmp.ne.s32.totalorder %s140, %s141
      %p150 = scmp.eq.s32.totalorder %s25, 0
      %p151 = por %p149, %p150
      %p152 = scmp.ne.s32.totalorder %s140, %s141
      %p153 = scmp.eq.s32.totalorder %s26, 1
      %p154 = por %p152, %p153
      %p156 = scmp.ne.s32.totalorder %s141, %s155
      %p157 = scmp.eq.s32.totalorder %s26, 0
      %p158 = por %p156, %p157
      %s160 = sadd.s32 %s159, 1
      %p163 = scmp.eq.s32.totalorder %s20, 1
      %p164 = scmp.ne.s32.totalorder %s159, %s161
      %p165 = scmp.eq.s32.totalorder %s20, 0
      %p166 = por %p164, %p165
      %p167 = scmp.ne.s32.totalorder %s159, %s161
      %p168 = scmp.eq.s32.totalorder %s25, 1
      %p169 = por %p167, %p168
      %p170 = scmp.ne.s32.totalorder %s161, %s162
      %p171 = scmp.eq.s32.totalorder %s25, 0
      %p172 = por %p170, %p171
      %p173 = scmp.ne.s32.totalorder %s161, %s162
      %p174 = scmp.eq.s32.totalorder %s26, 1
      %p175 = por %p173, %p174
      %p177 = scmp.ne.s32.totalorder %s162, %s176
      %p178 = scmp.eq.s32.totalorder %s26, 0
      %p179 = por %p177, %p178
      %s181 = sadd.s32 %s180, 1
      %p184 = scmp.eq.s32.totalorder %s20, 1
      %p185 = scmp.ne.s32.totalorder %s180, %s182
      %p186 = scmp.eq.s32.totalorder %s20, 0
      %p187 = por %p185, %p186
      %p188 = scmp.ne.s32.totalorder %s180, %s182
      %p189 = scmp.eq.s32.totalorder %s25, 1
      %p190 = por %p188, %p189
      %p191 = scmp.ne.s32.totalorder %s182, %s183
      %p192 = scmp.eq.s32.totalorder %s25, 0
      %p193 = por %p191, %p192
      %p194 = scmp.ne.s32.totalorder %s182, %s183
      %p195 = scmp.eq.s32.totalorder %s26, 1
      %p196 = por %p194, %p195
      %p198 = scmp.ne.s32.totalorder %s183, %s197
      %p199 = scmp.eq.s32.totalorder %s26, 0
      %p200 = por %p198, %p199
      %s202 = sadd.s32 %s201, 1
      %p205 = scmp.eq.s32.totalorder %s20, 1
      %p206 = scmp.ne.s32.totalorder %s201, %s203
      %p207 = scmp.eq.s32.totalorder %s20, 0
      %p208 = por %p206, %p207
      %p209 = scmp.ne.s32.totalorder %s201, %s203
      %p210 = scmp.eq.s32.totalorder %s25, 1
      %p211 = por %p209, %p210
      %p212 = scmp.ne.s32.totalorder %s203, %s204
      %p213 = scmp.eq.s32.totalorder %s25, 0
      %p214 = por %p212, %p213
      %p215 = scmp.ne.s32.totalorder %s203, %s204
      %p216 = scmp.eq.s32.totalorder %s26, 1
      %p217 = por %p215, %p216
      %p219 = scmp.ne.s32.totalorder %s204, %s218
      %p220 = scmp.eq.s32.totalorder %s26, 0
      %p221 = por %p219, %p220
      %s223 = sadd.s32 %s222, 1
      %p226 = scmp.eq.s32.totalorder %s20, 1
      %p227 = scmp.ne.s32.totalorder %s222, %s224
      %p228 = scmp.eq.s32.totalorder %s20, 0
      %p229 = por %p227, %p228
      %p230 = scmp.ne.s32.totalorder %s222, %s224
      %p231 = scmp.eq.s32.totalorder %s25, 1
      %p232 = por %p230, %p231
      %p233 = scmp.ne.s32.totalorder %s224, %s225
      %p234 = scmp.eq.s32.totalorder %s25, 0
      %p235 = por %p233, %p234
      %p236 = scmp.ne.s32.totalorder %s224, %s225
      %p237 = scmp.eq.s32.totalorder %s26, 1
      %p238 = por %p236, %p237
      %p240 = scmp.ne.s32.totalorder %s225, %s239
      %p241 = scmp.eq.s32.totalorder %s26, 0
      %p242 = por %p240, %p241
      %s244 = sadd.s32 %s243, 1
      %p247 = scmp.eq.s32.totalorder %s20, 1
      %p248 = scmp.ne.s32.totalorder %s243, %s245
      %p249 = scmp.eq.s32.totalorder %s20, 0
      %p250 = por %p248, %p249
      %p251 = scmp.ne.s32.totalorder %s243, %s245
      %p252 = scmp.eq.s32.totalorder %s25, 1
      %p253 = por %p251, %p252
      %p254 = scmp.ne.s32.totalorder %s245, %s246
      %p255 = scmp.eq.s32.totalorder %s25, 0
      %p256 = por %p254, %p255
      %p257 = scmp.ne.s32.totalorder %s245, %s246
      %p258 = scmp.eq.s32.totalorder %s26, 1
      %p259 = por %p257, %p258
      %p261 = scmp.ne.s32.totalorder %s246, %s260
      %p262 = scmp.eq.s32.totalorder %s26, 0
      %p263 = por %p261, %p262
      %s264 = ssub.s32 %s20, %s27
      %p265 = scmp.eq.s32.totalorder %s264, 0
      %s267 = sadd.s32 %s266, 1
      %s268 = scalar_select %p265, %s266, %s267
      %p271 = pneg %p265
      %p272 = scmp.eq.s32.totalorder %s20, 1
      %p273 = por %p271, %p272
      %p274 = scmp.ne.s32.totalorder %s266, %s269
      %p275 = scmp.eq.s32.totalorder %s20, 0
      %p276 = por %p274, %p275
      %p277 = scmp.ne.s32.totalorder %s266, %s269
      %p278 = scmp.eq.s32.totalorder %s25, 1
      %p279 = por %p277, %p278
      %p280 = scmp.ne.s32.totalorder %s269, %s270
      %p281 = scmp.eq.s32.totalorder %s25, 0
      %p282 = por %p280, %p281
      %p283 = scmp.ne.s32.totalorder %s269, %s270
      %p284 = scmp.eq.s32.totalorder %s26, 1
      %p285 = por %p283, %p284
      %p287 = scmp.ne.s32.totalorder %s270, %s286
      %p288 = scmp.eq.s32.totalorder %s26, 0
      %p289 = por %p287, %p288
      %p290 = scmp.le.s32.totalorder 1, %s20
      %p291 = scmp.lt.s32.totalorder %s20, 3
      %p292 = pnand %p290, %p291
      %p293 = pneg %p292
      // Predicated region
      $region9: #{tpu_custom_call.1} parent=5 // pred_check
        _
      $region10: #{tpu_custom_call.1} parent=5 // pred_check_branch
        %295 = sbr.rel (%p292) target = $region12
      $region11: #{tpu_custom_call.1} parent=5 // pred_region
        %s296 = ssub.s32 %s20, 1
        // Predicated region
        $region13: #{tpu_custom_call.1} parent=11 // pred_check
          %p297 = pneg %p67
        $region14: #{tpu_custom_call.1} parent=11 // pred_check_branch
          %299 = sbr.rel (%p297) target = $region16
        $region15: #{tpu_custom_call.1} parent=11 // pred_region
          _
        $region16: #{tpu_custom_call.1} parent=11 // pred_fallthru
          _
        // Predicated region
        $region17: #{tpu_custom_call.1} parent=11 // pred_check
          %p300 = pneg %p88
        $region18: #{tpu_custom_call.1} parent=11 // pred_check_branch
          %302 = sbr.rel (%p300) target = $region20
        $region19: #{tpu_custom_call.1} parent=11 // pred_region
          _
        $region20: #{tpu_custom_call.1} parent=11 // pred_fallthru
          _
        // Predicated region
        $region21: #{tpu_custom_call.1} parent=11 // pred_check
          %p303 = pneg %p109
        $region22: #{tpu_custom_call.1} parent=11 // pred_check_branch
          %305 = sbr.rel (%p303) target = $region24
        $region23: #{tpu_custom_call.1} parent=11 // pred_region
          _
        $region24: #{tpu_custom_call.1} parent=11 // pred_fallthru
          _
        // Predicated region
        $region25: #{tpu_custom_call.1} parent=11 // pred_check
          %p306 = pneg %p130
        $region26: #{tpu_custom_call.1} parent=11 // pred_check_branch
          %308 = sbr.rel (%p306) target = $region28
        $region27: #{tpu_custom_call.1} parent=11 // pred_region
          _
        $region28: #{tpu_custom_call.1} parent=11 // pred_fallthru
          _
        // Predicated region
        $region29: #{tpu_custom_call.1} parent=11 // pred_check
          %p309 = pneg %p151
        $region30: #{tpu_custom_call.1} parent=11 // pred_check_branch
          %311 = sbr.rel (%p309) target = $region32
        $region31: #{tpu_custom_call.1} parent=11 // pred_region
          _
        $region32: #{tpu_custom_call.1} parent=11 // pred_fallthru
          _
        // Predicated region
        $region33: #{tpu_custom_call.1} parent=11 // pred_check
          %p312 = pneg %p172
        $region34: #{tpu_custom_call.1} parent=11 // pred_check_branch
          %314 = sbr.rel (%p312) target = $region36
        $region35: #{tpu_custom_call.1} parent=11 // pred_region
          _
        $region36: #{tpu_custom_call.1} parent=11 // pred_fallthru
          _
        // Predicated region
        $region37: #{tpu_custom_call.1} parent=11 // pred_check
          %p315 = pneg %p193
        $region38: #{tpu_custom_call.1} parent=11 // pred_check_branch
          %317 = sbr.rel (%p315) target = $region40
        $region39: #{tpu_custom_call.1} parent=11 // pred_region
          _
        $region40: #{tpu_custom_call.1} parent=11 // pred_fallthru
          _
        // Predicated region
        $region41: #{tpu_custom_call.1} parent=11 // pred_check
          %p318 = pneg %p214
        $region42: #{tpu_custom_call.1} parent=11 // pred_check_branch
          %320 = sbr.rel (%p318) target = $region44
        $region43: #{tpu_custom_call.1} parent=11 // pred_region
          _
        $region44: #{tpu_custom_call.1} parent=11 // pred_fallthru
          _
        // Predicated region
        $region45: #{tpu_custom_call.1} parent=11 // pred_check
          %p321 = pneg %p235
        $region46: #{tpu_custom_call.1} parent=11 // pred_check_branch
          %323 = sbr.rel (%p321) target = $region48
        $region47: #{tpu_custom_call.1} parent=11 // pred_region
          _
        $region48: #{tpu_custom_call.1} parent=11 // pred_fallthru
          _
        // Predicated region
        $region49: #{tpu_custom_call.1} parent=11 // pred_check
          %p324 = pneg %p256
        $region50: #{tpu_custom_call.1} parent=11 // pred_check_branch
          %326 = sbr.rel (%p324) target = $region52
        $region51: #{tpu_custom_call.1} parent=11 // pred_region
          _
        $region52: #{tpu_custom_call.1} parent=11 // pred_fallthru
          _
      $region12: #{tpu_custom_call.1} parent=5 // pred_fallthru
        _
      %p327 = scmp.lt.s32.totalorder %s20, 2
      // Predicated region
      $region53: #{tpu_custom_call.1} parent=5 // pred_check
        %p328 = pneg %p327
      $region54: #{tpu_custom_call.1} parent=5 // pred_check_branch
        %330 = sbr.rel (%p328) target = $region56
      $region55: #{tpu_custom_call.1} parent=5 // pred_region
        // Predicated region
        $region57: #{tpu_custom_call.1} parent=55 // pred_check
          %p331 = pneg %p40
        $region58: #{tpu_custom_call.1} parent=55 // pred_check_branch
          %333 = sbr.rel (%p331) target = $region60
        $region59: #{tpu_custom_call.1} parent=55 // pred_region
          %p334 = scmp.lt.s32.totalorder %s20, 1
          %s335 = scalar_select %p334, %s20, 1
          %s336 = smul.addr %s335, 54
          %s337 = smul.addr %s336, 4
          %s338 = scalar_lea.vmem %s0, %s337
        $region60: #{tpu_custom_call.1} parent=55 // pred_fallthru
          _
      $region56: #{tpu_custom_call.1} parent=5 // pred_fallthru
        _
      %p339 = scmp.le.s32.totalorder 1, %s20
      %p340 = scmp.lt.s32.totalorder %s20, 3
      %p341 = pnand %p339, %p340
      %p342 = pneg %p341
      // Predicated region
      $region61: #{tpu_custom_call.1} parent=5 // pred_check
        _
      $region62: #{tpu_custom_call.1} parent=5 // pred_check_branch
        %344 = sbr.rel (%p341) target = $region64
      $region63: #{tpu_custom_call.1} parent=5 // pred_region
        %s345 = ssub.s32 %s20, 1
        %p346 = scmp.lt.s32.totalorder %s25, 1
        %s347 = scalar_select %p346, %s25, 1
        %s348 = smul.addr %s347, 54
        %s349 = smul.addr %s348, 4
        %s350 = scalar_lea.vmem %s0, %s349
        %p351 = pneg %p46
        %p352 = pneg %p43
        %p353 = pneg %p67
        %p354 = pneg %p64
        %p355 = pneg %p88
        %p356 = pneg %p85
        %p357 = pneg %p109
        %p358 = pneg %p106
        %p359 = pneg %p130
        %p360 = pneg %p127
        %p361 = pneg %p151
        %p362 = pneg %p148
        %p363 = pneg %p172
        %p364 = pneg %p169
        %p365 = pneg %p193
        %p366 = pneg %p190
        %p367 = pneg %p214
        %p368 = pneg %p211
        %p369 = pneg %p235
        %p370 = pneg %p232
        %p371 = pneg %p256
        %p372 = pneg %p253
        %p373 = pneg %p282
        %p374 = pneg %p279
        %s375 = sand.u32 %s269, 1
        %s376 = scalar_lea.sflag [#allocation5], %s375
        %s377 = sand.u32 %s269, 1
        %s378 = smul.addr %s377, 256
        %s379 = scalar_lea.vmem [#allocation4], %s378
        %p380 = scmp.lt.s32.totalorder %s25, 1
        %s381 = scalar_select %p380, %s25, 1
        %s382 = smul.addr %s381, 54
        %s383 = smul.addr %s382, 4
        %s384 = scalar_lea.vmem %s0, %s383
        %v386 = vld [vmem:[%s384] sm:$0xf]
        %v387 = vld [vmem:[%s384 + $0x4] sm:$0xf]
        %v388 = vld [vmem:[%s384 + $0xc] sm:$0xf]
        %v389 = vld [vmem:[%s384 + $0x10] sm:$0xf]
        %v390 = vld [vmem:[%s384 + $0x18] sm:$0xf]
        %v391 = vld [vmem:[%s384 + $0x1c] sm:$0xf]
        %v392 = vld [vmem:[%s384 + $0x24] sm:$0xf]
        %v393 = vld [vmem:[%s384 + $0x28] sm:$0xf]
        %v394 = vld [vmem:[%s384 + $0x30] sm:$0xf]
        %v395 = vld [vmem:[%s384 + $0x34] sm:$0xf]
        %v396 = vld [vmem:[%s384 + $0x3c] sm:$0xf]
        %v397 = vld [vmem:[%s384 + $0x40] sm:$0xf]
        %v398 = vld [vmem:[%s384 + $0x48] sm:$0xf]
        %v399 = vld [vmem:[%s384 + $0x4c] sm:$0xf]
        %v400 = vld [vmem:[%s384 + $0x54] sm:$0xf]
        %v401 = vld [vmem:[%s384 + $0x58] sm:$0xf]
        %v402 = vld [vmem:[%s384 + $0x60] sm:$0xf]
        %v403 = vld [vmem:[%s384 + $0x64] sm:$0xf]
        %v404 = vld [vmem:[%s384 + $0x6c] sm:$0xf]
        %v405 = vld [vmem:[%s384 + $0x70] sm:$0xf]
        %v406 = vld [vmem:[%s384 + $0x78] sm:$0xf]
        %v407 = vld [vmem:[%s384 + $0x7c] sm:$0xf]
        %v408 = vld [vmem:[%s384 + $0x84] sm:$0xf]
        %v409 = vld [vmem:[%s384 + $0x88] sm:$0xf]
        %v410 = vld [vmem:[%s384 + $0x90] sm:$0xf]
        %v411 = vld [vmem:[%s384 + $0x94] sm:$0xf]
        %v412 = vld [vmem:[%s384 + $0x9c] sm:$0xf]
        %v413 = vld [vmem:[%s384 + $0xa0] sm:$0xf]
        %v414 = vld [vmem:[%s384 + $0xa8] sm:$0xf]
        %v415 = vld [vmem:[%s384 + $0xac] sm:$0xf]
        %v416 = vld [vmem:[%s384 + $0xb4] sm:$0xf]
        %v417 = vld [vmem:[%s384 + $0xb8] sm:$0xf]
        %v418 = vld [vmem:[%s1] sm:$0xf]
        %v419 = vld [vmem:[%s1 + $0x4] sm:$0xf]
        %v420 = vld [vmem:[%s1 + $0x8] sm:$0xf]
        %v421 = vld [vmem:[%s1 + $0xc] sm:$0xf]
        %v422 = vld [vmem:[%s1 + $0x10] sm:$0xf]
        %v423 = vld [vmem:[%s1 + $0x14] sm:$0xf]
        %v424 = vld [vmem:[%s1 + $0x18] sm:$0xf]
        %v425 = vld [vmem:[%s1 + $0x1c] sm:$0xf]
        %v426 = vld [vmem:[%s1 + $0x20] sm:$0xf]
        %v427 = vld [vmem:[%s1 + $0x24] sm:$0xf]
        %v428 = vld [vmem:[%s1 + $0x28] sm:$0xf]
        %v429 = vld [vmem:[%s1 + $0x2c] sm:$0xf]
        %v430 = vld [vmem:[%s1 + $0x30] sm:$0xf]
        %v431 = vld [vmem:[%s1 + $0x34] sm:$0xf]
        %v432 = vld [vmem:[%s1 + $0x38] sm:$0xf]
        %v433 = vld [vmem:[%s1 + $0x3c] sm:$0xf]
        %v434 = vld [vmem:[%s384 + $0x8] sm:$0x1]
        %v435 = vld [vmem:[%s384 + $0x14] sm:$0x1]
        %v436 = vld [vmem:[%s384 + $0x20] sm:$0x1]
        %v437 = vld [vmem:[%s384 + $0x2c] sm:$0x1]
        %v438 = vld [vmem:[%s384 + $0x38] sm:$0x1]
        %v439 = vld [vmem:[%s384 + $0x44] sm:$0x1]
        %v440 = vld [vmem:[%s384 + $0x50] sm:$0x1]
        %v441 = vld [vmem:[%s384 + $0x5c] sm:$0x1]
        %v442 = vld [vmem:[%s384 + $0x68] sm:$0x1]
        %v443 = vld [vmem:[%s384 + $0x74] sm:$0x1]
        %v444 = vld [vmem:[%s384 + $0x80] sm:$0x1]
        %v445 = vld [vmem:[%s384 + $0x8c] sm:$0x1]
        %v446 = vld [vmem:[%s384 + $0x98] sm:$0x1]
        %v447 = vld [vmem:[%s384 + $0xa4] sm:$0x1]
        %v448 = vld [vmem:[%s384 + $0xb0] sm:$0x1]
        %v449 = vld [vmem:[%s384 + $0xbc] sm:$0x1]
        %vm450 = vsmask.f32 3328
        %vm451 = vsmask.f32 7440
        %vm452 = vmor %vm450, %vm451
        %v454 = vshrl.u32 %v386, 16
        %v456 = vrot.slane %v454, 4
        %v457 = vshll.u32 %v386, 16
        %v459 = vrot.slane %v457, 5
        %v460 = vor.u32 %v456, %v459
        %v461 = vrot.slane %v460, 4
        %v463 = vshll.u32 %v387, 16
        %v465 = vrot.slane %v463, 5
        %v466 = vsel %vm452, %v461, %v465
        %v467 = vshrl.u32 %v387, 16
        %v469 = vrot.slane %v467, 4
        %v470 = vor.u32 %v469, %v465
        %v471 = vrot.slane %v470, 4
        %v473 = vshll.u32 %v434, 16
        %v475 = vrot.slane %v473, 5
        %v476 = vsel %vm452, %v471, %v475
        %v478 = vshrl.u32 %v388, 16
        %v480 = vrot.slane %v478, 4
        %v481 = vshll.u32 %v388, 16
        %v483 = vrot.slane %v481, 5
        %v484 = vor.u32 %v480, %v483
        %v485 = vrot.slane %v484, 4
        %v487 = vshll.u32 %v389, 16
        %v489 = vrot.slane %v487, 5
        %v490 = vsel %vm452, %v485, %v489
        %v491 = vshrl.u32 %v389, 16
        %v493 = vrot.slane %v491, 4
        %v494 = vor.u32 %v493, %v489
        %v495 = vrot.slane %v494, 4
        %v497 = vshll.u32 %v435, 16
        %v499 = vrot.slane %v497, 5
        %v500 = vsel %vm452, %v495, %v499
        %v502 = vshrl.u32 %v390, 16
        %v504 = vrot.slane %v502, 4
        %v505 = vshll.u32 %v390, 16
        %v507 = vrot.slane %v505, 5
        %v508 = vor.u32 %v504, %v507
        %v509 = vrot.slane %v508, 4
        %v511 = vshll.u32 %v391, 16
        %v513 = vrot.slane %v511, 5
        %v514 = vsel %vm452, %v509, %v513
        %v515 = vshrl.u32 %v391, 16
        %v517 = vrot.slane %v515, 4
        %v518 = vor.u32 %v517, %v513
        %v519 = vrot.slane %v518, 4
        %v521 = vshll.u32 %v436, 16
        %v523 = vrot.slane %v521, 5
        %v524 = vsel %vm452, %v519, %v523
        %v526 = vshrl.u32 %v392, 16
        %v528 = vrot.slane %v526, 4
        %v529 = vshll.u32 %v392, 16
        %v531 = vrot.slane %v529, 5
        %v532 = vor.u32 %v528, %v531
        %v533 = vrot.slane %v532, 4
        %v535 = vshll.u32 %v393, 16
        %v537 = vrot.slane %v535, 5
        %v538 = vsel %vm452, %v533, %v537
        %v539 = vshrl.u32 %v393, 16
        %v541 = vrot.slane %v539, 4
        %v542 = vor.u32 %v541, %v537
        %v543 = vrot.slane %v542, 4
        %v545 = vshll.u32 %v437, 16
        %v547 = vrot.slane %v545, 5
        %v548 = vsel %vm452, %v543, %v547
        %v550 = vshrl.u32 %v394, 16
        %v552 = vrot.slane %v550, 4
        %v553 = vshll.u32 %v394, 16
        %v555 = vrot.slane %v553, 5
        %v556 = vor.u32 %v552, %v555
        %v557 = vrot.slane %v556, 4
        %v559 = vshll.u32 %v395, 16
        %v561 = vrot.slane %v559, 5
        %v562 = vsel %vm452, %v557, %v561
        %v563 = vshrl.u32 %v395, 16
        %v565 = vrot.slane %v563, 4
        %v566 = vor.u32 %v565, %v561
        %v567 = vrot.slane %v566, 4
        %v569 = vshll.u32 %v438, 16
        %v571 = vrot.slane %v569, 5
        %v572 = vsel %vm452, %v567, %v571
        %v574 = vshrl.u32 %v396, 16
        %v576 = vrot.slane %v574, 4
        %v577 = vshll.u32 %v396, 16
        %v579 = vrot.slane %v577, 5
        %v580 = vor.u32 %v576, %v579
        %v581 = vrot.slane %v580, 4
        %v583 = vshll.u32 %v397, 16
        %v585 = vrot.slane %v583, 5
        %v586 = vsel %vm452, %v581, %v585
        %v587 = vshrl.u32 %v397, 16
        %v589 = vrot.slane %v587, 4
        %v590 = vor.u32 %v589, %v585
        %v591 = vrot.slane %v590, 4
        %v593 = vshll.u32 %v439, 16
        %v595 = vrot.slane %v593, 5
        %v596 = vsel %vm452, %v591, %v595
        %v598 = vshrl.u32 %v398, 16
        %v600 = vrot.slane %v598, 4
        %v601 = vshll.u32 %v398, 16
        %v603 = vrot.slane %v601, 5
        %v604 = vor.u32 %v600, %v603
        %v605 = vrot.slane %v604, 4
        %v607 = vshll.u32 %v399, 16
        %v609 = vrot.slane %v607, 5
        %v610 = vsel %vm452, %v605, %v609
        %v611 = vshrl.u32 %v399, 16
        %v613 = vrot.slane %v611, 4
        %v614 = vor.u32 %v613, %v609
        %v615 = vrot.slane %v614, 4
        %v617 = vshll.u32 %v440, 16
        %v619 = vrot.slane %v617, 5
        %v620 = vsel %vm452, %v615, %v619
        %v622 = vshrl.u32 %v400, 16
        %v624 = vrot.slane %v622, 4
        %v625 = vshll.u32 %v400, 16
        %v627 = vrot.slane %v625, 5
        %v628 = vor.u32 %v624, %v627
        %v629 = vrot.slane %v628, 4
        %v631 = vshll.u32 %v401, 16
        %v633 = vrot.slane %v631, 5
        %v634 = vsel %vm452, %v629, %v633
        %v635 = vshrl.u32 %v401, 16
        %v637 = vrot.slane %v635, 4
        %v638 = vor.u32 %v637, %v633
        %v639 = vrot.slane %v638, 4
        %v641 = vshll.u32 %v441, 16
        %v643 = vrot.slane %v641, 5
        %v644 = vsel %vm452, %v639, %v643
        %v646 = vshrl.u32 %v402, 16
        %v648 = vrot.slane %v646, 4
        %v649 = vshll.u32 %v402, 16
        %v651 = vrot.slane %v649, 5
        %v652 = vor.u32 %v648, %v651
        %v653 = vrot.slane %v652, 4
        %v655 = vshll.u32 %v403, 16
        %v657 = vrot.slane %v655, 5
        %v658 = vsel %vm452, %v653, %v657
        %v659 = vshrl.u32 %v403, 16
        %v661 = vrot.slane %v659, 4
        %v662 = vor.u32 %v661, %v657
        %v663 = vrot.slane %v662, 4
        %v665 = vshll.u32 %v442, 16
        %v667 = vrot.slane %v665, 5
        %v668 = vsel %vm452, %v663, %v667
        %v670 = vshrl.u32 %v404, 16
        %v672 = vrot.slane %v670, 4
        %v673 = vshll.u32 %v404, 16
        %v675 = vrot.slane %v673, 5
        %v676 = vor.u32 %v672, %v675
        %v677 = vrot.slane %v676, 4
        %v679 = vshll.u32 %v405, 16
        %v681 = vrot.slane %v679, 5
        %v682 = vsel %vm452, %v677, %v681
        %v683 = vshrl.u32 %v405, 16
        %v685 = vrot.slane %v683, 4
        %v686 = vor.u32 %v685, %v681
        %v687 = vrot.slane %v686, 4
        %v689 = vshll.u32 %v443, 16
        %v691 = vrot.slane %v689, 5
        %v692 = vsel %vm452, %v687, %v691
        %v694 = vshrl.u32 %v406, 16
        %v696 = vrot.slane %v694, 4
        %v697 = vshll.u32 %v406, 16
        %v699 = vrot.slane %v697, 5
        %v700 = vor.u32 %v696, %v699
        %v701 = vrot.slane %v700, 4
        %v703 = vshll.u32 %v407, 16
        %v705 = vrot.slane %v703, 5
        %v706 = vsel %vm452, %v701, %v705
        %v707 = vshrl.u32 %v407, 16
        %v709 = vrot.slane %v707, 4
        %v710 = vor.u32 %v709, %v705
        %v711 = vrot.slane %v710, 4
        %v713 = vshll.u32 %v444, 16
        %v715 = vrot.slane %v713, 5
        %v716 = vsel %vm452, %v711, %v715
        %v718 = vshrl.u32 %v408, 16
        %v720 = vrot.slane %v718, 4
        %v721 = vshll.u32 %v408, 16
        %v723 = vrot.slane %v721, 5
        %v724 = vor.u32 %v720, %v723
        %v725 = vrot.slane %v724, 4
        %v727 = vshll.u32 %v409, 16
        %v729 = vrot.slane %v727, 5
        %v730 = vsel %vm452, %v725, %v729
        %v731 = vshrl.u32 %v409, 16
        %v733 = vrot.slane %v731, 4
        %v734 = vor.u32 %v733, %v729
        %v735 = vrot.slane %v734, 4
        %v737 = vshll.u32 %v445, 16
        %v739 = vrot.slane %v737, 5
        %v740 = vsel %vm452, %v735, %v739
        %v742 = vshrl.u32 %v410, 16
        %v744 = vrot.slane %v742, 4
        %v745 = vshll.u32 %v410, 16
        %v747 = vrot.slane %v745, 5
        %v748 = vor.u32 %v744, %v747
        %v749 = vrot.slane %v748, 4
        %v751 = vshll.u32 %v411, 16
        %v753 = vrot.slane %v751, 5
        %v754 = vsel %vm452, %v749, %v753
        %v755 = vshrl.u32 %v411, 16
        %v757 = vrot.slane %v755, 4
        %v758 = vor.u32 %v757, %v753
        %v759 = vrot.slane %v758, 4
        %v761 = vshll.u32 %v446, 16
        %v763 = vrot.slane %v761, 5
        %v764 = vsel %vm452, %v759, %v763
        %v766 = vshrl.u32 %v412, 16
        %v768 = vrot.slane %v766, 4
        %v769 = vshll.u32 %v412, 16
        %v771 = vrot.slane %v769, 5
        %v772 = vor.u32 %v768, %v771
        %v773 = vrot.slane %v772, 4
        %v775 = vshll.u32 %v413, 16
        %v777 = vrot.slane %v775, 5
        %v778 = vsel %vm452, %v773, %v777
        %v779 = vshrl.u32 %v413, 16
        %v781 = vrot.slane %v779, 4
        %v782 = vor.u32 %v781, %v777
        %v783 = vrot.slane %v782, 4
        %v785 = vshll.u32 %v447, 16
        %v787 = vrot.slane %v785, 5
        %v788 = vsel %vm452, %v783, %v787
        %v790 = vshrl.u32 %v414, 16
        %v792 = vrot.slane %v790, 4
        %v793 = vshll.u32 %v414, 16
        %v795 = vrot.slane %v793, 5
        %v796 = vor.u32 %v792, %v795
        %v797 = vrot.slane %v796, 4
        %v799 = vshll.u32 %v415, 16
        %v801 = vrot.slane %v799, 5
        %v802 = vsel %vm452, %v797, %v801
        %v803 = vshrl.u32 %v415, 16
        %v805 = vrot.slane %v803, 4
        %v806 = vor.u32 %v805, %v801
        %v807 = vrot.slane %v806, 4
        %v809 = vshll.u32 %v448, 16
        %v811 = vrot.slane %v809, 5
        %v812 = vsel %vm452, %v807, %v811
        %v814 = vshrl.u32 %v416, 16
        %v816 = vrot.slane %v814, 4
        %v817 = vshll.u32 %v416, 16
        %v819 = vrot.slane %v817, 5
        %v820 = vor.u32 %v816, %v819
        %v821 = vrot.slane %v820, 4
        %v823 = vshll.u32 %v417, 16
        %v825 = vrot.slane %v823, 5
        %v826 = vsel %vm452, %v821, %v825
        %v827 = vshrl.u32 %v417, 16
        %v829 = vrot.slane %v827, 4
        %v830 = vor.u32 %v829, %v825
        %v831 = vrot.slane %v830, 4
        %v833 = vshll.u32 %v449, 16
        %v835 = vrot.slane %v833, 5
        %v836 = vsel %vm452, %v831, %v835
        %s837 = scalar_lea.vmem %s1, 64
        %v838 = vld [vmem:[%s837] sm:$0xf]
        %v839 = vld [vmem:[%s837 + $0x4] sm:$0xf]
        %v840 = vld [vmem:[%s837 + $0x8] sm:$0xf]
        %v841 = vld [vmem:[%s837 + $0xc] sm:$0xf]
        %v842 = vld [vmem:[%s837 + $0x10] sm:$0xf]
        %v843 = vld [vmem:[%s837 + $0x14] sm:$0xf]
        %v844 = vld [vmem:[%s837 + $0x18] sm:$0xf]
        %v845 = vld [vmem:[%s837 + $0x1c] sm:$0xf]
        %v846 = vld [vmem:[%s837 + $0x20] sm:$0xf]
        %v847 = vld [vmem:[%s837 + $0x24] sm:$0xf]
        %v848 = vld [vmem:[%s837 + $0x28] sm:$0xf]
        %v849 = vld [vmem:[%s837 + $0x2c] sm:$0xf]
        %v850 = vld [vmem:[%s837 + $0x30] sm:$0xf]
        %v851 = vld [vmem:[%s837 + $0x34] sm:$0xf]
        %v852 = vld [vmem:[%s837 + $0x38] sm:$0xf]
        %v853 = vld [vmem:[%s837 + $0x3c] sm:$0xf]
        %v854 = vunpack.c.l.b16 %v466
        %v855 = vunpack.c.l.b16 %v476
        %v856 = vunpack.c.l.b16 %v490
        %v857 = vunpack.c.l.b16 %v500
        %v858 = vunpack.c.l.b16 %v514
        %v859 = vunpack.c.l.b16 %v524
        %v860 = vunpack.c.l.b16 %v538
        %v861 = vunpack.c.l.b16 %v548
        %v862 = vunpack.c.l.b16 %v562
        %v863 = vunpack.c.l.b16 %v572
        %v864 = vunpack.c.l.b16 %v586
        %v865 = vunpack.c.l.b16 %v596
        %v866 = vunpack.c.l.b16 %v610
        %v867 = vunpack.c.l.b16 %v620
        %v868 = vunpack.c.l.b16 %v634
        %v869 = vunpack.c.l.b16 %v644
        %v870 = vunpack.c.l.b16 %v658
        %v871 = vunpack.c.l.b16 %v668
        %v872 = vunpack.c.l.b16 %v682
        %v873 = vunpack.c.l.b16 %v692
        %v874 = vunpack.c.l.b16 %v706
        %v875 = vunpack.c.l.b16 %v716
        %v876 = vunpack.c.l.b16 %v730
        %v877 = vunpack.c.l.b16 %v740
        %v878 = vunpack.c.l.b16 %v754
        %v879 = vunpack.c.l.b16 %v764
        %v880 = vunpack.c.l.b16 %v778
        %v881 = vunpack.c.l.b16 %v788
        %v882 = vunpack.c.l.b16 %v802
        %v883 = vunpack.c.l.b16 %v812
        %v884 = vunpack.c.l.b16 %v826
        %v885 = vunpack.c.l.b16 %v836
        %v886 = vpack.c.b16 %v855, %v854
        %v887 = vpack.c.b16 %v857, %v856
        %v888 = vpack.c.b16 %v859, %v858
        %v889 = vpack.c.b16 %v861, %v860
        %v890 = vpack.c.b16 %v863, %v862
        %v891 = vpack.c.b16 %v865, %v864
        %v892 = vpack.c.b16 %v867, %v866
        %v893 = vpack.c.b16 %v869, %v868
        %v894 = vpack.c.b16 %v871, %v870
        %v895 = vpack.c.b16 %v873, %v872
        %v896 = vpack.c.b16 %v875, %v874
        %v897 = vpack.c.b16 %v877, %v876
        %v898 = vpack.c.b16 %v879, %v878
        %v899 = vpack.c.b16 %v881, %v880
        %v900 = vpack.c.b16 %v883, %v882
        %v901 = vpack.c.b16 %v885, %v884
        %v934 = vunpack.c.l.b16 %v838
        %v935 = vunpack.c.l.b16 %v839
        %v936 = vunpack.c.l.b16 %v840
        %v937 = vunpack.c.l.b16 %v841
        %v938 = vunpack.c.l.b16 %v842
        %v939 = vunpack.c.l.b16 %v843
        %v940 = vunpack.c.l.b16 %v844
        %v941 = vunpack.c.l.b16 %v845
        %v942 = vunpack.c.l.b16 %v846
        %v943 = vunpack.c.l.b16 %v847
        %v944 = vunpack.c.l.b16 %v848
        %v945 = vunpack.c.l.b16 %v849
        %v946 = vunpack.c.l.b16 %v850
        %v947 = vunpack.c.l.b16 %v851
        %v948 = vunpack.c.l.b16 %v852
        %v949 = vunpack.c.l.b16 %v853
        %v950 = vpack.c.b16 %v935, %v934
        %v951 = vpack.c.b16 %v937, %v936
        %v952 = vpack.c.b16 %v939, %v938
        %v953 = vpack.c.b16 %v941, %v940
        %v954 = vpack.c.b16 %v943, %v942
        %v955 = vpack.c.b16 %v945, %v944
        %v956 = vpack.c.b16 %v947, %v946
        %v957 = vpack.c.b16 %v949, %v948
        %966 = vmatprep.subr.bf16.mxu0 0
        %967 = vmatpush1.bf16.msra.mxu0 %v957
        %968 = vmatprep.subr.bf16.mxu0 0
        %969 = vmatpush1.bf16.msra.mxu0 %v956
        %970 = vmatprep.subr.bf16.mxu0 0
        %971 = vmatpush1.bf16.msra.mxu0 %v955
        %972 = vmatprep.subr.bf16.mxu0 0
        %973 = vmatpush1.bf16.msra.mxu0 %v954
        %974 = vmatprep.subr.bf16.mxu0 0
        %975 = vmatpush1.bf16.msra.mxu0 %v953
        %976 = vmatprep.subr.bf16.mxu0 0
        %977 = vmatpush1.bf16.msra.mxu0 %v952
        %978 = vmatprep.subr.bf16.mxu0 0
        %979 = vmatpush1.bf16.msra.mxu0 %v951
        %980 = vmatprep.subr.bf16.mxu0 0
        %981 = vmatpush1.bf16.msra.mxu0 %v950
        %982 = vmatprep.subr.bf16.mxu0 0
        %983 = vmatpush2.bf16.msra.mxu0 0
        %984 = vmatprep.subr.bf16.mxu0 0
        %985 = vmatpush2.bf16.msra.mxu0 0
        %986 = vmatprep.subr.bf16.mxu0 0
        %987 = vmatpush2.bf16.msra.mxu0 0
        %988 = vmatprep.subr.bf16.mxu0 0
        %989 = vmatpush2.bf16.msra.mxu0 0
        %990 = vmatprep.subr.bf16.mxu0 0
        %991 = vmatpush2.bf16.msra.mxu0 0
        %992 = vmatprep.subr.bf16.mxu0 0
        %993 = vmatpush2.bf16.msra.mxu0 0
        %994 = vmatprep.subr.bf16.mxu0 0
        %995 = vmatpush2.bf16.msra.mxu0 0
        %996 = vmatprep.subr.bf16.mxu0 0
        %997 = vmatpush2.bf16.msra.mxu0 0
        %998 = vmatprep.mubr.bf16.mxu0 0
        %999 = vmatmul.mubr.bf16.gmra.mxu0 %v886
        %v1000 = vpop.f32.mrf.mxu0
        %v1001 = vadd.f32 0.0, %v1000
        %v1002 = vpop.f32.mrf.mxu0
        %v1003 = vpop.f32.mrf.mxu0
        %v1004 = vadd.f32 0.0, %v1003
        %v1005 = vpop.f32.mrf.mxu0
        %1006 = vmatprep.mubr.bf16.mxu0 0
        %1007 = vmatmul.mubr.bf16.gmra.mxu0 %v887
        %v1008 = vpop.f32.mrf.mxu0
        %v1009 = vadd.f32 0.0, %v1008
        %v1010 = vpop.f32.mrf.mxu0
        %v1011 = vpop.f32.mrf.mxu0
        %v1012 = vadd.f32 0.0, %v1011
        %v1013 = vpop.f32.mrf.mxu0
        %1014 = vmatprep.mubr.bf16.mxu0 0
        %1015 = vmatmul.mubr.bf16.gmra.mxu0 %v888
        %v1016 = vpop.f32.mrf.mxu0
        %v1017 = vadd.f32 0.0, %v1016
        %v1018 = vpop.f32.mrf.mxu0
        %v1019 = vpop.f32.mrf.mxu0
        %v1020 = vadd.f32 0.0, %v1019
        %v1021 = vpop.f32.mrf.mxu0
        %1022 = vmatprep.mubr.bf16.mxu0 0
        %1023 = vmatmul.mubr.bf16.gmra.mxu0 %v889
        %v1024 = vpop.f32.mrf.mxu0
        %v1025 = vadd.f32 0.0, %v1024
        %v1026 = vpop.f32.mrf.mxu0
        %v1027 = vpop.f32.mrf.mxu0
        %v1028 = vadd.f32 0.0, %v1027
        %v1029 = vpop.f32.mrf.mxu0
        %1030 = vmatprep.mubr.bf16.mxu0 0
        %1031 = vmatmul.mubr.bf16.gmra.mxu0 %v890
        %v1032 = vpop.f32.mrf.mxu0
        %v1033 = vadd.f32 0.0, %v1032
        %v1034 = vpop.f32.mrf.mxu0
        %v1035 = vpop.f32.mrf.mxu0
        %v1036 = vadd.f32 0.0, %v1035
        %v1037 = vpop.f32.mrf.mxu0
        %1038 = vmatprep.mubr.bf16.mxu0 0
        %1039 = vmatmul.mubr.bf16.gmra.mxu0 %v891
        %v1040 = vpop.f32.mrf.mxu0
        %v1041 = vadd.f32 0.0, %v1040
        %v1042 = vpop.f32.mrf.mxu0
        %v1043 = vpop.f32.mrf.mxu0
        %v1044 = vadd.f32 0.0, %v1043
        %v1045 = vpop.f32.mrf.mxu0
        %1046 = vmatprep.mubr.bf16.mxu0 0
        %1047 = vmatmul.mubr.bf16.gmra.mxu0 %v892
        %v1048 = vpop.f32.mrf.mxu0
        %v1049 = vadd.f32 0.0, %v1048
        %v1050 = vpop.f32.mrf.mxu0
        %v1051 = vpop.f32.mrf.mxu0
        %v1052 = vadd.f32 0.0, %v1051
        %v1053 = vpop.f32.mrf.mxu0
        %1054 = vmatprep.mubr.bf16.mxu0 0
        %1055 = vmatmul.mubr.bf16.gmra.mxu0 %v893
        %v1056 = vpop.f32.mrf.mxu0
        %v1057 = vadd.f32 0.0, %v1056
        %v1058 = vpop.f32.mrf.mxu0
        %v1059 = vpop.f32.mrf.mxu0
        %v1060 = vadd.f32 0.0, %v1059
        %v1061 = vpop.f32.mrf.mxu0
        %1062 = vmatprep.mubr.bf16.mxu0 0
        %1063 = vmatmul.mubr.bf16.gmra.mxu0 %v894
        %v1064 = vpop.f32.mrf.mxu0
        %v1065 = vadd.f32 0.0, %v1064
        %v1066 = vpop.f32.mrf.mxu0
        %v1067 = vpop.f32.mrf.mxu0
        %v1068 = vadd.f32 0.0, %v1067
        %v1069 = vpop.f32.mrf.mxu0
        %1070 = vmatprep.mubr.bf16.mxu0 0
        %1071 = vmatmul.mubr.bf16.gmra.mxu0 %v895
        %v1072 = vpop.f32.mrf.mxu0
        %v1073 = vadd.f32 0.0, %v1072
        %v1074 = vpop.f32.mrf.mxu0
        %v1075 = vpop.f32.mrf.mxu0
        %v1076 = vadd.f32 0.0, %v1075
        %v1077 = vpop.f32.mrf.mxu0
        %1078 = vmatprep.mubr.bf16.mxu0 0
        %1079 = vmatmul.mubr.bf16.gmra.mxu0 %v896
        %v1080 = vpop.f32.mrf.mxu0
        %v1081 = vadd.f32 0.0, %v1080
        %v1082 = vpop.f32.mrf.mxu0
        %v1083 = vpop.f32.mrf.mxu0
        %v1084 = vadd.f32 0.0, %v1083
        %v1085 = vpop.f32.mrf.mxu0
        %1086 = vmatprep.mubr.bf16.mxu0 0
        %1087 = vmatmul.mubr.bf16.gmra.mxu0 %v897
        %v1088 = vpop.f32.mrf.mxu0
        %v1089 = vadd.f32 0.0, %v1088
        %v1090 = vpop.f32.mrf.mxu0
        %v1091 = vpop.f32.mrf.mxu0
        %v1092 = vadd.f32 0.0, %v1091
        %v1093 = vpop.f32.mrf.mxu0
        %1094 = vmatprep.mubr.bf16.mxu0 0
        %1095 = vmatmul.mubr.bf16.gmra.mxu0 %v898
        %v1096 = vpop.f32.mrf.mxu0
        %v1097 = vadd.f32 0.0, %v1096
        %v1098 = vpop.f32.mrf.mxu0
        %v1099 = vpop.f32.mrf.mxu0
        %v1100 = vadd.f32 0.0, %v1099
        %v1101 = vpop.f32.mrf.mxu0
        %1102 = vmatprep.mubr.bf16.mxu0 0
        %1103 = vmatmul.mubr.bf16.gmra.mxu0 %v899
        %v1104 = vpop.f32.mrf.mxu0
        %v1105 = vadd.f32 0.0, %v1104
        %v1106 = vpop.f32.mrf.mxu0
        %v1107 = vpop.f32.mrf.mxu0
        %v1108 = vadd.f32 0.0, %v1107
        %v1109 = vpop.f32.mrf.mxu0
        %1110 = vmatprep.mubr.bf16.mxu0 0
        %1111 = vmatmul.mubr.bf16.gmra.mxu0 %v900
        %v1112 = vpop.f32.mrf.mxu0
        %v1113 = vadd.f32 0.0, %v1112
        %v1114 = vpop.f32.mrf.mxu0
        %v1115 = vpop.f32.mrf.mxu0
        %v1116 = vadd.f32 0.0, %v1115
        %v1117 = vpop.f32.mrf.mxu0
        %1118 = vmatprep.mubr.bf16.mxu0 0
        %1119 = vmatmul.mubr.bf16.gmra.mxu0 %v901
        %v1120 = vpop.f32.mrf.mxu0
        %v1121 = vadd.f32 0.0, %v1120
        %v1122 = vpop.f32.mrf.mxu0
        %v1123 = vpop.f32.mrf.mxu0
        %v1124 = vadd.f32 0.0, %v1123
        %v1125 = vpop.f32.mrf.mxu0
        %1126 = vdwg.mxu0
        %v1159 = vunpack.c.l.b16 %v386
        %v1160 = vunpack.c.l.b16 %v387
        %v1161 = vunpack.c.l.b16 %v388
        %v1162 = vunpack.c.l.b16 %v389
        %v1163 = vunpack.c.l.b16 %v390
        %v1164 = vunpack.c.l.b16 %v391
        %v1165 = vunpack.c.l.b16 %v392
        %v1166 = vunpack.c.l.b16 %v393
        %v1167 = vunpack.c.l.b16 %v394
        %v1168 = vunpack.c.l.b16 %v395
        %v1169 = vunpack.c.l.b16 %v396
        %v1170 = vunpack.c.l.b16 %v397
        %v1171 = vunpack.c.l.b16 %v398
        %v1172 = vunpack.c.l.b16 %v399
        %v1173 = vunpack.c.l.b16 %v400
        %v1174 = vunpack.c.l.b16 %v401
        %v1175 = vunpack.c.l.b16 %v402
        %v1176 = vunpack.c.l.b16 %v403
        %v1177 = vunpack.c.l.b16 %v404
        %v1178 = vunpack.c.l.b16 %v405
        %v1179 = vunpack.c.l.b16 %v406
        %v1180 = vunpack.c.l.b16 %v407
        %v1181 = vunpack.c.l.b16 %v408
        %v1182 = vunpack.c.l.b16 %v409
        %v1183 = vunpack.c.l.b16 %v410
        %v1184 = vunpack.c.l.b16 %v411
        %v1185 = vunpack.c.l.b16 %v412
        %v1186 = vunpack.c.l.b16 %v413
        %v1187 = vunpack.c.l.b16 %v414
        %v1188 = vunpack.c.l.b16 %v415
        %v1189 = vunpack.c.l.b16 %v416
        %v1190 = vunpack.c.l.b16 %v417
        %v1191 = vpack.c.b16 %v1160, %v1159
        %v1192 = vpack.c.b16 %v1162, %v1161
        %v1193 = vpack.c.b16 %v1164, %v1163
        %v1194 = vpack.c.b16 %v1166, %v1165
        %v1195 = vpack.c.b16 %v1168, %v1167
        %v1196 = vpack.c.b16 %v1170, %v1169
        %v1197 = vpack.c.b16 %v1172, %v1171
        %v1198 = vpack.c.b16 %v1174, %v1173
        %v1199 = vpack.c.b16 %v1176, %v1175
        %v1200 = vpack.c.b16 %v1178, %v1177
        %v1201 = vpack.c.b16 %v1180, %v1179
        %v1202 = vpack.c.b16 %v1182, %v1181
        %v1203 = vpack.c.b16 %v1184, %v1183
        %v1204 = vpack.c.b16 %v1186, %v1185
        %v1205 = vpack.c.b16 %v1188, %v1187
        %v1206 = vpack.c.b16 %v1190, %v1189
        %v1239 = vunpack.c.l.b16 %v418
        %v1240 = vunpack.c.l.b16 %v419
        %v1241 = vunpack.c.l.b16 %v420
        %v1242 = vunpack.c.l.b16 %v421
        %v1243 = vunpack.c.l.b16 %v422
        %v1244 = vunpack.c.l.b16 %v423
        %v1245 = vunpack.c.l.b16 %v424
        %v1246 = vunpack.c.l.b16 %v425
        %v1247 = vunpack.c.l.b16 %v426
        %v1248 = vunpack.c.l.b16 %v427
        %v1249 = vunpack.c.l.b16 %v428
        %v1250 = vunpack.c.l.b16 %v429
        %v1251 = vunpack.c.l.b16 %v430
        %v1252 = vunpack.c.l.b16 %v431
        %v1253 = vunpack.c.l.b16 %v432
        %v1254 = vunpack.c.l.b16 %v433
        %v1255 = vpack.c.b16 %v1240, %v1239
        %v1256 = vpack.c.b16 %v1242, %v1241
        %v1257 = vpack.c.b16 %v1244, %v1243
        %v1258 = vpack.c.b16 %v1246, %v1245
        %v1259 = vpack.c.b16 %v1248, %v1247
        %v1260 = vpack.c.b16 %v1250, %v1249
        %v1261 = vpack.c.b16 %v1252, %v1251
        %v1262 = vpack.c.b16 %v1254, %v1253
        %1271 = vmatprep.subr.bf16.mxu0 0
        %1272 = vmatpush1.bf16.msra.mxu0 %v1262
        %1273 = vmatprep.subr.bf16.mxu0 0
        %1274 = vmatpush1.bf16.msra.mxu0 %v1261
        %1275 = vmatprep.subr.bf16.mxu0 0
        %1276 = vmatpush1.bf16.msra.mxu0 %v1260
        %1277 = vmatprep.subr.bf16.mxu0 0
        %1278 = vmatpush1.bf16.msra.mxu0 %v1259
        %1279 = vmatprep.subr.bf16.mxu0 0
        %1280 = vmatpush1.bf16.msra.mxu0 %v1258
        %1281 = vmatprep.subr.bf16.mxu0 0
        %1282 = vmatpush1.bf16.msra.mxu0 %v1257
        %1283 = vmatprep.subr.bf16.mxu0 0
        %1284 = vmatpush1.bf16.msra.mxu0 %v1256
        %1285 = vmatprep.subr.bf16.mxu0 0
        %1286 = vmatpush1.bf16.msra.mxu0 %v1255
        %1287 = vmatprep.subr.bf16.mxu0 0
        %1288 = vmatpush2.bf16.msra.mxu0 0
        %1289 = vmatprep.subr.bf16.mxu0 0
        %1290 = vmatpush2.bf16.msra.mxu0 0
        %1291 = vmatprep.subr.bf16.mxu0 0
        %1292 = vmatpush2.bf16.msra.mxu0 0
        %1293 = vmatprep.subr.bf16.mxu0 0
        %1294 = vmatpush2.bf16.msra.mxu0 0
        %1295 = vmatprep.subr.bf16.mxu0 0
        %1296 = vmatpush2.bf16.msra.mxu0 0
        %1297 = vmatprep.subr.bf16.mxu0 0
        %1298 = vmatpush2.bf16.msra.mxu0 0
        %1299 = vmatprep.subr.bf16.mxu0 0
        %1300 = vmatpush2.bf16.msra.mxu0 0
        %1301 = vmatprep.subr.bf16.mxu0 0
        %1302 = vmatpush2.bf16.msra.mxu0 0
        %1303 = vmatprep.mubr.bf16.mxu0 0
        %1304 = vmatmul.mubr.bf16.gmra.mxu0 %v1191
        %v1305 = vpop.f32.mrf.mxu0
        %v1306 = vadd.f32 %v1001, %v1305
        %v1307 = vpop.f32.mrf.mxu0
        %v1308 = vpop.f32.mrf.mxu0
        %v1309 = vadd.f32 %v1004, %v1308
        %v1310 = vpop.f32.mrf.mxu0
        %1311 = vmatprep.mubr.bf16.mxu0 0
        %1312 = vmatmul.mubr.bf16.gmra.mxu0 %v1192
        %v1313 = vpop.f32.mrf.mxu0
        %v1314 = vadd.f32 %v1009, %v1313
        %v1315 = vpop.f32.mrf.mxu0
        %v1316 = vpop.f32.mrf.mxu0
        %v1317 = vadd.f32 %v1012, %v1316
        %v1318 = vpop.f32.mrf.mxu0
        %1319 = vmatprep.mubr.bf16.mxu0 0
        %1320 = vmatmul.mubr.bf16.gmra.mxu0 %v1193
        %v1321 = vpop.f32.mrf.mxu0
        %v1322 = vadd.f32 %v1017, %v1321
        %v1323 = vpop.f32.mrf.mxu0
        %v1324 = vpop.f32.mrf.mxu0
        %v1325 = vadd.f32 %v1020, %v1324
        %v1326 = vpop.f32.mrf.mxu0
        %1327 = vmatprep.mubr.bf16.mxu0 0
        %1328 = vmatmul.mubr.bf16.gmra.mxu0 %v1194
        %v1329 = vpop.f32.mrf.mxu0
        %v1330 = vadd.f32 %v1025, %v1329
        %v1331 = vpop.f32.mrf.mxu0
        %v1332 = vpop.f32.mrf.mxu0
        %v1333 = vadd.f32 %v1028, %v1332
        %v1334 = vpop.f32.mrf.mxu0
        %1335 = vmatprep.mubr.bf16.mxu0 0
        %1336 = vmatmul.mubr.bf16.gmra.mxu0 %v1195
        %v1337 = vpop.f32.mrf.mxu0
        %v1338 = vadd.f32 %v1033, %v1337
        %v1339 = vpop.f32.mrf.mxu0
        %v1340 = vpop.f32.mrf.mxu0
        %v1341 = vadd.f32 %v1036, %v1340
        %v1342 = vpop.f32.mrf.mxu0
        %1343 = vmatprep.mubr.bf16.mxu0 0
        %1344 = vmatmul.mubr.bf16.gmra.mxu0 %v1196
        %v1345 = vpop.f32.mrf.mxu0
        %v1346 = vadd.f32 %v1041, %v1345
        %v1347 = vpop.f32.mrf.mxu0
        %v1348 = vpop.f32.mrf.mxu0
        %v1349 = vadd.f32 %v1044, %v1348
        %v1350 = vpop.f32.mrf.mxu0
        %1351 = vmatprep.mubr.bf16.mxu0 0
        %1352 = vmatmul.mubr.bf16.gmra.mxu0 %v1197
        %v1353 = vpop.f32.mrf.mxu0
        %v1354 = vadd.f32 %v1049, %v1353
        %v1355 = vpop.f32.mrf.mxu0
        %v1356 = vpop.f32.mrf.mxu0
        %v1357 = vadd.f32 %v1052, %v1356
        %v1358 = vpop.f32.mrf.mxu0
        %1359 = vmatprep.mubr.bf16.mxu0 0
        %1360 = vmatmul.mubr.bf16.gmra.mxu0 %v1198
        %v1361 = vpop.f32.mrf.mxu0
        %v1362 = vadd.f32 %v1057, %v1361
        %v1363 = vpop.f32.mrf.mxu0
        %v1364 = vpop.f32.mrf.mxu0
        %v1365 = vadd.f32 %v1060, %v1364
        %v1366 = vpop.f32.mrf.mxu0
        %1367 = vmatprep.mubr.bf16.mxu0 0
        %1368 = vmatmul.mubr.bf16.gmra.mxu0 %v1199
        %v1369 = vpop.f32.mrf.mxu0
        %v1370 = vadd.f32 %v1065, %v1369
        %v1371 = vpop.f32.mrf.mxu0
        %v1372 = vpop.f32.mrf.mxu0
        %v1373 = vadd.f32 %v1068, %v1372
        %v1374 = vpop.f32.mrf.mxu0
        %1375 = vmatprep.mubr.bf16.mxu0 0
        %1376 = vmatmul.mubr.bf16.gmra.mxu0 %v1200
        %v1377 = vpop.f32.mrf.mxu0
        %v1378 = vadd.f32 %v1073, %v1377
        %v1379 = vpop.f32.mrf.mxu0
        %v1380 = vpop.f32.mrf.mxu0
        %v1381 = vadd.f32 %v1076, %v1380
        %v1382 = vpop.f32.mrf.mxu0
        %1383 = vmatprep.mubr.bf16.mxu0 0
        %1384 = vmatmul.mubr.bf16.gmra.mxu0 %v1201
        %v1385 = vpop.f32.mrf.mxu0
        %v1386 = vadd.f32 %v1081, %v1385
        %v1387 = vpop.f32.mrf.mxu0
        %v1388 = vpop.f32.mrf.mxu0
        %v1389 = vadd.f32 %v1084, %v1388
        %v1390 = vpop.f32.mrf.mxu0
        %1391 = vmatprep.mubr.bf16.mxu0 0
        %1392 = vmatmul.mubr.bf16.gmra.mxu0 %v1202
        %v1393 = vpop.f32.mrf.mxu0
        %v1394 = vadd.f32 %v1089, %v1393
        %v1395 = vpop.f32.mrf.mxu0
        %v1396 = vpop.f32.mrf.mxu0
        %v1397 = vadd.f32 %v1092, %v1396
        %v1398 = vpop.f32.mrf.mxu0
        %1399 = vmatprep.mubr.bf16.mxu0 0
        %1400 = vmatmul.mubr.bf16.gmra.mxu0 %v1203
        %v1401 = vpop.f32.mrf.mxu0
        %v1402 = vadd.f32 %v1097, %v1401
        %v1403 = vpop.f32.mrf.mxu0
        %v1404 = vpop.f32.mrf.mxu0
        %v1405 = vadd.f32 %v1100, %v1404
        %v1406 = vpop.f32.mrf.mxu0
        %1407 = vmatprep.mubr.bf16.mxu0 0
        %1408 = vmatmul.mubr.bf16.gmra.mxu0 %v1204
        %v1409 = vpop.f32.mrf.mxu0
        %v1410 = vadd.f32 %v1105, %v1409
        %v1411 = vpop.f32.mrf.mxu0
        %v1412 = vpop.f32.mrf.mxu0
        %v1413 = vadd.f32 %v1108, %v1412
        %v1414 = vpop.f32.mrf.mxu0
        %1415 = vmatprep.mubr.bf16.mxu0 0
        %1416 = vmatmul.mubr.bf16.gmra.mxu0 %v1205
        %v1417 = vpop.f32.mrf.mxu0
        %v1418 = vadd.f32 %v1113, %v1417
        %v1419 = vpop.f32.mrf.mxu0
        %v1420 = vpop.f32.mrf.mxu0
        %v1421 = vadd.f32 %v1116, %v1420
        %v1422 = vpop.f32.mrf.mxu0
        %1423 = vmatprep.mubr.bf16.mxu0 0
        %1424 = vmatmul.mubr.bf16.gmra.mxu0 %v1206
        %v1425 = vpop.f32.mrf.mxu0
        %v1426 = vadd.f32 %v1121, %v1425
        %v1427 = vpop.f32.mrf.mxu0
        %v1428 = vpop.f32.mrf.mxu0
        %v1429 = vadd.f32 %v1124, %v1428
        %v1430 = vpop.f32.mrf.mxu0
        %1431 = vdwg.mxu0
        %v1432 = vld [vmem:[%s384] sm:$0xe]
        %v1433 = vld [vmem:[%s384 + $0xc] sm:$0xe]
        %v1434 = vld [vmem:[%s384 + $0x18] sm:$0xe]
        %v1435 = vld [vmem:[%s384 + $0x24] sm:$0xe]
        %v1436 = vld [vmem:[%s384 + $0x30] sm:$0xe]
        %v1437 = vld [vmem:[%s384 + $0x3c] sm:$0xe]
        %v1438 = vld [vmem:[%s384 + $0x48] sm:$0xe]
        %v1439 = vld [vmem:[%s384 + $0x54] sm:$0xe]
        %v1440 = vld [vmem:[%s384 + $0x60] sm:$0xe]
        %v1441 = vld [vmem:[%s384 + $0x6c] sm:$0xe]
        %v1442 = vld [vmem:[%s384 + $0x78] sm:$0xe]
        %v1443 = vld [vmem:[%s384 + $0x84] sm:$0xe]
        %v1444 = vld [vmem:[%s384 + $0x90] sm:$0xe]
        %v1445 = vld [vmem:[%s384 + $0x9c] sm:$0xe]
        %v1446 = vld [vmem:[%s384 + $0xa8] sm:$0xe]
        %v1447 = vld [vmem:[%s384 + $0xb4] sm:$0xe]
        %vm1480 = vcmask 1042432
        %vm1481 = vcmask 1046532
        %vm1482 = vmor %vm1480, %vm1481
        %v1483 = vrot.slane %v1432, 5
        %v1484 = vrot.slane %v1483, 4
        %v1485 = vrot.slane %v387, 5
        %v1486 = vsel %vm1482, %v1484, %v1485
        %v1487 = vrot.slane %v1485, 4
        %v1488 = vrot.slane %v434, 5
        %v1489 = vsel %vm1482, %v1487, %v1488
        %v1490 = vrot.slane %v1433, 5
        %v1491 = vrot.slane %v1490, 4
        %v1492 = vrot.slane %v389, 5
        %v1493 = vsel %vm1482, %v1491, %v1492
        %v1494 = vrot.slane %v1492, 4
        %v1495 = vrot.slane %v435, 5
        %v1496 = vsel %vm1482, %v1494, %v1495
        %v1497 = vrot.slane %v1434, 5
        %v1498 = vrot.slane %v1497, 4
        %v1499 = vrot.slane %v391, 5
        %v1500 = vsel %vm1482, %v1498, %v1499
        %v1501 = vrot.slane %v1499, 4
        %v1502 = vrot.slane %v436, 5
        %v1503 = vsel %vm1482, %v1501, %v1502
        %v1504 = vrot.slane %v1435, 5
        %v1505 = vrot.slane %v1504, 4
        %v1506 = vrot.slane %v393, 5
        %v1507 = vsel %vm1482, %v1505, %v1506
        %v1508 = vrot.slane %v1506, 4
        %v1509 = vrot.slane %v437, 5
        %v1510 = vsel %vm1482, %v1508, %v1509
        %v1511 = vrot.slane %v1436, 5
        %v1512 = vrot.slane %v1511, 4
        %v1513 = vrot.slane %v395, 5
        %v1514 = vsel %vm1482, %v1512, %v1513
        %v1515 = vrot.slane %v1513, 4
        %v1516 = vrot.slane %v438, 5
        %v1517 = vsel %vm1482, %v1515, %v1516
        %v1518 = vrot.slane %v1437, 5
        %v1519 = vrot.slane %v1518, 4
        %v1520 = vrot.slane %v397, 5
        %v1521 = vsel %vm1482, %v1519, %v1520
        %v1522 = vrot.slane %v1520, 4
        %v1523 = vrot.slane %v439, 5
        %v1524 = vsel %vm1482, %v1522, %v1523
        %v1525 = vrot.slane %v1438, 5
        %v1526 = vrot.slane %v1525, 4
        %v1527 = vrot.slane %v399, 5
        %v1528 = vsel %vm1482, %v1526, %v1527
        %v1529 = vrot.slane %v1527, 4
        %v1530 = vrot.slane %v440, 5
        %v1531 = vsel %vm1482, %v1529, %v1530
        %v1532 = vrot.slane %v1439, 5
        %v1533 = vrot.slane %v1532, 4
        %v1534 = vrot.slane %v401, 5
        %v1535 = vsel %vm1482, %v1533, %v1534
        %v1536 = vrot.slane %v1534, 4
        %v1537 = vrot.slane %v441, 5
        %v1538 = vsel %vm1482, %v1536, %v1537
        %v1539 = vrot.slane %v1440, 5
        %v1540 = vrot.slane %v1539, 4
        %v1541 = vrot.slane %v403, 5
        %v1542 = vsel %vm1482, %v1540, %v1541
        %v1543 = vrot.slane %v1541, 4
        %v1544 = vrot.slane %v442, 5
        %v1545 = vsel %vm1482, %v1543, %v1544
        %v1546 = vrot.slane %v1441, 5
        %v1547 = vrot.slane %v1546, 4
        %v1548 = vrot.slane %v405, 5
        %v1549 = vsel %vm1482, %v1547, %v1548
        %v1550 = vrot.slane %v1548, 4
        %v1551 = vrot.slane %v443, 5
        %v1552 = vsel %vm1482, %v1550, %v1551
        %v1553 = vrot.slane %v1442, 5
        %v1554 = vrot.slane %v1553, 4
        %v1555 = vrot.slane %v407, 5
        %v1556 = vsel %vm1482, %v1554, %v1555
        %v1557 = vrot.slane %v1555, 4
        %v1558 = vrot.slane %v444, 5
        %v1559 = vsel %vm1482, %v1557, %v1558
        %v1560 = vrot.slane %v1443, 5
        %v1561 = vrot.slane %v1560, 4
        %v1562 = vrot.slane %v409, 5
        %v1563 = vsel %vm1482, %v1561, %v1562
        %v1564 = vrot.slane %v1562, 4
        %v1565 = vrot.slane %v445, 5
        %v1566 = vsel %vm1482, %v1564, %v1565
        %v1567 = vrot.slane %v1444, 5
        %v1568 = vrot.slane %v1567, 4
        %v1569 = vrot.slane %v411, 5
        %v1570 = vsel %vm1482, %v1568, %v1569
        %v1571 = vrot.slane %v1569, 4
        %v1572 = vrot.slane %v446, 5
        %v1573 = vsel %vm1482, %v1571, %v1572
        %v1574 = vrot.slane %v1445, 5
        %v1575 = vrot.slane %v1574, 4
        %v1576 = vrot.slane %v413, 5
        %v1577 = vsel %vm1482, %v1575, %v1576
        %v1578 = vrot.slane %v1576, 4
        %v1579 = vrot.slane %v447, 5
        %v1580 = vsel %vm1482, %v1578, %v1579
        %v1581 = vrot.slane %v1446, 5
        %v1582 = vrot.slane %v1581, 4
        %v1583 = vrot.slane %v415, 5
        %v1584 = vsel %vm1482, %v1582, %v1583
        %v1585 = vrot.slane %v1583, 4
        %v1586 = vrot.slane %v448, 5
        %v1587 = vsel %vm1482, %v1585, %v1586
        %v1588 = vrot.slane %v1447, 5
        %v1589 = vrot.slane %v1588, 4
        %v1590 = vrot.slane %v417, 5
        %v1591 = vsel %vm1482, %v1589, %v1590
        %v1592 = vrot.slane %v1590, 4
        %v1593 = vrot.slane %v449, 5
        %v1594 = vsel %vm1482, %v1592, %v1593
        %s1595 = scalar_lea.vmem %s1, 128
        %v1596 = vld [vmem:[%s1595] sm:$0xf]
        %v1597 = vld [vmem:[%s1595 + $0x4] sm:$0xf]
        %v1598 = vld [vmem:[%s1595 + $0x8] sm:$0xf]
        %v1599 = vld [vmem:[%s1595 + $0xc] sm:$0xf]
        %v1600 = vld [vmem:[%s1595 + $0x10] sm:$0xf]
        %v1601 = vld [vmem:[%s1595 + $0x14] sm:$0xf]
        %v1602 = vld [vmem:[%s1595 + $0x18] sm:$0xf]
        %v1603 = vld [vmem:[%s1595 + $0x1c] sm:$0xf]
        %v1604 = vld [vmem:[%s1595 + $0x20] sm:$0xf]
        %v1605 = vld [vmem:[%s1595 + $0x24] sm:$0xf]
        %v1606 = vld [vmem:[%s1595 + $0x28] sm:$0xf]
        %v1607 = vld [vmem:[%s1595 + $0x2c] sm:$0xf]
        %v1608 = vld [vmem:[%s1595 + $0x30] sm:$0xf]
        %v1609 = vld [vmem:[%s1595 + $0x34] sm:$0xf]
        %v1610 = vld [vmem:[%s1595 + $0x38] sm:$0xf]
        %v1611 = vld [vmem:[%s1595 + $0x3c] sm:$0xf]
        %v1612 = vunpack.c.l.b16 %v1486
        %v1613 = vunpack.c.l.b16 %v1489
        %v1614 = vunpack.c.l.b16 %v1493
        %v1615 = vunpack.c.l.b16 %v1496
        %v1616 = vunpack.c.l.b16 %v1500
        %v1617 = vunpack.c.l.b16 %v1503
        %v1618 = vunpack.c.l.b16 %v1507
        %v1619 = vunpack.c.l.b16 %v1510
        %v1620 = vunpack.c.l.b16 %v1514
        %v1621 = vunpack.c.l.b16 %v1517
        %v1622 = vunpack.c.l.b16 %v1521
        %v1623 = vunpack.c.l.b16 %v1524
        %v1624 = vunpack.c.l.b16 %v1528
        %v1625 = vunpack.c.l.b16 %v1531
        %v1626 = vunpack.c.l.b16 %v1535
        %v1627 = vunpack.c.l.b16 %v1538
        %v1628 = vunpack.c.l.b16 %v1542
        %v1629 = vunpack.c.l.b16 %v1545
        %v1630 = vunpack.c.l.b16 %v1549
        %v1631 = vunpack.c.l.b16 %v1552
        %v1632 = vunpack.c.l.b16 %v1556
        %v1633 = vunpack.c.l.b16 %v1559
        %v1634 = vunpack.c.l.b16 %v1563
        %v1635 = vunpack.c.l.b16 %v1566
        %v1636 = vunpack.c.l.b16 %v1570
        %v1637 = vunpack.c.l.b16 %v1573
        %v1638 = vunpack.c.l.b16 %v1577
        %v1639 = vunpack.c.l.b16 %v1580
        %v1640 = vunpack.c.l.b16 %v1584
        %v1641 = vunpack.c.l.b16 %v1587
        %v1642 = vunpack.c.l.b16 %v1591
        %v1643 = vunpack.c.l.b16 %v1594
        %v1644 = vpack.c.b16 %v1613, %v1612
        %v1645 = vpack.c.b16 %v1615, %v1614
        %v1646 = vpack.c.b16 %v1617, %v1616
        %v1647 = vpack.c.b16 %v1619, %v1618
        %v1648 = vpack.c.b16 %v1621, %v1620
        %v1649 = vpack.c.b16 %v1623, %v1622
        %v1650 = vpack.c.b16 %v1625, %v1624
        %v1651 = vpack.c.b16 %v1627, %v1626
        %v1652 = vpack.c.b16 %v1629, %v1628
        %v1653 = vpack.c.b16 %v1631, %v1630
        %v1654 = vpack.c.b16 %v1633, %v1632
        %v1655 = vpack.c.b16 %v1635, %v1634
        %v1656 = vpack.c.b16 %v1637, %v1636
        %v1657 = vpack.c.b16 %v1639, %v1638
        %v1658 = vpack.c.b16 %v1641, %v1640
        %v1659 = vpack.c.b16 %v1643, %v1642
        %v1692 = vunpack.c.l.b16 %v1596
        %v1693 = vunpack.c.l.b16 %v1597
        %v1694 = vunpack.c.l.b16 %v1598
        %v1695 = vunpack.c.l.b16 %v1599
        %v1696 = vunpack.c.l.b16 %v1600
        %v1697 = vunpack.c.l.b16 %v1601
        %v1698 = vunpack.c.l.b16 %v1602
        %v1699 = vunpack.c.l.b16 %v1603
        %v1700 = vunpack.c.l.b16 %v1604
        %v1701 = vunpack.c.l.b16 %v1605
        %v1702 = vunpack.c.l.b16 %v1606
        %v1703 = vunpack.c.l.b16 %v1607
        %v1704 = vunpack.c.l.b16 %v1608
        %v1705 = vunpack.c.l.b16 %v1609
        %v1706 = vunpack.c.l.b16 %v1610
        %v1707 = vunpack.c.l.b16 %v1611
        %v1708 = vpack.c.b16 %v1693, %v1692
        %v1709 = vpack.c.b16 %v1695, %v1694
        %v1710 = vpack.c.b16 %v1697, %v1696
        %v1711 = vpack.c.b16 %v1699, %v1698
        %v1712 = vpack.c.b16 %v1701, %v1700
        %v1713 = vpack.c.b16 %v1703, %v1702
        %v1714 = vpack.c.b16 %v1705, %v1704
        %v1715 = vpack.c.b16 %v1707, %v1706
        %1724 = vmatprep.subr.bf16.mxu0 0
        %1725 = vmatpush1.bf16.msra.mxu0 %v1715
        %1726 = vmatprep.subr.bf16.mxu0 0
        %1727 = vmatpush1.bf16.msra.mxu0 %v1714
        %1728 = vmatprep.subr.bf16.mxu0 0
        %1729 = vmatpush1.bf16.msra.mxu0 %v1713
        %1730 = vmatprep.subr.bf16.mxu0 0
        %1731 = vmatpush1.bf16.msra.mxu0 %v1712
        %1732 = vmatprep.subr.bf16.mxu0 0
        %1733 = vmatpush1.bf16.msra.mxu0 %v1711
        %1734 = vmatprep.subr.bf16.mxu0 0
        %1735 = vmatpush1.bf16.msra.mxu0 %v1710
        %1736 = vmatprep.subr.bf16.mxu0 0
        %1737 = vmatpush1.bf16.msra.mxu0 %v1709
        %1738 = vmatprep.subr.bf16.mxu0 0
        %1739 = vmatpush1.bf16.msra.mxu0 %v1708
        %1740 = vmatprep.subr.bf16.mxu0 0
        %1741 = vmatpush2.bf16.msra.mxu0 0
        %1742 = vmatprep.subr.bf16.mxu0 0
        %1743 = vmatpush2.bf16.msra.mxu0 0
        %1744 = vmatprep.subr.bf16.mxu0 0
        %1745 = vmatpush2.bf16.msra.mxu0 0
        %1746 = vmatprep.subr.bf16.mxu0 0
        %1747 = vmatpush2.bf16.msra.mxu0 0
        %1748 = vmatprep.subr.bf16.mxu0 0
        %1749 = vmatpush2.bf16.msra.mxu0 0
        %1750 = vmatprep.subr.bf16.mxu0 0
        %1751 = vmatpush2.bf16.msra.mxu0 0
        %1752 = vmatprep.subr.bf16.mxu0 0
        %1753 = vmatpush2.bf16.msra.mxu0 0
        %1754 = vmatprep.subr.bf16.mxu0 0
        %1755 = vmatpush2.bf16.msra.mxu0 0
        %1756 = vmatprep.mubr.bf16.mxu0 0
        %1757 = vmatmul.mubr.bf16.gmra.mxu0 %v1644
        %v1758 = vpop.f32.mrf.mxu0
        %v1759 = vadd.f32 0.0, %v1758
        %v1760 = vpop.f32.mrf.mxu0
        %v1761 = vpop.f32.mrf.mxu0
        %v1762 = vadd.f32 0.0, %v1761
        %v1763 = vpop.f32.mrf.mxu0
        %1764 = vmatprep.mubr.bf16.mxu0 0
        %1765 = vmatmul.mubr.bf16.gmra.mxu0 %v1645
        %v1766 = vpop.f32.mrf.mxu0
        %v1767 = vadd.f32 0.0, %v1766
        %v1768 = vpop.f32.mrf.mxu0
        %v1769 = vpop.f32.mrf.mxu0
        %v1770 = vadd.f32 0.0, %v1769
        %v1771 = vpop.f32.mrf.mxu0
        %1772 = vmatprep.mubr.bf16.mxu0 0
        %1773 = vmatmul.mubr.bf16.gmra.mxu0 %v1646
        %v1774 = vpop.f32.mrf.mxu0
        %v1775 = vadd.f32 0.0, %v1774
        %v1776 = vpop.f32.mrf.mxu0
        %v1777 = vpop.f32.mrf.mxu0
        %v1778 = vadd.f32 0.0, %v1777
        %v1779 = vpop.f32.mrf.mxu0
        %1780 = vmatprep.mubr.bf16.mxu0 0
        %1781 = vmatmul.mubr.bf16.gmra.mxu0 %v1647
        %v1782 = vpop.f32.mrf.mxu0
        %v1783 = vadd.f32 0.0, %v1782
        %v1784 = vpop.f32.mrf.mxu0
        %v1785 = vpop.f32.mrf.mxu0
        %v1786 = vadd.f32 0.0, %v1785
        %v1787 = vpop.f32.mrf.mxu0
        %1788 = vmatprep.mubr.bf16.mxu0 0
        %1789 = vmatmul.mubr.bf16.gmra.mxu0 %v1648
        %v1790 = vpop.f32.mrf.mxu0
        %v1791 = vadd.f32 0.0, %v1790
        %v1792 = vpop.f32.mrf.mxu0
        %v1793 = vpop.f32.mrf.mxu0
        %v1794 = vadd.f32 0.0, %v1793
        %v1795 = vpop.f32.mrf.mxu0
        %1796 = vmatprep.mubr.bf16.mxu0 0
        %1797 = vmatmul.mubr.bf16.gmra.mxu0 %v1649
        %v1798 = vpop.f32.mrf.mxu0
        %v1799 = vadd.f32 0.0, %v1798
        %v1800 = vpop.f32.mrf.mxu0
        %v1801 = vpop.f32.mrf.mxu0
        %v1802 = vadd.f32 0.0, %v1801
        %v1803 = vpop.f32.mrf.mxu0
        %1804 = vmatprep.mubr.bf16.mxu0 0
        %1805 = vmatmul.mubr.bf16.gmra.mxu0 %v1650
        %v1806 = vpop.f32.mrf.mxu0
        %v1807 = vadd.f32 0.0, %v1806
        %v1808 = vpop.f32.mrf.mxu0
        %v1809 = vpop.f32.mrf.mxu0
        %v1810 = vadd.f32 0.0, %v1809
        %v1811 = vpop.f32.mrf.mxu0
        %1812 = vmatprep.mubr.bf16.mxu0 0
        %1813 = vmatmul.mubr.bf16.gmra.mxu0 %v1651
        %v1814 = vpop.f32.mrf.mxu0
        %v1815 = vadd.f32 0.0, %v1814
        %v1816 = vpop.f32.mrf.mxu0
        %v1817 = vpop.f32.mrf.mxu0
        %v1818 = vadd.f32 0.0, %v1817
        %v1819 = vpop.f32.mrf.mxu0
        %1820 = vmatprep.mubr.bf16.mxu0 0
        %1821 = vmatmul.mubr.bf16.gmra.mxu0 %v1652
        %v1822 = vpop.f32.mrf.mxu0
        %v1823 = vadd.f32 0.0, %v1822
        %v1824 = vpop.f32.mrf.mxu0
        %v1825 = vpop.f32.mrf.mxu0
        %v1826 = vadd.f32 0.0, %v1825
        %v1827 = vpop.f32.mrf.mxu0
        %1828 = vmatprep.mubr.bf16.mxu0 0
        %1829 = vmatmul.mubr.bf16.gmra.mxu0 %v1653
        %v1830 = vpop.f32.mrf.mxu0
        %v1831 = vadd.f32 0.0, %v1830
        %v1832 = vpop.f32.mrf.mxu0
        %v1833 = vpop.f32.mrf.mxu0
        %v1834 = vadd.f32 0.0, %v1833
        %v1835 = vpop.f32.mrf.mxu0
        %1836 = vmatprep.mubr.bf16.mxu0 0
        %1837 = vmatmul.mubr.bf16.gmra.mxu0 %v1654
        %v1838 = vpop.f32.mrf.mxu0
        %v1839 = vadd.f32 0.0, %v1838
        %v1840 = vpop.f32.mrf.mxu0
        %v1841 = vpop.f32.mrf.mxu0
        %v1842 = vadd.f32 0.0, %v1841
        %v1843 = vpop.f32.mrf.mxu0
        %1844 = vmatprep.mubr.bf16.mxu0 0
        %1845 = vmatmul.mubr.bf16.gmra.mxu0 %v1655
        %v1846 = vpop.f32.mrf.mxu0
        %v1847 = vadd.f32 0.0, %v1846
        %v1848 = vpop.f32.mrf.mxu0
        %v1849 = vpop.f32.mrf.mxu0
        %v1850 = vadd.f32 0.0, %v1849
        %v1851 = vpop.f32.mrf.mxu0
        %1852 = vmatprep.mubr.bf16.mxu0 0
        %1853 = vmatmul.mubr.bf16.gmra.mxu0 %v1656
        %v1854 = vpop.f32.mrf.mxu0
        %v1855 = vadd.f32 0.0, %v1854
        %v1856 = vpop.f32.mrf.mxu0
        %v1857 = vpop.f32.mrf.mxu0
        %v1858 = vadd.f32 0.0, %v1857
        %v1859 = vpop.f32.mrf.mxu0
        %1860 = vmatprep.mubr.bf16.mxu0 0
        %1861 = vmatmul.mubr.bf16.gmra.mxu0 %v1657
        %v1862 = vpop.f32.mrf.mxu0
        %v1863 = vadd.f32 0.0, %v1862
        %v1864 = vpop.f32.mrf.mxu0
        %v1865 = vpop.f32.mrf.mxu0
        %v1866 = vadd.f32 0.0, %v1865
        %v1867 = vpop.f32.mrf.mxu0
        %1868 = vmatprep.mubr.bf16.mxu0 0
        %1869 = vmatmul.mubr.bf16.gmra.mxu0 %v1658
        %v1870 = vpop.f32.mrf.mxu0
        %v1871 = vadd.f32 0.0, %v1870
        %v1872 = vpop.f32.mrf.mxu0
        %v1873 = vpop.f32.mrf.mxu0
        %v1874 = vadd.f32 0.0, %v1873
        %v1875 = vpop.f32.mrf.mxu0
        %1876 = vmatprep.mubr.bf16.mxu0 0
        %1877 = vmatmul.mubr.bf16.gmra.mxu0 %v1659
        %v1878 = vpop.f32.mrf.mxu0
        %v1879 = vadd.f32 0.0, %v1878
        %v1880 = vpop.f32.mrf.mxu0
        %v1881 = vpop.f32.mrf.mxu0
        %v1882 = vadd.f32 0.0, %v1881
        %v1883 = vpop.f32.mrf.mxu0
        %1884 = vdwg.mxu0
        %v1885 = vadd.f32 %v1306, %v1759
        %v1886 = vadd.f32 %v1309, %v1762
        %v1887 = vadd.f32 %v1314, %v1767
        %v1888 = vadd.f32 %v1317, %v1770
        %v1889 = vadd.f32 %v1322, %v1775
        %v1890 = vadd.f32 %v1325, %v1778
        %v1891 = vadd.f32 %v1330, %v1783
        %v1892 = vadd.f32 %v1333, %v1786
        %v1893 = vadd.f32 %v1338, %v1791
        %v1894 = vadd.f32 %v1341, %v1794
        %v1895 = vadd.f32 %v1346, %v1799
        %v1896 = vadd.f32 %v1349, %v1802
        %v1897 = vadd.f32 %v1354, %v1807
        %v1898 = vadd.f32 %v1357, %v1810
        %v1899 = vadd.f32 %v1362, %v1815
        %v1900 = vadd.f32 %v1365, %v1818
        %v1901 = vadd.f32 %v1370, %v1823
        %v1902 = vadd.f32 %v1373, %v1826
        %v1903 = vadd.f32 %v1378, %v1831
        %v1904 = vadd.f32 %v1381, %v1834
        %v1905 = vadd.f32 %v1386, %v1839
        %v1906 = vadd.f32 %v1389, %v1842
        %v1907 = vadd.f32 %v1394, %v1847
        %v1908 = vadd.f32 %v1397, %v1850
        %v1909 = vadd.f32 %v1402, %v1855
        %v1910 = vadd.f32 %v1405, %v1858
        %v1911 = vadd.f32 %v1410, %v1863
        %v1912 = vadd.f32 %v1413, %v1866
        %v1913 = vadd.f32 %v1418, %v1871
        %v1914 = vadd.f32 %v1421, %v1874
        %v1915 = vadd.f32 %v1426, %v1879
        %v1916 = vadd.f32 %v1429, %v1882
        %s1917 = scalar_lea.vmem %s384, 12
        %v1918 = vld [vmem:[%s1917] sm:$0xf]
        %v1919 = vld [vmem:[%s1917 + $0x4] sm:$0xf]
        %v1920 = vld [vmem:[%s1917 + $0xc] sm:$0xf]
        %v1921 = vld [vmem:[%s1917 + $0x10] sm:$0xf]
        %v1922 = vld [vmem:[%s1917 + $0x18] sm:$0xf]
        %v1923 = vld [vmem:[%s1917 + $0x1c] sm:$0xf]
        %v1924 = vld [vmem:[%s1917 + $0x24] sm:$0xf]
        %v1925 = vld [vmem:[%s1917 + $0x28] sm:$0xf]
        %v1926 = vld [vmem:[%s1917 + $0x30] sm:$0xf]
        %v1927 = vld [vmem:[%s1917 + $0x34] sm:$0xf]
        %v1928 = vld [vmem:[%s1917 + $0x3c] sm:$0xf]
        %v1929 = vld [vmem:[%s1917 + $0x40] sm:$0xf]
        %v1930 = vld [vmem:[%s1917 + $0x48] sm:$0xf]
        %v1931 = vld [vmem:[%s1917 + $0x4c] sm:$0xf]
        %v1932 = vld [vmem:[%s1917 + $0x54] sm:$0xf]
        %v1933 = vld [vmem:[%s1917 + $0x58] sm:$0xf]
        %v1934 = vld [vmem:[%s1917 + $0x60] sm:$0xf]
        %v1935 = vld [vmem:[%s1917 + $0x64] sm:$0xf]
        %v1936 = vld [vmem:[%s1917 + $0x6c] sm:$0xf]
        %v1937 = vld [vmem:[%s1917 + $0x70] sm:$0xf]
        %v1938 = vld [vmem:[%s1917 + $0x78] sm:$0xf]
        %v1939 = vld [vmem:[%s1917 + $0x7c] sm:$0xf]
        %v1940 = vld [vmem:[%s1917 + $0x84] sm:$0xf]
        %v1941 = vld [vmem:[%s1917 + $0x88] sm:$0xf]
        %v1942 = vld [vmem:[%s1917 + $0x90] sm:$0xf]
        %v1943 = vld [vmem:[%s1917 + $0x94] sm:$0xf]
        %v1944 = vld [vmem:[%s1917 + $0x9c] sm:$0xf]
        %v1945 = vld [vmem:[%s1917 + $0xa0] sm:$0xf]
        %v1946 = vld [vmem:[%s1917 + $0xa8] sm:$0xf]
        %v1947 = vld [vmem:[%s1917 + $0xac] sm:$0xf]
        %v1948 = vld [vmem:[%s1917 + $0xb4] sm:$0xf]
        %v1949 = vld [vmem:[%s1917 + $0xb8] sm:$0xf]
        %s1950 = scalar_lea.vmem %s1, 192
        %v1951 = vld [vmem:[%s1950] sm:$0xf]
        %v1952 = vld [vmem:[%s1950 + $0x4] sm:$0xf]
        %v1953 = vld [vmem:[%s1950 + $0x8] sm:$0xf]
        %v1954 = vld [vmem:[%s1950 + $0xc] sm:$0xf]
        %v1955 = vld [vmem:[%s1950 + $0x10] sm:$0xf]
        %v1956 = vld [vmem:[%s1950 + $0x14] sm:$0xf]
        %v1957 = vld [vmem:[%s1950 + $0x18] sm:$0xf]
        %v1958 = vld [vmem:[%s1950 + $0x1c] sm:$0xf]
        %v1959 = vld [vmem:[%s1950 + $0x20] sm:$0xf]
        %v1960 = vld [vmem:[%s1950 + $0x24] sm:$0xf]
        %v1961 = vld [vmem:[%s1950 + $0x28] sm:$0xf]
        %v1962 = vld [vmem:[%s1950 + $0x2c] sm:$0xf]
        %v1963 = vld [vmem:[%s1950 + $0x30] sm:$0xf]
        %v1964 = vld [vmem:[%s1950 + $0x34] sm:$0xf]
        %v1965 = vld [vmem:[%s1950 + $0x38] sm:$0xf]
        %v1966 = vld [vmem:[%s1950 + $0x3c] sm:$0xf]
        %v1999 = vunpack.c.l.b16 %v1918
        %v2000 = vunpack.c.l.b16 %v1919
        %v2001 = vunpack.c.l.b16 %v1920
        %v2002 = vunpack.c.l.b16 %v1921
        %v2003 = vunpack.c.l.b16 %v1922
        %v2004 = vunpack.c.l.b16 %v1923
        %v2005 = vunpack.c.l.b16 %v1924
        %v2006 = vunpack.c.l.b16 %v1925
        %v2007 = vunpack.c.l.b16 %v1926
        %v2008 = vunpack.c.l.b16 %v1927
        %v2009 = vunpack.c.l.b16 %v1928
        %v2010 = vunpack.c.l.b16 %v1929
        %v2011 = vunpack.c.l.b16 %v1930
        %v2012 = vunpack.c.l.b16 %v1931
        %v2013 = vunpack.c.l.b16 %v1932
        %v2014 = vunpack.c.l.b16 %v1933
        %v2015 = vunpack.c.l.b16 %v1934
        %v2016 = vunpack.c.l.b16 %v1935
        %v2017 = vunpack.c.l.b16 %v1936
        %v2018 = vunpack.c.l.b16 %v1937
        %v2019 = vunpack.c.l.b16 %v1938
        %v2020 = vunpack.c.l.b16 %v1939
        %v2021 = vunpack.c.l.b16 %v1940
        %v2022 = vunpack.c.l.b16 %v1941
        %v2023 = vunpack.c.l.b16 %v1942
        %v2024 = vunpack.c.l.b16 %v1943
        %v2025 = vunpack.c.l.b16 %v1944
        %v2026 = vunpack.c.l.b16 %v1945
        %v2027 = vunpack.c.l.b16 %v1946
        %v2028 = vunpack.c.l.b16 %v1947
        %v2029 = vunpack.c.l.b16 %v1948
        %v2030 = vunpack.c.l.b16 %v1949
        %v2031 = vpack.c.b16 %v2000, %v1999
        %v2032 = vpack.c.b16 %v2002, %v2001
        %v2033 = vpack.c.b16 %v2004, %v2003
        %v2034 = vpack.c.b16 %v2006, %v2005
        %v2035 = vpack.c.b16 %v2008, %v2007
        %v2036 = vpack.c.b16 %v2010, %v2009
        %v2037 = vpack.c.b16 %v2012, %v2011
        %v2038 = vpack.c.b16 %v2014, %v2013
        %v2039 = vpack.c.b16 %v2016, %v2015
        %v2040 = vpack.c.b16 %v2018, %v2017
        %v2041 = vpack.c.b16 %v2020, %v2019
        %v2042 = vpack.c.b16 %v2022, %v2021
        %v2043 = vpack.c.b16 %v2024, %v2023
        %v2044 = vpack.c.b16 %v2026, %v2025
        %v2045 = vpack.c.b16 %v2028, %v2027
        %v2046 = vpack.c.b16 %v2030, %v2029
        %v2079 = vunpack.c.l.b16 %v1951
        %v2080 = vunpack.c.l.b16 %v1952
        %v2081 = vunpack.c.l.b16 %v1953
        %v2082 = vunpack.c.l.b16 %v1954
        %v2083 = vunpack.c.l.b16 %v1955
        %v2084 = vunpack.c.l.b16 %v1956
        %v2085 = vunpack.c.l.b16 %v1957
        %v2086 = vunpack.c.l.b16 %v1958
        %v2087 = vunpack.c.l.b16 %v1959
        %v2088 = vunpack.c.l.b16 %v1960
        %v2089 = vunpack.c.l.b16 %v1961
        %v2090 = vunpack.c.l.b16 %v1962
        %v2091 = vunpack.c.l.b16 %v1963
        %v2092 = vunpack.c.l.b16 %v1964
        %v2093 = vunpack.c.l.b16 %v1965
        %v2094 = vunpack.c.l.b16 %v1966
        %v2095 = vpack.c.b16 %v2080, %v2079
        %v2096 = vpack.c.b16 %v2082, %v2081
        %v2097 = vpack.c.b16 %v2084, %v2083
        %v2098 = vpack.c.b16 %v2086, %v2085
        %v2099 = vpack.c.b16 %v2088, %v2087
        %v2100 = vpack.c.b16 %v2090, %v2089
        %v2101 = vpack.c.b16 %v2092, %v2091
        %v2102 = vpack.c.b16 %v2094, %v2093
        %2111 = vmatprep.subr.bf16.mxu0 0
        %2112 = vmatpush1.bf16.msra.mxu0 %v2102
        %2113 = vmatprep.subr.bf16.mxu0 0
        %2114 = vmatpush1.bf16.msra.mxu0 %v2101
        %2115 = vmatprep.subr.bf16.mxu0 0
        %2116 = vmatpush1.bf16.msra.mxu0 %v2100
        %2117 = vmatprep.subr.bf16.mxu0 0
        %2118 = vmatpush1.bf16.msra.mxu0 %v2099
        %2119 = vmatprep.subr.bf16.mxu0 0
        %2120 = vmatpush1.bf16.msra.mxu0 %v2098
        %2121 = vmatprep.subr.bf16.mxu0 0
        %2122 = vmatpush1.bf16.msra.mxu0 %v2097
        %2123 = vmatprep.subr.bf16.mxu0 0
        %2124 = vmatpush1.bf16.msra.mxu0 %v2096
        %2125 = vmatprep.subr.bf16.mxu0 0
        %2126 = vmatpush1.bf16.msra.mxu0 %v2095
        %2127 = vmatprep.subr.bf16.mxu0 0
        %2128 = vmatpush2.bf16.msra.mxu0 0
        %2129 = vmatprep.subr.bf16.mxu0 0
        %2130 = vmatpush2.bf16.msra.mxu0 0
        %2131 = vmatprep.subr.bf16.mxu0 0
        %2132 = vmatpush2.bf16.msra.mxu0 0
        %2133 = vmatprep.subr.bf16.mxu0 0
        %2134 = vmatpush2.bf16.msra.mxu0 0
        %2135 = vmatprep.subr.bf16.mxu0 0
        %2136 = vmatpush2.bf16.msra.mxu0 0
        %2137 = vmatprep.subr.bf16.mxu0 0
        %2138 = vmatpush2.bf16.msra.mxu0 0
        %2139 = vmatprep.subr.bf16.mxu0 0
        %2140 = vmatpush2.bf16.msra.mxu0 0
        %2141 = vmatprep.subr.bf16.mxu0 0
        %2142 = vmatpush2.bf16.msra.mxu0 0
        %2143 = vmatprep.mubr.bf16.mxu0 0
        %2144 = vmatmul.mubr.bf16.gmra.mxu0 %v2031
        %v2145 = vpop.f32.mrf.mxu0
        %v2146 = vadd.f32 0.0, %v2145
        %v2147 = vpop.f32.mrf.mxu0
        %v2148 = vpop.f32.mrf.mxu0
        %v2149 = vadd.f32 0.0, %v2148
        %v2150 = vpop.f32.mrf.mxu0
        %2151 = vmatprep.mubr.bf16.mxu0 0
        %2152 = vmatmul.mubr.bf16.gmra.mxu0 %v2032
        %v2153 = vpop.f32.mrf.mxu0
        %v2154 = vadd.f32 0.0, %v2153
        %v2155 = vpop.f32.mrf.mxu0
        %v2156 = vpop.f32.mrf.mxu0
        %v2157 = vadd.f32 0.0, %v2156
        %v2158 = vpop.f32.mrf.mxu0
        %2159 = vmatprep.mubr.bf16.mxu0 0
        %2160 = vmatmul.mubr.bf16.gmra.mxu0 %v2033
        %v2161 = vpop.f32.mrf.mxu0
        %v2162 = vadd.f32 0.0, %v2161
        %v2163 = vpop.f32.mrf.mxu0
        %v2164 = vpop.f32.mrf.mxu0
        %v2165 = vadd.f32 0.0, %v2164
        %v2166 = vpop.f32.mrf.mxu0
        %2167 = vmatprep.mubr.bf16.mxu0 0
        %2168 = vmatmul.mubr.bf16.gmra.mxu0 %v2034
        %v2169 = vpop.f32.mrf.mxu0
        %v2170 = vadd.f32 0.0, %v2169
        %v2171 = vpop.f32.mrf.mxu0
        %v2172 = vpop.f32.mrf.mxu0
        %v2173 = vadd.f32 0.0, %v2172
        %v2174 = vpop.f32.mrf.mxu0
        %2175 = vmatprep.mubr.bf16.mxu0 0
        %2176 = vmatmul.mubr.bf16.gmra.mxu0 %v2035
        %v2177 = vpop.f32.mrf.mxu0
        %v2178 = vadd.f32 0.0, %v2177
        %v2179 = vpop.f32.mrf.mxu0
        %v2180 = vpop.f32.mrf.mxu0
        %v2181 = vadd.f32 0.0, %v2180
        %v2182 = vpop.f32.mrf.mxu0
        %2183 = vmatprep.mubr.bf16.mxu0 0
        %2184 = vmatmul.mubr.bf16.gmra.mxu0 %v2036
        %v2185 = vpop.f32.mrf.mxu0
        %v2186 = vadd.f32 0.0, %v2185
        %v2187 = vpop.f32.mrf.mxu0
        %v2188 = vpop.f32.mrf.mxu0
        %v2189 = vadd.f32 0.0, %v2188
        %v2190 = vpop.f32.mrf.mxu0
        %2191 = vmatprep.mubr.bf16.mxu0 0
        %2192 = vmatmul.mubr.bf16.gmra.mxu0 %v2037
        %v2193 = vpop.f32.mrf.mxu0
        %v2194 = vadd.f32 0.0, %v2193
        %v2195 = vpop.f32.mrf.mxu0
        %v2196 = vpop.f32.mrf.mxu0
        %v2197 = vadd.f32 0.0, %v2196
        %v2198 = vpop.f32.mrf.mxu0
        %2199 = vmatprep.mubr.bf16.mxu0 0
        %2200 = vmatmul.mubr.bf16.gmra.mxu0 %v2038
        %v2201 = vpop.f32.mrf.mxu0
        %v2202 = vadd.f32 0.0, %v2201
        %v2203 = vpop.f32.mrf.mxu0
        %v2204 = vpop.f32.mrf.mxu0
        %v2205 = vadd.f32 0.0, %v2204
        %v2206 = vpop.f32.mrf.mxu0
        %2207 = vmatprep.mubr.bf16.mxu0 0
        %2208 = vmatmul.mubr.bf16.gmra.mxu0 %v2039
        %v2209 = vpop.f32.mrf.mxu0
        %v2210 = vadd.f32 0.0, %v2209
        %v2211 = vpop.f32.mrf.mxu0
        %v2212 = vpop.f32.mrf.mxu0
        %v2213 = vadd.f32 0.0, %v2212
        %v2214 = vpop.f32.mrf.mxu0
        %2215 = vmatprep.mubr.bf16.mxu0 0
        %2216 = vmatmul.mubr.bf16.gmra.mxu0 %v2040
        %v2217 = vpop.f32.mrf.mxu0
        %v2218 = vadd.f32 0.0, %v2217
        %v2219 = vpop.f32.mrf.mxu0
        %v2220 = vpop.f32.mrf.mxu0
        %v2221 = vadd.f32 0.0, %v2220
        %v2222 = vpop.f32.mrf.mxu0
        %2223 = vmatprep.mubr.bf16.mxu0 0
        %2224 = vmatmul.mubr.bf16.gmra.mxu0 %v2041
        %v2225 = vpop.f32.mrf.mxu0
        %v2226 = vadd.f32 0.0, %v2225
        %v2227 = vpop.f32.mrf.mxu0
        %v2228 = vpop.f32.mrf.mxu0
        %v2229 = vadd.f32 0.0, %v2228
        %v2230 = vpop.f32.mrf.mxu0
        %2231 = vmatprep.mubr.bf16.mxu0 0
        %2232 = vmatmul.mubr.bf16.gmra.mxu0 %v2042
        %v2233 = vpop.f32.mrf.mxu0
        %v2234 = vadd.f32 0.0, %v2233
        %v2235 = vpop.f32.mrf.mxu0
        %v2236 = vpop.f32.mrf.mxu0
        %v2237 = vadd.f32 0.0, %v2236
        %v2238 = vpop.f32.mrf.mxu0
        %2239 = vmatprep.mubr.bf16.mxu0 0
        %2240 = vmatmul.mubr.bf16.gmra.mxu0 %v2043
        %v2241 = vpop.f32.mrf.mxu0
        %v2242 = vadd.f32 0.0, %v2241
        %v2243 = vpop.f32.mrf.mxu0
        %v2244 = vpop.f32.mrf.mxu0
        %v2245 = vadd.f32 0.0, %v2244
        %v2246 = vpop.f32.mrf.mxu0
        %2247 = vmatprep.mubr.bf16.mxu0 0
        %2248 = vmatmul.mubr.bf16.gmra.mxu0 %v2044
        %v2249 = vpop.f32.mrf.mxu0
        %v2250 = vadd.f32 0.0, %v2249
        %v2251 = vpop.f32.mrf.mxu0
        %v2252 = vpop.f32.mrf.mxu0
        %v2253 = vadd.f32 0.0, %v2252
        %v2254 = vpop.f32.mrf.mxu0
        %2255 = vmatprep.mubr.bf16.mxu0 0
        %2256 = vmatmul.mubr.bf16.gmra.mxu0 %v2045
        %v2257 = vpop.f32.mrf.mxu0
        %v2258 = vadd.f32 0.0, %v2257
        %v2259 = vpop.f32.mrf.mxu0
        %v2260 = vpop.f32.mrf.mxu0
        %v2261 = vadd.f32 0.0, %v2260
        %v2262 = vpop.f32.mrf.mxu0
        %2263 = vmatprep.mubr.bf16.mxu0 0
        %2264 = vmatmul.mubr.bf16.gmra.mxu0 %v2046
        %v2265 = vpop.f32.mrf.mxu0
        %v2266 = vadd.f32 0.0, %v2265
        %v2267 = vpop.f32.mrf.mxu0
        %v2268 = vpop.f32.mrf.mxu0
        %v2269 = vadd.f32 0.0, %v2268
        %v2270 = vpop.f32.mrf.mxu0
        %2271 = vdwg.mxu0
        %v2272 = vadd.f32 %v1885, %v2146
        %v2273 = vadd.f32 %v1886, %v2149
        %v2274 = vadd.f32 %v1887, %v2154
        %v2275 = vadd.f32 %v1888, %v2157
        %v2276 = vadd.f32 %v1889, %v2162
        %v2277 = vadd.f32 %v1890, %v2165
        %v2278 = vadd.f32 %v1891, %v2170
        %v2279 = vadd.f32 %v1892, %v2173
        %v2280 = vadd.f32 %v1893, %v2178
        %v2281 = vadd.f32 %v1894, %v2181
        %v2282 = vadd.f32 %v1895, %v2186
        %v2283 = vadd.f32 %v1896, %v2189
        %v2284 = vadd.f32 %v1897, %v2194
        %v2285 = vadd.f32 %v1898, %v2197
        %v2286 = vadd.f32 %v1899, %v2202
        %v2287 = vadd.f32 %v1900, %v2205
        %v2288 = vadd.f32 %v1901, %v2210
        %v2289 = vadd.f32 %v1902, %v2213
        %v2290 = vadd.f32 %v1903, %v2218
        %v2291 = vadd.f32 %v1904, %v2221
        %v2292 = vadd.f32 %v1905, %v2226
        %v2293 = vadd.f32 %v1906, %v2229
        %v2294 = vadd.f32 %v1907, %v2234
        %v2295 = vadd.f32 %v1908, %v2237
        %v2296 = vadd.f32 %v1909, %v2242
        %v2297 = vadd.f32 %v1910, %v2245
        %v2298 = vadd.f32 %v1911, %v2250
        %v2299 = vadd.f32 %v1912, %v2253
        %v2300 = vadd.f32 %v1913, %v2258
        %v2301 = vadd.f32 %v1914, %v2261
        %v2302 = vadd.f32 %v1915, %v2266
        %v2303 = vadd.f32 %v1916, %v2269
        %v2304 = vld [vmem:[%s1917] sm:$0xf]
        %v2305 = vld [vmem:[%s1917 + $0x4] sm:$0xf]
        %v2306 = vld [vmem:[%s1917 + $0x8] sm:$0x1]
        %v2307 = vld [vmem:[%s1917 + $0xc] sm:$0xf]
        %v2308 = vld [vmem:[%s1917 + $0x10] sm:$0xf]
        %v2309 = vld [vmem:[%s1917 + $0x14] sm:$0x1]
        %v2310 = vld [vmem:[%s1917 + $0x18] sm:$0xf]
        %v2311 = vld [vmem:[%s1917 + $0x1c] sm:$0xf]
        %v2312 = vld [vmem:[%s1917 + $0x20] sm:$0x1]
        %v2313 = vld [vmem:[%s1917 + $0x24] sm:$0xf]
        %v2314 = vld [vmem:[%s1917 + $0x28] sm:$0xf]
        %v2315 = vld [vmem:[%s1917 + $0x2c] sm:$0x1]
        %v2316 = vld [vmem:[%s1917 + $0x30] sm:$0xf]
        %v2317 = vld [vmem:[%s1917 + $0x34] sm:$0xf]
        %v2318 = vld [vmem:[%s1917 + $0x38] sm:$0x1]
        %v2319 = vld [vmem:[%s1917 + $0x3c] sm:$0xf]
        %v2320 = vld [vmem:[%s1917 + $0x40] sm:$0xf]
        %v2321 = vld [vmem:[%s1917 + $0x44] sm:$0x1]
        %v2322 = vld [vmem:[%s1917 + $0x48] sm:$0xf]
        %v2323 = vld [vmem:[%s1917 + $0x4c] sm:$0xf]
        %v2324 = vld [vmem:[%s1917 + $0x50] sm:$0x1]
        %v2325 = vld [vmem:[%s1917 + $0x54] sm:$0xf]
        %v2326 = vld [vmem:[%s1917 + $0x58] sm:$0xf]
        %v2327 = vld [vmem:[%s1917 + $0x5c] sm:$0x1]
        %v2328 = vld [vmem:[%s1917 + $0x60] sm:$0xf]
        %v2329 = vld [vmem:[%s1917 + $0x64] sm:$0xf]
        %v2330 = vld [vmem:[%s1917 + $0x68] sm:$0x1]
        %v2331 = vld [vmem:[%s1917 + $0x6c] sm:$0xf]
        %v2332 = vld [vmem:[%s1917 + $0x70] sm:$0xf]
        %v2333 = vld [vmem:[%s1917 + $0x74] sm:$0x1]
        %v2334 = vld [vmem:[%s1917 + $0x78] sm:$0xf]
        %v2335 = vld [vmem:[%s1917 + $0x7c] sm:$0xf]
        %v2336 = vld [vmem:[%s1917 + $0x80] sm:$0x1]
        %v2337 = vld [vmem:[%s1917 + $0x84] sm:$0xf]
        %v2338 = vld [vmem:[%s1917 + $0x88] sm:$0xf]
        %v2339 = vld [vmem:[%s1917 + $0x8c] sm:$0x1]
        %v2340 = vld [vmem:[%s1917 + $0x90] sm:$0xf]
        %v2341 = vld [vmem:[%s1917 + $0x94] sm:$0xf]
        %v2342 = vld [vmem:[%s1917 + $0x98] sm:$0x1]
        %v2343 = vld [vmem:[%s1917 + $0x9c] sm:$0xf]
        %v2344 = vld [vmem:[%s1917 + $0xa0] sm:$0xf]
        %v2345 = vld [vmem:[%s1917 + $0xa4] sm:$0x1]
        %v2346 = vld [vmem:[%s1917 + $0xa8] sm:$0xf]
        %v2347 = vld [vmem:[%s1917 + $0xac] sm:$0xf]
        %v2348 = vld [vmem:[%s1917 + $0xb0] sm:$0x1]
        %v2349 = vld [vmem:[%s1917 + $0xb4] sm:$0xf]
        %v2350 = vld [vmem:[%s1917 + $0xb8] sm:$0xf]
        %v2351 = vld [vmem:[%s1917 + $0xbc] sm:$0x1]
        %v2353 = vshrl.u32 %v2304, 16
        %v2355 = vrot.slane %v2353, 4
        %v2356 = vshll.u32 %v2304, 16
        %v2358 = vrot.slane %v2356, 5
        %v2359 = vor.u32 %v2355, %v2358
        %v2360 = vrot.slane %v2359, 4
        %v2362 = vshll.u32 %v2305, 16
        %v2364 = vrot.slane %v2362, 5
        %v2365 = vsel %vm452, %v2360, %v2364
        %v2366 = vshrl.u32 %v2305, 16
        %v2368 = vrot.slane %v2366, 4
        %v2369 = vor.u32 %v2368, %v2364
        %v2370 = vrot.slane %v2369, 4
        %v2372 = vshll.u32 %v2306, 16
        %v2374 = vrot.slane %v2372, 5
        %v2375 = vsel %vm452, %v2370, %v2374
        %v2377 = vshrl.u32 %v2307, 16
        %v2379 = vrot.slane %v2377, 4
        %v2380 = vshll.u32 %v2307, 16
        %v2382 = vrot.slane %v2380, 5
        %v2383 = vor.u32 %v2379, %v2382
        %v2384 = vrot.slane %v2383, 4
        %v2386 = vshll.u32 %v2308, 16
        %v2388 = vrot.slane %v2386, 5
        %v2389 = vsel %vm452, %v2384, %v2388
        %v2390 = vshrl.u32 %v2308, 16
        %v2392 = vrot.slane %v2390, 4
        %v2393 = vor.u32 %v2392, %v2388
        %v2394 = vrot.slane %v2393, 4
        %v2396 = vshll.u32 %v2309, 16
        %v2398 = vrot.slane %v2396, 5
        %v2399 = vsel %vm452, %v2394, %v2398
        %v2401 = vshrl.u32 %v2310, 16
        %v2403 = vrot.slane %v2401, 4
        %v2404 = vshll.u32 %v2310, 16
        %v2406 = vrot.slane %v2404, 5
        %v2407 = vor.u32 %v2403, %v2406
        %v2408 = vrot.slane %v2407, 4
        %v2410 = vshll.u32 %v2311, 16
        %v2412 = vrot.slane %v2410, 5
        %v2413 = vsel %vm452, %v2408, %v2412
        %v2414 = vshrl.u32 %v2311, 16
        %v2416 = vrot.slane %v2414, 4
        %v2417 = vor.u32 %v2416, %v2412
        %v2418 = vrot.slane %v2417, 4
        %v2420 = vshll.u32 %v2312, 16
        %v2422 = vrot.slane %v2420, 5
        %v2423 = vsel %vm452, %v2418, %v2422
        %v2425 = vshrl.u32 %v2313, 16
        %v2427 = vrot.slane %v2425, 4
        %v2428 = vshll.u32 %v2313, 16
        %v2430 = vrot.slane %v2428, 5
        %v2431 = vor.u32 %v2427, %v2430
        %v2432 = vrot.slane %v2431, 4
        %v2434 = vshll.u32 %v2314, 16
        %v2436 = vrot.slane %v2434, 5
        %v2437 = vsel %vm452, %v2432, %v2436
        %v2438 = vshrl.u32 %v2314, 16
        %v2440 = vrot.slane %v2438, 4
        %v2441 = vor.u32 %v2440, %v2436
        %v2442 = vrot.slane %v2441, 4
        %v2444 = vshll.u32 %v2315, 16
        %v2446 = vrot.slane %v2444, 5
        %v2447 = vsel %vm452, %v2442, %v2446
        %v2449 = vshrl.u32 %v2316, 16
        %v2451 = vrot.slane %v2449, 4
        %v2452 = vshll.u32 %v2316, 16
        %v2454 = vrot.slane %v2452, 5
        %v2455 = vor.u32 %v2451, %v2454
        %v2456 = vrot.slane %v2455, 4
        %v2458 = vshll.u32 %v2317, 16
        %v2460 = vrot.slane %v2458, 5
        %v2461 = vsel %vm452, %v2456, %v2460
        %v2462 = vshrl.u32 %v2317, 16
        %v2464 = vrot.slane %v2462, 4
        %v2465 = vor.u32 %v2464, %v2460
        %v2466 = vrot.slane %v2465, 4
        %v2468 = vshll.u32 %v2318, 16
        %v2470 = vrot.slane %v2468, 5
        %v2471 = vsel %vm452, %v2466, %v2470
        %v2473 = vshrl.u32 %v2319, 16
        %v2475 = vrot.slane %v2473, 4
        %v2476 = vshll.u32 %v2319, 16
        %v2478 = vrot.slane %v2476, 5
        %v2479 = vor.u32 %v2475, %v2478
        %v2480 = vrot.slane %v2479, 4
        %v2482 = vshll.u32 %v2320, 16
        %v2484 = vrot.slane %v2482, 5
        %v2485 = vsel %vm452, %v2480, %v2484
        %v2486 = vshrl.u32 %v2320, 16
        %v2488 = vrot.slane %v2486, 4
        %v2489 = vor.u32 %v2488, %v2484
        %v2490 = vrot.slane %v2489, 4
        %v2492 = vshll.u32 %v2321, 16
        %v2494 = vrot.slane %v2492, 5
        %v2495 = vsel %vm452, %v2490, %v2494
        %v2497 = vshrl.u32 %v2322, 16
        %v2499 = vrot.slane %v2497, 4
        %v2500 = vshll.u32 %v2322, 16
        %v2502 = vrot.slane %v2500, 5
        %v2503 = vor.u32 %v2499, %v2502
        %v2504 = vrot.slane %v2503, 4
        %v2506 = vshll.u32 %v2323, 16
        %v2508 = vrot.slane %v2506, 5
        %v2509 = vsel %vm452, %v2504, %v2508
        %v2510 = vshrl.u32 %v2323, 16
        %v2512 = vrot.slane %v2510, 4
        %v2513 = vor.u32 %v2512, %v2508
        %v2514 = vrot.slane %v2513, 4
        %v2516 = vshll.u32 %v2324, 16
        %v2518 = vrot.slane %v2516, 5
        %v2519 = vsel %vm452, %v2514, %v2518
        %v2521 = vshrl.u32 %v2325, 16
        %v2523 = vrot.slane %v2521, 4
        %v2524 = vshll.u32 %v2325, 16
        %v2526 = vrot.slane %v2524, 5
        %v2527 = vor.u32 %v2523, %v2526
        %v2528 = vrot.slane %v2527, 4
        %v2530 = vshll.u32 %v2326, 16
        %v2532 = vrot.slane %v2530, 5
        %v2533 = vsel %vm452, %v2528, %v2532
        %v2534 = vshrl.u32 %v2326, 16
        %v2536 = vrot.slane %v2534, 4
        %v2537 = vor.u32 %v2536, %v2532
        %v2538 = vrot.slane %v2537, 4
        %v2540 = vshll.u32 %v2327, 16
        %v2542 = vrot.slane %v2540, 5
        %v2543 = vsel %vm452, %v2538, %v2542
        %v2545 = vshrl.u32 %v2328, 16
        %v2547 = vrot.slane %v2545, 4
        %v2548 = vshll.u32 %v2328, 16
        %v2550 = vrot.slane %v2548, 5
        %v2551 = vor.u32 %v2547, %v2550
        %v2552 = vrot.slane %v2551, 4
        %v2554 = vshll.u32 %v2329, 16
        %v2556 = vrot.slane %v2554, 5
        %v2557 = vsel %vm452, %v2552, %v2556
        %v2558 = vshrl.u32 %v2329, 16
        %v2560 = vrot.slane %v2558, 4
        %v2561 = vor.u32 %v2560, %v2556
        %v2562 = vrot.slane %v2561, 4
        %v2564 = vshll.u32 %v2330, 16
        %v2566 = vrot.slane %v2564, 5
        %v2567 = vsel %vm452, %v2562, %v2566
        %v2569 = vshrl.u32 %v2331, 16
        %v2571 = vrot.slane %v2569, 4
        %v2572 = vshll.u32 %v2331, 16
        %v2574 = vrot.slane %v2572, 5
        %v2575 = vor.u32 %v2571, %v2574
        %v2576 = vrot.slane %v2575, 4
        %v2578 = vshll.u32 %v2332, 16
        %v2580 = vrot.slane %v2578, 5
        %v2581 = vsel %vm452, %v2576, %v2580
        %v2582 = vshrl.u32 %v2332, 16
        %v2584 = vrot.slane %v2582, 4
        %v2585 = vor.u32 %v2584, %v2580
        %v2586 = vrot.slane %v2585, 4
        %v2588 = vshll.u32 %v2333, 16
        %v2590 = vrot.slane %v2588, 5
        %v2591 = vsel %vm452, %v2586, %v2590
        %v2593 = vshrl.u32 %v2334, 16
        %v2595 = vrot.slane %v2593, 4
        %v2596 = vshll.u32 %v2334, 16
        %v2598 = vrot.slane %v2596, 5
        %v2599 = vor.u32 %v2595, %v2598
        %v2600 = vrot.slane %v2599, 4
        %v2602 = vshll.u32 %v2335, 16
        %v2604 = vrot.slane %v2602, 5
        %v2605 = vsel %vm452, %v2600, %v2604
        %v2606 = vshrl.u32 %v2335, 16
        %v2608 = vrot.slane %v2606, 4
        %v2609 = vor.u32 %v2608, %v2604
        %v2610 = vrot.slane %v2609, 4
        %v2612 = vshll.u32 %v2336, 16
        %v2614 = vrot.slane %v2612, 5
        %v2615 = vsel %vm452, %v2610, %v2614
        %v2617 = vshrl.u32 %v2337, 16
        %v2619 = vrot.slane %v2617, 4
        %v2620 = vshll.u32 %v2337, 16
        %v2622 = vrot.slane %v2620, 5
        %v2623 = vor.u32 %v2619, %v2622
        %v2624 = vrot.slane %v2623, 4
        %v2626 = vshll.u32 %v2338, 16
        %v2628 = vrot.slane %v2626, 5
        %v2629 = vsel %vm452, %v2624, %v2628
        %v2630 = vshrl.u32 %v2338, 16
        %v2632 = vrot.slane %v2630, 4
        %v2633 = vor.u32 %v2632, %v2628
        %v2634 = vrot.slane %v2633, 4
        %v2636 = vshll.u32 %v2339, 16
        %v2638 = vrot.slane %v2636, 5
        %v2639 = vsel %vm452, %v2634, %v2638
        %v2641 = vshrl.u32 %v2340, 16
        %v2643 = vrot.slane %v2641, 4
        %v2644 = vshll.u32 %v2340, 16
        %v2646 = vrot.slane %v2644, 5
        %v2647 = vor.u32 %v2643, %v2646
        %v2648 = vrot.slane %v2647, 4
        %v2650 = vshll.u32 %v2341, 16
        %v2652 = vrot.slane %v2650, 5
        %v2653 = vsel %vm452, %v2648, %v2652
        %v2654 = vshrl.u32 %v2341, 16
        %v2656 = vrot.slane %v2654, 4
        %v2657 = vor.u32 %v2656, %v2652
        %v2658 = vrot.slane %v2657, 4
        %v2660 = vshll.u32 %v2342, 16
        %v2662 = vrot.slane %v2660, 5
        %v2663 = vsel %vm452, %v2658, %v2662
        %v2665 = vshrl.u32 %v2343, 16
        %v2667 = vrot.slane %v2665, 4
        %v2668 = vshll.u32 %v2343, 16
        %v2670 = vrot.slane %v2668, 5
        %v2671 = vor.u32 %v2667, %v2670
        %v2672 = vrot.slane %v2671, 4
        %v2674 = vshll.u32 %v2344, 16
        %v2676 = vrot.slane %v2674, 5
        %v2677 = vsel %vm452, %v2672, %v2676
        %v2678 = vshrl.u32 %v2344, 16
        %v2680 = vrot.slane %v2678, 4
        %v2681 = vor.u32 %v2680, %v2676
        %v2682 = vrot.slane %v2681, 4
        %v2684 = vshll.u32 %v2345, 16
        %v2686 = vrot.slane %v2684, 5
        %v2687 = vsel %vm452, %v2682, %v2686
        %v2689 = vshrl.u32 %v2346, 16
        %v2691 = vrot.slane %v2689, 4
        %v2692 = vshll.u32 %v2346, 16
        %v2694 = vrot.slane %v2692, 5
        %v2695 = vor.u32 %v2691, %v2694
        %v2696 = vrot.slane %v2695, 4
        %v2698 = vshll.u32 %v2347, 16
        %v2700 = vrot.slane %v2698, 5
        %v2701 = vsel %vm452, %v2696, %v2700
        %v2702 = vshrl.u32 %v2347, 16
        %v2704 = vrot.slane %v2702, 4
        %v2705 = vor.u32 %v2704, %v2700
        %v2706 = vrot.slane %v2705, 4
        %v2708 = vshll.u32 %v2348, 16
        %v2710 = vrot.slane %v2708, 5
        %v2711 = vsel %vm452, %v2706, %v2710
        %v2713 = vshrl.u32 %v2349, 16
        %v2715 = vrot.slane %v2713, 4
        %v2716 = vshll.u32 %v2349, 16
        %v2718 = vrot.slane %v2716, 5
        %v2719 = vor.u32 %v2715, %v2718
        %v2720 = vrot.slane %v2719, 4
        %v2722 = vshll.u32 %v2350, 16
        %v2724 = vrot.slane %v2722, 5
        %v2725 = vsel %vm452, %v2720, %v2724
        %v2726 = vshrl.u32 %v2350, 16
        %v2728 = vrot.slane %v2726, 4
        %v2729 = vor.u32 %v2728, %v2724
        %v2730 = vrot.slane %v2729, 4
        %v2732 = vshll.u32 %v2351, 16
        %v2734 = vrot.slane %v2732, 5
        %v2735 = vsel %vm452, %v2730, %v2734
        %s2736 = scalar_lea.vmem %s1, 256
        %v2737 = vld [vmem:[%s2736] sm:$0xf]
        %v2738 = vld [vmem:[%s2736 + $0x4] sm:$0xf]
        %v2739 = vld [vmem:[%s2736 + $0x8] sm:$0xf]
        %v2740 = vld [vmem:[%s2736 + $0xc] sm:$0xf]
        %v2741 = vld [vmem:[%s2736 + $0x10] sm:$0xf]
        %v2742 = vld [vmem:[%s2736 + $0x14] sm:$0xf]
        %v2743 = vld [vmem:[%s2736 + $0x18] sm:$0xf]
        %v2744 = vld [vmem:[%s2736 + $0x1c] sm:$0xf]
        %v2745 = vld [vmem:[%s2736 + $0x20] sm:$0xf]
        %v2746 = vld [vmem:[%s2736 + $0x24] sm:$0xf]
        %v2747 = vld [vmem:[%s2736 + $0x28] sm:$0xf]
        %v2748 = vld [vmem:[%s2736 + $0x2c] sm:$0xf]
        %v2749 = vld [vmem:[%s2736 + $0x30] sm:$0xf]
        %v2750 = vld [vmem:[%s2736 + $0x34] sm:$0xf]
        %v2751 = vld [vmem:[%s2736 + $0x38] sm:$0xf]
        %v2752 = vld [vmem:[%s2736 + $0x3c] sm:$0xf]
        %v2753 = vunpack.c.l.b16 %v2365
        %v2754 = vunpack.c.l.b16 %v2375
        %v2755 = vunpack.c.l.b16 %v2389
        %v2756 = vunpack.c.l.b16 %v2399
        %v2757 = vunpack.c.l.b16 %v2413
        %v2758 = vunpack.c.l.b16 %v2423
        %v2759 = vunpack.c.l.b16 %v2437
        %v2760 = vunpack.c.l.b16 %v2447
        %v2761 = vunpack.c.l.b16 %v2461
        %v2762 = vunpack.c.l.b16 %v2471
        %v2763 = vunpack.c.l.b16 %v2485
        %v2764 = vunpack.c.l.b16 %v2495
        %v2765 = vunpack.c.l.b16 %v2509
        %v2766 = vunpack.c.l.b16 %v2519
        %v2767 = vunpack.c.l.b16 %v2533
        %v2768 = vunpack.c.l.b16 %v2543
        %v2769 = vunpack.c.l.b16 %v2557
        %v2770 = vunpack.c.l.b16 %v2567
        %v2771 = vunpack.c.l.b16 %v2581
        %v2772 = vunpack.c.l.b16 %v2591
        %v2773 = vunpack.c.l.b16 %v2605
        %v2774 = vunpack.c.l.b16 %v2615
        %v2775 = vunpack.c.l.b16 %v2629
        %v2776 = vunpack.c.l.b16 %v2639
        %v2777 = vunpack.c.l.b16 %v2653
        %v2778 = vunpack.c.l.b16 %v2663
        %v2779 = vunpack.c.l.b16 %v2677
        %v2780 = vunpack.c.l.b16 %v2687
        %v2781 = vunpack.c.l.b16 %v2701
        %v2782 = vunpack.c.l.b16 %v2711
        %v2783 = vunpack.c.l.b16 %v2725
        %v2784 = vunpack.c.l.b16 %v2735
        %v2785 = vpack.c.b16 %v2754, %v2753
        %v2786 = vpack.c.b16 %v2756, %v2755
        %v2787 = vpack.c.b16 %v2758, %v2757
        %v2788 = vpack.c.b16 %v2760, %v2759
        %v2789 = vpack.c.b16 %v2762, %v2761
        %v2790 = vpack.c.b16 %v2764, %v2763
        %v2791 = vpack.c.b16 %v2766, %v2765
        %v2792 = vpack.c.b16 %v2768, %v2767
        %v2793 = vpack.c.b16 %v2770, %v2769
        %v2794 = vpack.c.b16 %v2772, %v2771
        %v2795 = vpack.c.b16 %v2774, %v2773
        %v2796 = vpack.c.b16 %v2776, %v2775
        %v2797 = vpack.c.b16 %v2778, %v2777
        %v2798 = vpack.c.b16 %v2780, %v2779
        %v2799 = vpack.c.b16 %v2782, %v2781
        %v2800 = vpack.c.b16 %v2784, %v2783
        %v2833 = vunpack.c.l.b16 %v2737
        %v2834 = vunpack.c.l.b16 %v2738
        %v2835 = vunpack.c.l.b16 %v2739
        %v2836 = vunpack.c.l.b16 %v2740
        %v2837 = vunpack.c.l.b16 %v2741
        %v2838 = vunpack.c.l.b16 %v2742
        %v2839 = vunpack.c.l.b16 %v2743
        %v2840 = vunpack.c.l.b16 %v2744
        %v2841 = vunpack.c.l.b16 %v2745
        %v2842 = vunpack.c.l.b16 %v2746
        %v2843 = vunpack.c.l.b16 %v2747
        %v2844 = vunpack.c.l.b16 %v2748
        %v2845 = vunpack.c.l.b16 %v2749
        %v2846 = vunpack.c.l.b16 %v2750
        %v2847 = vunpack.c.l.b16 %v2751
        %v2848 = vunpack.c.l.b16 %v2752
        %v2849 = vpack.c.b16 %v2834, %v2833
        %v2850 = vpack.c.b16 %v2836, %v2835
        %v2851 = vpack.c.b16 %v2838, %v2837
        %v2852 = vpack.c.b16 %v2840, %v2839
        %v2853 = vpack.c.b16 %v2842, %v2841
        %v2854 = vpack.c.b16 %v2844, %v2843
        %v2855 = vpack.c.b16 %v2846, %v2845
        %v2856 = vpack.c.b16 %v2848, %v2847
        %2865 = vmatprep.subr.bf16.mxu0 0
        %2866 = vmatpush1.bf16.msra.mxu0 %v2856
        %2867 = vmatprep.subr.bf16.mxu0 0
        %2868 = vmatpush1.bf16.msra.mxu0 %v2855
        %2869 = vmatprep.subr.bf16.mxu0 0
        %2870 = vmatpush1.bf16.msra.mxu0 %v2854
        %2871 = vmatprep.subr.bf16.mxu0 0
        %2872 = vmatpush1.bf16.msra.mxu0 %v2853
        %2873 = vmatprep.subr.bf16.mxu0 0
        %2874 = vmatpush1.bf16.msra.mxu0 %v2852
        %2875 = vmatprep.subr.bf16.mxu0 0
        %2876 = vmatpush1.bf16.msra.mxu0 %v2851
        %2877 = vmatprep.subr.bf16.mxu0 0
        %2878 = vmatpush1.bf16.msra.mxu0 %v2850
        %2879 = vmatprep.subr.bf16.mxu0 0
        %2880 = vmatpush1.bf16.msra.mxu0 %v2849
        %2881 = vmatprep.subr.bf16.mxu0 0
        %2882 = vmatpush2.bf16.msra.mxu0 0
        %2883 = vmatprep.subr.bf16.mxu0 0
        %2884 = vmatpush2.bf16.msra.mxu0 0
        %2885 = vmatprep.subr.bf16.mxu0 0
        %2886 = vmatpush2.bf16.msra.mxu0 0
        %2887 = vmatprep.subr.bf16.mxu0 0
        %2888 = vmatpush2.bf16.msra.mxu0 0
        %2889 = vmatprep.subr.bf16.mxu0 0
        %2890 = vmatpush2.bf16.msra.mxu0 0
        %2891 = vmatprep.subr.bf16.mxu0 0
        %2892 = vmatpush2.bf16.msra.mxu0 0
        %2893 = vmatprep.subr.bf16.mxu0 0
        %2894 = vmatpush2.bf16.msra.mxu0 0
        %2895 = vmatprep.subr.bf16.mxu0 0
        %2896 = vmatpush2.bf16.msra.mxu0 0
        %2897 = vmatprep.mubr.bf16.mxu0 0
        %2898 = vmatmul.mubr.bf16.gmra.mxu0 %v2785
        %v2899 = vpop.f32.mrf.mxu0
        %v2900 = vadd.f32 0.0, %v2899
        %v2901 = vpop.f32.mrf.mxu0
        %v2902 = vpop.f32.mrf.mxu0
        %v2903 = vadd.f32 0.0, %v2902
        %v2904 = vpop.f32.mrf.mxu0
        %2905 = vmatprep.mubr.bf16.mxu0 0
        %2906 = vmatmul.mubr.bf16.gmra.mxu0 %v2786
        %v2907 = vpop.f32.mrf.mxu0
        %v2908 = vadd.f32 0.0, %v2907
        %v2909 = vpop.f32.mrf.mxu0
        %v2910 = vpop.f32.mrf.mxu0
        %v2911 = vadd.f32 0.0, %v2910
        %v2912 = vpop.f32.mrf.mxu0
        %2913 = vmatprep.mubr.bf16.mxu0 0
        %2914 = vmatmul.mubr.bf16.gmra.mxu0 %v2787
        %v2915 = vpop.f32.mrf.mxu0
        %v2916 = vadd.f32 0.0, %v2915
        %v2917 = vpop.f32.mrf.mxu0
        %v2918 = vpop.f32.mrf.mxu0
        %v2919 = vadd.f32 0.0, %v2918
        %v2920 = vpop.f32.mrf.mxu0
        %2921 = vmatprep.mubr.bf16.mxu0 0
        %2922 = vmatmul.mubr.bf16.gmra.mxu0 %v2788
        %v2923 = vpop.f32.mrf.mxu0
        %v2924 = vadd.f32 0.0, %v2923
        %v2925 = vpop.f32.mrf.mxu0
        %v2926 = vpop.f32.mrf.mxu0
        %v2927 = vadd.f32 0.0, %v2926
        %v2928 = vpop.f32.mrf.mxu0
        %2929 = vmatprep.mubr.bf16.mxu0 0
        %2930 = vmatmul.mubr.bf16.gmra.mxu0 %v2789
        %v2931 = vpop.f32.mrf.mxu0
        %v2932 = vadd.f32 0.0, %v2931
        %v2933 = vpop.f32.mrf.mxu0
        %v2934 = vpop.f32.mrf.mxu0
        %v2935 = vadd.f32 0.0, %v2934
        %v2936 = vpop.f32.mrf.mxu0
        %2937 = vmatprep.mubr.bf16.mxu0 0
        %2938 = vmatmul.mubr.bf16.gmra.mxu0 %v2790
        %v2939 = vpop.f32.mrf.mxu0
        %v2940 = vadd.f32 0.0, %v2939
        %v2941 = vpop.f32.mrf.mxu0
        %v2942 = vpop.f32.mrf.mxu0
        %v2943 = vadd.f32 0.0, %v2942
        %v2944 = vpop.f32.mrf.mxu0
        %2945 = vmatprep.mubr.bf16.mxu0 0
        %2946 = vmatmul.mubr.bf16.gmra.mxu0 %v2791
        %v2947 = vpop.f32.mrf.mxu0
        %v2948 = vadd.f32 0.0, %v2947
        %v2949 = vpop.f32.mrf.mxu0
        %v2950 = vpop.f32.mrf.mxu0
        %v2951 = vadd.f32 0.0, %v2950
        %v2952 = vpop.f32.mrf.mxu0
        %2953 = vmatprep.mubr.bf16.mxu0 0
        %2954 = vmatmul.mubr.bf16.gmra.mxu0 %v2792
        %v2955 = vpop.f32.mrf.mxu0
        %v2956 = vadd.f32 0.0, %v2955
        %v2957 = vpop.f32.mrf.mxu0
        %v2958 = vpop.f32.mrf.mxu0
        %v2959 = vadd.f32 0.0, %v2958
        %v2960 = vpop.f32.mrf.mxu0
        %2961 = vmatprep.mubr.bf16.mxu0 0
        %2962 = vmatmul.mubr.bf16.gmra.mxu0 %v2793
        %v2963 = vpop.f32.mrf.mxu0
        %v2964 = vadd.f32 0.0, %v2963
        %v2965 = vpop.f32.mrf.mxu0
        %v2966 = vpop.f32.mrf.mxu0
        %v2967 = vadd.f32 0.0, %v2966
        %v2968 = vpop.f32.mrf.mxu0
        %2969 = vmatprep.mubr.bf16.mxu0 0
        %2970 = vmatmul.mubr.bf16.gmra.mxu0 %v2794
        %v2971 = vpop.f32.mrf.mxu0
        %v2972 = vadd.f32 0.0, %v2971
        %v2973 = vpop.f32.mrf.mxu0
        %v2974 = vpop.f32.mrf.mxu0
        %v2975 = vadd.f32 0.0, %v2974
        %v2976 = vpop.f32.mrf.mxu0
        %2977 = vmatprep.mubr.bf16.mxu0 0
        %2978 = vmatmul.mubr.bf16.gmra.mxu0 %v2795
        %v2979 = vpop.f32.mrf.mxu0
        %v2980 = vadd.f32 0.0, %v2979
        %v2981 = vpop.f32.mrf.mxu0
        %v2982 = vpop.f32.mrf.mxu0
        %v2983 = vadd.f32 0.0, %v2982
        %v2984 = vpop.f32.mrf.mxu0
        %2985 = vmatprep.mubr.bf16.mxu0 0
        %2986 = vmatmul.mubr.bf16.gmra.mxu0 %v2796
        %v2987 = vpop.f32.mrf.mxu0
        %v2988 = vadd.f32 0.0, %v2987
        %v2989 = vpop.f32.mrf.mxu0
        %v2990 = vpop.f32.mrf.mxu0
        %v2991 = vadd.f32 0.0, %v2990
        %v2992 = vpop.f32.mrf.mxu0
        %2993 = vmatprep.mubr.bf16.mxu0 0
        %2994 = vmatmul.mubr.bf16.gmra.mxu0 %v2797
        %v2995 = vpop.f32.mrf.mxu0
        %v2996 = vadd.f32 0.0, %v2995
        %v2997 = vpop.f32.mrf.mxu0
        %v2998 = vpop.f32.mrf.mxu0
        %v2999 = vadd.f32 0.0, %v2998
        %v3000 = vpop.f32.mrf.mxu0
        %3001 = vmatprep.mubr.bf16.mxu0 0
        %3002 = vmatmul.mubr.bf16.gmra.mxu0 %v2798
        %v3003 = vpop.f32.mrf.mxu0
        %v3004 = vadd.f32 0.0, %v3003
        %v3005 = vpop.f32.mrf.mxu0
        %v3006 = vpop.f32.mrf.mxu0
        %v3007 = vadd.f32 0.0, %v3006
        %v3008 = vpop.f32.mrf.mxu0
        %3009 = vmatprep.mubr.bf16.mxu0 0
        %3010 = vmatmul.mubr.bf16.gmra.mxu0 %v2799
        %v3011 = vpop.f32.mrf.mxu0
        %v3012 = vadd.f32 0.0, %v3011
        %v3013 = vpop.f32.mrf.mxu0
        %v3014 = vpop.f32.mrf.mxu0
        %v3015 = vadd.f32 0.0, %v3014
        %v3016 = vpop.f32.mrf.mxu0
        %3017 = vmatprep.mubr.bf16.mxu0 0
        %3018 = vmatmul.mubr.bf16.gmra.mxu0 %v2800
        %v3019 = vpop.f32.mrf.mxu0
        %v3020 = vadd.f32 0.0, %v3019
        %v3021 = vpop.f32.mrf.mxu0
        %v3022 = vpop.f32.mrf.mxu0
        %v3023 = vadd.f32 0.0, %v3022
        %v3024 = vpop.f32.mrf.mxu0
        %3025 = vdwg.mxu0
        %v3026 = vadd.f32 %v2272, %v2900
        %v3027 = vadd.f32 %v2273, %v2903
        %v3028 = vadd.f32 %v2274, %v2908
        %v3029 = vadd.f32 %v2275, %v2911
        %v3030 = vadd.f32 %v2276, %v2916
        %v3031 = vadd.f32 %v2277, %v2919
        %v3032 = vadd.f32 %v2278, %v2924
        %v3033 = vadd.f32 %v2279, %v2927
        %v3034 = vadd.f32 %v2280, %v2932
        %v3035 = vadd.f32 %v2281, %v2935
        %v3036 = vadd.f32 %v2282, %v2940
        %v3037 = vadd.f32 %v2283, %v2943
        %v3038 = vadd.f32 %v2284, %v2948
        %v3039 = vadd.f32 %v2285, %v2951
        %v3040 = vadd.f32 %v2286, %v2956
        %v3041 = vadd.f32 %v2287, %v2959
        %v3042 = vadd.f32 %v2288, %v2964
        %v3043 = vadd.f32 %v2289, %v2967
        %v3044 = vadd.f32 %v2290, %v2972
        %v3045 = vadd.f32 %v2291, %v2975
        %v3046 = vadd.f32 %v2292, %v2980
        %v3047 = vadd.f32 %v2293, %v2983
        %v3048 = vadd.f32 %v2294, %v2988
        %v3049 = vadd.f32 %v2295, %v2991
        %v3050 = vadd.f32 %v2296, %v2996
        %v3051 = vadd.f32 %v2297, %v2999
        %v3052 = vadd.f32 %v2298, %v3004
        %v3053 = vadd.f32 %v2299, %v3007
        %v3054 = vadd.f32 %v2300, %v3012
        %v3055 = vadd.f32 %v2301, %v3015
        %v3056 = vadd.f32 %v2302, %v3020
        %v3057 = vadd.f32 %v2303, %v3023
        %v3058 = vld [vmem:[%s1917] sm:$0xe]
        %v3059 = vld [vmem:[%s1917 + $0xc] sm:$0xe]
        %v3060 = vld [vmem:[%s1917 + $0x18] sm:$0xe]
        %v3061 = vld [vmem:[%s1917 + $0x24] sm:$0xe]
        %v3062 = vld [vmem:[%s1917 + $0x30] sm:$0xe]
        %v3063 = vld [vmem:[%s1917 + $0x3c] sm:$0xe]
        %v3064 = vld [vmem:[%s1917 + $0x48] sm:$0xe]
        %v3065 = vld [vmem:[%s1917 + $0x54] sm:$0xe]
        %v3066 = vld [vmem:[%s1917 + $0x60] sm:$0xe]
        %v3067 = vld [vmem:[%s1917 + $0x6c] sm:$0xe]
        %v3068 = vld [vmem:[%s1917 + $0x78] sm:$0xe]
        %v3069 = vld [vmem:[%s1917 + $0x84] sm:$0xe]
        %v3070 = vld [vmem:[%s1917 + $0x90] sm:$0xe]
        %v3071 = vld [vmem:[%s1917 + $0x9c] sm:$0xe]
        %v3072 = vld [vmem:[%s1917 + $0xa8] sm:$0xe]
        %v3073 = vld [vmem:[%s1917 + $0xb4] sm:$0xe]
        %v3122 = vrot.slane %v3058, 5
        %v3123 = vrot.slane %v3122, 4
        %v3124 = vrot.slane %v2305, 5
        %v3125 = vsel %vm1482, %v3123, %v3124
        %v3126 = vrot.slane %v3124, 4
        %v3127 = vrot.slane %v2306, 5
        %v3128 = vsel %vm1482, %v3126, %v3127
        %v3129 = vrot.slane %v3059, 5
        %v3130 = vrot.slane %v3129, 4
        %v3131 = vrot.slane %v2308, 5
        %v3132 = vsel %vm1482, %v3130, %v3131
        %v3133 = vrot.slane %v3131, 4
        %v3134 = vrot.slane %v2309, 5
        %v3135 = vsel %vm1482, %v3133, %v3134
        %v3136 = vrot.slane %v3060, 5
        %v3137 = vrot.slane %v3136, 4
        %v3138 = vrot.slane %v2311, 5
        %v3139 = vsel %vm1482, %v3137, %v3138
        %v3140 = vrot.slane %v3138, 4
        %v3141 = vrot.slane %v2312, 5
        %v3142 = vsel %vm1482, %v3140, %v3141
        %v3143 = vrot.slane %v3061, 5
        %v3144 = vrot.slane %v3143, 4
        %v3145 = vrot.slane %v2314, 5
        %v3146 = vsel %vm1482, %v3144, %v3145
        %v3147 = vrot.slane %v3145, 4
        %v3148 = vrot.slane %v2315, 5
        %v3149 = vsel %vm1482, %v3147, %v3148
        %v3150 = vrot.slane %v3062, 5
        %v3151 = vrot.slane %v3150, 4
        %v3152 = vrot.slane %v2317, 5
        %v3153 = vsel %vm1482, %v3151, %v3152
        %v3154 = vrot.slane %v3152, 4
        %v3155 = vrot.slane %v2318, 5
        %v3156 = vsel %vm1482, %v3154, %v3155
        %v3157 = vrot.slane %v3063, 5
        %v3158 = vrot.slane %v3157, 4
        %v3159 = vrot.slane %v2320, 5
        %v3160 = vsel %vm1482, %v3158, %v3159
        %v3161 = vrot.slane %v3159, 4
        %v3162 = vrot.slane %v2321, 5
        %v3163 = vsel %vm1482, %v3161, %v3162
        %v3164 = vrot.slane %v3064, 5
        %v3165 = vrot.slane %v3164, 4
        %v3166 = vrot.slane %v2323, 5
        %v3167 = vsel %vm1482, %v3165, %v3166
        %v3168 = vrot.slane %v3166, 4
        %v3169 = vrot.slane %v2324, 5
        %v3170 = vsel %vm1482, %v3168, %v3169
        %v3171 = vrot.slane %v3065, 5
        %v3172 = vrot.slane %v3171, 4
        %v3173 = vrot.slane %v2326, 5
        %v3174 = vsel %vm1482, %v3172, %v3173
        %v3175 = vrot.slane %v3173, 4
        %v3176 = vrot.slane %v2327, 5
        %v3177 = vsel %vm1482, %v3175, %v3176
        %v3178 = vrot.slane %v3066, 5
        %v3179 = vrot.slane %v3178, 4
        %v3180 = vrot.slane %v2329, 5
        %v3181 = vsel %vm1482, %v3179, %v3180
        %v3182 = vrot.slane %v3180, 4
        %v3183 = vrot.slane %v2330, 5
        %v3184 = vsel %vm1482, %v3182, %v3183
        %v3185 = vrot.slane %v3067, 5
        %v3186 = vrot.slane %v3185, 4
        %v3187 = vrot.slane %v2332, 5
        %v3188 = vsel %vm1482, %v3186, %v3187
        %v3189 = vrot.slane %v3187, 4
        %v3190 = vrot.slane %v2333, 5
        %v3191 = vsel %vm1482, %v3189, %v3190
        %v3192 = vrot.slane %v3068, 5
        %v3193 = vrot.slane %v3192, 4
        %v3194 = vrot.slane %v2335, 5
        %v3195 = vsel %vm1482, %v3193, %v3194
        %v3196 = vrot.slane %v3194, 4
        %v3197 = vrot.slane %v2336, 5
        %v3198 = vsel %vm1482, %v3196, %v3197
        %v3199 = vrot.slane %v3069, 5
        %v3200 = vrot.slane %v3199, 4
        %v3201 = vrot.slane %v2338, 5
        %v3202 = vsel %vm1482, %v3200, %v3201
        %v3203 = vrot.slane %v3201, 4
        %v3204 = vrot.slane %v2339, 5
        %v3205 = vsel %vm1482, %v3203, %v3204
        %v3206 = vrot.slane %v3070, 5
        %v3207 = vrot.slane %v3206, 4
        %v3208 = vrot.slane %v2341, 5
        %v3209 = vsel %vm1482, %v3207, %v3208
        %v3210 = vrot.slane %v3208, 4
        %v3211 = vrot.slane %v2342, 5
        %v3212 = vsel %vm1482, %v3210, %v3211
        %v3213 = vrot.slane %v3071, 5
        %v3214 = vrot.slane %v3213, 4
        %v3215 = vrot.slane %v2344, 5
        %v3216 = vsel %vm1482, %v3214, %v3215
        %v3217 = vrot.slane %v3215, 4
        %v3218 = vrot.slane %v2345, 5
        %v3219 = vsel %vm1482, %v3217, %v3218
        %v3220 = vrot.slane %v3072, 5
        %v3221 = vrot.slane %v3220, 4
        %v3222 = vrot.slane %v2347, 5
        %v3223 = vsel %vm1482, %v3221, %v3222
        %v3224 = vrot.slane %v3222, 4
        %v3225 = vrot.slane %v2348, 5
        %v3226 = vsel %vm1482, %v3224, %v3225
        %v3227 = vrot.slane %v3073, 5
        %v3228 = vrot.slane %v3227, 4
        %v3229 = vrot.slane %v2350, 5
        %v3230 = vsel %vm1482, %v3228, %v3229
        %v3231 = vrot.slane %v3229, 4
        %v3232 = vrot.slane %v2351, 5
        %v3233 = vsel %vm1482, %v3231, %v3232
        %s3234 = scalar_lea.vmem %s1, 320
        %v3235 = vld [vmem:[%s3234] sm:$0xf]
        %v3236 = vld [vmem:[%s3234 + $0x4] sm:$0xf]
        %v3237 = vld [vmem:[%s3234 + $0x8] sm:$0xf]
        %v3238 = vld [vmem:[%s3234 + $0xc] sm:$0xf]
        %v3239 = vld [vmem:[%s3234 + $0x10] sm:$0xf]
        %v3240 = vld [vmem:[%s3234 + $0x14] sm:$0xf]
        %v3241 = vld [vmem:[%s3234 + $0x18] sm:$0xf]
        %v3242 = vld [vmem:[%s3234 + $0x1c] sm:$0xf]
        %v3243 = vld [vmem:[%s3234 + $0x20] sm:$0xf]
        %v3244 = vld [vmem:[%s3234 + $0x24] sm:$0xf]
        %v3245 = vld [vmem:[%s3234 + $0x28] sm:$0xf]
        %v3246 = vld [vmem:[%s3234 + $0x2c] sm:$0xf]
        %v3247 = vld [vmem:[%s3234 + $0x30] sm:$0xf]
        %v3248 = vld [vmem:[%s3234 + $0x34] sm:$0xf]
        %v3249 = vld [vmem:[%s3234 + $0x38] sm:$0xf]
        %v3250 = vld [vmem:[%s3234 + $0x3c] sm:$0xf]
        %v3251 = vunpack.c.l.b16 %v3125
        %v3252 = vunpack.c.l.b16 %v3128
        %v3253 = vunpack.c.l.b16 %v3132
        %v3254 = vunpack.c.l.b16 %v3135
        %v3255 = vunpack.c.l.b16 %v3139
        %v3256 = vunpack.c.l.b16 %v3142
        %v3257 = vunpack.c.l.b16 %v3146
        %v3258 = vunpack.c.l.b16 %v3149
        %v3259 = vunpack.c.l.b16 %v3153
        %v3260 = vunpack.c.l.b16 %v3156
        %v3261 = vunpack.c.l.b16 %v3160
        %v3262 = vunpack.c.l.b16 %v3163
        %v3263 = vunpack.c.l.b16 %v3167
        %v3264 = vunpack.c.l.b16 %v3170
        %v3265 = vunpack.c.l.b16 %v3174
        %v3266 = vunpack.c.l.b16 %v3177
        %v3267 = vunpack.c.l.b16 %v3181
        %v3268 = vunpack.c.l.b16 %v3184
        %v3269 = vunpack.c.l.b16 %v3188
        %v3270 = vunpack.c.l.b16 %v3191
        %v3271 = vunpack.c.l.b16 %v3195
        %v3272 = vunpack.c.l.b16 %v3198
        %v3273 = vunpack.c.l.b16 %v3202
        %v3274 = vunpack.c.l.b16 %v3205
        %v3275 = vunpack.c.l.b16 %v3209
        %v3276 = vunpack.c.l.b16 %v3212
        %v3277 = vunpack.c.l.b16 %v3216
        %v3278 = vunpack.c.l.b16 %v3219
        %v3279 = vunpack.c.l.b16 %v3223
        %v3280 = vunpack.c.l.b16 %v3226
        %v3281 = vunpack.c.l.b16 %v3230
        %v3282 = vunpack.c.l.b16 %v3233
        %v3283 = vpack.c.b16 %v3252, %v3251
        %v3284 = vpack.c.b16 %v3254, %v3253
        %v3285 = vpack.c.b16 %v3256, %v3255
        %v3286 = vpack.c.b16 %v3258, %v3257
        %v3287 = vpack.c.b16 %v3260, %v3259
        %v3288 = vpack.c.b16 %v3262, %v3261
        %v3289 = vpack.c.b16 %v3264, %v3263
        %v3290 = vpack.c.b16 %v3266, %v3265
        %v3291 = vpack.c.b16 %v3268, %v3267
        %v3292 = vpack.c.b16 %v3270, %v3269
        %v3293 = vpack.c.b16 %v3272, %v3271
        %v3294 = vpack.c.b16 %v3274, %v3273
        %v3295 = vpack.c.b16 %v3276, %v3275
        %v3296 = vpack.c.b16 %v3278, %v3277
        %v3297 = vpack.c.b16 %v3280, %v3279
        %v3298 = vpack.c.b16 %v3282, %v3281
        %v3331 = vunpack.c.l.b16 %v3235
        %v3332 = vunpack.c.l.b16 %v3236
        %v3333 = vunpack.c.l.b16 %v3237
        %v3334 = vunpack.c.l.b16 %v3238
        %v3335 = vunpack.c.l.b16 %v3239
        %v3336 = vunpack.c.l.b16 %v3240
        %v3337 = vunpack.c.l.b16 %v3241
        %v3338 = vunpack.c.l.b16 %v3242
        %v3339 = vunpack.c.l.b16 %v3243
        %v3340 = vunpack.c.l.b16 %v3244
        %v3341 = vunpack.c.l.b16 %v3245
        %v3342 = vunpack.c.l.b16 %v3246
        %v3343 = vunpack.c.l.b16 %v3247
        %v3344 = vunpack.c.l.b16 %v3248
        %v3345 = vunpack.c.l.b16 %v3249
        %v3346 = vunpack.c.l.b16 %v3250
        %v3347 = vpack.c.b16 %v3332, %v3331
        %v3348 = vpack.c.b16 %v3334, %v3333
        %v3349 = vpack.c.b16 %v3336, %v3335
        %v3350 = vpack.c.b16 %v3338, %v3337
        %v3351 = vpack.c.b16 %v3340, %v3339
        %v3352 = vpack.c.b16 %v3342, %v3341
        %v3353 = vpack.c.b16 %v3344, %v3343
        %v3354 = vpack.c.b16 %v3346, %v3345
        %3363 = vmatprep.subr.bf16.mxu0 0
        %3364 = vmatpush1.bf16.msra.mxu0 %v3354
        %3365 = vmatprep.subr.bf16.mxu0 0
        %3366 = vmatpush1.bf16.msra.mxu0 %v3353
        %3367 = vmatprep.subr.bf16.mxu0 0
        %3368 = vmatpush1.bf16.msra.mxu0 %v3352
        %3369 = vmatprep.subr.bf16.mxu0 0
        %3370 = vmatpush1.bf16.msra.mxu0 %v3351
        %3371 = vmatprep.subr.bf16.mxu0 0
        %3372 = vmatpush1.bf16.msra.mxu0 %v3350
        %3373 = vmatprep.subr.bf16.mxu0 0
        %3374 = vmatpush1.bf16.msra.mxu0 %v3349
        %3375 = vmatprep.subr.bf16.mxu0 0
        %3376 = vmatpush1.bf16.msra.mxu0 %v3348
        %3377 = vmatprep.subr.bf16.mxu0 0
        %3378 = vmatpush1.bf16.msra.mxu0 %v3347
        %3379 = vmatprep.subr.bf16.mxu0 0
        %3380 = vmatpush2.bf16.msra.mxu0 0
        %3381 = vmatprep.subr.bf16.mxu0 0
        %3382 = vmatpush2.bf16.msra.mxu0 0
        %3383 = vmatprep.subr.bf16.mxu0 0
        %3384 = vmatpush2.bf16.msra.mxu0 0
        %3385 = vmatprep.subr.bf16.mxu0 0
        %3386 = vmatpush2.bf16.msra.mxu0 0
        %3387 = vmatprep.subr.bf16.mxu0 0
        %3388 = vmatpush2.bf16.msra.mxu0 0
        %3389 = vmatprep.subr.bf16.mxu0 0
        %3390 = vmatpush2.bf16.msra.mxu0 0
        %3391 = vmatprep.subr.bf16.mxu0 0
        %3392 = vmatpush2.bf16.msra.mxu0 0
        %3393 = vmatprep.subr.bf16.mxu0 0
        %3394 = vmatpush2.bf16.msra.mxu0 0
        %3395 = vmatprep.mubr.bf16.mxu0 0
        %3396 = vmatmul.mubr.bf16.gmra.mxu0 %v3283
        %v3397 = vpop.f32.mrf.mxu0
        %v3398 = vadd.f32 0.0, %v3397
        %v3399 = vpop.f32.mrf.mxu0
        %v3400 = vpop.f32.mrf.mxu0
        %v3401 = vadd.f32 0.0, %v3400
        %v3402 = vpop.f32.mrf.mxu0
        %3403 = vmatprep.mubr.bf16.mxu0 0
        %3404 = vmatmul.mubr.bf16.gmra.mxu0 %v3284
        %v3405 = vpop.f32.mrf.mxu0
        %v3406 = vadd.f32 0.0, %v3405
        %v3407 = vpop.f32.mrf.mxu0
        %v3408 = vpop.f32.mrf.mxu0
        %v3409 = vadd.f32 0.0, %v3408
        %v3410 = vpop.f32.mrf.mxu0
        %3411 = vmatprep.mubr.bf16.mxu0 0
        %3412 = vmatmul.mubr.bf16.gmra.mxu0 %v3285
        %v3413 = vpop.f32.mrf.mxu0
        %v3414 = vadd.f32 0.0, %v3413
        %v3415 = vpop.f32.mrf.mxu0
        %v3416 = vpop.f32.mrf.mxu0
        %v3417 = vadd.f32 0.0, %v3416
        %v3418 = vpop.f32.mrf.mxu0
        %3419 = vmatprep.mubr.bf16.mxu0 0
        %3420 = vmatmul.mubr.bf16.gmra.mxu0 %v3286
        %v3421 = vpop.f32.mrf.mxu0
        %v3422 = vadd.f32 0.0, %v3421
        %v3423 = vpop.f32.mrf.mxu0
        %v3424 = vpop.f32.mrf.mxu0
        %v3425 = vadd.f32 0.0, %v3424
        %v3426 = vpop.f32.mrf.mxu0
        %3427 = vmatprep.mubr.bf16.mxu0 0
        %3428 = vmatmul.mubr.bf16.gmra.mxu0 %v3287
        %v3429 = vpop.f32.mrf.mxu0
        %v3430 = vadd.f32 0.0, %v3429
        %v3431 = vpop.f32.mrf.mxu0
        %v3432 = vpop.f32.mrf.mxu0
        %v3433 = vadd.f32 0.0, %v3432
        %v3434 = vpop.f32.mrf.mxu0
        %3435 = vmatprep.mubr.bf16.mxu0 0
        %3436 = vmatmul.mubr.bf16.gmra.mxu0 %v3288
        %v3437 = vpop.f32.mrf.mxu0
        %v3438 = vadd.f32 0.0, %v3437
        %v3439 = vpop.f32.mrf.mxu0
        %v3440 = vpop.f32.mrf.mxu0
        %v3441 = vadd.f32 0.0, %v3440
        %v3442 = vpop.f32.mrf.mxu0
        %3443 = vmatprep.mubr.bf16.mxu0 0
        %3444 = vmatmul.mubr.bf16.gmra.mxu0 %v3289
        %v3445 = vpop.f32.mrf.mxu0
        %v3446 = vadd.f32 0.0, %v3445
        %v3447 = vpop.f32.mrf.mxu0
        %v3448 = vpop.f32.mrf.mxu0
        %v3449 = vadd.f32 0.0, %v3448
        %v3450 = vpop.f32.mrf.mxu0
        %3451 = vmatprep.mubr.bf16.mxu0 0
        %3452 = vmatmul.mubr.bf16.gmra.mxu0 %v3290
        %v3453 = vpop.f32.mrf.mxu0
        %v3454 = vadd.f32 0.0, %v3453
        %v3455 = vpop.f32.mrf.mxu0
        %v3456 = vpop.f32.mrf.mxu0
        %v3457 = vadd.f32 0.0, %v3456
        %v3458 = vpop.f32.mrf.mxu0
        %3459 = vmatprep.mubr.bf16.mxu0 0
        %3460 = vmatmul.mubr.bf16.gmra.mxu0 %v3291
        %v3461 = vpop.f32.mrf.mxu0
        %v3462 = vadd.f32 0.0, %v3461
        %v3463 = vpop.f32.mrf.mxu0
        %v3464 = vpop.f32.mrf.mxu0
        %v3465 = vadd.f32 0.0, %v3464
        %v3466 = vpop.f32.mrf.mxu0
        %3467 = vmatprep.mubr.bf16.mxu0 0
        %3468 = vmatmul.mubr.bf16.gmra.mxu0 %v3292
        %v3469 = vpop.f32.mrf.mxu0
        %v3470 = vadd.f32 0.0, %v3469
        %v3471 = vpop.f32.mrf.mxu0
        %v3472 = vpop.f32.mrf.mxu0
        %v3473 = vadd.f32 0.0, %v3472
        %v3474 = vpop.f32.mrf.mxu0
        %3475 = vmatprep.mubr.bf16.mxu0 0
        %3476 = vmatmul.mubr.bf16.gmra.mxu0 %v3293
        %v3477 = vpop.f32.mrf.mxu0
        %v3478 = vadd.f32 0.0, %v3477
        %v3479 = vpop.f32.mrf.mxu0
        %v3480 = vpop.f32.mrf.mxu0
        %v3481 = vadd.f32 0.0, %v3480
        %v3482 = vpop.f32.mrf.mxu0
        %3483 = vmatprep.mubr.bf16.mxu0 0
        %3484 = vmatmul.mubr.bf16.gmra.mxu0 %v3294
        %v3485 = vpop.f32.mrf.mxu0
        %v3486 = vadd.f32 0.0, %v3485
        %v3487 = vpop.f32.mrf.mxu0
        %v3488 = vpop.f32.mrf.mxu0
        %v3489 = vadd.f32 0.0, %v3488
        %v3490 = vpop.f32.mrf.mxu0
        %3491 = vmatprep.mubr.bf16.mxu0 0
        %3492 = vmatmul.mubr.bf16.gmra.mxu0 %v3295
        %v3493 = vpop.f32.mrf.mxu0
        %v3494 = vadd.f32 0.0, %v3493
        %v3495 = vpop.f32.mrf.mxu0
        %v3496 = vpop.f32.mrf.mxu0
        %v3497 = vadd.f32 0.0, %v3496
        %v3498 = vpop.f32.mrf.mxu0
        %3499 = vmatprep.mubr.bf16.mxu0 0
        %3500 = vmatmul.mubr.bf16.gmra.mxu0 %v3296
        %v3501 = vpop.f32.mrf.mxu0
        %v3502 = vadd.f32 0.0, %v3501
        %v3503 = vpop.f32.mrf.mxu0
        %v3504 = vpop.f32.mrf.mxu0
        %v3505 = vadd.f32 0.0, %v3504
        %v3506 = vpop.f32.mrf.mxu0
        %3507 = vmatprep.mubr.bf16.mxu0 0
        %3508 = vmatmul.mubr.bf16.gmra.mxu0 %v3297
        %v3509 = vpop.f32.mrf.mxu0
        %v3510 = vadd.f32 0.0, %v3509
        %v3511 = vpop.f32.mrf.mxu0
        %v3512 = vpop.f32.mrf.mxu0
        %v3513 = vadd.f32 0.0, %v3512
        %v3514 = vpop.f32.mrf.mxu0
        %3515 = vmatprep.mubr.bf16.mxu0 0
        %3516 = vmatmul.mubr.bf16.gmra.mxu0 %v3298
        %v3517 = vpop.f32.mrf.mxu0
        %v3518 = vadd.f32 0.0, %v3517
        %v3519 = vpop.f32.mrf.mxu0
        %v3520 = vpop.f32.mrf.mxu0
        %v3521 = vadd.f32 0.0, %v3520
        %v3522 = vpop.f32.mrf.mxu0
        %3523 = vdwg.mxu0
        %v3524 = vadd.f32 %v3026, %v3398
        %v3525 = vadd.f32 %v3027, %v3401
        %v3526 = vadd.f32 %v3028, %v3406
        %v3527 = vadd.f32 %v3029, %v3409
        %v3528 = vadd.f32 %v3030, %v3414
        %v3529 = vadd.f32 %v3031, %v3417
        %v3530 = vadd.f32 %v3032, %v3422
        %v3531 = vadd.f32 %v3033, %v3425
        %v3532 = vadd.f32 %v3034, %v3430
        %v3533 = vadd.f32 %v3035, %v3433
        %v3534 = vadd.f32 %v3036, %v3438
        %v3535 = vadd.f32 %v3037, %v3441
        %v3536 = vadd.f32 %v3038, %v3446
        %v3537 = vadd.f32 %v3039, %v3449
        %v3538 = vadd.f32 %v3040, %v3454
        %v3539 = vadd.f32 %v3041, %v3457
        %v3540 = vadd.f32 %v3042, %v3462
        %v3541 = vadd.f32 %v3043, %v3465
        %v3542 = vadd.f32 %v3044, %v3470
        %v3543 = vadd.f32 %v3045, %v3473
        %v3544 = vadd.f32 %v3046, %v3478
        %v3545 = vadd.f32 %v3047, %v3481
        %v3546 = vadd.f32 %v3048, %v3486
        %v3547 = vadd.f32 %v3049, %v3489
        %v3548 = vadd.f32 %v3050, %v3494
        %v3549 = vadd.f32 %v3051, %v3497
        %v3550 = vadd.f32 %v3052, %v3502
        %v3551 = vadd.f32 %v3053, %v3505
        %v3552 = vadd.f32 %v3054, %v3510
        %v3553 = vadd.f32 %v3055, %v3513
        %v3554 = vadd.f32 %v3056, %v3518
        %v3555 = vadd.f32 %v3057, %v3521
        %s3556 = scalar_lea.vmem %s384, 24
        %v3557 = vld [vmem:[%s3556] sm:$0xf]
        %v3558 = vld [vmem:[%s3556 + $0x4] sm:$0xf]
        %v3559 = vld [vmem:[%s3556 + $0xc] sm:$0xf]
        %v3560 = vld [vmem:[%s3556 + $0x10] sm:$0xf]
        %v3561 = vld [vmem:[%s3556 + $0x18] sm:$0xf]
        %v3562 = vld [vmem:[%s3556 + $0x1c] sm:$0xf]
        %v3563 = vld [vmem:[%s3556 + $0x24] sm:$0xf]
        %v3564 = vld [vmem:[%s3556 + $0x28] sm:$0xf]
        %v3565 = vld [vmem:[%s3556 + $0x30] sm:$0xf]
        %v3566 = vld [vmem:[%s3556 + $0x34] sm:$0xf]
        %v3567 = vld [vmem:[%s3556 + $0x3c] sm:$0xf]
        %v3568 = vld [vmem:[%s3556 + $0x40] sm:$0xf]
        %v3569 = vld [vmem:[%s3556 + $0x48] sm:$0xf]
        %v3570 = vld [vmem:[%s3556 + $0x4c] sm:$0xf]
        %v3571 = vld [vmem:[%s3556 + $0x54] sm:$0xf]
        %v3572 = vld [vmem:[%s3556 + $0x58] sm:$0xf]
        %v3573 = vld [vmem:[%s3556 + $0x60] sm:$0xf]
        %v3574 = vld [vmem:[%s3556 + $0x64] sm:$0xf]
        %v3575 = vld [vmem:[%s3556 + $0x6c] sm:$0xf]
        %v3576 = vld [vmem:[%s3556 + $0x70] sm:$0xf]
        %v3577 = vld [vmem:[%s3556 + $0x78] sm:$0xf]
        %v3578 = vld [vmem:[%s3556 + $0x7c] sm:$0xf]
        %v3579 = vld [vmem:[%s3556 + $0x84] sm:$0xf]
        %v3580 = vld [vmem:[%s3556 + $0x88] sm:$0xf]
        %v3581 = vld [vmem:[%s3556 + $0x90] sm:$0xf]
        %v3582 = vld [vmem:[%s3556 + $0x94] sm:$0xf]
        %v3583 = vld [vmem:[%s3556 + $0x9c] sm:$0xf]
        %v3584 = vld [vmem:[%s3556 + $0xa0] sm:$0xf]
        %v3585 = vld [vmem:[%s3556 + $0xa8] sm:$0xf]
        %v3586 = vld [vmem:[%s3556 + $0xac] sm:$0xf]
        %v3587 = vld [vmem:[%s3556 + $0xb4] sm:$0xf]
        %v3588 = vld [vmem:[%s3556 + $0xb8] sm:$0xf]
        %s3589 = scalar_lea.vmem %s1, 384
        %v3590 = vld [vmem:[%s3589] sm:$0xf]
        %v3591 = vld [vmem:[%s3589 + $0x4] sm:$0xf]
        %v3592 = vld [vmem:[%s3589 + $0x8] sm:$0xf]
        %v3593 = vld [vmem:[%s3589 + $0xc] sm:$0xf]
        %v3594 = vld [vmem:[%s3589 + $0x10] sm:$0xf]
        %v3595 = vld [vmem:[%s3589 + $0x14] sm:$0xf]
        %v3596 = vld [vmem:[%s3589 + $0x18] sm:$0xf]
        %v3597 = vld [vmem:[%s3589 + $0x1c] sm:$0xf]
        %v3598 = vld [vmem:[%s3589 + $0x20] sm:$0xf]
        %v3599 = vld [vmem:[%s3589 + $0x24] sm:$0xf]
        %v3600 = vld [vmem:[%s3589 + $0x28] sm:$0xf]
        %v3601 = vld [vmem:[%s3589 + $0x2c] sm:$0xf]
        %v3602 = vld [vmem:[%s3589 + $0x30] sm:$0xf]
        %v3603 = vld [vmem:[%s3589 + $0x34] sm:$0xf]
        %v3604 = vld [vmem:[%s3589 + $0x38] sm:$0xf]
        %v3605 = vld [vmem:[%s3589 + $0x3c] sm:$0xf]
        %v3638 = vunpack.c.l.b16 %v3557
        %v3639 = vunpack.c.l.b16 %v3558
        %v3640 = vunpack.c.l.b16 %v3559
        %v3641 = vunpack.c.l.b16 %v3560
        %v3642 = vunpack.c.l.b16 %v3561
        %v3643 = vunpack.c.l.b16 %v3562
        %v3644 = vunpack.c.l.b16 %v3563
        %v3645 = vunpack.c.l.b16 %v3564
        %v3646 = vunpack.c.l.b16 %v3565
        %v3647 = vunpack.c.l.b16 %v3566
        %v3648 = vunpack.c.l.b16 %v3567
        %v3649 = vunpack.c.l.b16 %v3568
        %v3650 = vunpack.c.l.b16 %v3569
        %v3651 = vunpack.c.l.b16 %v3570
        %v3652 = vunpack.c.l.b16 %v3571
        %v3653 = vunpack.c.l.b16 %v3572
        %v3654 = vunpack.c.l.b16 %v3573
        %v3655 = vunpack.c.l.b16 %v3574
        %v3656 = vunpack.c.l.b16 %v3575
        %v3657 = vunpack.c.l.b16 %v3576
        %v3658 = vunpack.c.l.b16 %v3577
        %v3659 = vunpack.c.l.b16 %v3578
        %v3660 = vunpack.c.l.b16 %v3579
        %v3661 = vunpack.c.l.b16 %v3580
        %v3662 = vunpack.c.l.b16 %v3581
        %v3663 = vunpack.c.l.b16 %v3582
        %v3664 = vunpack.c.l.b16 %v3583
        %v3665 = vunpack.c.l.b16 %v3584
        %v3666 = vunpack.c.l.b16 %v3585
        %v3667 = vunpack.c.l.b16 %v3586
        %v3668 = vunpack.c.l.b16 %v3587
        %v3669 = vunpack.c.l.b16 %v3588
        %v3670 = vpack.c.b16 %v3639, %v3638
        %v3671 = vpack.c.b16 %v3641, %v3640
        %v3672 = vpack.c.b16 %v3643, %v3642
        %v3673 = vpack.c.b16 %v3645, %v3644
        %v3674 = vpack.c.b16 %v3647, %v3646
        %v3675 = vpack.c.b16 %v3649, %v3648
        %v3676 = vpack.c.b16 %v3651, %v3650
        %v3677 = vpack.c.b16 %v3653, %v3652
        %v3678 = vpack.c.b16 %v3655, %v3654
        %v3679 = vpack.c.b16 %v3657, %v3656
        %v3680 = vpack.c.b16 %v3659, %v3658
        %v3681 = vpack.c.b16 %v3661, %v3660
        %v3682 = vpack.c.b16 %v3663, %v3662
        %v3683 = vpack.c.b16 %v3665, %v3664
        %v3684 = vpack.c.b16 %v3667, %v3666
        %v3685 = vpack.c.b16 %v3669, %v3668
        %v3718 = vunpack.c.l.b16 %v3590
        %v3719 = vunpack.c.l.b16 %v3591
        %v3720 = vunpack.c.l.b16 %v3592
        %v3721 = vunpack.c.l.b16 %v3593
        %v3722 = vunpack.c.l.b16 %v3594
        %v3723 = vunpack.c.l.b16 %v3595
        %v3724 = vunpack.c.l.b16 %v3596
        %v3725 = vunpack.c.l.b16 %v3597
        %v3726 = vunpack.c.l.b16 %v3598
        %v3727 = vunpack.c.l.b16 %v3599
        %v3728 = vunpack.c.l.b16 %v3600
        %v3729 = vunpack.c.l.b16 %v3601
        %v3730 = vunpack.c.l.b16 %v3602
        %v3731 = vunpack.c.l.b16 %v3603
        %v3732 = vunpack.c.l.b16 %v3604
        %v3733 = vunpack.c.l.b16 %v3605
        %v3734 = vpack.c.b16 %v3719, %v3718
        %v3735 = vpack.c.b16 %v3721, %v3720
        %v3736 = vpack.c.b16 %v3723, %v3722
        %v3737 = vpack.c.b16 %v3725, %v3724
        %v3738 = vpack.c.b16 %v3727, %v3726
        %v3739 = vpack.c.b16 %v3729, %v3728
        %v3740 = vpack.c.b16 %v3731, %v3730
        %v3741 = vpack.c.b16 %v3733, %v3732
        %3750 = vmatprep.subr.bf16.mxu0 0
        %3751 = vmatpush1.bf16.msra.mxu0 %v3741
        %3752 = vmatprep.subr.bf16.mxu0 0
        %3753 = vmatpush1.bf16.msra.mxu0 %v3740
        %3754 = vmatprep.subr.bf16.mxu0 0
        %3755 = vmatpush1.bf16.msra.mxu0 %v3739
        %3756 = vmatprep.subr.bf16.mxu0 0
        %3757 = vmatpush1.bf16.msra.mxu0 %v3738
        %3758 = vmatprep.subr.bf16.mxu0 0
        %3759 = vmatpush1.bf16.msra.mxu0 %v3737
        %3760 = vmatprep.subr.bf16.mxu0 0
        %3761 = vmatpush1.bf16.msra.mxu0 %v3736
        %3762 = vmatprep.subr.bf16.mxu0 0
        %3763 = vmatpush1.bf16.msra.mxu0 %v3735
        %3764 = vmatprep.subr.bf16.mxu0 0
        %3765 = vmatpush1.bf16.msra.mxu0 %v3734
        %3766 = vmatprep.subr.bf16.mxu0 0
        %3767 = vmatpush2.bf16.msra.mxu0 0
        %3768 = vmatprep.subr.bf16.mxu0 0
        %3769 = vmatpush2.bf16.msra.mxu0 0
        %3770 = vmatprep.subr.bf16.mxu0 0
        %3771 = vmatpush2.bf16.msra.mxu0 0
        %3772 = vmatprep.subr.bf16.mxu0 0
        %3773 = vmatpush2.bf16.msra.mxu0 0
        %3774 = vmatprep.subr.bf16.mxu0 0
        %3775 = vmatpush2.bf16.msra.mxu0 0
        %3776 = vmatprep.subr.bf16.mxu0 0
        %3777 = vmatpush2.bf16.msra.mxu0 0
        %3778 = vmatprep.subr.bf16.mxu0 0
        %3779 = vmatpush2.bf16.msra.mxu0 0
        %3780 = vmatprep.subr.bf16.mxu0 0
        %3781 = vmatpush2.bf16.msra.mxu0 0
        %3782 = vmatprep.mubr.bf16.mxu0 0
        %3783 = vmatmul.mubr.bf16.gmra.mxu0 %v3670
        %v3784 = vpop.f32.mrf.mxu0
        %v3785 = vadd.f32 0.0, %v3784
        %v3786 = vpop.f32.mrf.mxu0
        %v3787 = vpop.f32.mrf.mxu0
        %v3788 = vadd.f32 0.0, %v3787
        %v3789 = vpop.f32.mrf.mxu0
        %3790 = vmatprep.mubr.bf16.mxu0 0
        %3791 = vmatmul.mubr.bf16.gmra.mxu0 %v3671
        %v3792 = vpop.f32.mrf.mxu0
        %v3793 = vadd.f32 0.0, %v3792
        %v3794 = vpop.f32.mrf.mxu0
        %v3795 = vpop.f32.mrf.mxu0
        %v3796 = vadd.f32 0.0, %v3795
        %v3797 = vpop.f32.mrf.mxu0
        %3798 = vmatprep.mubr.bf16.mxu0 0
        %3799 = vmatmul.mubr.bf16.gmra.mxu0 %v3672
        %v3800 = vpop.f32.mrf.mxu0
        %v3801 = vadd.f32 0.0, %v3800
        %v3802 = vpop.f32.mrf.mxu0
        %v3803 = vpop.f32.mrf.mxu0
        %v3804 = vadd.f32 0.0, %v3803
        %v3805 = vpop.f32.mrf.mxu0
        %3806 = vmatprep.mubr.bf16.mxu0 0
        %3807 = vmatmul.mubr.bf16.gmra.mxu0 %v3673
        %v3808 = vpop.f32.mrf.mxu0
        %v3809 = vadd.f32 0.0, %v3808
        %v3810 = vpop.f32.mrf.mxu0
        %v3811 = vpop.f32.mrf.mxu0
        %v3812 = vadd.f32 0.0, %v3811
        %v3813 = vpop.f32.mrf.mxu0
        %3814 = vmatprep.mubr.bf16.mxu0 0
        %3815 = vmatmul.mubr.bf16.gmra.mxu0 %v3674
        %v3816 = vpop.f32.mrf.mxu0
        %v3817 = vadd.f32 0.0, %v3816
        %v3818 = vpop.f32.mrf.mxu0
        %v3819 = vpop.f32.mrf.mxu0
        %v3820 = vadd.f32 0.0, %v3819
        %v3821 = vpop.f32.mrf.mxu0
        %3822 = vmatprep.mubr.bf16.mxu0 0
        %3823 = vmatmul.mubr.bf16.gmra.mxu0 %v3675
        %v3824 = vpop.f32.mrf.mxu0
        %v3825 = vadd.f32 0.0, %v3824
        %v3826 = vpop.f32.mrf.mxu0
        %v3827 = vpop.f32.mrf.mxu0
        %v3828 = vadd.f32 0.0, %v3827
        %v3829 = vpop.f32.mrf.mxu0
        %3830 = vmatprep.mubr.bf16.mxu0 0
        %3831 = vmatmul.mubr.bf16.gmra.mxu0 %v3676
        %v3832 = vpop.f32.mrf.mxu0
        %v3833 = vadd.f32 0.0, %v3832
        %v3834 = vpop.f32.mrf.mxu0
        %v3835 = vpop.f32.mrf.mxu0
        %v3836 = vadd.f32 0.0, %v3835
        %v3837 = vpop.f32.mrf.mxu0
        %3838 = vmatprep.mubr.bf16.mxu0 0
        %3839 = vmatmul.mubr.bf16.gmra.mxu0 %v3677
        %v3840 = vpop.f32.mrf.mxu0
        %v3841 = vadd.f32 0.0, %v3840
        %v3842 = vpop.f32.mrf.mxu0
        %v3843 = vpop.f32.mrf.mxu0
        %v3844 = vadd.f32 0.0, %v3843
        %v3845 = vpop.f32.mrf.mxu0
        %3846 = vmatprep.mubr.bf16.mxu0 0
        %3847 = vmatmul.mubr.bf16.gmra.mxu0 %v3678
        %v3848 = vpop.f32.mrf.mxu0
        %v3849 = vadd.f32 0.0, %v3848
        %v3850 = vpop.f32.mrf.mxu0
        %v3851 = vpop.f32.mrf.mxu0
        %v3852 = vadd.f32 0.0, %v3851
        %v3853 = vpop.f32.mrf.mxu0
        %3854 = vmatprep.mubr.bf16.mxu0 0
        %3855 = vmatmul.mubr.bf16.gmra.mxu0 %v3679
        %v3856 = vpop.f32.mrf.mxu0
        %v3857 = vadd.f32 0.0, %v3856
        %v3858 = vpop.f32.mrf.mxu0
        %v3859 = vpop.f32.mrf.mxu0
        %v3860 = vadd.f32 0.0, %v3859
        %v3861 = vpop.f32.mrf.mxu0
        %3862 = vmatprep.mubr.bf16.mxu0 0
        %3863 = vmatmul.mubr.bf16.gmra.mxu0 %v3680
        %v3864 = vpop.f32.mrf.mxu0
        %v3865 = vadd.f32 0.0, %v3864
        %v3866 = vpop.f32.mrf.mxu0
        %v3867 = vpop.f32.mrf.mxu0
        %v3868 = vadd.f32 0.0, %v3867
        %v3869 = vpop.f32.mrf.mxu0
        %3870 = vmatprep.mubr.bf16.mxu0 0
        %3871 = vmatmul.mubr.bf16.gmra.mxu0 %v3681
        %v3872 = vpop.f32.mrf.mxu0
        %v3873 = vadd.f32 0.0, %v3872
        %v3874 = vpop.f32.mrf.mxu0
        %v3875 = vpop.f32.mrf.mxu0
        %v3876 = vadd.f32 0.0, %v3875
        %v3877 = vpop.f32.mrf.mxu0
        %3878 = vmatprep.mubr.bf16.mxu0 0
        %3879 = vmatmul.mubr.bf16.gmra.mxu0 %v3682
        %v3880 = vpop.f32.mrf.mxu0
        %v3881 = vadd.f32 0.0, %v3880
        %v3882 = vpop.f32.mrf.mxu0
        %v3883 = vpop.f32.mrf.mxu0
        %v3884 = vadd.f32 0.0, %v3883
        %v3885 = vpop.f32.mrf.mxu0
        %3886 = vmatprep.mubr.bf16.mxu0 0
        %3887 = vmatmul.mubr.bf16.gmra.mxu0 %v3683
        %v3888 = vpop.f32.mrf.mxu0
        %v3889 = vadd.f32 0.0, %v3888
        %v3890 = vpop.f32.mrf.mxu0
        %v3891 = vpop.f32.mrf.mxu0
        %v3892 = vadd.f32 0.0, %v3891
        %v3893 = vpop.f32.mrf.mxu0
        %3894 = vmatprep.mubr.bf16.mxu0 0
        %3895 = vmatmul.mubr.bf16.gmra.mxu0 %v3684
        %v3896 = vpop.f32.mrf.mxu0
        %v3897 = vadd.f32 0.0, %v3896
        %v3898 = vpop.f32.mrf.mxu0
        %v3899 = vpop.f32.mrf.mxu0
        %v3900 = vadd.f32 0.0, %v3899
        %v3901 = vpop.f32.mrf.mxu0
        %3902 = vmatprep.mubr.bf16.mxu0 0
        %3903 = vmatmul.mubr.bf16.gmra.mxu0 %v3685
        %v3904 = vpop.f32.mrf.mxu0
        %v3905 = vadd.f32 0.0, %v3904
        %v3906 = vpop.f32.mrf.mxu0
        %v3907 = vpop.f32.mrf.mxu0
        %v3908 = vadd.f32 0.0, %v3907
        %v3909 = vpop.f32.mrf.mxu0
        %3910 = vdwg.mxu0
        %v3911 = vadd.f32 %v3524, %v3785
        %v3912 = vadd.f32 %v3525, %v3788
        %v3913 = vadd.f32 %v3526, %v3793
        %v3914 = vadd.f32 %v3527, %v3796
        %v3915 = vadd.f32 %v3528, %v3801
        %v3916 = vadd.f32 %v3529, %v3804
        %v3917 = vadd.f32 %v3530, %v3809
        %v3918 = vadd.f32 %v3531, %v3812
        %v3919 = vadd.f32 %v3532, %v3817
        %v3920 = vadd.f32 %v3533, %v3820
        %v3921 = vadd.f32 %v3534, %v3825
        %v3922 = vadd.f32 %v3535, %v3828
        %v3923 = vadd.f32 %v3536, %v3833
        %v3924 = vadd.f32 %v3537, %v3836
        %v3925 = vadd.f32 %v3538, %v3841
        %v3926 = vadd.f32 %v3539, %v3844
        %v3927 = vadd.f32 %v3540, %v3849
        %v3928 = vadd.f32 %v3541, %v3852
        %v3929 = vadd.f32 %v3542, %v3857
        %v3930 = vadd.f32 %v3543, %v3860
        %v3931 = vadd.f32 %v3544, %v3865
        %v3932 = vadd.f32 %v3545, %v3868
        %v3933 = vadd.f32 %v3546, %v3873
        %v3934 = vadd.f32 %v3547, %v3876
        %v3935 = vadd.f32 %v3548, %v3881
        %v3936 = vadd.f32 %v3549, %v3884
        %v3937 = vadd.f32 %v3550, %v3889
        %v3938 = vadd.f32 %v3551, %v3892
        %v3939 = vadd.f32 %v3552, %v3897
        %v3940 = vadd.f32 %v3553, %v3900
        %v3941 = vadd.f32 %v3554, %v3905
        %v3942 = vadd.f32 %v3555, %v3908
        %v3943 = vld [vmem:[%s3556] sm:$0xf]
        %v3944 = vld [vmem:[%s3556 + $0x4] sm:$0xf]
        %v3945 = vld [vmem:[%s3556 + $0x8] sm:$0x1]
        %v3946 = vld [vmem:[%s3556 + $0xc] sm:$0xf]
        %v3947 = vld [vmem:[%s3556 + $0x10] sm:$0xf]
        %v3948 = vld [vmem:[%s3556 + $0x14] sm:$0x1]
        %v3949 = vld [vmem:[%s3556 + $0x18] sm:$0xf]
        %v3950 = vld [vmem:[%s3556 + $0x1c] sm:$0xf]
        %v3951 = vld [vmem:[%s3556 + $0x20] sm:$0x1]
        %v3952 = vld [vmem:[%s3556 + $0x24] sm:$0xf]
        %v3953 = vld [vmem:[%s3556 + $0x28] sm:$0xf]
        %v3954 = vld [vmem:[%s3556 + $0x2c] sm:$0x1]
        %v3955 = vld [vmem:[%s3556 + $0x30] sm:$0xf]
        %v3956 = vld [vmem:[%s3556 + $0x34] sm:$0xf]
        %v3957 = vld [vmem:[%s3556 + $0x38] sm:$0x1]
        %v3958 = vld [vmem:[%s3556 + $0x3c] sm:$0xf]
        %v3959 = vld [vmem:[%s3556 + $0x40] sm:$0xf]
        %v3960 = vld [vmem:[%s3556 + $0x44] sm:$0x1]
        %v3961 = vld [vmem:[%s3556 + $0x48] sm:$0xf]
        %v3962 = vld [vmem:[%s3556 + $0x4c] sm:$0xf]
        %v3963 = vld [vmem:[%s3556 + $0x50] sm:$0x1]
        %v3964 = vld [vmem:[%s3556 + $0x54] sm:$0xf]
        %v3965 = vld [vmem:[%s3556 + $0x58] sm:$0xf]
        %v3966 = vld [vmem:[%s3556 + $0x5c] sm:$0x1]
        %v3967 = vld [vmem:[%s3556 + $0x60] sm:$0xf]
        %v3968 = vld [vmem:[%s3556 + $0x64] sm:$0xf]
        %v3969 = vld [vmem:[%s3556 + $0x68] sm:$0x1]
        %v3970 = vld [vmem:[%s3556 + $0x6c] sm:$0xf]
        %v3971 = vld [vmem:[%s3556 + $0x70] sm:$0xf]
        %v3972 = vld [vmem:[%s3556 + $0x74] sm:$0x1]
        %v3973 = vld [vmem:[%s3556 + $0x78] sm:$0xf]
        %v3974 = vld [vmem:[%s3556 + $0x7c] sm:$0xf]
        %v3975 = vld [vmem:[%s3556 + $0x80] sm:$0x1]
        %v3976 = vld [vmem:[%s3556 + $0x84] sm:$0xf]
        %v3977 = vld [vmem:[%s3556 + $0x88] sm:$0xf]
        %v3978 = vld [vmem:[%s3556 + $0x8c] sm:$0x1]
        %v3979 = vld [vmem:[%s3556 + $0x90] sm:$0xf]
        %v3980 = vld [vmem:[%s3556 + $0x94] sm:$0xf]
        %v3981 = vld [vmem:[%s3556 + $0x98] sm:$0x1]
        %v3982 = vld [vmem:[%s3556 + $0x9c] sm:$0xf]
        %v3983 = vld [vmem:[%s3556 + $0xa0] sm:$0xf]
        %v3984 = vld [vmem:[%s3556 + $0xa4] sm:$0x1]
        %v3985 = vld [vmem:[%s3556 + $0xa8] sm:$0xf]
        %v3986 = vld [vmem:[%s3556 + $0xac] sm:$0xf]
        %v3987 = vld [vmem:[%s3556 + $0xb0] sm:$0x1]
        %v3988 = vld [vmem:[%s3556 + $0xb4] sm:$0xf]
        %v3989 = vld [vmem:[%s3556 + $0xb8] sm:$0xf]
        %v3990 = vld [vmem:[%s3556 + $0xbc] sm:$0x1]
        %v3992 = vshrl.u32 %v3943, 16
        %v3994 = vrot.slane %v3992, 4
        %v3995 = vshll.u32 %v3943, 16
        %v3997 = vrot.slane %v3995, 5
        %v3998 = vor.u32 %v3994, %v3997
        %v3999 = vrot.slane %v3998, 4
        %v4001 = vshll.u32 %v3944, 16
        %v4003 = vrot.slane %v4001, 5
        %v4004 = vsel %vm452, %v3999, %v4003
        %v4005 = vshrl.u32 %v3944, 16
        %v4007 = vrot.slane %v4005, 4
        %v4008 = vor.u32 %v4007, %v4003
        %v4009 = vrot.slane %v4008, 4
        %v4011 = vshll.u32 %v3945, 16
        %v4013 = vrot.slane %v4011, 5
        %v4014 = vsel %vm452, %v4009, %v4013
        %v4016 = vshrl.u32 %v3946, 16
        %v4018 = vrot.slane %v4016, 4
        %v4019 = vshll.u32 %v3946, 16
        %v4021 = vrot.slane %v4019, 5
        %v4022 = vor.u32 %v4018, %v4021
        %v4023 = vrot.slane %v4022, 4
        %v4025 = vshll.u32 %v3947, 16
        %v4027 = vrot.slane %v4025, 5
        %v4028 = vsel %vm452, %v4023, %v4027
        %v4029 = vshrl.u32 %v3947, 16
        %v4031 = vrot.slane %v4029, 4
        %v4032 = vor.u32 %v4031, %v4027
        %v4033 = vrot.slane %v4032, 4
        %v4035 = vshll.u32 %v3948, 16
        %v4037 = vrot.slane %v4035, 5
        %v4038 = vsel %vm452, %v4033, %v4037
        %v4040 = vshrl.u32 %v3949, 16
        %v4042 = vrot.slane %v4040, 4
        %v4043 = vshll.u32 %v3949, 16
        %v4045 = vrot.slane %v4043, 5
        %v4046 = vor.u32 %v4042, %v4045
        %v4047 = vrot.slane %v4046, 4
        %v4049 = vshll.u32 %v3950, 16
        %v4051 = vrot.slane %v4049, 5
        %v4052 = vsel %vm452, %v4047, %v4051
        %v4053 = vshrl.u32 %v3950, 16
        %v4055 = vrot.slane %v4053, 4
        %v4056 = vor.u32 %v4055, %v4051
        %v4057 = vrot.slane %v4056, 4
        %v4059 = vshll.u32 %v3951, 16
        %v4061 = vrot.slane %v4059, 5
        %v4062 = vsel %vm452, %v4057, %v4061
        %v4064 = vshrl.u32 %v3952, 16
        %v4066 = vrot.slane %v4064, 4
        %v4067 = vshll.u32 %v3952, 16
        %v4069 = vrot.slane %v4067, 5
        %v4070 = vor.u32 %v4066, %v4069
        %v4071 = vrot.slane %v4070, 4
        %v4073 = vshll.u32 %v3953, 16
        %v4075 = vrot.slane %v4073, 5
        %v4076 = vsel %vm452, %v4071, %v4075
        %v4077 = vshrl.u32 %v3953, 16
        %v4079 = vrot.slane %v4077, 4
        %v4080 = vor.u32 %v4079, %v4075
        %v4081 = vrot.slane %v4080, 4
        %v4083 = vshll.u32 %v3954, 16
        %v4085 = vrot.slane %v4083, 5
        %v4086 = vsel %vm452, %v4081, %v4085
        %v4088 = vshrl.u32 %v3955, 16
        %v4090 = vrot.slane %v4088, 4
        %v4091 = vshll.u32 %v3955, 16
        %v4093 = vrot.slane %v4091, 5
        %v4094 = vor.u32 %v4090, %v4093
        %v4095 = vrot.slane %v4094, 4
        %v4097 = vshll.u32 %v3956, 16
        %v4099 = vrot.slane %v4097, 5
        %v4100 = vsel %vm452, %v4095, %v4099
        %v4101 = vshrl.u32 %v3956, 16
        %v4103 = vrot.slane %v4101, 4
        %v4104 = vor.u32 %v4103, %v4099
        %v4105 = vrot.slane %v4104, 4
        %v4107 = vshll.u32 %v3957, 16
        %v4109 = vrot.slane %v4107, 5
        %v4110 = vsel %vm452, %v4105, %v4109
        %v4112 = vshrl.u32 %v3958, 16
        %v4114 = vrot.slane %v4112, 4
        %v4115 = vshll.u32 %v3958, 16
        %v4117 = vrot.slane %v4115, 5
        %v4118 = vor.u32 %v4114, %v4117
        %v4119 = vrot.slane %v4118, 4
        %v4121 = vshll.u32 %v3959, 16
        %v4123 = vrot.slane %v4121, 5
        %v4124 = vsel %vm452, %v4119, %v4123
        %v4125 = vshrl.u32 %v3959, 16
        %v4127 = vrot.slane %v4125, 4
        %v4128 = vor.u32 %v4127, %v4123
        %v4129 = vrot.slane %v4128, 4
        %v4131 = vshll.u32 %v3960, 16
        %v4133 = vrot.slane %v4131, 5
        %v4134 = vsel %vm452, %v4129, %v4133
        %v4136 = vshrl.u32 %v3961, 16
        %v4138 = vrot.slane %v4136, 4
        %v4139 = vshll.u32 %v3961, 16
        %v4141 = vrot.slane %v4139, 5
        %v4142 = vor.u32 %v4138, %v4141
        %v4143 = vrot.slane %v4142, 4
        %v4145 = vshll.u32 %v3962, 16
        %v4147 = vrot.slane %v4145, 5
        %v4148 = vsel %vm452, %v4143, %v4147
        %v4149 = vshrl.u32 %v3962, 16
        %v4151 = vrot.slane %v4149, 4
        %v4152 = vor.u32 %v4151, %v4147
        %v4153 = vrot.slane %v4152, 4
        %v4155 = vshll.u32 %v3963, 16
        %v4157 = vrot.slane %v4155, 5
        %v4158 = vsel %vm452, %v4153, %v4157
        %v4160 = vshrl.u32 %v3964, 16
        %v4162 = vrot.slane %v4160, 4
        %v4163 = vshll.u32 %v3964, 16
        %v4165 = vrot.slane %v4163, 5
        %v4166 = vor.u32 %v4162, %v4165
        %v4167 = vrot.slane %v4166, 4
        %v4169 = vshll.u32 %v3965, 16
        %v4171 = vrot.slane %v4169, 5
        %v4172 = vsel %vm452, %v4167, %v4171
        %v4173 = vshrl.u32 %v3965, 16
        %v4175 = vrot.slane %v4173, 4
        %v4176 = vor.u32 %v4175, %v4171
        %v4177 = vrot.slane %v4176, 4
        %v4179 = vshll.u32 %v3966, 16
        %v4181 = vrot.slane %v4179, 5
        %v4182 = vsel %vm452, %v4177, %v4181
        %v4184 = vshrl.u32 %v3967, 16
        %v4186 = vrot.slane %v4184, 4
        %v4187 = vshll.u32 %v3967, 16
        %v4189 = vrot.slane %v4187, 5
        %v4190 = vor.u32 %v4186, %v4189
        %v4191 = vrot.slane %v4190, 4
        %v4193 = vshll.u32 %v3968, 16
        %v4195 = vrot.slane %v4193, 5
        %v4196 = vsel %vm452, %v4191, %v4195
        %v4197 = vshrl.u32 %v3968, 16
        %v4199 = vrot.slane %v4197, 4
        %v4200 = vor.u32 %v4199, %v4195
        %v4201 = vrot.slane %v4200, 4
        %v4203 = vshll.u32 %v3969, 16
        %v4205 = vrot.slane %v4203, 5
        %v4206 = vsel %vm452, %v4201, %v4205
        %v4208 = vshrl.u32 %v3970, 16
        %v4210 = vrot.slane %v4208, 4
        %v4211 = vshll.u32 %v3970, 16
        %v4213 = vrot.slane %v4211, 5
        %v4214 = vor.u32 %v4210, %v4213
        %v4215 = vrot.slane %v4214, 4
        %v4217 = vshll.u32 %v3971, 16
        %v4219 = vrot.slane %v4217, 5
        %v4220 = vsel %vm452, %v4215, %v4219
        %v4221 = vshrl.u32 %v3971, 16
        %v4223 = vrot.slane %v4221, 4
        %v4224 = vor.u32 %v4223, %v4219
        %v4225 = vrot.slane %v4224, 4
        %v4227 = vshll.u32 %v3972, 16
        %v4229 = vrot.slane %v4227, 5
        %v4230 = vsel %vm452, %v4225, %v4229
        %v4232 = vshrl.u32 %v3973, 16
        %v4234 = vrot.slane %v4232, 4
        %v4235 = vshll.u32 %v3973, 16
        %v4237 = vrot.slane %v4235, 5
        %v4238 = vor.u32 %v4234, %v4237
        %v4239 = vrot.slane %v4238, 4
        %v4241 = vshll.u32 %v3974, 16
        %v4243 = vrot.slane %v4241, 5
        %v4244 = vsel %vm452, %v4239, %v4243
        %v4245 = vshrl.u32 %v3974, 16
        %v4247 = vrot.slane %v4245, 4
        %v4248 = vor.u32 %v4247, %v4243
        %v4249 = vrot.slane %v4248, 4
        %v4251 = vshll.u32 %v3975, 16
        %v4253 = vrot.slane %v4251, 5
        %v4254 = vsel %vm452, %v4249, %v4253
        %v4256 = vshrl.u32 %v3976, 16
        %v4258 = vrot.slane %v4256, 4
        %v4259 = vshll.u32 %v3976, 16
        %v4261 = vrot.slane %v4259, 5
        %v4262 = vor.u32 %v4258, %v4261
        %v4263 = vrot.slane %v4262, 4
        %v4265 = vshll.u32 %v3977, 16
        %v4267 = vrot.slane %v4265, 5
        %v4268 = vsel %vm452, %v4263, %v4267
        %v4269 = vshrl.u32 %v3977, 16
        %v4271 = vrot.slane %v4269, 4
        %v4272 = vor.u32 %v4271, %v4267
        %v4273 = vrot.slane %v4272, 4
        %v4275 = vshll.u32 %v3978, 16
        %v4277 = vrot.slane %v4275, 5
        %v4278 = vsel %vm452, %v4273, %v4277
        %v4280 = vshrl.u32 %v3979, 16
        %v4282 = vrot.slane %v4280, 4
        %v4283 = vshll.u32 %v3979, 16
        %v4285 = vrot.slane %v4283, 5
        %v4286 = vor.u32 %v4282, %v4285
        %v4287 = vrot.slane %v4286, 4
        %v4289 = vshll.u32 %v3980, 16
        %v4291 = vrot.slane %v4289, 5
        %v4292 = vsel %vm452, %v4287, %v4291
        %v4293 = vshrl.u32 %v3980, 16
        %v4295 = vrot.slane %v4293, 4
        %v4296 = vor.u32 %v4295, %v4291
        %v4297 = vrot.slane %v4296, 4
        %v4299 = vshll.u32 %v3981, 16
        %v4301 = vrot.slane %v4299, 5
        %v4302 = vsel %vm452, %v4297, %v4301
        %v4304 = vshrl.u32 %v3982, 16
        %v4306 = vrot.slane %v4304, 4
        %v4307 = vshll.u32 %v3982, 16
        %v4309 = vrot.slane %v4307, 5
        %v4310 = vor.u32 %v4306, %v4309
        %v4311 = vrot.slane %v4310, 4
        %v4313 = vshll.u32 %v3983, 16
        %v4315 = vrot.slane %v4313, 5
        %v4316 = vsel %vm452, %v4311, %v4315
        %v4317 = vshrl.u32 %v3983, 16
        %v4319 = vrot.slane %v4317, 4
        %v4320 = vor.u32 %v4319, %v4315
        %v4321 = vrot.slane %v4320, 4
        %v4323 = vshll.u32 %v3984, 16
        %v4325 = vrot.slane %v4323, 5
        %v4326 = vsel %vm452, %v4321, %v4325
        %v4328 = vshrl.u32 %v3985, 16
        %v4330 = vrot.slane %v4328, 4
        %v4331 = vshll.u32 %v3985, 16
        %v4333 = vrot.slane %v4331, 5
        %v4334 = vor.u32 %v4330, %v4333
        %v4335 = vrot.slane %v4334, 4
        %v4337 = vshll.u32 %v3986, 16
        %v4339 = vrot.slane %v4337, 5
        %v4340 = vsel %vm452, %v4335, %v4339
        %v4341 = vshrl.u32 %v3986, 16
        %v4343 = vrot.slane %v4341, 4
        %v4344 = vor.u32 %v4343, %v4339
        %v4345 = vrot.slane %v4344, 4
        %v4347 = vshll.u32 %v3987, 16
        %v4349 = vrot.slane %v4347, 5
        %v4350 = vsel %vm452, %v4345, %v4349
        %v4352 = vshrl.u32 %v3988, 16
        %v4354 = vrot.slane %v4352, 4
        %v4355 = vshll.u32 %v3988, 16
        %v4357 = vrot.slane %v4355, 5
        %v4358 = vor.u32 %v4354, %v4357
        %v4359 = vrot.slane %v4358, 4
        %v4361 = vshll.u32 %v3989, 16
        %v4363 = vrot.slane %v4361, 5
        %v4364 = vsel %vm452, %v4359, %v4363
        %v4365 = vshrl.u32 %v3989, 16
        %v4367 = vrot.slane %v4365, 4
        %v4368 = vor.u32 %v4367, %v4363
        %v4369 = vrot.slane %v4368, 4
        %v4371 = vshll.u32 %v3990, 16
        %v4373 = vrot.slane %v4371, 5
        %v4374 = vsel %vm452, %v4369, %v4373
        %s4375 = scalar_lea.vmem %s1, 448
        %v4376 = vld [vmem:[%s4375] sm:$0xf]
        %v4377 = vld [vmem:[%s4375 + $0x4] sm:$0xf]
        %v4378 = vld [vmem:[%s4375 + $0x8] sm:$0xf]
        %v4379 = vld [vmem:[%s4375 + $0xc] sm:$0xf]
        %v4380 = vld [vmem:[%s4375 + $0x10] sm:$0xf]
        %v4381 = vld [vmem:[%s4375 + $0x14] sm:$0xf]
        %v4382 = vld [vmem:[%s4375 + $0x18] sm:$0xf]
        %v4383 = vld [vmem:[%s4375 + $0x1c] sm:$0xf]
        %v4384 = vld [vmem:[%s4375 + $0x20] sm:$0xf]
        %v4385 = vld [vmem:[%s4375 + $0x24] sm:$0xf]
        %v4386 = vld [vmem:[%s4375 + $0x28] sm:$0xf]
        %v4387 = vld [vmem:[%s4375 + $0x2c] sm:$0xf]
        %v4388 = vld [vmem:[%s4375 + $0x30] sm:$0xf]
        %v4389 = vld [vmem:[%s4375 + $0x34] sm:$0xf]
        %v4390 = vld [vmem:[%s4375 + $0x38] sm:$0xf]
        %v4391 = vld [vmem:[%s4375 + $0x3c] sm:$0xf]
        %v4392 = vunpack.c.l.b16 %v4004
        %v4393 = vunpack.c.l.b16 %v4014
        %v4394 = vunpack.c.l.b16 %v4028
        %v4395 = vunpack.c.l.b16 %v4038
        %v4396 = vunpack.c.l.b16 %v4052
        %v4397 = vunpack.c.l.b16 %v4062
        %v4398 = vunpack.c.l.b16 %v4076
        %v4399 = vunpack.c.l.b16 %v4086
        %v4400 = vunpack.c.l.b16 %v4100
        %v4401 = vunpack.c.l.b16 %v4110
        %v4402 = vunpack.c.l.b16 %v4124
        %v4403 = vunpack.c.l.b16 %v4134
        %v4404 = vunpack.c.l.b16 %v4148
        %v4405 = vunpack.c.l.b16 %v4158
        %v4406 = vunpack.c.l.b16 %v4172
        %v4407 = vunpack.c.l.b16 %v4182
        %v4408 = vunpack.c.l.b16 %v4196
        %v4409 = vunpack.c.l.b16 %v4206
        %v4410 = vunpack.c.l.b16 %v4220
        %v4411 = vunpack.c.l.b16 %v4230
        %v4412 = vunpack.c.l.b16 %v4244
        %v4413 = vunpack.c.l.b16 %v4254
        %v4414 = vunpack.c.l.b16 %v4268
        %v4415 = vunpack.c.l.b16 %v4278
        %v4416 = vunpack.c.l.b16 %v4292
        %v4417 = vunpack.c.l.b16 %v4302
        %v4418 = vunpack.c.l.b16 %v4316
        %v4419 = vunpack.c.l.b16 %v4326
        %v4420 = vunpack.c.l.b16 %v4340
        %v4421 = vunpack.c.l.b16 %v4350
        %v4422 = vunpack.c.l.b16 %v4364
        %v4423 = vunpack.c.l.b16 %v4374
        %v4424 = vpack.c.b16 %v4393, %v4392
        %v4425 = vpack.c.b16 %v4395, %v4394
        %v4426 = vpack.c.b16 %v4397, %v4396
        %v4427 = vpack.c.b16 %v4399, %v4398
        %v4428 = vpack.c.b16 %v4401, %v4400
        %v4429 = vpack.c.b16 %v4403, %v4402
        %v4430 = vpack.c.b16 %v4405, %v4404
        %v4431 = vpack.c.b16 %v4407, %v4406
        %v4432 = vpack.c.b16 %v4409, %v4408
        %v4433 = vpack.c.b16 %v4411, %v4410
        %v4434 = vpack.c.b16 %v4413, %v4412
        %v4435 = vpack.c.b16 %v4415, %v4414
        %v4436 = vpack.c.b16 %v4417, %v4416
        %v4437 = vpack.c.b16 %v4419, %v4418
        %v4438 = vpack.c.b16 %v4421, %v4420
        %v4439 = vpack.c.b16 %v4423, %v4422
        %v4472 = vunpack.c.l.b16 %v4376
        %v4473 = vunpack.c.l.b16 %v4377
        %v4474 = vunpack.c.l.b16 %v4378
        %v4475 = vunpack.c.l.b16 %v4379
        %v4476 = vunpack.c.l.b16 %v4380
        %v4477 = vunpack.c.l.b16 %v4381
        %v4478 = vunpack.c.l.b16 %v4382
        %v4479 = vunpack.c.l.b16 %v4383
        %v4480 = vunpack.c.l.b16 %v4384
        %v4481 = vunpack.c.l.b16 %v4385
        %v4482 = vunpack.c.l.b16 %v4386
        %v4483 = vunpack.c.l.b16 %v4387
        %v4484 = vunpack.c.l.b16 %v4388
        %v4485 = vunpack.c.l.b16 %v4389
        %v4486 = vunpack.c.l.b16 %v4390
        %v4487 = vunpack.c.l.b16 %v4391
        %v4488 = vpack.c.b16 %v4473, %v4472
        %v4489 = vpack.c.b16 %v4475, %v4474
        %v4490 = vpack.c.b16 %v4477, %v4476
        %v4491 = vpack.c.b16 %v4479, %v4478
        %v4492 = vpack.c.b16 %v4481, %v4480
        %v4493 = vpack.c.b16 %v4483, %v4482
        %v4494 = vpack.c.b16 %v4485, %v4484
        %v4495 = vpack.c.b16 %v4487, %v4486
        %4504 = vmatprep.subr.bf16.mxu0 0
        %4505 = vmatpush1.bf16.msra.mxu0 %v4495
        %4506 = vmatprep.subr.bf16.mxu0 0
        %4507 = vmatpush1.bf16.msra.mxu0 %v4494
        %4508 = vmatprep.subr.bf16.mxu0 0
        %4509 = vmatpush1.bf16.msra.mxu0 %v4493
        %4510 = vmatprep.subr.bf16.mxu0 0
        %4511 = vmatpush1.bf16.msra.mxu0 %v4492
        %4512 = vmatprep.subr.bf16.mxu0 0
        %4513 = vmatpush1.bf16.msra.mxu0 %v4491
        %4514 = vmatprep.subr.bf16.mxu0 0
        %4515 = vmatpush1.bf16.msra.mxu0 %v4490
        %4516 = vmatprep.subr.bf16.mxu0 0
        %4517 = vmatpush1.bf16.msra.mxu0 %v4489
        %4518 = vmatprep.subr.bf16.mxu0 0
        %4519 = vmatpush1.bf16.msra.mxu0 %v4488
        %4520 = vmatprep.subr.bf16.mxu0 0
        %4521 = vmatpush2.bf16.msra.mxu0 0
        %4522 = vmatprep.subr.bf16.mxu0 0
        %4523 = vmatpush2.bf16.msra.mxu0 0
        %4524 = vmatprep.subr.bf16.mxu0 0
        %4525 = vmatpush2.bf16.msra.mxu0 0
        %4526 = vmatprep.subr.bf16.mxu0 0
        %4527 = vmatpush2.bf16.msra.mxu0 0
        %4528 = vmatprep.subr.bf16.mxu0 0
        %4529 = vmatpush2.bf16.msra.mxu0 0
        %4530 = vmatprep.subr.bf16.mxu0 0
        %4531 = vmatpush2.bf16.msra.mxu0 0
        %4532 = vmatprep.subr.bf16.mxu0 0
        %4533 = vmatpush2.bf16.msra.mxu0 0
        %4534 = vmatprep.subr.bf16.mxu0 0
        %4535 = vmatpush2.bf16.msra.mxu0 0
        %4536 = vmatprep.mubr.bf16.mxu0 0
        %4537 = vmatmul.mubr.bf16.gmra.mxu0 %v4424
        %v4538 = vpop.f32.mrf.mxu0
        %v4539 = vadd.f32 0.0, %v4538
        %v4540 = vpop.f32.mrf.mxu0
        %v4541 = vpop.f32.mrf.mxu0
        %v4542 = vadd.f32 0.0, %v4541
        %v4543 = vpop.f32.mrf.mxu0
        %4544 = vmatprep.mubr.bf16.mxu0 0
        %4545 = vmatmul.mubr.bf16.gmra.mxu0 %v4425
        %v4546 = vpop.f32.mrf.mxu0
        %v4547 = vadd.f32 0.0, %v4546
        %v4548 = vpop.f32.mrf.mxu0
        %v4549 = vpop.f32.mrf.mxu0
        %v4550 = vadd.f32 0.0, %v4549
        %v4551 = vpop.f32.mrf.mxu0
        %4552 = vmatprep.mubr.bf16.mxu0 0
        %4553 = vmatmul.mubr.bf16.gmra.mxu0 %v4426
        %v4554 = vpop.f32.mrf.mxu0
        %v4555 = vadd.f32 0.0, %v4554
        %v4556 = vpop.f32.mrf.mxu0
        %v4557 = vpop.f32.mrf.mxu0
        %v4558 = vadd.f32 0.0, %v4557
        %v4559 = vpop.f32.mrf.mxu0
        %4560 = vmatprep.mubr.bf16.mxu0 0
        %4561 = vmatmul.mubr.bf16.gmra.mxu0 %v4427
        %v4562 = vpop.f32.mrf.mxu0
        %v4563 = vadd.f32 0.0, %v4562
        %v4564 = vpop.f32.mrf.mxu0
        %v4565 = vpop.f32.mrf.mxu0
        %v4566 = vadd.f32 0.0, %v4565
        %v4567 = vpop.f32.mrf.mxu0
        %4568 = vmatprep.mubr.bf16.mxu0 0
        %4569 = vmatmul.mubr.bf16.gmra.mxu0 %v4428
        %v4570 = vpop.f32.mrf.mxu0
        %v4571 = vadd.f32 0.0, %v4570
        %v4572 = vpop.f32.mrf.mxu0
        %v4573 = vpop.f32.mrf.mxu0
        %v4574 = vadd.f32 0.0, %v4573
        %v4575 = vpop.f32.mrf.mxu0
        %4576 = vmatprep.mubr.bf16.mxu0 0
        %4577 = vmatmul.mubr.bf16.gmra.mxu0 %v4429
        %v4578 = vpop.f32.mrf.mxu0
        %v4579 = vadd.f32 0.0, %v4578
        %v4580 = vpop.f32.mrf.mxu0
        %v4581 = vpop.f32.mrf.mxu0
        %v4582 = vadd.f32 0.0, %v4581
        %v4583 = vpop.f32.mrf.mxu0
        %4584 = vmatprep.mubr.bf16.mxu0 0
        %4585 = vmatmul.mubr.bf16.gmra.mxu0 %v4430
        %v4586 = vpop.f32.mrf.mxu0
        %v4587 = vadd.f32 0.0, %v4586
        %v4588 = vpop.f32.mrf.mxu0
        %v4589 = vpop.f32.mrf.mxu0
        %v4590 = vadd.f32 0.0, %v4589
        %v4591 = vpop.f32.mrf.mxu0
        %4592 = vmatprep.mubr.bf16.mxu0 0
        %4593 = vmatmul.mubr.bf16.gmra.mxu0 %v4431
        %v4594 = vpop.f32.mrf.mxu0
        %v4595 = vadd.f32 0.0, %v4594
        %v4596 = vpop.f32.mrf.mxu0
        %v4597 = vpop.f32.mrf.mxu0
        %v4598 = vadd.f32 0.0, %v4597
        %v4599 = vpop.f32.mrf.mxu0
        %4600 = vmatprep.mubr.bf16.mxu0 0
        %4601 = vmatmul.mubr.bf16.gmra.mxu0 %v4432
        %v4602 = vpop.f32.mrf.mxu0
        %v4603 = vadd.f32 0.0, %v4602
        %v4604 = vpop.f32.mrf.mxu0
        %v4605 = vpop.f32.mrf.mxu0
        %v4606 = vadd.f32 0.0, %v4605
        %v4607 = vpop.f32.mrf.mxu0
        %4608 = vmatprep.mubr.bf16.mxu0 0
        %4609 = vmatmul.mubr.bf16.gmra.mxu0 %v4433
        %v4610 = vpop.f32.mrf.mxu0
        %v4611 = vadd.f32 0.0, %v4610
        %v4612 = vpop.f32.mrf.mxu0
        %v4613 = vpop.f32.mrf.mxu0
        %v4614 = vadd.f32 0.0, %v4613
        %v4615 = vpop.f32.mrf.mxu0
        %4616 = vmatprep.mubr.bf16.mxu0 0
        %4617 = vmatmul.mubr.bf16.gmra.mxu0 %v4434
        %v4618 = vpop.f32.mrf.mxu0
        %v4619 = vadd.f32 0.0, %v4618
        %v4620 = vpop.f32.mrf.mxu0
        %v4621 = vpop.f32.mrf.mxu0
        %v4622 = vadd.f32 0.0, %v4621
        %v4623 = vpop.f32.mrf.mxu0
        %4624 = vmatprep.mubr.bf16.mxu0 0
        %4625 = vmatmul.mubr.bf16.gmra.mxu0 %v4435
        %v4626 = vpop.f32.mrf.mxu0
        %v4627 = vadd.f32 0.0, %v4626
        %v4628 = vpop.f32.mrf.mxu0
        %v4629 = vpop.f32.mrf.mxu0
        %v4630 = vadd.f32 0.0, %v4629
        %v4631 = vpop.f32.mrf.mxu0
        %4632 = vmatprep.mubr.bf16.mxu0 0
        %4633 = vmatmul.mubr.bf16.gmra.mxu0 %v4436
        %v4634 = vpop.f32.mrf.mxu0
        %v4635 = vadd.f32 0.0, %v4634
        %v4636 = vpop.f32.mrf.mxu0
        %v4637 = vpop.f32.mrf.mxu0
        %v4638 = vadd.f32 0.0, %v4637
        %v4639 = vpop.f32.mrf.mxu0
        %4640 = vmatprep.mubr.bf16.mxu0 0
        %4641 = vmatmul.mubr.bf16.gmra.mxu0 %v4437
        %v4642 = vpop.f32.mrf.mxu0
        %v4643 = vadd.f32 0.0, %v4642
        %v4644 = vpop.f32.mrf.mxu0
        %v4645 = vpop.f32.mrf.mxu0
        %v4646 = vadd.f32 0.0, %v4645
        %v4647 = vpop.f32.mrf.mxu0
        %4648 = vmatprep.mubr.bf16.mxu0 0
        %4649 = vmatmul.mubr.bf16.gmra.mxu0 %v4438
        %v4650 = vpop.f32.mrf.mxu0
        %v4651 = vadd.f32 0.0, %v4650
        %v4652 = vpop.f32.mrf.mxu0
        %v4653 = vpop.f32.mrf.mxu0
        %v4654 = vadd.f32 0.0, %v4653
        %v4655 = vpop.f32.mrf.mxu0
        %4656 = vmatprep.mubr.bf16.mxu0 0
        %4657 = vmatmul.mubr.bf16.gmra.mxu0 %v4439
        %v4658 = vpop.f32.mrf.mxu0
        %v4659 = vadd.f32 0.0, %v4658
        %v4660 = vpop.f32.mrf.mxu0
        %v4661 = vpop.f32.mrf.mxu0
        %v4662 = vadd.f32 0.0, %v4661
        %v4663 = vpop.f32.mrf.mxu0
        %4664 = vdwg.mxu0
        %v4665 = vadd.f32 %v3911, %v4539
        %v4666 = vadd.f32 %v3912, %v4542
        %v4667 = vadd.f32 %v3913, %v4547
        %v4668 = vadd.f32 %v3914, %v4550
        %v4669 = vadd.f32 %v3915, %v4555
        %v4670 = vadd.f32 %v3916, %v4558
        %v4671 = vadd.f32 %v3917, %v4563
        %v4672 = vadd.f32 %v3918, %v4566
        %v4673 = vadd.f32 %v3919, %v4571
        %v4674 = vadd.f32 %v3920, %v4574
        %v4675 = vadd.f32 %v3921, %v4579
        %v4676 = vadd.f32 %v3922, %v4582
        %v4677 = vadd.f32 %v3923, %v4587
        %v4678 = vadd.f32 %v3924, %v4590
        %v4679 = vadd.f32 %v3925, %v4595
        %v4680 = vadd.f32 %v3926, %v4598
        %v4681 = vadd.f32 %v3927, %v4603
        %v4682 = vadd.f32 %v3928, %v4606
        %v4683 = vadd.f32 %v3929, %v4611
        %v4684 = vadd.f32 %v3930, %v4614
        %v4685 = vadd.f32 %v3931, %v4619
        %v4686 = vadd.f32 %v3932, %v4622
        %v4687 = vadd.f32 %v3933, %v4627
        %v4688 = vadd.f32 %v3934, %v4630
        %v4689 = vadd.f32 %v3935, %v4635
        %v4690 = vadd.f32 %v3936, %v4638
        %v4691 = vadd.f32 %v3937, %v4643
        %v4692 = vadd.f32 %v3938, %v4646
        %v4693 = vadd.f32 %v3939, %v4651
        %v4694 = vadd.f32 %v3940, %v4654
        %v4695 = vadd.f32 %v3941, %v4659
        %v4696 = vadd.f32 %v3942, %v4662
        %v4697 = vld [vmem:[%s3556] sm:$0xe]
        %v4698 = vld [vmem:[%s3556 + $0xc] sm:$0xe]
        %v4699 = vld [vmem:[%s3556 + $0x18] sm:$0xe]
        %v4700 = vld [vmem:[%s3556 + $0x24] sm:$0xe]
        %v4701 = vld [vmem:[%s3556 + $0x30] sm:$0xe]
        %v4702 = vld [vmem:[%s3556 + $0x3c] sm:$0xe]
        %v4703 = vld [vmem:[%s3556 + $0x48] sm:$0xe]
        %v4704 = vld [vmem:[%s3556 + $0x54] sm:$0xe]
        %v4705 = vld [vmem:[%s3556 + $0x60] sm:$0xe]
        %v4706 = vld [vmem:[%s3556 + $0x6c] sm:$0xe]
        %v4707 = vld [vmem:[%s3556 + $0x78] sm:$0xe]
        %v4708 = vld [vmem:[%s3556 + $0x84] sm:$0xe]
        %v4709 = vld [vmem:[%s3556 + $0x90] sm:$0xe]
        %v4710 = vld [vmem:[%s3556 + $0x9c] sm:$0xe]
        %v4711 = vld [vmem:[%s3556 + $0xa8] sm:$0xe]
        %v4712 = vld [vmem:[%s3556 + $0xb4] sm:$0xe]
        %v4761 = vrot.slane %v4697, 5
        %v4762 = vrot.slane %v4761, 4
        %v4763 = vrot.slane %v3944, 5
        %v4764 = vsel %vm1482, %v4762, %v4763
        %v4765 = vrot.slane %v4763, 4
        %v4766 = vrot.slane %v3945, 5
        %v4767 = vsel %vm1482, %v4765, %v4766
        %v4768 = vrot.slane %v4698, 5
        %v4769 = vrot.slane %v4768, 4
        %v4770 = vrot.slane %v3947, 5
        %v4771 = vsel %vm1482, %v4769, %v4770
        %v4772 = vrot.slane %v4770, 4
        %v4773 = vrot.slane %v3948, 5
        %v4774 = vsel %vm1482, %v4772, %v4773
        %v4775 = vrot.slane %v4699, 5
        %v4776 = vrot.slane %v4775, 4
        %v4777 = vrot.slane %v3950, 5
        %v4778 = vsel %vm1482, %v4776, %v4777
        %v4779 = vrot.slane %v4777, 4
        %v4780 = vrot.slane %v3951, 5
        %v4781 = vsel %vm1482, %v4779, %v4780
        %v4782 = vrot.slane %v4700, 5
        %v4783 = vrot.slane %v4782, 4
        %v4784 = vrot.slane %v3953, 5
        %v4785 = vsel %vm1482, %v4783, %v4784
        %v4786 = vrot.slane %v4784, 4
        %v4787 = vrot.slane %v3954, 5
        %v4788 = vsel %vm1482, %v4786, %v4787
        %v4789 = vrot.slane %v4701, 5
        %v4790 = vrot.slane %v4789, 4
        %v4791 = vrot.slane %v3956, 5
        %v4792 = vsel %vm1482, %v4790, %v4791
        %v4793 = vrot.slane %v4791, 4
        %v4794 = vrot.slane %v3957, 5
        %v4795 = vsel %vm1482, %v4793, %v4794
        %v4796 = vrot.slane %v4702, 5
        %v4797 = vrot.slane %v4796, 4
        %v4798 = vrot.slane %v3959, 5
        %v4799 = vsel %vm1482, %v4797, %v4798
        %v4800 = vrot.slane %v4798, 4
        %v4801 = vrot.slane %v3960, 5
        %v4802 = vsel %vm1482, %v4800, %v4801
        %v4803 = vrot.slane %v4703, 5
        %v4804 = vrot.slane %v4803, 4
        %v4805 = vrot.slane %v3962, 5
        %v4806 = vsel %vm1482, %v4804, %v4805
        %v4807 = vrot.slane %v4805, 4
        %v4808 = vrot.slane %v3963, 5
        %v4809 = vsel %vm1482, %v4807, %v4808
        %v4810 = vrot.slane %v4704, 5
        %v4811 = vrot.slane %v4810, 4
        %v4812 = vrot.slane %v3965, 5
        %v4813 = vsel %vm1482, %v4811, %v4812
        %v4814 = vrot.slane %v4812, 4
        %v4815 = vrot.slane %v3966, 5
        %v4816 = vsel %vm1482, %v4814, %v4815
        %v4817 = vrot.slane %v4705, 5
        %v4818 = vrot.slane %v4817, 4
        %v4819 = vrot.slane %v3968, 5
        %v4820 = vsel %vm1482, %v4818, %v4819
        %v4821 = vrot.slane %v4819, 4
        %v4822 = vrot.slane %v3969, 5
        %v4823 = vsel %vm1482, %v4821, %v4822
        %v4824 = vrot.slane %v4706, 5
        %v4825 = vrot.slane %v4824, 4
        %v4826 = vrot.slane %v3971, 5
        %v4827 = vsel %vm1482, %v4825, %v4826
        %v4828 = vrot.slane %v4826, 4
        %v4829 = vrot.slane %v3972, 5
        %v4830 = vsel %vm1482, %v4828, %v4829
        %v4831 = vrot.slane %v4707, 5
        %v4832 = vrot.slane %v4831, 4
        %v4833 = vrot.slane %v3974, 5
        %v4834 = vsel %vm1482, %v4832, %v4833
        %v4835 = vrot.slane %v4833, 4
        %v4836 = vrot.slane %v3975, 5
        %v4837 = vsel %vm1482, %v4835, %v4836
        %v4838 = vrot.slane %v4708, 5
        %v4839 = vrot.slane %v4838, 4
        %v4840 = vrot.slane %v3977, 5
        %v4841 = vsel %vm1482, %v4839, %v4840
        %v4842 = vrot.slane %v4840, 4
        %v4843 = vrot.slane %v3978, 5
        %v4844 = vsel %vm1482, %v4842, %v4843
        %v4845 = vrot.slane %v4709, 5
        %v4846 = vrot.slane %v4845, 4
        %v4847 = vrot.slane %v3980, 5
        %v4848 = vsel %vm1482, %v4846, %v4847
        %v4849 = vrot.slane %v4847, 4
        %v4850 = vrot.slane %v3981, 5
        %v4851 = vsel %vm1482, %v4849, %v4850
        %v4852 = vrot.slane %v4710, 5
        %v4853 = vrot.slane %v4852, 4
        %v4854 = vrot.slane %v3983, 5
        %v4855 = vsel %vm1482, %v4853, %v4854
        %v4856 = vrot.slane %v4854, 4
        %v4857 = vrot.slane %v3984, 5
        %v4858 = vsel %vm1482, %v4856, %v4857
        %v4859 = vrot.slane %v4711, 5
        %v4860 = vrot.slane %v4859, 4
        %v4861 = vrot.slane %v3986, 5
        %v4862 = vsel %vm1482, %v4860, %v4861
        %v4863 = vrot.slane %v4861, 4
        %v4864 = vrot.slane %v3987, 5
        %v4865 = vsel %vm1482, %v4863, %v4864
        %v4866 = vrot.slane %v4712, 5
        %v4867 = vrot.slane %v4866, 4
        %v4868 = vrot.slane %v3989, 5
        %v4869 = vsel %vm1482, %v4867, %v4868
        %v4870 = vrot.slane %v4868, 4
        %v4871 = vrot.slane %v3990, 5
        %v4872 = vsel %vm1482, %v4870, %v4871
        %s4873 = scalar_lea.vmem %s1, 512
        %v4874 = vld [vmem:[%s4873] sm:$0xf]
        %v4875 = vld [vmem:[%s4873 + $0x4] sm:$0xf]
        %v4876 = vld [vmem:[%s4873 + $0x8] sm:$0xf]
        %v4877 = vld [vmem:[%s4873 + $0xc] sm:$0xf]
        %v4878 = vld [vmem:[%s4873 + $0x10] sm:$0xf]
        %v4879 = vld [vmem:[%s4873 + $0x14] sm:$0xf]
        %v4880 = vld [vmem:[%s4873 + $0x18] sm:$0xf]
        %v4881 = vld [vmem:[%s4873 + $0x1c] sm:$0xf]
        %v4882 = vld [vmem:[%s4873 + $0x20] sm:$0xf]
        %v4883 = vld [vmem:[%s4873 + $0x24] sm:$0xf]
        %v4884 = vld [vmem:[%s4873 + $0x28] sm:$0xf]
        %v4885 = vld [vmem:[%s4873 + $0x2c] sm:$0xf]
        %v4886 = vld [vmem:[%s4873 + $0x30] sm:$0xf]
        %v4887 = vld [vmem:[%s4873 + $0x34] sm:$0xf]
        %v4888 = vld [vmem:[%s4873 + $0x38] sm:$0xf]
        %v4889 = vld [vmem:[%s4873 + $0x3c] sm:$0xf]
        %v4890 = vunpack.c.l.b16 %v4764
        %v4891 = vunpack.c.l.b16 %v4767
        %v4892 = vunpack.c.l.b16 %v4771
        %v4893 = vunpack.c.l.b16 %v4774
        %v4894 = vunpack.c.l.b16 %v4778
        %v4895 = vunpack.c.l.b16 %v4781
        %v4896 = vunpack.c.l.b16 %v4785
        %v4897 = vunpack.c.l.b16 %v4788
        %v4898 = vunpack.c.l.b16 %v4792
        %v4899 = vunpack.c.l.b16 %v4795
        %v4900 = vunpack.c.l.b16 %v4799
        %v4901 = vunpack.c.l.b16 %v4802
        %v4902 = vunpack.c.l.b16 %v4806
        %v4903 = vunpack.c.l.b16 %v4809
        %v4904 = vunpack.c.l.b16 %v4813
        %v4905 = vunpack.c.l.b16 %v4816
        %v4906 = vunpack.c.l.b16 %v4820
        %v4907 = vunpack.c.l.b16 %v4823
        %v4908 = vunpack.c.l.b16 %v4827
        %v4909 = vunpack.c.l.b16 %v4830
        %v4910 = vunpack.c.l.b16 %v4834
        %v4911 = vunpack.c.l.b16 %v4837
        %v4912 = vunpack.c.l.b16 %v4841
        %v4913 = vunpack.c.l.b16 %v4844
        %v4914 = vunpack.c.l.b16 %v4848
        %v4915 = vunpack.c.l.b16 %v4851
        %v4916 = vunpack.c.l.b16 %v4855
        %v4917 = vunpack.c.l.b16 %v4858
        %v4918 = vunpack.c.l.b16 %v4862
        %v4919 = vunpack.c.l.b16 %v4865
        %v4920 = vunpack.c.l.b16 %v4869
        %v4921 = vunpack.c.l.b16 %v4872
        %v4922 = vpack.c.b16 %v4891, %v4890
        %v4923 = vpack.c.b16 %v4893, %v4892
        %v4924 = vpack.c.b16 %v4895, %v4894
        %v4925 = vpack.c.b16 %v4897, %v4896
        %v4926 = vpack.c.b16 %v4899, %v4898
        %v4927 = vpack.c.b16 %v4901, %v4900
        %v4928 = vpack.c.b16 %v4903, %v4902
        %v4929 = vpack.c.b16 %v4905, %v4904
        %v4930 = vpack.c.b16 %v4907, %v4906
        %v4931 = vpack.c.b16 %v4909, %v4908
        %v4932 = vpack.c.b16 %v4911, %v4910
        %v4933 = vpack.c.b16 %v4913, %v4912
        %v4934 = vpack.c.b16 %v4915, %v4914
        %v4935 = vpack.c.b16 %v4917, %v4916
        %v4936 = vpack.c.b16 %v4919, %v4918
        %v4937 = vpack.c.b16 %v4921, %v4920
        %v4970 = vunpack.c.l.b16 %v4874
        %v4971 = vunpack.c.l.b16 %v4875
        %v4972 = vunpack.c.l.b16 %v4876
        %v4973 = vunpack.c.l.b16 %v4877
        %v4974 = vunpack.c.l.b16 %v4878
        %v4975 = vunpack.c.l.b16 %v4879
        %v4976 = vunpack.c.l.b16 %v4880
        %v4977 = vunpack.c.l.b16 %v4881
        %v4978 = vunpack.c.l.b16 %v4882
        %v4979 = vunpack.c.l.b16 %v4883
        %v4980 = vunpack.c.l.b16 %v4884
        %v4981 = vunpack.c.l.b16 %v4885
        %v4982 = vunpack.c.l.b16 %v4886
        %v4983 = vunpack.c.l.b16 %v4887
        %v4984 = vunpack.c.l.b16 %v4888
        %v4985 = vunpack.c.l.b16 %v4889
        %v4986 = vpack.c.b16 %v4971, %v4970
        %v4987 = vpack.c.b16 %v4973, %v4972
        %v4988 = vpack.c.b16 %v4975, %v4974
        %v4989 = vpack.c.b16 %v4977, %v4976
        %v4990 = vpack.c.b16 %v4979, %v4978
        %v4991 = vpack.c.b16 %v4981, %v4980
        %v4992 = vpack.c.b16 %v4983, %v4982
        %v4993 = vpack.c.b16 %v4985, %v4984
        %5002 = vmatprep.subr.bf16.mxu0 0
        %5003 = vmatpush1.bf16.msra.mxu0 %v4993
        %5004 = vmatprep.subr.bf16.mxu0 0
        %5005 = vmatpush1.bf16.msra.mxu0 %v4992
        %5006 = vmatprep.subr.bf16.mxu0 0
        %5007 = vmatpush1.bf16.msra.mxu0 %v4991
        %5008 = vmatprep.subr.bf16.mxu0 0
        %5009 = vmatpush1.bf16.msra.mxu0 %v4990
        %5010 = vmatprep.subr.bf16.mxu0 0
        %5011 = vmatpush1.bf16.msra.mxu0 %v4989
        %5012 = vmatprep.subr.bf16.mxu0 0
        %5013 = vmatpush1.bf16.msra.mxu0 %v4988
        %5014 = vmatprep.subr.bf16.mxu0 0
        %5015 = vmatpush1.bf16.msra.mxu0 %v4987
        %5016 = vmatprep.subr.bf16.mxu0 0
        %5017 = vmatpush1.bf16.msra.mxu0 %v4986
        %5018 = vmatprep.subr.bf16.mxu0 0
        %5019 = vmatpush2.bf16.msra.mxu0 0
        %5020 = vmatprep.subr.bf16.mxu0 0
        %5021 = vmatpush2.bf16.msra.mxu0 0
        %5022 = vmatprep.subr.bf16.mxu0 0
        %5023 = vmatpush2.bf16.msra.mxu0 0
        %5024 = vmatprep.subr.bf16.mxu0 0
        %5025 = vmatpush2.bf16.msra.mxu0 0
        %5026 = vmatprep.subr.bf16.mxu0 0
        %5027 = vmatpush2.bf16.msra.mxu0 0
        %5028 = vmatprep.subr.bf16.mxu0 0
        %5029 = vmatpush2.bf16.msra.mxu0 0
        %5030 = vmatprep.subr.bf16.mxu0 0
        %5031 = vmatpush2.bf16.msra.mxu0 0
        %5032 = vmatprep.subr.bf16.mxu0 0
        %5033 = vmatpush2.bf16.msra.mxu0 0
        %5034 = vmatprep.mubr.bf16.mxu0 0
        %5035 = vmatmul.mubr.bf16.gmra.mxu0 %v4922
        %v5036 = vpop.f32.mrf.mxu0
        %v5037 = vadd.f32 0.0, %v5036
        %v5038 = vpop.f32.mrf.mxu0
        %v5039 = vpop.f32.mrf.mxu0
        %v5040 = vadd.f32 0.0, %v5039
        %v5041 = vpop.f32.mrf.mxu0
        %5042 = vmatprep.mubr.bf16.mxu0 0
        %5043 = vmatmul.mubr.bf16.gmra.mxu0 %v4923
        %v5044 = vpop.f32.mrf.mxu0
        %v5045 = vadd.f32 0.0, %v5044
        %v5046 = vpop.f32.mrf.mxu0
        %v5047 = vpop.f32.mrf.mxu0
        %v5048 = vadd.f32 0.0, %v5047
        %v5049 = vpop.f32.mrf.mxu0
        %5050 = vmatprep.mubr.bf16.mxu0 0
        %5051 = vmatmul.mubr.bf16.gmra.mxu0 %v4924
        %v5052 = vpop.f32.mrf.mxu0
        %v5053 = vadd.f32 0.0, %v5052
        %v5054 = vpop.f32.mrf.mxu0
        %v5055 = vpop.f32.mrf.mxu0
        %v5056 = vadd.f32 0.0, %v5055
        %v5057 = vpop.f32.mrf.mxu0
        %5058 = vmatprep.mubr.bf16.mxu0 0
        %5059 = vmatmul.mubr.bf16.gmra.mxu0 %v4925
        %v5060 = vpop.f32.mrf.mxu0
        %v5061 = vadd.f32 0.0, %v5060
        %v5062 = vpop.f32.mrf.mxu0
        %v5063 = vpop.f32.mrf.mxu0
        %v5064 = vadd.f32 0.0, %v5063
        %v5065 = vpop.f32.mrf.mxu0
        %5066 = vmatprep.mubr.bf16.mxu0 0
        %5067 = vmatmul.mubr.bf16.gmra.mxu0 %v4926
        %v5068 = vpop.f32.mrf.mxu0
        %v5069 = vadd.f32 0.0, %v5068
        %v5070 = vpop.f32.mrf.mxu0
        %v5071 = vpop.f32.mrf.mxu0
        %v5072 = vadd.f32 0.0, %v5071
        %v5073 = vpop.f32.mrf.mxu0
        %5074 = vmatprep.mubr.bf16.mxu0 0
        %5075 = vmatmul.mubr.bf16.gmra.mxu0 %v4927
        %v5076 = vpop.f32.mrf.mxu0
        %v5077 = vadd.f32 0.0, %v5076
        %v5078 = vpop.f32.mrf.mxu0
        %v5079 = vpop.f32.mrf.mxu0
        %v5080 = vadd.f32 0.0, %v5079
        %v5081 = vpop.f32.mrf.mxu0
        %5082 = vmatprep.mubr.bf16.mxu0 0
        %5083 = vmatmul.mubr.bf16.gmra.mxu0 %v4928
        %v5084 = vpop.f32.mrf.mxu0
        %v5085 = vadd.f32 0.0, %v5084
        %v5086 = vpop.f32.mrf.mxu0
        %v5087 = vpop.f32.mrf.mxu0
        %v5088 = vadd.f32 0.0, %v5087
        %v5089 = vpop.f32.mrf.mxu0
        %5090 = vmatprep.mubr.bf16.mxu0 0
        %5091 = vmatmul.mubr.bf16.gmra.mxu0 %v4929
        %v5092 = vpop.f32.mrf.mxu0
        %v5093 = vadd.f32 0.0, %v5092
        %v5094 = vpop.f32.mrf.mxu0
        %v5095 = vpop.f32.mrf.mxu0
        %v5096 = vadd.f32 0.0, %v5095
        %v5097 = vpop.f32.mrf.mxu0
        %5098 = vmatprep.mubr.bf16.mxu0 0
        %5099 = vmatmul.mubr.bf16.gmra.mxu0 %v4930
        %v5100 = vpop.f32.mrf.mxu0
        %v5101 = vadd.f32 0.0, %v5100
        %v5102 = vpop.f32.mrf.mxu0
        %v5103 = vpop.f32.mrf.mxu0
        %v5104 = vadd.f32 0.0, %v5103
        %v5105 = vpop.f32.mrf.mxu0
        %5106 = vmatprep.mubr.bf16.mxu0 0
        %5107 = vmatmul.mubr.bf16.gmra.mxu0 %v4931
        %v5108 = vpop.f32.mrf.mxu0
        %v5109 = vadd.f32 0.0, %v5108
        %v5110 = vpop.f32.mrf.mxu0
        %v5111 = vpop.f32.mrf.mxu0
        %v5112 = vadd.f32 0.0, %v5111
        %v5113 = vpop.f32.mrf.mxu0
        %5114 = vmatprep.mubr.bf16.mxu0 0
        %5115 = vmatmul.mubr.bf16.gmra.mxu0 %v4932
        %v5116 = vpop.f32.mrf.mxu0
        %v5117 = vadd.f32 0.0, %v5116
        %v5118 = vpop.f32.mrf.mxu0
        %v5119 = vpop.f32.mrf.mxu0
        %v5120 = vadd.f32 0.0, %v5119
        %v5121 = vpop.f32.mrf.mxu0
        %5122 = vmatprep.mubr.bf16.mxu0 0
        %5123 = vmatmul.mubr.bf16.gmra.mxu0 %v4933
        %v5124 = vpop.f32.mrf.mxu0
        %v5125 = vadd.f32 0.0, %v5124
        %v5126 = vpop.f32.mrf.mxu0
        %v5127 = vpop.f32.mrf.mxu0
        %v5128 = vadd.f32 0.0, %v5127
        %v5129 = vpop.f32.mrf.mxu0
        %5130 = vmatprep.mubr.bf16.mxu0 0
        %5131 = vmatmul.mubr.bf16.gmra.mxu0 %v4934
        %v5132 = vpop.f32.mrf.mxu0
        %v5133 = vadd.f32 0.0, %v5132
        %v5134 = vpop.f32.mrf.mxu0
        %v5135 = vpop.f32.mrf.mxu0
        %v5136 = vadd.f32 0.0, %v5135
        %v5137 = vpop.f32.mrf.mxu0
        %5138 = vmatprep.mubr.bf16.mxu0 0
        %5139 = vmatmul.mubr.bf16.gmra.mxu0 %v4935
        %v5140 = vpop.f32.mrf.mxu0
        %v5141 = vadd.f32 0.0, %v5140
        %v5142 = vpop.f32.mrf.mxu0
        %v5143 = vpop.f32.mrf.mxu0
        %v5144 = vadd.f32 0.0, %v5143
        %v5145 = vpop.f32.mrf.mxu0
        %5146 = vmatprep.mubr.bf16.mxu0 0
        %5147 = vmatmul.mubr.bf16.gmra.mxu0 %v4936
        %v5148 = vpop.f32.mrf.mxu0
        %v5149 = vadd.f32 0.0, %v5148
        %v5150 = vpop.f32.mrf.mxu0
        %v5151 = vpop.f32.mrf.mxu0
        %v5152 = vadd.f32 0.0, %v5151
        %v5153 = vpop.f32.mrf.mxu0
        %5154 = vmatprep.mubr.bf16.mxu0 0
        %5155 = vmatmul.mubr.bf16.gmra.mxu0 %v4937
        %v5156 = vpop.f32.mrf.mxu0
        %v5157 = vadd.f32 0.0, %v5156
        %v5158 = vpop.f32.mrf.mxu0
        %v5159 = vpop.f32.mrf.mxu0
        %v5160 = vadd.f32 0.0, %v5159
        %v5161 = vpop.f32.mrf.mxu0
        %5162 = vdwg.mxu0
        %v5163 = vadd.f32 %v4665, %v5037
        %v5164 = vadd.f32 %v4666, %v5040
        %v5165 = vadd.f32 %v4667, %v5045
        %v5166 = vadd.f32 %v4668, %v5048
        %v5167 = vadd.f32 %v4669, %v5053
        %v5168 = vadd.f32 %v4670, %v5056
        %v5169 = vadd.f32 %v4671, %v5061
        %v5170 = vadd.f32 %v4672, %v5064
        %v5171 = vadd.f32 %v4673, %v5069
        %v5172 = vadd.f32 %v4674, %v5072
        %v5173 = vadd.f32 %v4675, %v5077
        %v5174 = vadd.f32 %v4676, %v5080
        %v5175 = vadd.f32 %v4677, %v5085
        %v5176 = vadd.f32 %v4678, %v5088
        %v5177 = vadd.f32 %v4679, %v5093
        %v5178 = vadd.f32 %v4680, %v5096
        %v5179 = vadd.f32 %v4681, %v5101
        %v5180 = vadd.f32 %v4682, %v5104
        %v5181 = vadd.f32 %v4683, %v5109
        %v5182 = vadd.f32 %v4684, %v5112
        %v5183 = vadd.f32 %v4685, %v5117
        %v5184 = vadd.f32 %v4686, %v5120
        %v5185 = vadd.f32 %v4687, %v5125
        %v5186 = vadd.f32 %v4688, %v5128
        %v5187 = vadd.f32 %v4689, %v5133
        %v5188 = vadd.f32 %v4690, %v5136
        %v5189 = vadd.f32 %v4691, %v5141
        %v5190 = vadd.f32 %v4692, %v5144
        %v5191 = vadd.f32 %v4693, %v5149
        %v5192 = vadd.f32 %v4694, %v5152
        %v5193 = vadd.f32 %v4695, %v5157
        %v5194 = vadd.f32 %v4696, %v5160
        %v5195 = vld [vmem:[%s2] sm:$0x1]
        %v5197 = vlaneseq
        %v5198 = vshrl.u32 %v5197, 7
        %v5199 = vsub.s32 0, %v5198
        %v5200 = vrot.slane %v5195, %v5199
        %v5202 = vmul.f32 %v5163, %v5200
        %v5203 = vmul.f32 %v5164, %v5200
        %v5204 = vmul.f32 %v5165, %v5200
        %v5205 = vmul.f32 %v5166, %v5200
        %v5206 = vmul.f32 %v5167, %v5200
        %v5207 = vmul.f32 %v5168, %v5200
        %v5208 = vmul.f32 %v5169, %v5200
        %v5209 = vmul.f32 %v5170, %v5200
        %v5210 = vmul.f32 %v5171, %v5200
        %v5211 = vmul.f32 %v5172, %v5200
        %v5212 = vmul.f32 %v5173, %v5200
        %v5213 = vmul.f32 %v5174, %v5200
        %v5214 = vmul.f32 %v5175, %v5200
        %v5215 = vmul.f32 %v5176, %v5200
        %v5216 = vmul.f32 %v5177, %v5200
        %v5217 = vmul.f32 %v5178, %v5200
        %v5218 = vmul.f32 %v5179, %v5200
        %v5219 = vmul.f32 %v5180, %v5200
        %v5220 = vmul.f32 %v5181, %v5200
        %v5221 = vmul.f32 %v5182, %v5200
        %v5222 = vmul.f32 %v5183, %v5200
        %v5223 = vmul.f32 %v5184, %v5200
        %v5224 = vmul.f32 %v5185, %v5200
        %v5225 = vmul.f32 %v5186, %v5200
        %v5226 = vmul.f32 %v5187, %v5200
        %v5227 = vmul.f32 %v5188, %v5200
        %v5228 = vmul.f32 %v5189, %v5200
        %v5229 = vmul.f32 %v5190, %v5200
        %v5230 = vmul.f32 %v5191, %v5200
        %v5231 = vmul.f32 %v5192, %v5200
        %v5232 = vmul.f32 %v5193, %v5200
        %v5233 = vmul.f32 %v5194, %v5200
        %v5234 = vld [vmem:[%s3] sm:$0x1]
        %v5236 = vlaneseq
        %v5237 = vshrl.u32 %v5236, 7
        %v5238 = vsub.s32 0, %v5237
        %v5239 = vrot.slane %v5234, %v5238
        %v5241 = vadd.f32 %v5202, %v5239
        %v5242 = vadd.f32 %v5203, %v5239
        %v5243 = vadd.f32 %v5204, %v5239
        %v5244 = vadd.f32 %v5205, %v5239
        %v5245 = vadd.f32 %v5206, %v5239
        %v5246 = vadd.f32 %v5207, %v5239
        %v5247 = vadd.f32 %v5208, %v5239
        %v5248 = vadd.f32 %v5209, %v5239
        %v5249 = vadd.f32 %v5210, %v5239
        %v5250 = vadd.f32 %v5211, %v5239
        %v5251 = vadd.f32 %v5212, %v5239
        %v5252 = vadd.f32 %v5213, %v5239
        %v5253 = vadd.f32 %v5214, %v5239
        %v5254 = vadd.f32 %v5215, %v5239
        %v5255 = vadd.f32 %v5216, %v5239
        %v5256 = vadd.f32 %v5217, %v5239
        %v5257 = vadd.f32 %v5218, %v5239
        %v5258 = vadd.f32 %v5219, %v5239
        %v5259 = vadd.f32 %v5220, %v5239
        %v5260 = vadd.f32 %v5221, %v5239
        %v5261 = vadd.f32 %v5222, %v5239
        %v5262 = vadd.f32 %v5223, %v5239
        %v5263 = vadd.f32 %v5224, %v5239
        %v5264 = vadd.f32 %v5225, %v5239
        %v5265 = vadd.f32 %v5226, %v5239
        %v5266 = vadd.f32 %v5227, %v5239
        %v5267 = vadd.f32 %v5228, %v5239
        %v5268 = vadd.f32 %v5229, %v5239
        %v5269 = vadd.f32 %v5230, %v5239
        %v5270 = vadd.f32 %v5231, %v5239
        %v5271 = vadd.f32 %v5232, %v5239
        %v5272 = vadd.f32 %v5233, %v5239
        %v5273 = vmax.f32 %v5241, 0.0
        %v5274 = vmax.f32 %v5242, 0.0
        %v5275 = vmax.f32 %v5243, 0.0
        %v5276 = vmax.f32 %v5244, 0.0
        %v5277 = vmax.f32 %v5245, 0.0
        %v5278 = vmax.f32 %v5246, 0.0
        %v5279 = vmax.f32 %v5247, 0.0
        %v5280 = vmax.f32 %v5248, 0.0
        %v5281 = vmax.f32 %v5249, 0.0
        %v5282 = vmax.f32 %v5250, 0.0
        %v5283 = vmax.f32 %v5251, 0.0
        %v5284 = vmax.f32 %v5252, 0.0
        %v5285 = vmax.f32 %v5253, 0.0
        %v5286 = vmax.f32 %v5254, 0.0
        %v5287 = vmax.f32 %v5255, 0.0
        %v5288 = vmax.f32 %v5256, 0.0
        %v5289 = vmax.f32 %v5257, 0.0
        %v5290 = vmax.f32 %v5258, 0.0
        %v5291 = vmax.f32 %v5259, 0.0
        %v5292 = vmax.f32 %v5260, 0.0
        %v5293 = vmax.f32 %v5261, 0.0
        %v5294 = vmax.f32 %v5262, 0.0
        %v5295 = vmax.f32 %v5263, 0.0
        %v5296 = vmax.f32 %v5264, 0.0
        %v5297 = vmax.f32 %v5265, 0.0
        %v5298 = vmax.f32 %v5266, 0.0
        %v5299 = vmax.f32 %v5267, 0.0
        %v5300 = vmax.f32 %v5268, 0.0
        %v5301 = vmax.f32 %v5269, 0.0
        %v5302 = vmax.f32 %v5270, 0.0
        %v5303 = vmax.f32 %v5271, 0.0
        %v5304 = vmax.f32 %v5272, 0.0
        %5305 = vst [vmem:[#allocation2] sm:$0xff] 0.0
        %5306 = vst [vmem:[#allocation2 + $0x8] sm:$0xff] 0.0
        %5307 = vst [vmem:[#allocation2 + $0x10] sm:$0x3] 0.0
        %5308 = vst [vmem:[#allocation2 + $0x18] sm:$0xff] 0.0
        %5309 = vst [vmem:[#allocation2 + $0x20] sm:$0xff] 0.0
        %5310 = vst [vmem:[#allocation2 + $0x28] sm:$0x3] 0.0
        %5311 = vst [vmem:[#allocation2 + $0x30] sm:$0xff] 0.0
        %5312 = vst [vmem:[#allocation2 + $0x38] sm:$0xff] 0.0
        %5313 = vst [vmem:[#allocation2 + $0x40] sm:$0x3] 0.0
        %5314 = vst [vmem:[#allocation2 + $0x48] sm:$0xff] 0.0
        %5315 = vst [vmem:[#allocation2 + $0x50] sm:$0xff] 0.0
        %5316 = vst [vmem:[#allocation2 + $0x58] sm:$0x3] 0.0
        %5317 = vst [vmem:[#allocation2 + $0x60] sm:$0xff] 0.0
        %5318 = vst [vmem:[#allocation2 + $0x68] sm:$0xff] 0.0
        %5319 = vst [vmem:[#allocation2 + $0x70] sm:$0x3] 0.0
        %5320 = vst [vmem:[#allocation2 + $0x78] sm:$0xff] 0.0
        %5321 = vst [vmem:[#allocation2 + $0x80] sm:$0xff] 0.0
        %5322 = vst [vmem:[#allocation2 + $0x88] sm:$0x3] 0.0
        %5323 = vst [vmem:[#allocation2 + $0x90] sm:$0xff] 0.0
        %5324 = vst [vmem:[#allocation2 + $0x98] sm:$0xff] 0.0
        %5325 = vst [vmem:[#allocation2 + $0xa0] sm:$0x3] 0.0
        %5326 = vst [vmem:[#allocation2 + $0xa8] sm:$0xff] 0.0
        %5327 = vst [vmem:[#allocation2 + $0xb0] sm:$0xff] 0.0
        %5328 = vst [vmem:[#allocation2 + $0xb8] sm:$0x3] 0.0
        %5329 = vst [vmem:[#allocation2 + $0xc0] sm:$0xff] 0.0
        %5330 = vst [vmem:[#allocation2 + $0xc8] sm:$0xff] 0.0
        %5331 = vst [vmem:[#allocation2 + $0xd0] sm:$0x3] 0.0
        %5332 = vst [vmem:[#allocation2 + $0xd8] sm:$0xff] 0.0
        %5333 = vst [vmem:[#allocation2 + $0xe0] sm:$0xff] 0.0
        %5334 = vst [vmem:[#allocation2 + $0xe8] sm:$0x3] 0.0
        %5335 = vst [vmem:[#allocation2 + $0xf0] sm:$0xff] 0.0
        %5336 = vst [vmem:[#allocation2 + $0xf8] sm:$0xff] 0.0
        %5337 = vst [vmem:[#allocation2 + $0x100] sm:$0x3] 0.0
        %5338 = vst [vmem:[#allocation2 + $0x108] sm:$0xff] 0.0
        %5339 = vst [vmem:[#allocation2 + $0x110] sm:$0xff] 0.0
        %5340 = vst [vmem:[#allocation2 + $0x118] sm:$0x3] 0.0
        %5341 = vst [vmem:[#allocation2 + $0x120] sm:$0xff] 0.0
        %5342 = vst [vmem:[#allocation2 + $0x128] sm:$0xff] 0.0
        %5343 = vst [vmem:[#allocation2 + $0x130] sm:$0x3] 0.0
        %5344 = vst [vmem:[#allocation2 + $0x138] sm:$0xff] 0.0
        %5345 = vst [vmem:[#allocation2 + $0x140] sm:$0xff] 0.0
        %5346 = vst [vmem:[#allocation2 + $0x148] sm:$0x3] 0.0
        %5347 = vst [vmem:[#allocation2 + $0x150] sm:$0xff] 0.0
        %5348 = vst [vmem:[#allocation2 + $0x158] sm:$0xff] 0.0
        %5349 = vst [vmem:[#allocation2 + $0x160] sm:$0x3] 0.0
        %5350 = vst [vmem:[#allocation2 + $0x168] sm:$0xff] 0.0
        %5351 = vst [vmem:[#allocation2 + $0x170] sm:$0xff] 0.0
        %5352 = vst [vmem:[#allocation2 + $0x178] sm:$0x3] 0.0
        %5353 = vst [vmem:[#allocation2 + $0x180] sm:$0xff] 0.0
        %5354 = vst [vmem:[#allocation2 + $0x188] sm:$0xff] 0.0
        %5355 = vst [vmem:[#allocation2 + $0x190] sm:$0x3] 0.0
        %5356 = vst [vmem:[#allocation2 + $0x198] sm:$0xff] 0.0
        %5357 = vst [vmem:[#allocation2 + $0x1a0] sm:$0xff] 0.0
        %5358 = vst [vmem:[#allocation2 + $0x1a8] sm:$0x3] 0.0
        %s5359 = scalar_lea.vmem [#allocation2], 24
        %5360 = vst [vmem:[%s5359 + $0x1] sm:$0xff] %v5273
        %5361 = vst [vmem:[%s5359 + $0x9] sm:$0xff] %v5274
        %5362 = vst [vmem:[%s5359 + $0x19] sm:$0xff] %v5275
        %5363 = vst [vmem:[%s5359 + $0x21] sm:$0xff] %v5276
        %5364 = vst [vmem:[%s5359 + $0x31] sm:$0xff] %v5277
        %5365 = vst [vmem:[%s5359 + $0x39] sm:$0xff] %v5278
        %5366 = vst [vmem:[%s5359 + $0x49] sm:$0xff] %v5279
        %5367 = vst [vmem:[%s5359 + $0x51] sm:$0xff] %v5280
        %5368 = vst [vmem:[%s5359 + $0x61] sm:$0xff] %v5281
        %5369 = vst [vmem:[%s5359 + $0x69] sm:$0xff] %v5282
        %5370 = vst [vmem:[%s5359 + $0x79] sm:$0xff] %v5283
        %5371 = vst [vmem:[%s5359 + $0x81] sm:$0xff] %v5284
        %5372 = vst [vmem:[%s5359 + $0x91] sm:$0xff] %v5285
        %5373 = vst [vmem:[%s5359 + $0x99] sm:$0xff] %v5286
        %5374 = vst [vmem:[%s5359 + $0xa9] sm:$0xff] %v5287
        %5375 = vst [vmem:[%s5359 + $0xb1] sm:$0xff] %v5288
        %5376 = vst [vmem:[%s5359 + $0xc1] sm:$0xff] %v5289
        %5377 = vst [vmem:[%s5359 + $0xc9] sm:$0xff] %v5290
        %5378 = vst [vmem:[%s5359 + $0xd9] sm:$0xff] %v5291
        %5379 = vst [vmem:[%s5359 + $0xe1] sm:$0xff] %v5292
        %5380 = vst [vmem:[%s5359 + $0xf1] sm:$0xff] %v5293
        %5381 = vst [vmem:[%s5359 + $0xf9] sm:$0xff] %v5294
        %5382 = vst [vmem:[%s5359 + $0x109] sm:$0xff] %v5295
        %5383 = vst [vmem:[%s5359 + $0x111] sm:$0xff] %v5296
        %5384 = vst [vmem:[%s5359 + $0x121] sm:$0xff] %v5297
        %5385 = vst [vmem:[%s5359 + $0x129] sm:$0xff] %v5298
        %5386 = vst [vmem:[%s5359 + $0x139] sm:$0xff] %v5299
        %5387 = vst [vmem:[%s5359 + $0x141] sm:$0xff] %v5300
        %5388 = vst [vmem:[%s5359 + $0x151] sm:$0xff] %v5301
        %5389 = vst [vmem:[%s5359 + $0x159] sm:$0xff] %v5302
        %5390 = vst [vmem:[%s5359 + $0x169] sm:$0xff] %v5303
        %5391 = vst [vmem:[%s5359 + $0x171] sm:$0xff] %v5304
        %5392 = vst [vmem:[#allocation3] sm:$0xff] -1e+30
        %5393 = vst [vmem:[#allocation3 + $0x8] sm:$0xff] -1e+30
        %5394 = vst [vmem:[#allocation3 + $0x10] sm:$0x3] -1e+30
        %5395 = vst [vmem:[#allocation3 + $0x18] sm:$0xff] -1e+30
        %5396 = vst [vmem:[#allocation3 + $0x20] sm:$0xff] -1e+30
        %5397 = vst [vmem:[#allocation3 + $0x28] sm:$0x3] -1e+30
        %5398 = vst [vmem:[#allocation3 + $0x30] sm:$0xff] -1e+30
        %5399 = vst [vmem:[#allocation3 + $0x38] sm:$0xff] -1e+30
        %5400 = vst [vmem:[#allocation3 + $0x40] sm:$0x3] -1e+30
        %5401 = vst [vmem:[#allocation3 + $0x48] sm:$0xff] -1e+30
        %5402 = vst [vmem:[#allocation3 + $0x50] sm:$0xff] -1e+30
        %5403 = vst [vmem:[#allocation3 + $0x58] sm:$0x3] -1e+30
        %5404 = vst [vmem:[#allocation3 + $0x60] sm:$0xff] -1e+30
        %5405 = vst [vmem:[#allocation3 + $0x68] sm:$0xff] -1e+30
        %5406 = vst [vmem:[#allocation3 + $0x70] sm:$0x3] -1e+30
        %5407 = vst [vmem:[#allocation3 + $0x78] sm:$0xff] -1e+30
        %5408 = vst [vmem:[#allocation3 + $0x80] sm:$0xff] -1e+30
        %5409 = vst [vmem:[#allocation3 + $0x88] sm:$0x3] -1e+30
        %5410 = vst [vmem:[#allocation3 + $0x90] sm:$0xff] -1e+30
        %5411 = vst [vmem:[#allocation3 + $0x98] sm:$0xff] -1e+30
        %5412 = vst [vmem:[#allocation3 + $0xa0] sm:$0x3] -1e+30
        %5413 = vst [vmem:[#allocation3 + $0xa8] sm:$0xff] -1e+30
        %5414 = vst [vmem:[#allocation3 + $0xb0] sm:$0xff] -1e+30
        %5415 = vst [vmem:[#allocation3 + $0xb8] sm:$0x3] -1e+30
        %5416 = vst [vmem:[#allocation3 + $0xc0] sm:$0xff] -1e+30
        %5417 = vst [vmem:[#allocation3 + $0xc8] sm:$0xff] -1e+30
        %5418 = vst [vmem:[#allocation3 + $0xd0] sm:$0x3] -1e+30
        %5419 = vst [vmem:[#allocation3 + $0xd8] sm:$0xff] -1e+30
        %5420 = vst [vmem:[#allocation3 + $0xe0] sm:$0xff] -1e+30
        %5421 = vst [vmem:[#allocation3 + $0xe8] sm:$0x3] -1e+30
        %5422 = vst [vmem:[#allocation3 + $0xf0] sm:$0xff] -1e+30
        %5423 = vst [vmem:[#allocation3 + $0xf8] sm:$0xff] -1e+30
        %5424 = vst [vmem:[#allocation3 + $0x100] sm:$0x3] -1e+30
        %5425 = vst [vmem:[#allocation3 + $0x108] sm:$0xff] -1e+30
        %5426 = vst [vmem:[#allocation3 + $0x110] sm:$0xff] -1e+30
        %5427 = vst [vmem:[#allocation3 + $0x118] sm:$0x3] -1e+30
        %5428 = vst [vmem:[#allocation3 + $0x120] sm:$0xff] -1e+30
        %5429 = vst [vmem:[#allocation3 + $0x128] sm:$0xff] -1e+30
        %5430 = vst [vmem:[#allocation3 + $0x130] sm:$0x3] -1e+30
        %5431 = vst [vmem:[#allocation3 + $0x138] sm:$0xff] -1e+30
        %5432 = vst [vmem:[#allocation3 + $0x140] sm:$0xff] -1e+30
        %5433 = vst [vmem:[#allocation3 + $0x148] sm:$0x3] -1e+30
        %5434 = vst [vmem:[#allocation3 + $0x150] sm:$0xff] -1e+30
        %5435 = vst [vmem:[#allocation3 + $0x158] sm:$0xff] -1e+30
        %5436 = vst [vmem:[#allocation3 + $0x160] sm:$0x3] -1e+30
        %5437 = vst [vmem:[#allocation3 + $0x168] sm:$0xff] -1e+30
        %5438 = vst [vmem:[#allocation3 + $0x170] sm:$0xff] -1e+30
        %5439 = vst [vmem:[#allocation3 + $0x178] sm:$0x3] -1e+30
        %5440 = vst [vmem:[#allocation3 + $0x180] sm:$0xff] -1e+30
        %5441 = vst [vmem:[#allocation3 + $0x188] sm:$0xff] -1e+30
        %5442 = vst [vmem:[#allocation3 + $0x190] sm:$0x3] -1e+30
        %5443 = vst [vmem:[#allocation3 + $0x198] sm:$0xff] -1e+30
        %5444 = vst [vmem:[#allocation3 + $0x1a0] sm:$0xff] -1e+30
        %5445 = vst [vmem:[#allocation3 + $0x1a8] sm:$0x3] -1e+30
        %s5446 = scalar_lea.vmem [#allocation3], 24
        %5447 = vst [vmem:[%s5446 + $0x1] sm:$0xff] %v5163
        %5448 = vst [vmem:[%s5446 + $0x9] sm:$0xff] %v5164
        %5449 = vst [vmem:[%s5446 + $0x19] sm:$0xff] %v5165
        %5450 = vst [vmem:[%s5446 + $0x21] sm:$0xff] %v5166
        %5451 = vst [vmem:[%s5446 + $0x31] sm:$0xff] %v5167
        %5452 = vst [vmem:[%s5446 + $0x39] sm:$0xff] %v5168
        %5453 = vst [vmem:[%s5446 + $0x49] sm:$0xff] %v5169
        %5454 = vst [vmem:[%s5446 + $0x51] sm:$0xff] %v5170
        %5455 = vst [vmem:[%s5446 + $0x61] sm:$0xff] %v5171
        %5456 = vst [vmem:[%s5446 + $0x69] sm:$0xff] %v5172
        %5457 = vst [vmem:[%s5446 + $0x79] sm:$0xff] %v5173
        %5458 = vst [vmem:[%s5446 + $0x81] sm:$0xff] %v5174
        %5459 = vst [vmem:[%s5446 + $0x91] sm:$0xff] %v5175
        %5460 = vst [vmem:[%s5446 + $0x99] sm:$0xff] %v5176
        %5461 = vst [vmem:[%s5446 + $0xa9] sm:$0xff] %v5177
        %5462 = vst [vmem:[%s5446 + $0xb1] sm:$0xff] %v5178
        %5463 = vst [vmem:[%s5446 + $0xc1] sm:$0xff] %v5179
        %5464 = vst [vmem:[%s5446 + $0xc9] sm:$0xff] %v5180
        %5465 = vst [vmem:[%s5446 + $0xd9] sm:$0xff] %v5181
        %5466 = vst [vmem:[%s5446 + $0xe1] sm:$0xff] %v5182
        %5467 = vst [vmem:[%s5446 + $0xf1] sm:$0xff] %v5183
        %5468 = vst [vmem:[%s5446 + $0xf9] sm:$0xff] %v5184
        %5469 = vst [vmem:[%s5446 + $0x109] sm:$0xff] %v5185
        %5470 = vst [vmem:[%s5446 + $0x111] sm:$0xff] %v5186
        %5471 = vst [vmem:[%s5446 + $0x121] sm:$0xff] %v5187
        %5472 = vst [vmem:[%s5446 + $0x129] sm:$0xff] %v5188
        %5473 = vst [vmem:[%s5446 + $0x139] sm:$0xff] %v5189
        %5474 = vst [vmem:[%s5446 + $0x141] sm:$0xff] %v5190
        %5475 = vst [vmem:[%s5446 + $0x151] sm:$0xff] %v5191
        %5476 = vst [vmem:[%s5446 + $0x159] sm:$0xff] %v5192
        %5477 = vst [vmem:[%s5446 + $0x169] sm:$0xff] %v5193
        %5478 = vst [vmem:[%s5446 + $0x171] sm:$0xff] %v5194
        %v5479 = vld [vmem:[#allocation2] sm:$0xff]
        %v5480 = vld [vmem:[#allocation2 + $0x8] sm:$0xff]
        %v5481 = vld [vmem:[#allocation2 + $0x18] sm:$0xff]
        %v5482 = vld [vmem:[#allocation2 + $0x20] sm:$0xff]
        %v5483 = vld [vmem:[#allocation2 + $0x30] sm:$0xff]
        %v5484 = vld [vmem:[#allocation2 + $0x38] sm:$0xff]
        %v5485 = vld [vmem:[#allocation2 + $0x48] sm:$0xff]
        %v5486 = vld [vmem:[#allocation2 + $0x50] sm:$0xff]
        %v5487 = vld [vmem:[#allocation2 + $0x60] sm:$0xff]
        %v5488 = vld [vmem:[#allocation2 + $0x68] sm:$0xff]
        %v5489 = vld [vmem:[#allocation2 + $0x78] sm:$0xff]
        %v5490 = vld [vmem:[#allocation2 + $0x80] sm:$0xff]
        %v5491 = vld [vmem:[#allocation2 + $0x90] sm:$0xff]
        %v5492 = vld [vmem:[#allocation2 + $0x98] sm:$0xff]
        %v5493 = vld [vmem:[#allocation2 + $0xa8] sm:$0xff]
        %v5494 = vld [vmem:[#allocation2 + $0xb0] sm:$0xff]
        %v5495 = vld [vmem:[#allocation2 + $0xc0] sm:$0xff]
        %v5496 = vld [vmem:[#allocation2 + $0xc8] sm:$0xff]
        %v5497 = vld [vmem:[#allocation2 + $0xd8] sm:$0xff]
        %v5498 = vld [vmem:[#allocation2 + $0xe0] sm:$0xff]
        %v5499 = vld [vmem:[#allocation2 + $0xf0] sm:$0xff]
        %v5500 = vld [vmem:[#allocation2 + $0xf8] sm:$0xff]
        %v5501 = vld [vmem:[#allocation2 + $0x108] sm:$0xff]
        %v5502 = vld [vmem:[#allocation2 + $0x110] sm:$0xff]
        %v5503 = vld [vmem:[#allocation2 + $0x120] sm:$0xff]
        %v5504 = vld [vmem:[#allocation2 + $0x128] sm:$0xff]
        %v5505 = vld [vmem:[#allocation2 + $0x138] sm:$0xff]
        %v5506 = vld [vmem:[#allocation2 + $0x140] sm:$0xff]
        %v5507 = vld [vmem:[#allocation2 + $0x150] sm:$0xff]
        %v5508 = vld [vmem:[#allocation2 + $0x158] sm:$0xff]
        %v5509 = vld [vmem:[#allocation2 + $0x168] sm:$0xff]
        %v5510 = vld [vmem:[#allocation2 + $0x170] sm:$0xff]
        %v5511 = vld [vmem:[#allocation3] sm:$0xff]
        %v5512 = vld [vmem:[#allocation3 + $0x8] sm:$0xff]
        %v5513 = vld [vmem:[#allocation3 + $0x18] sm:$0xff]
        %v5514 = vld [vmem:[#allocation3 + $0x20] sm:$0xff]
        %v5515 = vld [vmem:[#allocation3 + $0x30] sm:$0xff]
        %v5516 = vld [vmem:[#allocation3 + $0x38] sm:$0xff]
        %v5517 = vld [vmem:[#allocation3 + $0x48] sm:$0xff]
        %v5518 = vld [vmem:[#allocation3 + $0x50] sm:$0xff]
        %v5519 = vld [vmem:[#allocation3 + $0x60] sm:$0xff]
        %v5520 = vld [vmem:[#allocation3 + $0x68] sm:$0xff]
        %v5521 = vld [vmem:[#allocation3 + $0x78] sm:$0xff]
        %v5522 = vld [vmem:[#allocation3 + $0x80] sm:$0xff]
        %v5523 = vld [vmem:[#allocation3 + $0x90] sm:$0xff]
        %v5524 = vld [vmem:[#allocation3 + $0x98] sm:$0xff]
        %v5525 = vld [vmem:[#allocation3 + $0xa8] sm:$0xff]
        %v5526 = vld [vmem:[#allocation3 + $0xb0] sm:$0xff]
        %v5527 = vld [vmem:[#allocation3 + $0xc0] sm:$0xff]
        %v5528 = vld [vmem:[#allocation3 + $0xc8] sm:$0xff]
        %v5529 = vld [vmem:[#allocation3 + $0xd8] sm:$0xff]
        %v5530 = vld [vmem:[#allocation3 + $0xe0] sm:$0xff]
        %v5531 = vld [vmem:[#allocation3 + $0xf0] sm:$0xff]
        %v5532 = vld [vmem:[#allocation3 + $0xf8] sm:$0xff]
        %v5533 = vld [vmem:[#allocation3 + $0x108] sm:$0xff]
        %v5534 = vld [vmem:[#allocation3 + $0x110] sm:$0xff]
        %v5535 = vld [vmem:[#allocation3 + $0x120] sm:$0xff]
        %v5536 = vld [vmem:[#allocation3 + $0x128] sm:$0xff]
        %v5537 = vld [vmem:[#allocation3 + $0x138] sm:$0xff]
        %v5538 = vld [vmem:[#allocation3 + $0x140] sm:$0xff]
        %v5539 = vld [vmem:[#allocation3 + $0x150] sm:$0xff]
        %v5540 = vld [vmem:[#allocation3 + $0x158] sm:$0xff]
        %v5541 = vld [vmem:[#allocation3 + $0x168] sm:$0xff]
        %v5542 = vld [vmem:[#allocation3 + $0x170] sm:$0xff]
        %v5543 = vld [vmem:[%s4] sm:$0x1]
        %v5545 = vlaneseq
        %v5546 = vshrl.u32 %v5545, 7
        %v5547 = vsub.s32 0, %v5546
        %v5548 = vrot.slane %v5543, %v5547
        %v5550 = vmul.f32 %v5479, %v5548
        %v5551 = vmul.f32 %v5480, %v5548
        %v5552 = vmul.f32 %v5481, %v5548
        %v5553 = vmul.f32 %v5482, %v5548
        %v5554 = vmul.f32 %v5483, %v5548
        %v5555 = vmul.f32 %v5484, %v5548
        %v5556 = vmul.f32 %v5485, %v5548
        %v5557 = vmul.f32 %v5486, %v5548
        %v5558 = vmul.f32 %v5487, %v5548
        %v5559 = vmul.f32 %v5488, %v5548
        %v5560 = vmul.f32 %v5489, %v5548
        %v5561 = vmul.f32 %v5490, %v5548
        %v5562 = vmul.f32 %v5491, %v5548
        %v5563 = vmul.f32 %v5492, %v5548
        %v5564 = vmul.f32 %v5493, %v5548
        %v5565 = vmul.f32 %v5494, %v5548
        %v5566 = vmul.f32 %v5495, %v5548
        %v5567 = vmul.f32 %v5496, %v5548
        %v5568 = vmul.f32 %v5497, %v5548
        %v5569 = vmul.f32 %v5498, %v5548
        %v5570 = vmul.f32 %v5499, %v5548
        %v5571 = vmul.f32 %v5500, %v5548
        %v5572 = vmul.f32 %v5501, %v5548
        %v5573 = vmul.f32 %v5502, %v5548
        %v5574 = vmul.f32 %v5503, %v5548
        %v5575 = vmul.f32 %v5504, %v5548
        %v5576 = vmul.f32 %v5505, %v5548
        %v5577 = vmul.f32 %v5506, %v5548
        %v5578 = vmul.f32 %v5507, %v5548
        %v5579 = vmul.f32 %v5508, %v5548
        %v5580 = vmul.f32 %v5509, %v5548
        %v5581 = vmul.f32 %v5510, %v5548
        %v5582 = vadd.f32 %v5550, 0.0
        %v5583 = vadd.f32 %v5551, 0.0
        %v5584 = vadd.f32 %v5552, 0.0
        %v5585 = vadd.f32 %v5553, 0.0
        %v5586 = vadd.f32 %v5554, 0.0
        %v5587 = vadd.f32 %v5555, 0.0
        %v5588 = vadd.f32 %v5556, 0.0
        %v5589 = vadd.f32 %v5557, 0.0
        %v5590 = vadd.f32 %v5558, 0.0
        %v5591 = vadd.f32 %v5559, 0.0
        %v5592 = vadd.f32 %v5560, 0.0
        %v5593 = vadd.f32 %v5561, 0.0
        %v5594 = vadd.f32 %v5562, 0.0
        %v5595 = vadd.f32 %v5563, 0.0
        %v5596 = vadd.f32 %v5564, 0.0
        %v5597 = vadd.f32 %v5565, 0.0
        %v5598 = vadd.f32 %v5566, 0.0
        %v5599 = vadd.f32 %v5567, 0.0
        %v5600 = vadd.f32 %v5568, 0.0
        %v5601 = vadd.f32 %v5569, 0.0
        %v5602 = vadd.f32 %v5570, 0.0
        %v5603 = vadd.f32 %v5571, 0.0
        %v5604 = vadd.f32 %v5572, 0.0
        %v5605 = vadd.f32 %v5573, 0.0
        %v5606 = vadd.f32 %v5574, 0.0
        %v5607 = vadd.f32 %v5575, 0.0
        %v5608 = vadd.f32 %v5576, 0.0
        %v5609 = vadd.f32 %v5577, 0.0
        %v5610 = vadd.f32 %v5578, 0.0
        %v5611 = vadd.f32 %v5579, 0.0
        %v5612 = vadd.f32 %v5580, 0.0
        %v5613 = vadd.f32 %v5581, 0.0
        %v5614 = vmax.f32 %v5511, -1e+30
        %v5615 = vmax.f32 %v5512, -1e+30
        %v5616 = vmax.f32 %v5513, -1e+30
        %v5617 = vmax.f32 %v5514, -1e+30
        %v5618 = vmax.f32 %v5515, -1e+30
        %v5619 = vmax.f32 %v5516, -1e+30
        %v5620 = vmax.f32 %v5517, -1e+30
        %v5621 = vmax.f32 %v5518, -1e+30
        %v5622 = vmax.f32 %v5519, -1e+30
        %v5623 = vmax.f32 %v5520, -1e+30
        %v5624 = vmax.f32 %v5521, -1e+30
        %v5625 = vmax.f32 %v5522, -1e+30
        %v5626 = vmax.f32 %v5523, -1e+30
        %v5627 = vmax.f32 %v5524, -1e+30
        %v5628 = vmax.f32 %v5525, -1e+30
        %v5629 = vmax.f32 %v5526, -1e+30
        %v5630 = vmax.f32 %v5527, -1e+30
        %v5631 = vmax.f32 %v5528, -1e+30
        %v5632 = vmax.f32 %v5529, -1e+30
        %v5633 = vmax.f32 %v5530, -1e+30
        %v5634 = vmax.f32 %v5531, -1e+30
        %v5635 = vmax.f32 %v5532, -1e+30
        %v5636 = vmax.f32 %v5533, -1e+30
        %v5637 = vmax.f32 %v5534, -1e+30
        %v5638 = vmax.f32 %v5535, -1e+30
        %v5639 = vmax.f32 %v5536, -1e+30
        %v5640 = vmax.f32 %v5537, -1e+30
        %v5641 = vmax.f32 %v5538, -1e+30
        %v5642 = vmax.f32 %v5539, -1e+30
        %v5643 = vmax.f32 %v5540, -1e+30
        %v5644 = vmax.f32 %v5541, -1e+30
        %v5645 = vmax.f32 %v5542, -1e+30
        %v5646 = vld [vmem:[#allocation2 + $0x1] sm:$0xff]
        %v5647 = vld [vmem:[#allocation2 + $0x9] sm:$0xff]
        %v5648 = vld [vmem:[#allocation2 + $0x19] sm:$0xff]
        %v5649 = vld [vmem:[#allocation2 + $0x21] sm:$0xff]
        %v5650 = vld [vmem:[#allocation2 + $0x31] sm:$0xff]
        %v5651 = vld [vmem:[#allocation2 + $0x39] sm:$0xff]
        %v5652 = vld [vmem:[#allocation2 + $0x49] sm:$0xff]
        %v5653 = vld [vmem:[#allocation2 + $0x51] sm:$0xff]
        %v5654 = vld [vmem:[#allocation2 + $0x61] sm:$0xff]
        %v5655 = vld [vmem:[#allocation2 + $0x69] sm:$0xff]
        %v5656 = vld [vmem:[#allocation2 + $0x79] sm:$0xff]
        %v5657 = vld [vmem:[#allocation2 + $0x81] sm:$0xff]
        %v5658 = vld [vmem:[#allocation2 + $0x91] sm:$0xff]
        %v5659 = vld [vmem:[#allocation2 + $0x99] sm:$0xff]
        %v5660 = vld [vmem:[#allocation2 + $0xa9] sm:$0xff]
        %v5661 = vld [vmem:[#allocation2 + $0xb1] sm:$0xff]
        %v5662 = vld [vmem:[#allocation2 + $0xc1] sm:$0xff]
        %v5663 = vld [vmem:[#allocation2 + $0xc9] sm:$0xff]
        %v5664 = vld [vmem:[#allocation2 + $0xd9] sm:$0xff]
        %v5665 = vld [vmem:[#allocation2 + $0xe1] sm:$0xff]
        %v5666 = vld [vmem:[#allocation2 + $0xf1] sm:$0xff]
        %v5667 = vld [vmem:[#allocation2 + $0xf9] sm:$0xff]
        %v5668 = vld [vmem:[#allocation2 + $0x109] sm:$0xff]
        %v5669 = vld [vmem:[#allocation2 + $0x111] sm:$0xff]
        %v5670 = vld [vmem:[#allocation2 + $0x121] sm:$0xff]
        %v5671 = vld [vmem:[#allocation2 + $0x129] sm:$0xff]
        %v5672 = vld [vmem:[#allocation2 + $0x139] sm:$0xff]
        %v5673 = vld [vmem:[#allocation2 + $0x141] sm:$0xff]
        %v5674 = vld [vmem:[#allocation2 + $0x151] sm:$0xff]
        %v5675 = vld [vmem:[#allocation2 + $0x159] sm:$0xff]
        %v5676 = vld [vmem:[#allocation2 + $0x169] sm:$0xff]
        %v5677 = vld [vmem:[#allocation2 + $0x171] sm:$0xff]
        %v5678 = vld [vmem:[#allocation3 + $0x1] sm:$0xff]
        %v5679 = vld [vmem:[#allocation3 + $0x9] sm:$0xff]
        %v5680 = vld [vmem:[#allocation3 + $0x19] sm:$0xff]
        %v5681 = vld [vmem:[#allocation3 + $0x21] sm:$0xff]
        %v5682 = vld [vmem:[#allocation3 + $0x31] sm:$0xff]
        %v5683 = vld [vmem:[#allocation3 + $0x39] sm:$0xff]
        %v5684 = vld [vmem:[#allocation3 + $0x49] sm:$0xff]
        %v5685 = vld [vmem:[#allocation3 + $0x51] sm:$0xff]
        %v5686 = vld [vmem:[#allocation3 + $0x61] sm:$0xff]
        %v5687 = vld [vmem:[#allocation3 + $0x69] sm:$0xff]
        %v5688 = vld [vmem:[#allocation3 + $0x79] sm:$0xff]
        %v5689 = vld [vmem:[#allocation3 + $0x81] sm:$0xff]
        %v5690 = vld [vmem:[#allocation3 + $0x91] sm:$0xff]
        %v5691 = vld [vmem:[#allocation3 + $0x99] sm:$0xff]
        %v5692 = vld [vmem:[#allocation3 + $0xa9] sm:$0xff]
        %v5693 = vld [vmem:[#allocation3 + $0xb1] sm:$0xff]
        %v5694 = vld [vmem:[#allocation3 + $0xc1] sm:$0xff]
        %v5695 = vld [vmem:[#allocation3 + $0xc9] sm:$0xff]
        %v5696 = vld [vmem:[#allocation3 + $0xd9] sm:$0xff]
        %v5697 = vld [vmem:[#allocation3 + $0xe1] sm:$0xff]
        %v5698 = vld [vmem:[#allocation3 + $0xf1] sm:$0xff]
        %v5699 = vld [vmem:[#allocation3 + $0xf9] sm:$0xff]
        %v5700 = vld [vmem:[#allocation3 + $0x109] sm:$0xff]
        %v5701 = vld [vmem:[#allocation3 + $0x111] sm:$0xff]
        %v5702 = vld [vmem:[#allocation3 + $0x121] sm:$0xff]
        %v5703 = vld [vmem:[#allocation3 + $0x129] sm:$0xff]
        %v5704 = vld [vmem:[#allocation3 + $0x139] sm:$0xff]
        %v5705 = vld [vmem:[#allocation3 + $0x141] sm:$0xff]
        %v5706 = vld [vmem:[#allocation3 + $0x151] sm:$0xff]
        %v5707 = vld [vmem:[#allocation3 + $0x159] sm:$0xff]
        %v5708 = vld [vmem:[#allocation3 + $0x169] sm:$0xff]
        %v5709 = vld [vmem:[#allocation3 + $0x171] sm:$0xff]
        %s5710 = scalar_lea.vmem %s4, 1
        %v5711 = vld [vmem:[%s5710] sm:$0x1]
        %v5713 = vlaneseq
        %v5714 = vshrl.u32 %v5713, 7
        %v5715 = vsub.s32 0, %v5714
        %v5716 = vrot.slane %v5711, %v5715
        %v5718 = vmul.f32 %v5646, %v5716
        %v5719 = vmul.f32 %v5647, %v5716
        %v5720 = vmul.f32 %v5648, %v5716
        %v5721 = vmul.f32 %v5649, %v5716
        %v5722 = vmul.f32 %v5650, %v5716
        %v5723 = vmul.f32 %v5651, %v5716
        %v5724 = vmul.f32 %v5652, %v5716
        %v5725 = vmul.f32 %v5653, %v5716
        %v5726 = vmul.f32 %v5654, %v5716
        %v5727 = vmul.f32 %v5655, %v5716
        %v5728 = vmul.f32 %v5656, %v5716
        %v5729 = vmul.f32 %v5657, %v5716
        %v5730 = vmul.f32 %v5658, %v5716
        %v5731 = vmul.f32 %v5659, %v5716
        %v5732 = vmul.f32 %v5660, %v5716
        %v5733 = vmul.f32 %v5661, %v5716
        %v5734 = vmul.f32 %v5662, %v5716
        %v5735 = vmul.f32 %v5663, %v5716
        %v5736 = vmul.f32 %v5664, %v5716
        %v5737 = vmul.f32 %v5665, %v5716
        %v5738 = vmul.f32 %v5666, %v5716
        %v5739 = vmul.f32 %v5667, %v5716
        %v5740 = vmul.f32 %v5668, %v5716
        %v5741 = vmul.f32 %v5669, %v5716
        %v5742 = vmul.f32 %v5670, %v5716
        %v5743 = vmul.f32 %v5671, %v5716
        %v5744 = vmul.f32 %v5672, %v5716
        %v5745 = vmul.f32 %v5673, %v5716
        %v5746 = vmul.f32 %v5674, %v5716
        %v5747 = vmul.f32 %v5675, %v5716
        %v5748 = vmul.f32 %v5676, %v5716
        %v5749 = vmul.f32 %v5677, %v5716
        %v5750 = vadd.f32 %v5582, %v5718
        %v5751 = vadd.f32 %v5583, %v5719
        %v5752 = vadd.f32 %v5584, %v5720
        %v5753 = vadd.f32 %v5585, %v5721
        %v5754 = vadd.f32 %v5586, %v5722
        %v5755 = vadd.f32 %v5587, %v5723
        %v5756 = vadd.f32 %v5588, %v5724
        %v5757 = vadd.f32 %v5589, %v5725
        %v5758 = vadd.f32 %v5590, %v5726
        %v5759 = vadd.f32 %v5591, %v5727
        %v5760 = vadd.f32 %v5592, %v5728
        %v5761 = vadd.f32 %v5593, %v5729
        %v5762 = vadd.f32 %v5594, %v5730
        %v5763 = vadd.f32 %v5595, %v5731
        %v5764 = vadd.f32 %v5596, %v5732
        %v5765 = vadd.f32 %v5597, %v5733
        %v5766 = vadd.f32 %v5598, %v5734
        %v5767 = vadd.f32 %v5599, %v5735
        %v5768 = vadd.f32 %v5600, %v5736
        %v5769 = vadd.f32 %v5601, %v5737
        %v5770 = vadd.f32 %v5602, %v5738
        %v5771 = vadd.f32 %v5603, %v5739
        %v5772 = vadd.f32 %v5604, %v5740
        %v5773 = vadd.f32 %v5605, %v5741
        %v5774 = vadd.f32 %v5606, %v5742
        %v5775 = vadd.f32 %v5607, %v5743
        %v5776 = vadd.f32 %v5608, %v5744
        %v5777 = vadd.f32 %v5609, %v5745
        %v5778 = vadd.f32 %v5610, %v5746
        %v5779 = vadd.f32 %v5611, %v5747
        %v5780 = vadd.f32 %v5612, %v5748
        %v5781 = vadd.f32 %v5613, %v5749
        %v5782 = vmax.f32 %v5614, %v5678
        %v5783 = vmax.f32 %v5615, %v5679
        %v5784 = vmax.f32 %v5616, %v5680
        %v5785 = vmax.f32 %v5617, %v5681
        %v5786 = vmax.f32 %v5618, %v5682
        %v5787 = vmax.f32 %v5619, %v5683
        %v5788 = vmax.f32 %v5620, %v5684
        %v5789 = vmax.f32 %v5621, %v5685
        %v5790 = vmax.f32 %v5622, %v5686
        %v5791 = vmax.f32 %v5623, %v5687
        %v5792 = vmax.f32 %v5624, %v5688
        %v5793 = vmax.f32 %v5625, %v5689
        %v5794 = vmax.f32 %v5626, %v5690
        %v5795 = vmax.f32 %v5627, %v5691
        %v5796 = vmax.f32 %v5628, %v5692
        %v5797 = vmax.f32 %v5629, %v5693
        %v5798 = vmax.f32 %v5630, %v5694
        %v5799 = vmax.f32 %v5631, %v5695
        %v5800 = vmax.f32 %v5632, %v5696
        %v5801 = vmax.f32 %v5633, %v5697
        %v5802 = vmax.f32 %v5634, %v5698
        %v5803 = vmax.f32 %v5635, %v5699
        %v5804 = vmax.f32 %v5636, %v5700
        %v5805 = vmax.f32 %v5637, %v5701
        %v5806 = vmax.f32 %v5638, %v5702
        %v5807 = vmax.f32 %v5639, %v5703
        %v5808 = vmax.f32 %v5640, %v5704
        %v5809 = vmax.f32 %v5641, %v5705
        %v5810 = vmax.f32 %v5642, %v5706
        %v5811 = vmax.f32 %v5643, %v5707
        %v5812 = vmax.f32 %v5644, %v5708
        %v5813 = vmax.f32 %v5645, %v5709
        %v5814 = vld [vmem:[#allocation2 + $0x2] sm:$0xff]
        %v5815 = vld [vmem:[#allocation2 + $0xa] sm:$0xff]
        %v5816 = vld [vmem:[#allocation2 + $0x1a] sm:$0xff]
        %v5817 = vld [vmem:[#allocation2 + $0x22] sm:$0xff]
        %v5818 = vld [vmem:[#allocation2 + $0x32] sm:$0xff]
        %v5819 = vld [vmem:[#allocation2 + $0x3a] sm:$0xff]
        %v5820 = vld [vmem:[#allocation2 + $0x4a] sm:$0xff]
        %v5821 = vld [vmem:[#allocation2 + $0x52] sm:$0xff]
        %v5822 = vld [vmem:[#allocation2 + $0x62] sm:$0xff]
        %v5823 = vld [vmem:[#allocation2 + $0x6a] sm:$0xff]
        %v5824 = vld [vmem:[#allocation2 + $0x7a] sm:$0xff]
        %v5825 = vld [vmem:[#allocation2 + $0x82] sm:$0xff]
        %v5826 = vld [vmem:[#allocation2 + $0x92] sm:$0xff]
        %v5827 = vld [vmem:[#allocation2 + $0x9a] sm:$0xff]
        %v5828 = vld [vmem:[#allocation2 + $0xaa] sm:$0xff]
        %v5829 = vld [vmem:[#allocation2 + $0xb2] sm:$0xff]
        %v5830 = vld [vmem:[#allocation2 + $0xc2] sm:$0xff]
        %v5831 = vld [vmem:[#allocation2 + $0xca] sm:$0xff]
        %v5832 = vld [vmem:[#allocation2 + $0xda] sm:$0xff]
        %v5833 = vld [vmem:[#allocation2 + $0xe2] sm:$0xff]
        %v5834 = vld [vmem:[#allocation2 + $0xf2] sm:$0xff]
        %v5835 = vld [vmem:[#allocation2 + $0xfa] sm:$0xff]
        %v5836 = vld [vmem:[#allocation2 + $0x10a] sm:$0xff]
        %v5837 = vld [vmem:[#allocation2 + $0x112] sm:$0xff]
        %v5838 = vld [vmem:[#allocation2 + $0x122] sm:$0xff]
        %v5839 = vld [vmem:[#allocation2 + $0x12a] sm:$0xff]
        %v5840 = vld [vmem:[#allocation2 + $0x13a] sm:$0xff]
        %v5841 = vld [vmem:[#allocation2 + $0x142] sm:$0xff]
        %v5842 = vld [vmem:[#allocation2 + $0x152] sm:$0xff]
        %v5843 = vld [vmem:[#allocation2 + $0x15a] sm:$0xff]
        %v5844 = vld [vmem:[#allocation2 + $0x16a] sm:$0xff]
        %v5845 = vld [vmem:[#allocation2 + $0x172] sm:$0xff]
        %v5846 = vld [vmem:[#allocation3 + $0x2] sm:$0xff]
        %v5847 = vld [vmem:[#allocation3 + $0xa] sm:$0xff]
        %v5848 = vld [vmem:[#allocation3 + $0x1a] sm:$0xff]
        %v5849 = vld [vmem:[#allocation3 + $0x22] sm:$0xff]
        %v5850 = vld [vmem:[#allocation3 + $0x32] sm:$0xff]
        %v5851 = vld [vmem:[#allocation3 + $0x3a] sm:$0xff]
        %v5852 = vld [vmem:[#allocation3 + $0x4a] sm:$0xff]
        %v5853 = vld [vmem:[#allocation3 + $0x52] sm:$0xff]
        %v5854 = vld [vmem:[#allocation3 + $0x62] sm:$0xff]
        %v5855 = vld [vmem:[#allocation3 + $0x6a] sm:$0xff]
        %v5856 = vld [vmem:[#allocation3 + $0x7a] sm:$0xff]
        %v5857 = vld [vmem:[#allocation3 + $0x82] sm:$0xff]
        %v5858 = vld [vmem:[#allocation3 + $0x92] sm:$0xff]
        %v5859 = vld [vmem:[#allocation3 + $0x9a] sm:$0xff]
        %v5860 = vld [vmem:[#allocation3 + $0xaa] sm:$0xff]
        %v5861 = vld [vmem:[#allocation3 + $0xb2] sm:$0xff]
        %v5862 = vld [vmem:[#allocation3 + $0xc2] sm:$0xff]
        %v5863 = vld [vmem:[#allocation3 + $0xca] sm:$0xff]
        %v5864 = vld [vmem:[#allocation3 + $0xda] sm:$0xff]
        %v5865 = vld [vmem:[#allocation3 + $0xe2] sm:$0xff]
        %v5866 = vld [vmem:[#allocation3 + $0xf2] sm:$0xff]
        %v5867 = vld [vmem:[#allocation3 + $0xfa] sm:$0xff]
        %v5868 = vld [vmem:[#allocation3 + $0x10a] sm:$0xff]
        %v5869 = vld [vmem:[#allocation3 + $0x112] sm:$0xff]
        %v5870 = vld [vmem:[#allocation3 + $0x122] sm:$0xff]
        %v5871 = vld [vmem:[#allocation3 + $0x12a] sm:$0xff]
        %v5872 = vld [vmem:[#allocation3 + $0x13a] sm:$0xff]
        %v5873 = vld [vmem:[#allocation3 + $0x142] sm:$0xff]
        %v5874 = vld [vmem:[#allocation3 + $0x152] sm:$0xff]
        %v5875 = vld [vmem:[#allocation3 + $0x15a] sm:$0xff]
        %v5876 = vld [vmem:[#allocation3 + $0x16a] sm:$0xff]
        %v5877 = vld [vmem:[#allocation3 + $0x172] sm:$0xff]
        %s5878 = scalar_lea.vmem %s4, 2
        %v5879 = vld [vmem:[%s5878] sm:$0x1]
        %v5881 = vlaneseq
        %v5882 = vshrl.u32 %v5881, 7
        %v5883 = vsub.s32 0, %v5882
        %v5884 = vrot.slane %v5879, %v5883
        %v5886 = vmul.f32 %v5814, %v5884
        %v5887 = vmul.f32 %v5815, %v5884
        %v5888 = vmul.f32 %v5816, %v5884
        %v5889 = vmul.f32 %v5817, %v5884
        %v5890 = vmul.f32 %v5818, %v5884
        %v5891 = vmul.f32 %v5819, %v5884
        %v5892 = vmul.f32 %v5820, %v5884
        %v5893 = vmul.f32 %v5821, %v5884
        %v5894 = vmul.f32 %v5822, %v5884
        %v5895 = vmul.f32 %v5823, %v5884
        %v5896 = vmul.f32 %v5824, %v5884
        %v5897 = vmul.f32 %v5825, %v5884
        %v5898 = vmul.f32 %v5826, %v5884
        %v5899 = vmul.f32 %v5827, %v5884
        %v5900 = vmul.f32 %v5828, %v5884
        %v5901 = vmul.f32 %v5829, %v5884
        %v5902 = vmul.f32 %v5830, %v5884
        %v5903 = vmul.f32 %v5831, %v5884
        %v5904 = vmul.f32 %v5832, %v5884
        %v5905 = vmul.f32 %v5833, %v5884
        %v5906 = vmul.f32 %v5834, %v5884
        %v5907 = vmul.f32 %v5835, %v5884
        %v5908 = vmul.f32 %v5836, %v5884
        %v5909 = vmul.f32 %v5837, %v5884
        %v5910 = vmul.f32 %v5838, %v5884
        %v5911 = vmul.f32 %v5839, %v5884
        %v5912 = vmul.f32 %v5840, %v5884
        %v5913 = vmul.f32 %v5841, %v5884
        %v5914 = vmul.f32 %v5842, %v5884
        %v5915 = vmul.f32 %v5843, %v5884
        %v5916 = vmul.f32 %v5844, %v5884
        %v5917 = vmul.f32 %v5845, %v5884
        %v5918 = vadd.f32 %v5750, %v5886
        %v5919 = vadd.f32 %v5751, %v5887
        %v5920 = vadd.f32 %v5752, %v5888
        %v5921 = vadd.f32 %v5753, %v5889
        %v5922 = vadd.f32 %v5754, %v5890
        %v5923 = vadd.f32 %v5755, %v5891
        %v5924 = vadd.f32 %v5756, %v5892
        %v5925 = vadd.f32 %v5757, %v5893
        %v5926 = vadd.f32 %v5758, %v5894
        %v5927 = vadd.f32 %v5759, %v5895
        %v5928 = vadd.f32 %v5760, %v5896
        %v5929 = vadd.f32 %v5761, %v5897
        %v5930 = vadd.f32 %v5762, %v5898
        %v5931 = vadd.f32 %v5763, %v5899
        %v5932 = vadd.f32 %v5764, %v5900
        %v5933 = vadd.f32 %v5765, %v5901
        %v5934 = vadd.f32 %v5766, %v5902
        %v5935 = vadd.f32 %v5767, %v5903
        %v5936 = vadd.f32 %v5768, %v5904
        %v5937 = vadd.f32 %v5769, %v5905
        %v5938 = vadd.f32 %v5770, %v5906
        %v5939 = vadd.f32 %v5771, %v5907
        %v5940 = vadd.f32 %v5772, %v5908
        %v5941 = vadd.f32 %v5773, %v5909
        %v5942 = vadd.f32 %v5774, %v5910
        %v5943 = vadd.f32 %v5775, %v5911
        %v5944 = vadd.f32 %v5776, %v5912
        %v5945 = vadd.f32 %v5777, %v5913
        %v5946 = vadd.f32 %v5778, %v5914
        %v5947 = vadd.f32 %v5779, %v5915
        %v5948 = vadd.f32 %v5780, %v5916
        %v5949 = vadd.f32 %v5781, %v5917
        %v5950 = vmax.f32 %v5782, %v5846
        %v5951 = vmax.f32 %v5783, %v5847
        %v5952 = vmax.f32 %v5784, %v5848
        %v5953 = vmax.f32 %v5785, %v5849
        %v5954 = vmax.f32 %v5786, %v5850
        %v5955 = vmax.f32 %v5787, %v5851
        %v5956 = vmax.f32 %v5788, %v5852
        %v5957 = vmax.f32 %v5789, %v5853
        %v5958 = vmax.f32 %v5790, %v5854
        %v5959 = vmax.f32 %v5791, %v5855
        %v5960 = vmax.f32 %v5792, %v5856
        %v5961 = vmax.f32 %v5793, %v5857
        %v5962 = vmax.f32 %v5794, %v5858
        %v5963 = vmax.f32 %v5795, %v5859
        %v5964 = vmax.f32 %v5796, %v5860
        %v5965 = vmax.f32 %v5797, %v5861
        %v5966 = vmax.f32 %v5798, %v5862
        %v5967 = vmax.f32 %v5799, %v5863
        %v5968 = vmax.f32 %v5800, %v5864
        %v5969 = vmax.f32 %v5801, %v5865
        %v5970 = vmax.f32 %v5802, %v5866
        %v5971 = vmax.f32 %v5803, %v5867
        %v5972 = vmax.f32 %v5804, %v5868
        %v5973 = vmax.f32 %v5805, %v5869
        %v5974 = vmax.f32 %v5806, %v5870
        %v5975 = vmax.f32 %v5807, %v5871
        %v5976 = vmax.f32 %v5808, %v5872
        %v5977 = vmax.f32 %v5809, %v5873
        %v5978 = vmax.f32 %v5810, %v5874
        %v5979 = vmax.f32 %v5811, %v5875
        %v5980 = vmax.f32 %v5812, %v5876
        %v5981 = vmax.f32 %v5813, %v5877
        %v5982 = vld [vmem:[%s5359] sm:$0xff]
        %v5983 = vld [vmem:[%s5359 + $0x8] sm:$0xff]
        %v5984 = vld [vmem:[%s5359 + $0x18] sm:$0xff]
        %v5985 = vld [vmem:[%s5359 + $0x20] sm:$0xff]
        %v5986 = vld [vmem:[%s5359 + $0x30] sm:$0xff]
        %v5987 = vld [vmem:[%s5359 + $0x38] sm:$0xff]
        %v5988 = vld [vmem:[%s5359 + $0x48] sm:$0xff]
        %v5989 = vld [vmem:[%s5359 + $0x50] sm:$0xff]
        %v5990 = vld [vmem:[%s5359 + $0x60] sm:$0xff]
        %v5991 = vld [vmem:[%s5359 + $0x68] sm:$0xff]
        %v5992 = vld [vmem:[%s5359 + $0x78] sm:$0xff]
        %v5993 = vld [vmem:[%s5359 + $0x80] sm:$0xff]
        %v5994 = vld [vmem:[%s5359 + $0x90] sm:$0xff]
        %v5995 = vld [vmem:[%s5359 + $0x98] sm:$0xff]
        %v5996 = vld [vmem:[%s5359 + $0xa8] sm:$0xff]
        %v5997 = vld [vmem:[%s5359 + $0xb0] sm:$0xff]
        %v5998 = vld [vmem:[%s5359 + $0xc0] sm:$0xff]
        %v5999 = vld [vmem:[%s5359 + $0xc8] sm:$0xff]
        %v6000 = vld [vmem:[%s5359 + $0xd8] sm:$0xff]
        %v6001 = vld [vmem:[%s5359 + $0xe0] sm:$0xff]
        %v6002 = vld [vmem:[%s5359 + $0xf0] sm:$0xff]
        %v6003 = vld [vmem:[%s5359 + $0xf8] sm:$0xff]
        %v6004 = vld [vmem:[%s5359 + $0x108] sm:$0xff]
        %v6005 = vld [vmem:[%s5359 + $0x110] sm:$0xff]
        %v6006 = vld [vmem:[%s5359 + $0x120] sm:$0xff]
        %v6007 = vld [vmem:[%s5359 + $0x128] sm:$0xff]
        %v6008 = vld [vmem:[%s5359 + $0x138] sm:$0xff]
        %v6009 = vld [vmem:[%s5359 + $0x140] sm:$0xff]
        %v6010 = vld [vmem:[%s5359 + $0x150] sm:$0xff]
        %v6011 = vld [vmem:[%s5359 + $0x158] sm:$0xff]
        %v6012 = vld [vmem:[%s5359 + $0x168] sm:$0xff]
        %v6013 = vld [vmem:[%s5359 + $0x170] sm:$0xff]
        %v6014 = vld [vmem:[%s5446] sm:$0xff]
        %v6015 = vld [vmem:[%s5446 + $0x8] sm:$0xff]
        %v6016 = vld [vmem:[%s5446 + $0x18] sm:$0xff]
        %v6017 = vld [vmem:[%s5446 + $0x20] sm:$0xff]
        %v6018 = vld [vmem:[%s5446 + $0x30] sm:$0xff]
        %v6019 = vld [vmem:[%s5446 + $0x38] sm:$0xff]
        %v6020 = vld [vmem:[%s5446 + $0x48] sm:$0xff]
        %v6021 = vld [vmem:[%s5446 + $0x50] sm:$0xff]
        %v6022 = vld [vmem:[%s5446 + $0x60] sm:$0xff]
        %v6023 = vld [vmem:[%s5446 + $0x68] sm:$0xff]
        %v6024 = vld [vmem:[%s5446 + $0x78] sm:$0xff]
        %v6025 = vld [vmem:[%s5446 + $0x80] sm:$0xff]
        %v6026 = vld [vmem:[%s5446 + $0x90] sm:$0xff]
        %v6027 = vld [vmem:[%s5446 + $0x98] sm:$0xff]
        %v6028 = vld [vmem:[%s5446 + $0xa8] sm:$0xff]
        %v6029 = vld [vmem:[%s5446 + $0xb0] sm:$0xff]
        %v6030 = vld [vmem:[%s5446 + $0xc0] sm:$0xff]
        %v6031 = vld [vmem:[%s5446 + $0xc8] sm:$0xff]
        %v6032 = vld [vmem:[%s5446 + $0xd8] sm:$0xff]
        %v6033 = vld [vmem:[%s5446 + $0xe0] sm:$0xff]
        %v6034 = vld [vmem:[%s5446 + $0xf0] sm:$0xff]
        %v6035 = vld [vmem:[%s5446 + $0xf8] sm:$0xff]
        %v6036 = vld [vmem:[%s5446 + $0x108] sm:$0xff]
        %v6037 = vld [vmem:[%s5446 + $0x110] sm:$0xff]
        %v6038 = vld [vmem:[%s5446 + $0x120] sm:$0xff]
        %v6039 = vld [vmem:[%s5446 + $0x128] sm:$0xff]
        %v6040 = vld [vmem:[%s5446 + $0x138] sm:$0xff]
        %v6041 = vld [vmem:[%s5446 + $0x140] sm:$0xff]
        %v6042 = vld [vmem:[%s5446 + $0x150] sm:$0xff]
        %v6043 = vld [vmem:[%s5446 + $0x158] sm:$0xff]
        %v6044 = vld [vmem:[%s5446 + $0x168] sm:$0xff]
        %v6045 = vld [vmem:[%s5446 + $0x170] sm:$0xff]
        %s6046 = scalar_lea.vmem %s4, 3
        %v6047 = vld [vmem:[%s6046] sm:$0x1]
        %v6049 = vlaneseq
        %v6050 = vshrl.u32 %v6049, 7
        %v6051 = vsub.s32 0, %v6050
        %v6052 = vrot.slane %v6047, %v6051
        %v6054 = vmul.f32 %v5982, %v6052
        %v6055 = vmul.f32 %v5983, %v6052
        %v6056 = vmul.f32 %v5984, %v6052
        %v6057 = vmul.f32 %v5985, %v6052
        %v6058 = vmul.f32 %v5986, %v6052
        %v6059 = vmul.f32 %v5987, %v6052
        %v6060 = vmul.f32 %v5988, %v6052
        %v6061 = vmul.f32 %v5989, %v6052
        %v6062 = vmul.f32 %v5990, %v6052
        %v6063 = vmul.f32 %v5991, %v6052
        %v6064 = vmul.f32 %v5992, %v6052
        %v6065 = vmul.f32 %v5993, %v6052
        %v6066 = vmul.f32 %v5994, %v6052
        %v6067 = vmul.f32 %v5995, %v6052
        %v6068 = vmul.f32 %v5996, %v6052
        %v6069 = vmul.f32 %v5997, %v6052
        %v6070 = vmul.f32 %v5998, %v6052
        %v6071 = vmul.f32 %v5999, %v6052
        %v6072 = vmul.f32 %v6000, %v6052
        %v6073 = vmul.f32 %v6001, %v6052
        %v6074 = vmul.f32 %v6002, %v6052
        %v6075 = vmul.f32 %v6003, %v6052
        %v6076 = vmul.f32 %v6004, %v6052
        %v6077 = vmul.f32 %v6005, %v6052
        %v6078 = vmul.f32 %v6006, %v6052
        %v6079 = vmul.f32 %v6007, %v6052
        %v6080 = vmul.f32 %v6008, %v6052
        %v6081 = vmul.f32 %v6009, %v6052
        %v6082 = vmul.f32 %v6010, %v6052
        %v6083 = vmul.f32 %v6011, %v6052
        %v6084 = vmul.f32 %v6012, %v6052
        %v6085 = vmul.f32 %v6013, %v6052
        %v6086 = vadd.f32 %v5918, %v6054
        %v6087 = vadd.f32 %v5919, %v6055
        %v6088 = vadd.f32 %v5920, %v6056
        %v6089 = vadd.f32 %v5921, %v6057
        %v6090 = vadd.f32 %v5922, %v6058
        %v6091 = vadd.f32 %v5923, %v6059
        %v6092 = vadd.f32 %v5924, %v6060
        %v6093 = vadd.f32 %v5925, %v6061
        %v6094 = vadd.f32 %v5926, %v6062
        %v6095 = vadd.f32 %v5927, %v6063
        %v6096 = vadd.f32 %v5928, %v6064
        %v6097 = vadd.f32 %v5929, %v6065
        %v6098 = vadd.f32 %v5930, %v6066
        %v6099 = vadd.f32 %v5931, %v6067
        %v6100 = vadd.f32 %v5932, %v6068
        %v6101 = vadd.f32 %v5933, %v6069
        %v6102 = vadd.f32 %v5934, %v6070
        %v6103 = vadd.f32 %v5935, %v6071
        %v6104 = vadd.f32 %v5936, %v6072
        %v6105 = vadd.f32 %v5937, %v6073
        %v6106 = vadd.f32 %v5938, %v6074
        %v6107 = vadd.f32 %v5939, %v6075
        %v6108 = vadd.f32 %v5940, %v6076
        %v6109 = vadd.f32 %v5941, %v6077
        %v6110 = vadd.f32 %v5942, %v6078
        %v6111 = vadd.f32 %v5943, %v6079
        %v6112 = vadd.f32 %v5944, %v6080
        %v6113 = vadd.f32 %v5945, %v6081
        %v6114 = vadd.f32 %v5946, %v6082
        %v6115 = vadd.f32 %v5947, %v6083
        %v6116 = vadd.f32 %v5948, %v6084
        %v6117 = vadd.f32 %v5949, %v6085
        %v6118 = vmax.f32 %v5950, %v6014
        %v6119 = vmax.f32 %v5951, %v6015
        %v6120 = vmax.f32 %v5952, %v6016
        %v6121 = vmax.f32 %v5953, %v6017
        %v6122 = vmax.f32 %v5954, %v6018
        %v6123 = vmax.f32 %v5955, %v6019
        %v6124 = vmax.f32 %v5956, %v6020
        %v6125 = vmax.f32 %v5957, %v6021
        %v6126 = vmax.f32 %v5958, %v6022
        %v6127 = vmax.f32 %v5959, %v6023
        %v6128 = vmax.f32 %v5960, %v6024
        %v6129 = vmax.f32 %v5961, %v6025
        %v6130 = vmax.f32 %v5962, %v6026
        %v6131 = vmax.f32 %v5963, %v6027
        %v6132 = vmax.f32 %v5964, %v6028
        %v6133 = vmax.f32 %v5965, %v6029
        %v6134 = vmax.f32 %v5966, %v6030
        %v6135 = vmax.f32 %v5967, %v6031
        %v6136 = vmax.f32 %v5968, %v6032
        %v6137 = vmax.f32 %v5969, %v6033
        %v6138 = vmax.f32 %v5970, %v6034
        %v6139 = vmax.f32 %v5971, %v6035
        %v6140 = vmax.f32 %v5972, %v6036
        %v6141 = vmax.f32 %v5973, %v6037
        %v6142 = vmax.f32 %v5974, %v6038
        %v6143 = vmax.f32 %v5975, %v6039
        %v6144 = vmax.f32 %v5976, %v6040
        %v6145 = vmax.f32 %v5977, %v6041
        %v6146 = vmax.f32 %v5978, %v6042
        %v6147 = vmax.f32 %v5979, %v6043
        %v6148 = vmax.f32 %v5980, %v6044
        %v6149 = vmax.f32 %v5981, %v6045
        %v6150 = vld [vmem:[%s5359 + $0x1] sm:$0xff]
        %v6151 = vld [vmem:[%s5359 + $0x9] sm:$0xff]
        %v6152 = vld [vmem:[%s5359 + $0x19] sm:$0xff]
        %v6153 = vld [vmem:[%s5359 + $0x21] sm:$0xff]
        %v6154 = vld [vmem:[%s5359 + $0x31] sm:$0xff]
        %v6155 = vld [vmem:[%s5359 + $0x39] sm:$0xff]
        %v6156 = vld [vmem:[%s5359 + $0x49] sm:$0xff]
        %v6157 = vld [vmem:[%s5359 + $0x51] sm:$0xff]
        %v6158 = vld [vmem:[%s5359 + $0x61] sm:$0xff]
        %v6159 = vld [vmem:[%s5359 + $0x69] sm:$0xff]
        %v6160 = vld [vmem:[%s5359 + $0x79] sm:$0xff]
        %v6161 = vld [vmem:[%s5359 + $0x81] sm:$0xff]
        %v6162 = vld [vmem:[%s5359 + $0x91] sm:$0xff]
        %v6163 = vld [vmem:[%s5359 + $0x99] sm:$0xff]
        %v6164 = vld [vmem:[%s5359 + $0xa9] sm:$0xff]
        %v6165 = vld [vmem:[%s5359 + $0xb1] sm:$0xff]
        %v6166 = vld [vmem:[%s5359 + $0xc1] sm:$0xff]
        %v6167 = vld [vmem:[%s5359 + $0xc9] sm:$0xff]
        %v6168 = vld [vmem:[%s5359 + $0xd9] sm:$0xff]
        %v6169 = vld [vmem:[%s5359 + $0xe1] sm:$0xff]
        %v6170 = vld [vmem:[%s5359 + $0xf1] sm:$0xff]
        %v6171 = vld [vmem:[%s5359 + $0xf9] sm:$0xff]
        %v6172 = vld [vmem:[%s5359 + $0x109] sm:$0xff]
        %v6173 = vld [vmem:[%s5359 + $0x111] sm:$0xff]
        %v6174 = vld [vmem:[%s5359 + $0x121] sm:$0xff]
        %v6175 = vld [vmem:[%s5359 + $0x129] sm:$0xff]
        %v6176 = vld [vmem:[%s5359 + $0x139] sm:$0xff]
        %v6177 = vld [vmem:[%s5359 + $0x141] sm:$0xff]
        %v6178 = vld [vmem:[%s5359 + $0x151] sm:$0xff]
        %v6179 = vld [vmem:[%s5359 + $0x159] sm:$0xff]
        %v6180 = vld [vmem:[%s5359 + $0x169] sm:$0xff]
        %v6181 = vld [vmem:[%s5359 + $0x171] sm:$0xff]
        %v6182 = vld [vmem:[%s5446 + $0x1] sm:$0xff]
        %v6183 = vld [vmem:[%s5446 + $0x9] sm:$0xff]
        %v6184 = vld [vmem:[%s5446 + $0x19] sm:$0xff]
        %v6185 = vld [vmem:[%s5446 + $0x21] sm:$0xff]
        %v6186 = vld [vmem:[%s5446 + $0x31] sm:$0xff]
        %v6187 = vld [vmem:[%s5446 + $0x39] sm:$0xff]
        %v6188 = vld [vmem:[%s5446 + $0x49] sm:$0xff]
        %v6189 = vld [vmem:[%s5446 + $0x51] sm:$0xff]
        %v6190 = vld [vmem:[%s5446 + $0x61] sm:$0xff]
        %v6191 = vld [vmem:[%s5446 + $0x69] sm:$0xff]
        %v6192 = vld [vmem:[%s5446 + $0x79] sm:$0xff]
        %v6193 = vld [vmem:[%s5446 + $0x81] sm:$0xff]
        %v6194 = vld [vmem:[%s5446 + $0x91] sm:$0xff]
        %v6195 = vld [vmem:[%s5446 + $0x99] sm:$0xff]
        %v6196 = vld [vmem:[%s5446 + $0xa9] sm:$0xff]
        %v6197 = vld [vmem:[%s5446 + $0xb1] sm:$0xff]
        %v6198 = vld [vmem:[%s5446 + $0xc1] sm:$0xff]
        %v6199 = vld [vmem:[%s5446 + $0xc9] sm:$0xff]
        %v6200 = vld [vmem:[%s5446 + $0xd9] sm:$0xff]
        %v6201 = vld [vmem:[%s5446 + $0xe1] sm:$0xff]
        %v6202 = vld [vmem:[%s5446 + $0xf1] sm:$0xff]
        %v6203 = vld [vmem:[%s5446 + $0xf9] sm:$0xff]
        %v6204 = vld [vmem:[%s5446 + $0x109] sm:$0xff]
        %v6205 = vld [vmem:[%s5446 + $0x111] sm:$0xff]
        %v6206 = vld [vmem:[%s5446 + $0x121] sm:$0xff]
        %v6207 = vld [vmem:[%s5446 + $0x129] sm:$0xff]
        %v6208 = vld [vmem:[%s5446 + $0x139] sm:$0xff]
        %v6209 = vld [vmem:[%s5446 + $0x141] sm:$0xff]
        %v6210 = vld [vmem:[%s5446 + $0x151] sm:$0xff]
        %v6211 = vld [vmem:[%s5446 + $0x159] sm:$0xff]
        %v6212 = vld [vmem:[%s5446 + $0x169] sm:$0xff]
        %v6213 = vld [vmem:[%s5446 + $0x171] sm:$0xff]
        %s6214 = scalar_lea.vmem %s4, 4
        %v6215 = vld [vmem:[%s6214] sm:$0x1]
        %v6217 = vlaneseq
        %v6218 = vshrl.u32 %v6217, 7
        %v6219 = vsub.s32 0, %v6218
        %v6220 = vrot.slane %v6215, %v6219
        %v6222 = vmul.f32 %v6150, %v6220
        %v6223 = vmul.f32 %v6151, %v6220
        %v6224 = vmul.f32 %v6152, %v6220
        %v6225 = vmul.f32 %v6153, %v6220
        %v6226 = vmul.f32 %v6154, %v6220
        %v6227 = vmul.f32 %v6155, %v6220
        %v6228 = vmul.f32 %v6156, %v6220
        %v6229 = vmul.f32 %v6157, %v6220
        %v6230 = vmul.f32 %v6158, %v6220
        %v6231 = vmul.f32 %v6159, %v6220
        %v6232 = vmul.f32 %v6160, %v6220
        %v6233 = vmul.f32 %v6161, %v6220
        %v6234 = vmul.f32 %v6162, %v6220
        %v6235 = vmul.f32 %v6163, %v6220
        %v6236 = vmul.f32 %v6164, %v6220
        %v6237 = vmul.f32 %v6165, %v6220
        %v6238 = vmul.f32 %v6166, %v6220
        %v6239 = vmul.f32 %v6167, %v6220
        %v6240 = vmul.f32 %v6168, %v6220
        %v6241 = vmul.f32 %v6169, %v6220
        %v6242 = vmul.f32 %v6170, %v6220
        %v6243 = vmul.f32 %v6171, %v6220
        %v6244 = vmul.f32 %v6172, %v6220
        %v6245 = vmul.f32 %v6173, %v6220
        %v6246 = vmul.f32 %v6174, %v6220
        %v6247 = vmul.f32 %v6175, %v6220
        %v6248 = vmul.f32 %v6176, %v6220
        %v6249 = vmul.f32 %v6177, %v6220
        %v6250 = vmul.f32 %v6178, %v6220
        %v6251 = vmul.f32 %v6179, %v6220
        %v6252 = vmul.f32 %v6180, %v6220
        %v6253 = vmul.f32 %v6181, %v6220
        %v6254 = vadd.f32 %v6086, %v6222
        %v6255 = vadd.f32 %v6087, %v6223
        %v6256 = vadd.f32 %v6088, %v6224
        %v6257 = vadd.f32 %v6089, %v6225
        %v6258 = vadd.f32 %v6090, %v6226
        %v6259 = vadd.f32 %v6091, %v6227
        %v6260 = vadd.f32 %v6092, %v6228
        %v6261 = vadd.f32 %v6093, %v6229
        %v6262 = vadd.f32 %v6094, %v6230
        %v6263 = vadd.f32 %v6095, %v6231
        %v6264 = vadd.f32 %v6096, %v6232
        %v6265 = vadd.f32 %v6097, %v6233
        %v6266 = vadd.f32 %v6098, %v6234
        %v6267 = vadd.f32 %v6099, %v6235
        %v6268 = vadd.f32 %v6100, %v6236
        %v6269 = vadd.f32 %v6101, %v6237
        %v6270 = vadd.f32 %v6102, %v6238
        %v6271 = vadd.f32 %v6103, %v6239
        %v6272 = vadd.f32 %v6104, %v6240
        %v6273 = vadd.f32 %v6105, %v6241
        %v6274 = vadd.f32 %v6106, %v6242
        %v6275 = vadd.f32 %v6107, %v6243
        %v6276 = vadd.f32 %v6108, %v6244
        %v6277 = vadd.f32 %v6109, %v6245
        %v6278 = vadd.f32 %v6110, %v6246
        %v6279 = vadd.f32 %v6111, %v6247
        %v6280 = vadd.f32 %v6112, %v6248
        %v6281 = vadd.f32 %v6113, %v6249
        %v6282 = vadd.f32 %v6114, %v6250
        %v6283 = vadd.f32 %v6115, %v6251
        %v6284 = vadd.f32 %v6116, %v6252
        %v6285 = vadd.f32 %v6117, %v6253
        %v6286 = vmax.f32 %v6118, %v6182
        %v6287 = vmax.f32 %v6119, %v6183
        %v6288 = vmax.f32 %v6120, %v6184
        %v6289 = vmax.f32 %v6121, %v6185
        %v6290 = vmax.f32 %v6122, %v6186
        %v6291 = vmax.f32 %v6123, %v6187
        %v6292 = vmax.f32 %v6124, %v6188
        %v6293 = vmax.f32 %v6125, %v6189
        %v6294 = vmax.f32 %v6126, %v6190
        %v6295 = vmax.f32 %v6127, %v6191
        %v6296 = vmax.f32 %v6128, %v6192
        %v6297 = vmax.f32 %v6129, %v6193
        %v6298 = vmax.f32 %v6130, %v6194
        %v6299 = vmax.f32 %v6131, %v6195
        %v6300 = vmax.f32 %v6132, %v6196
        %v6301 = vmax.f32 %v6133, %v6197
        %v6302 = vmax.f32 %v6134, %v6198
        %v6303 = vmax.f32 %v6135, %v6199
        %v6304 = vmax.f32 %v6136, %v6200
        %v6305 = vmax.f32 %v6137, %v6201
        %v6306 = vmax.f32 %v6138, %v6202
        %v6307 = vmax.f32 %v6139, %v6203
        %v6308 = vmax.f32 %v6140, %v6204
        %v6309 = vmax.f32 %v6141, %v6205
        %v6310 = vmax.f32 %v6142, %v6206
        %v6311 = vmax.f32 %v6143, %v6207
        %v6312 = vmax.f32 %v6144, %v6208
        %v6313 = vmax.f32 %v6145, %v6209
        %v6314 = vmax.f32 %v6146, %v6210
        %v6315 = vmax.f32 %v6147, %v6211
        %v6316 = vmax.f32 %v6148, %v6212
        %v6317 = vmax.f32 %v6149, %v6213
        %v6318 = vld [vmem:[%s5359 + $0x2] sm:$0xff]
        %v6319 = vld [vmem:[%s5359 + $0xa] sm:$0xff]
        %v6320 = vld [vmem:[%s5359 + $0x1a] sm:$0xff]
        %v6321 = vld [vmem:[%s5359 + $0x22] sm:$0xff]
        %v6322 = vld [vmem:[%s5359 + $0x32] sm:$0xff]
        %v6323 = vld [vmem:[%s5359 + $0x3a] sm:$0xff]
        %v6324 = vld [vmem:[%s5359 + $0x4a] sm:$0xff]
        %v6325 = vld [vmem:[%s5359 + $0x52] sm:$0xff]
        %v6326 = vld [vmem:[%s5359 + $0x62] sm:$0xff]
        %v6327 = vld [vmem:[%s5359 + $0x6a] sm:$0xff]
        %v6328 = vld [vmem:[%s5359 + $0x7a] sm:$0xff]
        %v6329 = vld [vmem:[%s5359 + $0x82] sm:$0xff]
        %v6330 = vld [vmem:[%s5359 + $0x92] sm:$0xff]
        %v6331 = vld [vmem:[%s5359 + $0x9a] sm:$0xff]
        %v6332 = vld [vmem:[%s5359 + $0xaa] sm:$0xff]
        %v6333 = vld [vmem:[%s5359 + $0xb2] sm:$0xff]
        %v6334 = vld [vmem:[%s5359 + $0xc2] sm:$0xff]
        %v6335 = vld [vmem:[%s5359 + $0xca] sm:$0xff]
        %v6336 = vld [vmem:[%s5359 + $0xda] sm:$0xff]
        %v6337 = vld [vmem:[%s5359 + $0xe2] sm:$0xff]
        %v6338 = vld [vmem:[%s5359 + $0xf2] sm:$0xff]
        %v6339 = vld [vmem:[%s5359 + $0xfa] sm:$0xff]
        %v6340 = vld [vmem:[%s5359 + $0x10a] sm:$0xff]
        %v6341 = vld [vmem:[%s5359 + $0x112] sm:$0xff]
        %v6342 = vld [vmem:[%s5359 + $0x122] sm:$0xff]
        %v6343 = vld [vmem:[%s5359 + $0x12a] sm:$0xff]
        %v6344 = vld [vmem:[%s5359 + $0x13a] sm:$0xff]
        %v6345 = vld [vmem:[%s5359 + $0x142] sm:$0xff]
        %v6346 = vld [vmem:[%s5359 + $0x152] sm:$0xff]
        %v6347 = vld [vmem:[%s5359 + $0x15a] sm:$0xff]
        %v6348 = vld [vmem:[%s5359 + $0x16a] sm:$0xff]
        %v6349 = vld [vmem:[%s5359 + $0x172] sm:$0xff]
        %v6350 = vld [vmem:[%s5446 + $0x2] sm:$0xff]
        %v6351 = vld [vmem:[%s5446 + $0xa] sm:$0xff]
        %v6352 = vld [vmem:[%s5446 + $0x1a] sm:$0xff]
        %v6353 = vld [vmem:[%s5446 + $0x22] sm:$0xff]
        %v6354 = vld [vmem:[%s5446 + $0x32] sm:$0xff]
        %v6355 = vld [vmem:[%s5446 + $0x3a] sm:$0xff]
        %v6356 = vld [vmem:[%s5446 + $0x4a] sm:$0xff]
        %v6357 = vld [vmem:[%s5446 + $0x52] sm:$0xff]
        %v6358 = vld [vmem:[%s5446 + $0x62] sm:$0xff]
        %v6359 = vld [vmem:[%s5446 + $0x6a] sm:$0xff]
        %v6360 = vld [vmem:[%s5446 + $0x7a] sm:$0xff]
        %v6361 = vld [vmem:[%s5446 + $0x82] sm:$0xff]
        %v6362 = vld [vmem:[%s5446 + $0x92] sm:$0xff]
        %v6363 = vld [vmem:[%s5446 + $0x9a] sm:$0xff]
        %v6364 = vld [vmem:[%s5446 + $0xaa] sm:$0xff]
        %v6365 = vld [vmem:[%s5446 + $0xb2] sm:$0xff]
        %v6366 = vld [vmem:[%s5446 + $0xc2] sm:$0xff]
        %v6367 = vld [vmem:[%s5446 + $0xca] sm:$0xff]
        %v6368 = vld [vmem:[%s5446 + $0xda] sm:$0xff]
        %v6369 = vld [vmem:[%s5446 + $0xe2] sm:$0xff]
        %v6370 = vld [vmem:[%s5446 + $0xf2] sm:$0xff]
        %v6371 = vld [vmem:[%s5446 + $0xfa] sm:$0xff]
        %v6372 = vld [vmem:[%s5446 + $0x10a] sm:$0xff]
        %v6373 = vld [vmem:[%s5446 + $0x112] sm:$0xff]
        %v6374 = vld [vmem:[%s5446 + $0x122] sm:$0xff]
        %v6375 = vld [vmem:[%s5446 + $0x12a] sm:$0xff]
        %v6376 = vld [vmem:[%s5446 + $0x13a] sm:$0xff]
        %v6377 = vld [vmem:[%s5446 + $0x142] sm:$0xff]
        %v6378 = vld [vmem:[%s5446 + $0x152] sm:$0xff]
        %v6379 = vld [vmem:[%s5446 + $0x15a] sm:$0xff]
        %v6380 = vld [vmem:[%s5446 + $0x16a] sm:$0xff]
        %v6381 = vld [vmem:[%s5446 + $0x172] sm:$0xff]
        %s6382 = scalar_lea.vmem %s4, 5
        %v6383 = vld [vmem:[%s6382] sm:$0x1]
        %v6385 = vlaneseq
        %v6386 = vshrl.u32 %v6385, 7
        %v6387 = vsub.s32 0, %v6386
        %v6388 = vrot.slane %v6383, %v6387
        %v6390 = vmul.f32 %v6318, %v6388
        %v6391 = vmul.f32 %v6319, %v6388
        %v6392 = vmul.f32 %v6320, %v6388
        %v6393 = vmul.f32 %v6321, %v6388
        %v6394 = vmul.f32 %v6322, %v6388
        %v6395 = vmul.f32 %v6323, %v6388
        %v6396 = vmul.f32 %v6324, %v6388
        %v6397 = vmul.f32 %v6325, %v6388
        %v6398 = vmul.f32 %v6326, %v6388
        %v6399 = vmul.f32 %v6327, %v6388
        %v6400 = vmul.f32 %v6328, %v6388
        %v6401 = vmul.f32 %v6329, %v6388
        %v6402 = vmul.f32 %v6330, %v6388
        %v6403 = vmul.f32 %v6331, %v6388
        %v6404 = vmul.f32 %v6332, %v6388
        %v6405 = vmul.f32 %v6333, %v6388
        %v6406 = vmul.f32 %v6334, %v6388
        %v6407 = vmul.f32 %v6335, %v6388
        %v6408 = vmul.f32 %v6336, %v6388
        %v6409 = vmul.f32 %v6337, %v6388
        %v6410 = vmul.f32 %v6338, %v6388
        %v6411 = vmul.f32 %v6339, %v6388
        %v6412 = vmul.f32 %v6340, %v6388
        %v6413 = vmul.f32 %v6341, %v6388
        %v6414 = vmul.f32 %v6342, %v6388
        %v6415 = vmul.f32 %v6343, %v6388
        %v6416 = vmul.f32 %v6344, %v6388
        %v6417 = vmul.f32 %v6345, %v6388
        %v6418 = vmul.f32 %v6346, %v6388
        %v6419 = vmul.f32 %v6347, %v6388
        %v6420 = vmul.f32 %v6348, %v6388
        %v6421 = vmul.f32 %v6349, %v6388
        %v6422 = vadd.f32 %v6254, %v6390
        %v6423 = vadd.f32 %v6255, %v6391
        %v6424 = vadd.f32 %v6256, %v6392
        %v6425 = vadd.f32 %v6257, %v6393
        %v6426 = vadd.f32 %v6258, %v6394
        %v6427 = vadd.f32 %v6259, %v6395
        %v6428 = vadd.f32 %v6260, %v6396
        %v6429 = vadd.f32 %v6261, %v6397
        %v6430 = vadd.f32 %v6262, %v6398
        %v6431 = vadd.f32 %v6263, %v6399
        %v6432 = vadd.f32 %v6264, %v6400
        %v6433 = vadd.f32 %v6265, %v6401
        %v6434 = vadd.f32 %v6266, %v6402
        %v6435 = vadd.f32 %v6267, %v6403
        %v6436 = vadd.f32 %v6268, %v6404
        %v6437 = vadd.f32 %v6269, %v6405
        %v6438 = vadd.f32 %v6270, %v6406
        %v6439 = vadd.f32 %v6271, %v6407
        %v6440 = vadd.f32 %v6272, %v6408
        %v6441 = vadd.f32 %v6273, %v6409
        %v6442 = vadd.f32 %v6274, %v6410
        %v6443 = vadd.f32 %v6275, %v6411
        %v6444 = vadd.f32 %v6276, %v6412
        %v6445 = vadd.f32 %v6277, %v6413
        %v6446 = vadd.f32 %v6278, %v6414
        %v6447 = vadd.f32 %v6279, %v6415
        %v6448 = vadd.f32 %v6280, %v6416
        %v6449 = vadd.f32 %v6281, %v6417
        %v6450 = vadd.f32 %v6282, %v6418
        %v6451 = vadd.f32 %v6283, %v6419
        %v6452 = vadd.f32 %v6284, %v6420
        %v6453 = vadd.f32 %v6285, %v6421
        %v6454 = vmax.f32 %v6286, %v6350
        %v6455 = vmax.f32 %v6287, %v6351
        %v6456 = vmax.f32 %v6288, %v6352
        %v6457 = vmax.f32 %v6289, %v6353
        %v6458 = vmax.f32 %v6290, %v6354
        %v6459 = vmax.f32 %v6291, %v6355
        %v6460 = vmax.f32 %v6292, %v6356
        %v6461 = vmax.f32 %v6293, %v6357
        %v6462 = vmax.f32 %v6294, %v6358
        %v6463 = vmax.f32 %v6295, %v6359
        %v6464 = vmax.f32 %v6296, %v6360
        %v6465 = vmax.f32 %v6297, %v6361
        %v6466 = vmax.f32 %v6298, %v6362
        %v6467 = vmax.f32 %v6299, %v6363
        %v6468 = vmax.f32 %v6300, %v6364
        %v6469 = vmax.f32 %v6301, %v6365
        %v6470 = vmax.f32 %v6302, %v6366
        %v6471 = vmax.f32 %v6303, %v6367
        %v6472 = vmax.f32 %v6304, %v6368
        %v6473 = vmax.f32 %v6305, %v6369
        %v6474 = vmax.f32 %v6306, %v6370
        %v6475 = vmax.f32 %v6307, %v6371
        %v6476 = vmax.f32 %v6308, %v6372
        %v6477 = vmax.f32 %v6309, %v6373
        %v6478 = vmax.f32 %v6310, %v6374
        %v6479 = vmax.f32 %v6311, %v6375
        %v6480 = vmax.f32 %v6312, %v6376
        %v6481 = vmax.f32 %v6313, %v6377
        %v6482 = vmax.f32 %v6314, %v6378
        %v6483 = vmax.f32 %v6315, %v6379
        %v6484 = vmax.f32 %v6316, %v6380
        %v6485 = vmax.f32 %v6317, %v6381
        %s6486 = scalar_lea.vmem [#allocation2], 48
        %v6487 = vld [vmem:[%s6486] sm:$0xff]
        %v6488 = vld [vmem:[%s6486 + $0x8] sm:$0xff]
        %v6489 = vld [vmem:[%s6486 + $0x18] sm:$0xff]
        %v6490 = vld [vmem:[%s6486 + $0x20] sm:$0xff]
        %v6491 = vld [vmem:[%s6486 + $0x30] sm:$0xff]
        %v6492 = vld [vmem:[%s6486 + $0x38] sm:$0xff]
        %v6493 = vld [vmem:[%s6486 + $0x48] sm:$0xff]
        %v6494 = vld [vmem:[%s6486 + $0x50] sm:$0xff]
        %v6495 = vld [vmem:[%s6486 + $0x60] sm:$0xff]
        %v6496 = vld [vmem:[%s6486 + $0x68] sm:$0xff]
        %v6497 = vld [vmem:[%s6486 + $0x78] sm:$0xff]
        %v6498 = vld [vmem:[%s6486 + $0x80] sm:$0xff]
        %v6499 = vld [vmem:[%s6486 + $0x90] sm:$0xff]
        %v6500 = vld [vmem:[%s6486 + $0x98] sm:$0xff]
        %v6501 = vld [vmem:[%s6486 + $0xa8] sm:$0xff]
        %v6502 = vld [vmem:[%s6486 + $0xb0] sm:$0xff]
        %v6503 = vld [vmem:[%s6486 + $0xc0] sm:$0xff]
        %v6504 = vld [vmem:[%s6486 + $0xc8] sm:$0xff]
        %v6505 = vld [vmem:[%s6486 + $0xd8] sm:$0xff]
        %v6506 = vld [vmem:[%s6486 + $0xe0] sm:$0xff]
        %v6507 = vld [vmem:[%s6486 + $0xf0] sm:$0xff]
        %v6508 = vld [vmem:[%s6486 + $0xf8] sm:$0xff]
        %v6509 = vld [vmem:[%s6486 + $0x108] sm:$0xff]
        %v6510 = vld [vmem:[%s6486 + $0x110] sm:$0xff]
        %v6511 = vld [vmem:[%s6486 + $0x120] sm:$0xff]
        %v6512 = vld [vmem:[%s6486 + $0x128] sm:$0xff]
        %v6513 = vld [vmem:[%s6486 + $0x138] sm:$0xff]
        %v6514 = vld [vmem:[%s6486 + $0x140] sm:$0xff]
        %v6515 = vld [vmem:[%s6486 + $0x150] sm:$0xff]
        %v6516 = vld [vmem:[%s6486 + $0x158] sm:$0xff]
        %v6517 = vld [vmem:[%s6486 + $0x168] sm:$0xff]
        %v6518 = vld [vmem:[%s6486 + $0x170] sm:$0xff]
        %s6519 = scalar_lea.vmem [#allocation3], 48
        %v6520 = vld [vmem:[%s6519] sm:$0xff]
        %v6521 = vld [vmem:[%s6519 + $0x8] sm:$0xff]
        %v6522 = vld [vmem:[%s6519 + $0x18] sm:$0xff]
        %v6523 = vld [vmem:[%s6519 + $0x20] sm:$0xff]
        %v6524 = vld [vmem:[%s6519 + $0x30] sm:$0xff]
        %v6525 = vld [vmem:[%s6519 + $0x38] sm:$0xff]
        %v6526 = vld [vmem:[%s6519 + $0x48] sm:$0xff]
        %v6527 = vld [vmem:[%s6519 + $0x50] sm:$0xff]
        %v6528 = vld [vmem:[%s6519 + $0x60] sm:$0xff]
        %v6529 = vld [vmem:[%s6519 + $0x68] sm:$0xff]
        %v6530 = vld [vmem:[%s6519 + $0x78] sm:$0xff]
        %v6531 = vld [vmem:[%s6519 + $0x80] sm:$0xff]
        %v6532 = vld [vmem:[%s6519 + $0x90] sm:$0xff]
        %v6533 = vld [vmem:[%s6519 + $0x98] sm:$0xff]
        %v6534 = vld [vmem:[%s6519 + $0xa8] sm:$0xff]
        %v6535 = vld [vmem:[%s6519 + $0xb0] sm:$0xff]
        %v6536 = vld [vmem:[%s6519 + $0xc0] sm:$0xff]
        %v6537 = vld [vmem:[%s6519 + $0xc8] sm:$0xff]
        %v6538 = vld [vmem:[%s6519 + $0xd8] sm:$0xff]
        %v6539 = vld [vmem:[%s6519 + $0xe0] sm:$0xff]
        %v6540 = vld [vmem:[%s6519 + $0xf0] sm:$0xff]
        %v6541 = vld [vmem:[%s6519 + $0xf8] sm:$0xff]
        %v6542 = vld [vmem:[%s6519 + $0x108] sm:$0xff]
        %v6543 = vld [vmem:[%s6519 + $0x110] sm:$0xff]
        %v6544 = vld [vmem:[%s6519 + $0x120] sm:$0xff]
        %v6545 = vld [vmem:[%s6519 + $0x128] sm:$0xff]
        %v6546 = vld [vmem:[%s6519 + $0x138] sm:$0xff]
        %v6547 = vld [vmem:[%s6519 + $0x140] sm:$0xff]
        %v6548 = vld [vmem:[%s6519 + $0x150] sm:$0xff]
        %v6549 = vld [vmem:[%s6519 + $0x158] sm:$0xff]
        %v6550 = vld [vmem:[%s6519 + $0x168] sm:$0xff]
        %v6551 = vld [vmem:[%s6519 + $0x170] sm:$0xff]
        %s6552 = scalar_lea.vmem %s4, 6
        %v6553 = vld [vmem:[%s6552] sm:$0x1]
        %v6555 = vlaneseq
        %v6556 = vshrl.u32 %v6555, 7
        %v6557 = vsub.s32 0, %v6556
        %v6558 = vrot.slane %v6553, %v6557
        %v6560 = vmul.f32 %v6487, %v6558
        %v6561 = vmul.f32 %v6488, %v6558
        %v6562 = vmul.f32 %v6489, %v6558
        %v6563 = vmul.f32 %v6490, %v6558
        %v6564 = vmul.f32 %v6491, %v6558
        %v6565 = vmul.f32 %v6492, %v6558
        %v6566 = vmul.f32 %v6493, %v6558
        %v6567 = vmul.f32 %v6494, %v6558
        %v6568 = vmul.f32 %v6495, %v6558
        %v6569 = vmul.f32 %v6496, %v6558
        %v6570 = vmul.f32 %v6497, %v6558
        %v6571 = vmul.f32 %v6498, %v6558
        %v6572 = vmul.f32 %v6499, %v6558
        %v6573 = vmul.f32 %v6500, %v6558
        %v6574 = vmul.f32 %v6501, %v6558
        %v6575 = vmul.f32 %v6502, %v6558
        %v6576 = vmul.f32 %v6503, %v6558
        %v6577 = vmul.f32 %v6504, %v6558
        %v6578 = vmul.f32 %v6505, %v6558
        %v6579 = vmul.f32 %v6506, %v6558
        %v6580 = vmul.f32 %v6507, %v6558
        %v6581 = vmul.f32 %v6508, %v6558
        %v6582 = vmul.f32 %v6509, %v6558
        %v6583 = vmul.f32 %v6510, %v6558
        %v6584 = vmul.f32 %v6511, %v6558
        %v6585 = vmul.f32 %v6512, %v6558
        %v6586 = vmul.f32 %v6513, %v6558
        %v6587 = vmul.f32 %v6514, %v6558
        %v6588 = vmul.f32 %v6515, %v6558
        %v6589 = vmul.f32 %v6516, %v6558
        %v6590 = vmul.f32 %v6517, %v6558
        %v6591 = vmul.f32 %v6518, %v6558
        %v6592 = vadd.f32 %v6422, %v6560
        %v6593 = vadd.f32 %v6423, %v6561
        %v6594 = vadd.f32 %v6424, %v6562
        %v6595 = vadd.f32 %v6425, %v6563
        %v6596 = vadd.f32 %v6426, %v6564
        %v6597 = vadd.f32 %v6427, %v6565
        %v6598 = vadd.f32 %v6428, %v6566
        %v6599 = vadd.f32 %v6429, %v6567
        %v6600 = vadd.f32 %v6430, %v6568
        %v6601 = vadd.f32 %v6431, %v6569
        %v6602 = vadd.f32 %v6432, %v6570
        %v6603 = vadd.f32 %v6433, %v6571
        %v6604 = vadd.f32 %v6434, %v6572
        %v6605 = vadd.f32 %v6435, %v6573
        %v6606 = vadd.f32 %v6436, %v6574
        %v6607 = vadd.f32 %v6437, %v6575
        %v6608 = vadd.f32 %v6438, %v6576
        %v6609 = vadd.f32 %v6439, %v6577
        %v6610 = vadd.f32 %v6440, %v6578
        %v6611 = vadd.f32 %v6441, %v6579
        %v6612 = vadd.f32 %v6442, %v6580
        %v6613 = vadd.f32 %v6443, %v6581
        %v6614 = vadd.f32 %v6444, %v6582
        %v6615 = vadd.f32 %v6445, %v6583
        %v6616 = vadd.f32 %v6446, %v6584
        %v6617 = vadd.f32 %v6447, %v6585
        %v6618 = vadd.f32 %v6448, %v6586
        %v6619 = vadd.f32 %v6449, %v6587
        %v6620 = vadd.f32 %v6450, %v6588
        %v6621 = vadd.f32 %v6451, %v6589
        %v6622 = vadd.f32 %v6452, %v6590
        %v6623 = vadd.f32 %v6453, %v6591
        %v6624 = vmax.f32 %v6454, %v6520
        %v6625 = vmax.f32 %v6455, %v6521
        %v6626 = vmax.f32 %v6456, %v6522
        %v6627 = vmax.f32 %v6457, %v6523
        %v6628 = vmax.f32 %v6458, %v6524
        %v6629 = vmax.f32 %v6459, %v6525
        %v6630 = vmax.f32 %v6460, %v6526
        %v6631 = vmax.f32 %v6461, %v6527
        %v6632 = vmax.f32 %v6462, %v6528
        %v6633 = vmax.f32 %v6463, %v6529
        %v6634 = vmax.f32 %v6464, %v6530
        %v6635 = vmax.f32 %v6465, %v6531
        %v6636 = vmax.f32 %v6466, %v6532
        %v6637 = vmax.f32 %v6467, %v6533
        %v6638 = vmax.f32 %v6468, %v6534
        %v6639 = vmax.f32 %v6469, %v6535
        %v6640 = vmax.f32 %v6470, %v6536
        %v6641 = vmax.f32 %v6471, %v6537
        %v6642 = vmax.f32 %v6472, %v6538
        %v6643 = vmax.f32 %v6473, %v6539
        %v6644 = vmax.f32 %v6474, %v6540
        %v6645 = vmax.f32 %v6475, %v6541
        %v6646 = vmax.f32 %v6476, %v6542
        %v6647 = vmax.f32 %v6477, %v6543
        %v6648 = vmax.f32 %v6478, %v6544
        %v6649 = vmax.f32 %v6479, %v6545
        %v6650 = vmax.f32 %v6480, %v6546
        %v6651 = vmax.f32 %v6481, %v6547
        %v6652 = vmax.f32 %v6482, %v6548
        %v6653 = vmax.f32 %v6483, %v6549
        %v6654 = vmax.f32 %v6484, %v6550
        %v6655 = vmax.f32 %v6485, %v6551
        %v6656 = vld [vmem:[%s6486 + $0x1] sm:$0xff]
        %v6657 = vld [vmem:[%s6486 + $0x9] sm:$0xff]
        %v6658 = vld [vmem:[%s6486 + $0x19] sm:$0xff]
        %v6659 = vld [vmem:[%s6486 + $0x21] sm:$0xff]
        %v6660 = vld [vmem:[%s6486 + $0x31] sm:$0xff]
        %v6661 = vld [vmem:[%s6486 + $0x39] sm:$0xff]
        %v6662 = vld [vmem:[%s6486 + $0x49] sm:$0xff]
        %v6663 = vld [vmem:[%s6486 + $0x51] sm:$0xff]
        %v6664 = vld [vmem:[%s6486 + $0x61] sm:$0xff]
        %v6665 = vld [vmem:[%s6486 + $0x69] sm:$0xff]
        %v6666 = vld [vmem:[%s6486 + $0x79] sm:$0xff]
        %v6667 = vld [vmem:[%s6486 + $0x81] sm:$0xff]
        %v6668 = vld [vmem:[%s6486 + $0x91] sm:$0xff]
        %v6669 = vld [vmem:[%s6486 + $0x99] sm:$0xff]
        %v6670 = vld [vmem:[%s6486 + $0xa9] sm:$0xff]
        %v6671 = vld [vmem:[%s6486 + $0xb1] sm:$0xff]
        %v6672 = vld [vmem:[%s6486 + $0xc1] sm:$0xff]
        %v6673 = vld [vmem:[%s6486 + $0xc9] sm:$0xff]
        %v6674 = vld [vmem:[%s6486 + $0xd9] sm:$0xff]
        %v6675 = vld [vmem:[%s6486 + $0xe1] sm:$0xff]
        %v6676 = vld [vmem:[%s6486 + $0xf1] sm:$0xff]
        %v6677 = vld [vmem:[%s6486 + $0xf9] sm:$0xff]
        %v6678 = vld [vmem:[%s6486 + $0x109] sm:$0xff]
        %v6679 = vld [vmem:[%s6486 + $0x111] sm:$0xff]
        %v6680 = vld [vmem:[%s6486 + $0x121] sm:$0xff]
        %v6681 = vld [vmem:[%s6486 + $0x129] sm:$0xff]
        %v6682 = vld [vmem:[%s6486 + $0x139] sm:$0xff]
        %v6683 = vld [vmem:[%s6486 + $0x141] sm:$0xff]
        %v6684 = vld [vmem:[%s6486 + $0x151] sm:$0xff]
        %v6685 = vld [vmem:[%s6486 + $0x159] sm:$0xff]
        %v6686 = vld [vmem:[%s6486 + $0x169] sm:$0xff]
        %v6687 = vld [vmem:[%s6486 + $0x171] sm:$0xff]
        %v6688 = vld [vmem:[%s6519 + $0x1] sm:$0xff]
        %v6689 = vld [vmem:[%s6519 + $0x9] sm:$0xff]
        %v6690 = vld [vmem:[%s6519 + $0x19] sm:$0xff]
        %v6691 = vld [vmem:[%s6519 + $0x21] sm:$0xff]
        %v6692 = vld [vmem:[%s6519 + $0x31] sm:$0xff]
        %v6693 = vld [vmem:[%s6519 + $0x39] sm:$0xff]
        %v6694 = vld [vmem:[%s6519 + $0x49] sm:$0xff]
        %v6695 = vld [vmem:[%s6519 + $0x51] sm:$0xff]
        %v6696 = vld [vmem:[%s6519 + $0x61] sm:$0xff]
        %v6697 = vld [vmem:[%s6519 + $0x69] sm:$0xff]
        %v6698 = vld [vmem:[%s6519 + $0x79] sm:$0xff]
        %v6699 = vld [vmem:[%s6519 + $0x81] sm:$0xff]
        %v6700 = vld [vmem:[%s6519 + $0x91] sm:$0xff]
        %v6701 = vld [vmem:[%s6519 + $0x99] sm:$0xff]
        %v6702 = vld [vmem:[%s6519 + $0xa9] sm:$0xff]
        %v6703 = vld [vmem:[%s6519 + $0xb1] sm:$0xff]
        %v6704 = vld [vmem:[%s6519 + $0xc1] sm:$0xff]
        %v6705 = vld [vmem:[%s6519 + $0xc9] sm:$0xff]
        %v6706 = vld [vmem:[%s6519 + $0xd9] sm:$0xff]
        %v6707 = vld [vmem:[%s6519 + $0xe1] sm:$0xff]
        %v6708 = vld [vmem:[%s6519 + $0xf1] sm:$0xff]
        %v6709 = vld [vmem:[%s6519 + $0xf9] sm:$0xff]
        %v6710 = vld [vmem:[%s6519 + $0x109] sm:$0xff]
        %v6711 = vld [vmem:[%s6519 + $0x111] sm:$0xff]
        %v6712 = vld [vmem:[%s6519 + $0x121] sm:$0xff]
        %v6713 = vld [vmem:[%s6519 + $0x129] sm:$0xff]
        %v6714 = vld [vmem:[%s6519 + $0x139] sm:$0xff]
        %v6715 = vld [vmem:[%s6519 + $0x141] sm:$0xff]
        %v6716 = vld [vmem:[%s6519 + $0x151] sm:$0xff]
        %v6717 = vld [vmem:[%s6519 + $0x159] sm:$0xff]
        %v6718 = vld [vmem:[%s6519 + $0x169] sm:$0xff]
        %v6719 = vld [vmem:[%s6519 + $0x171] sm:$0xff]
        %s6720 = scalar_lea.vmem %s4, 7
        %v6721 = vld [vmem:[%s6720] sm:$0x1]
        %v6723 = vlaneseq
        %v6724 = vshrl.u32 %v6723, 7
        %v6725 = vsub.s32 0, %v6724
        %v6726 = vrot.slane %v6721, %v6725
        %v6728 = vmul.f32 %v6656, %v6726
        %v6729 = vmul.f32 %v6657, %v6726
        %v6730 = vmul.f32 %v6658, %v6726
        %v6731 = vmul.f32 %v6659, %v6726
        %v6732 = vmul.f32 %v6660, %v6726
        %v6733 = vmul.f32 %v6661, %v6726
        %v6734 = vmul.f32 %v6662, %v6726
        %v6735 = vmul.f32 %v6663, %v6726
        %v6736 = vmul.f32 %v6664, %v6726
        %v6737 = vmul.f32 %v6665, %v6726
        %v6738 = vmul.f32 %v6666, %v6726
        %v6739 = vmul.f32 %v6667, %v6726
        %v6740 = vmul.f32 %v6668, %v6726
        %v6741 = vmul.f32 %v6669, %v6726
        %v6742 = vmul.f32 %v6670, %v6726
        %v6743 = vmul.f32 %v6671, %v6726
        %v6744 = vmul.f32 %v6672, %v6726
        %v6745 = vmul.f32 %v6673, %v6726
        %v6746 = vmul.f32 %v6674, %v6726
        %v6747 = vmul.f32 %v6675, %v6726
        %v6748 = vmul.f32 %v6676, %v6726
        %v6749 = vmul.f32 %v6677, %v6726
        %v6750 = vmul.f32 %v6678, %v6726
        %v6751 = vmul.f32 %v6679, %v6726
        %v6752 = vmul.f32 %v6680, %v6726
        %v6753 = vmul.f32 %v6681, %v6726
        %v6754 = vmul.f32 %v6682, %v6726
        %v6755 = vmul.f32 %v6683, %v6726
        %v6756 = vmul.f32 %v6684, %v6726
        %v6757 = vmul.f32 %v6685, %v6726
        %v6758 = vmul.f32 %v6686, %v6726
        %v6759 = vmul.f32 %v6687, %v6726
        %v6760 = vadd.f32 %v6592, %v6728
        %v6761 = vadd.f32 %v6593, %v6729
        %v6762 = vadd.f32 %v6594, %v6730
        %v6763 = vadd.f32 %v6595, %v6731
        %v6764 = vadd.f32 %v6596, %v6732
        %v6765 = vadd.f32 %v6597, %v6733
        %v6766 = vadd.f32 %v6598, %v6734
        %v6767 = vadd.f32 %v6599, %v6735
        %v6768 = vadd.f32 %v6600, %v6736
        %v6769 = vadd.f32 %v6601, %v6737
        %v6770 = vadd.f32 %v6602, %v6738
        %v6771 = vadd.f32 %v6603, %v6739
        %v6772 = vadd.f32 %v6604, %v6740
        %v6773 = vadd.f32 %v6605, %v6741
        %v6774 = vadd.f32 %v6606, %v6742
        %v6775 = vadd.f32 %v6607, %v6743
        %v6776 = vadd.f32 %v6608, %v6744
        %v6777 = vadd.f32 %v6609, %v6745
        %v6778 = vadd.f32 %v6610, %v6746
        %v6779 = vadd.f32 %v6611, %v6747
        %v6780 = vadd.f32 %v6612, %v6748
        %v6781 = vadd.f32 %v6613, %v6749
        %v6782 = vadd.f32 %v6614, %v6750
        %v6783 = vadd.f32 %v6615, %v6751
        %v6784 = vadd.f32 %v6616, %v6752
        %v6785 = vadd.f32 %v6617, %v6753
        %v6786 = vadd.f32 %v6618, %v6754
        %v6787 = vadd.f32 %v6619, %v6755
        %v6788 = vadd.f32 %v6620, %v6756
        %v6789 = vadd.f32 %v6621, %v6757
        %v6790 = vadd.f32 %v6622, %v6758
        %v6791 = vadd.f32 %v6623, %v6759
        %v6792 = vmax.f32 %v6624, %v6688
        %v6793 = vmax.f32 %v6625, %v6689
        %v6794 = vmax.f32 %v6626, %v6690
        %v6795 = vmax.f32 %v6627, %v6691
        %v6796 = vmax.f32 %v6628, %v6692
        %v6797 = vmax.f32 %v6629, %v6693
        %v6798 = vmax.f32 %v6630, %v6694
        %v6799 = vmax.f32 %v6631, %v6695
        %v6800 = vmax.f32 %v6632, %v6696
        %v6801 = vmax.f32 %v6633, %v6697
        %v6802 = vmax.f32 %v6634, %v6698
        %v6803 = vmax.f32 %v6635, %v6699
        %v6804 = vmax.f32 %v6636, %v6700
        %v6805 = vmax.f32 %v6637, %v6701
        %v6806 = vmax.f32 %v6638, %v6702
        %v6807 = vmax.f32 %v6639, %v6703
        %v6808 = vmax.f32 %v6640, %v6704
        %v6809 = vmax.f32 %v6641, %v6705
        %v6810 = vmax.f32 %v6642, %v6706
        %v6811 = vmax.f32 %v6643, %v6707
        %v6812 = vmax.f32 %v6644, %v6708
        %v6813 = vmax.f32 %v6645, %v6709
        %v6814 = vmax.f32 %v6646, %v6710
        %v6815 = vmax.f32 %v6647, %v6711
        %v6816 = vmax.f32 %v6648, %v6712
        %v6817 = vmax.f32 %v6649, %v6713
        %v6818 = vmax.f32 %v6650, %v6714
        %v6819 = vmax.f32 %v6651, %v6715
        %v6820 = vmax.f32 %v6652, %v6716
        %v6821 = vmax.f32 %v6653, %v6717
        %v6822 = vmax.f32 %v6654, %v6718
        %v6823 = vmax.f32 %v6655, %v6719
        %v6824 = vld [vmem:[%s6486 + $0x2] sm:$0xff]
        %v6825 = vld [vmem:[%s6486 + $0xa] sm:$0xff]
        %v6826 = vld [vmem:[%s6486 + $0x1a] sm:$0xff]
        %v6827 = vld [vmem:[%s6486 + $0x22] sm:$0xff]
        %v6828 = vld [vmem:[%s6486 + $0x32] sm:$0xff]
        %v6829 = vld [vmem:[%s6486 + $0x3a] sm:$0xff]
        %v6830 = vld [vmem:[%s6486 + $0x4a] sm:$0xff]
        %v6831 = vld [vmem:[%s6486 + $0x52] sm:$0xff]
        %v6832 = vld [vmem:[%s6486 + $0x62] sm:$0xff]
        %v6833 = vld [vmem:[%s6486 + $0x6a] sm:$0xff]
        %v6834 = vld [vmem:[%s6486 + $0x7a] sm:$0xff]
        %v6835 = vld [vmem:[%s6486 + $0x82] sm:$0xff]
        %v6836 = vld [vmem:[%s6486 + $0x92] sm:$0xff]
        %v6837 = vld [vmem:[%s6486 + $0x9a] sm:$0xff]
        %v6838 = vld [vmem:[%s6486 + $0xaa] sm:$0xff]
        %v6839 = vld [vmem:[%s6486 + $0xb2] sm:$0xff]
        %v6840 = vld [vmem:[%s6486 + $0xc2] sm:$0xff]
        %v6841 = vld [vmem:[%s6486 + $0xca] sm:$0xff]
        %v6842 = vld [vmem:[%s6486 + $0xda] sm:$0xff]
        %v6843 = vld [vmem:[%s6486 + $0xe2] sm:$0xff]
        %v6844 = vld [vmem:[%s6486 + $0xf2] sm:$0xff]
        %v6845 = vld [vmem:[%s6486 + $0xfa] sm:$0xff]
        %v6846 = vld [vmem:[%s6486 + $0x10a] sm:$0xff]
        %v6847 = vld [vmem:[%s6486 + $0x112] sm:$0xff]
        %v6848 = vld [vmem:[%s6486 + $0x122] sm:$0xff]
        %v6849 = vld [vmem:[%s6486 + $0x12a] sm:$0xff]
        %v6850 = vld [vmem:[%s6486 + $0x13a] sm:$0xff]
        %v6851 = vld [vmem:[%s6486 + $0x142] sm:$0xff]
        %v6852 = vld [vmem:[%s6486 + $0x152] sm:$0xff]
        %v6853 = vld [vmem:[%s6486 + $0x15a] sm:$0xff]
        %v6854 = vld [vmem:[%s6486 + $0x16a] sm:$0xff]
        %v6855 = vld [vmem:[%s6486 + $0x172] sm:$0xff]
        %v6856 = vld [vmem:[%s6519 + $0x2] sm:$0xff]
        %v6857 = vld [vmem:[%s6519 + $0xa] sm:$0xff]
        %v6858 = vld [vmem:[%s6519 + $0x1a] sm:$0xff]
        %v6859 = vld [vmem:[%s6519 + $0x22] sm:$0xff]
        %v6860 = vld [vmem:[%s6519 + $0x32] sm:$0xff]
        %v6861 = vld [vmem:[%s6519 + $0x3a] sm:$0xff]
        %v6862 = vld [vmem:[%s6519 + $0x4a] sm:$0xff]
        %v6863 = vld [vmem:[%s6519 + $0x52] sm:$0xff]
        %v6864 = vld [vmem:[%s6519 + $0x62] sm:$0xff]
        %v6865 = vld [vmem:[%s6519 + $0x6a] sm:$0xff]
        %v6866 = vld [vmem:[%s6519 + $0x7a] sm:$0xff]
        %v6867 = vld [vmem:[%s6519 + $0x82] sm:$0xff]
        %v6868 = vld [vmem:[%s6519 + $0x92] sm:$0xff]
        %v6869 = vld [vmem:[%s6519 + $0x9a] sm:$0xff]
        %v6870 = vld [vmem:[%s6519 + $0xaa] sm:$0xff]
        %v6871 = vld [vmem:[%s6519 + $0xb2] sm:$0xff]
        %v6872 = vld [vmem:[%s6519 + $0xc2] sm:$0xff]
        %v6873 = vld [vmem:[%s6519 + $0xca] sm:$0xff]
        %v6874 = vld [vmem:[%s6519 + $0xda] sm:$0xff]
        %v6875 = vld [vmem:[%s6519 + $0xe2] sm:$0xff]
        %v6876 = vld [vmem:[%s6519 + $0xf2] sm:$0xff]
        %v6877 = vld [vmem:[%s6519 + $0xfa] sm:$0xff]
        %v6878 = vld [vmem:[%s6519 + $0x10a] sm:$0xff]
        %v6879 = vld [vmem:[%s6519 + $0x112] sm:$0xff]
        %v6880 = vld [vmem:[%s6519 + $0x122] sm:$0xff]
        %v6881 = vld [vmem:[%s6519 + $0x12a] sm:$0xff]
        %v6882 = vld [vmem:[%s6519 + $0x13a] sm:$0xff]
        %v6883 = vld [vmem:[%s6519 + $0x142] sm:$0xff]
        %v6884 = vld [vmem:[%s6519 + $0x152] sm:$0xff]
        %v6885 = vld [vmem:[%s6519 + $0x15a] sm:$0xff]
        %v6886 = vld [vmem:[%s6519 + $0x16a] sm:$0xff]
        %v6887 = vld [vmem:[%s6519 + $0x172] sm:$0xff]
        %s6888 = scalar_lea.vmem %s4, 8
        %v6889 = vld [vmem:[%s6888] sm:$0x1]
        %v6891 = vlaneseq
        %v6892 = vshrl.u32 %v6891, 7
        %v6893 = vsub.s32 0, %v6892
        %v6894 = vrot.slane %v6889, %v6893
        %v6896 = vmul.f32 %v6824, %v6894
        %v6897 = vmul.f32 %v6825, %v6894
        %v6898 = vmul.f32 %v6826, %v6894
        %v6899 = vmul.f32 %v6827, %v6894
        %v6900 = vmul.f32 %v6828, %v6894
        %v6901 = vmul.f32 %v6829, %v6894
        %v6902 = vmul.f32 %v6830, %v6894
        %v6903 = vmul.f32 %v6831, %v6894
        %v6904 = vmul.f32 %v6832, %v6894
        %v6905 = vmul.f32 %v6833, %v6894
        %v6906 = vmul.f32 %v6834, %v6894
        %v6907 = vmul.f32 %v6835, %v6894
        %v6908 = vmul.f32 %v6836, %v6894
        %v6909 = vmul.f32 %v6837, %v6894
        %v6910 = vmul.f32 %v6838, %v6894
        %v6911 = vmul.f32 %v6839, %v6894
        %v6912 = vmul.f32 %v6840, %v6894
        %v6913 = vmul.f32 %v6841, %v6894
        %v6914 = vmul.f32 %v6842, %v6894
        %v6915 = vmul.f32 %v6843, %v6894
        %v6916 = vmul.f32 %v6844, %v6894
        %v6917 = vmul.f32 %v6845, %v6894
        %v6918 = vmul.f32 %v6846, %v6894
        %v6919 = vmul.f32 %v6847, %v6894
        %v6920 = vmul.f32 %v6848, %v6894
        %v6921 = vmul.f32 %v6849, %v6894
        %v6922 = vmul.f32 %v6850, %v6894
        %v6923 = vmul.f32 %v6851, %v6894
        %v6924 = vmul.f32 %v6852, %v6894
        %v6925 = vmul.f32 %v6853, %v6894
        %v6926 = vmul.f32 %v6854, %v6894
        %v6927 = vmul.f32 %v6855, %v6894
        %v6928 = vadd.f32 %v6760, %v6896
        %v6929 = vadd.f32 %v6761, %v6897
        %v6930 = vadd.f32 %v6762, %v6898
        %v6931 = vadd.f32 %v6763, %v6899
        %v6932 = vadd.f32 %v6764, %v6900
        %v6933 = vadd.f32 %v6765, %v6901
        %v6934 = vadd.f32 %v6766, %v6902
        %v6935 = vadd.f32 %v6767, %v6903
        %v6936 = vadd.f32 %v6768, %v6904
        %v6937 = vadd.f32 %v6769, %v6905
        %v6938 = vadd.f32 %v6770, %v6906
        %v6939 = vadd.f32 %v6771, %v6907
        %v6940 = vadd.f32 %v6772, %v6908
        %v6941 = vadd.f32 %v6773, %v6909
        %v6942 = vadd.f32 %v6774, %v6910
        %v6943 = vadd.f32 %v6775, %v6911
        %v6944 = vadd.f32 %v6776, %v6912
        %v6945 = vadd.f32 %v6777, %v6913
        %v6946 = vadd.f32 %v6778, %v6914
        %v6947 = vadd.f32 %v6779, %v6915
        %v6948 = vadd.f32 %v6780, %v6916
        %v6949 = vadd.f32 %v6781, %v6917
        %v6950 = vadd.f32 %v6782, %v6918
        %v6951 = vadd.f32 %v6783, %v6919
        %v6952 = vadd.f32 %v6784, %v6920
        %v6953 = vadd.f32 %v6785, %v6921
        %v6954 = vadd.f32 %v6786, %v6922
        %v6955 = vadd.f32 %v6787, %v6923
        %v6956 = vadd.f32 %v6788, %v6924
        %v6957 = vadd.f32 %v6789, %v6925
        %v6958 = vadd.f32 %v6790, %v6926
        %v6959 = vadd.f32 %v6791, %v6927
        %v6960 = vmax.f32 %v6792, %v6856
        %v6961 = vmax.f32 %v6793, %v6857
        %v6962 = vmax.f32 %v6794, %v6858
        %v6963 = vmax.f32 %v6795, %v6859
        %v6964 = vmax.f32 %v6796, %v6860
        %v6965 = vmax.f32 %v6797, %v6861
        %v6966 = vmax.f32 %v6798, %v6862
        %v6967 = vmax.f32 %v6799, %v6863
        %v6968 = vmax.f32 %v6800, %v6864
        %v6969 = vmax.f32 %v6801, %v6865
        %v6970 = vmax.f32 %v6802, %v6866
        %v6971 = vmax.f32 %v6803, %v6867
        %v6972 = vmax.f32 %v6804, %v6868
        %v6973 = vmax.f32 %v6805, %v6869
        %v6974 = vmax.f32 %v6806, %v6870
        %v6975 = vmax.f32 %v6807, %v6871
        %v6976 = vmax.f32 %v6808, %v6872
        %v6977 = vmax.f32 %v6809, %v6873
        %v6978 = vmax.f32 %v6810, %v6874
        %v6979 = vmax.f32 %v6811, %v6875
        %v6980 = vmax.f32 %v6812, %v6876
        %v6981 = vmax.f32 %v6813, %v6877
        %v6982 = vmax.f32 %v6814, %v6878
        %v6983 = vmax.f32 %v6815, %v6879
        %v6984 = vmax.f32 %v6816, %v6880
        %v6985 = vmax.f32 %v6817, %v6881
        %v6986 = vmax.f32 %v6818, %v6882
        %v6987 = vmax.f32 %v6819, %v6883
        %v6988 = vmax.f32 %v6820, %v6884
        %v6989 = vmax.f32 %v6821, %v6885
        %v6990 = vmax.f32 %v6822, %v6886
        %v6991 = vmax.f32 %v6823, %v6887
        %v6992 = vld [vmem:[%s5] sm:$0x1]
        %v6994 = vlaneseq
        %v6995 = vshrl.u32 %v6994, 7
        %v6996 = vsub.s32 0, %v6995
        %v6997 = vrot.slane %v6992, %v6996
        %v6999 = vmul.f32 %v6928, %v6997
        %v7000 = vmul.f32 %v6929, %v6997
        %v7001 = vmul.f32 %v6930, %v6997
        %v7002 = vmul.f32 %v6931, %v6997
        %v7003 = vmul.f32 %v6932, %v6997
        %v7004 = vmul.f32 %v6933, %v6997
        %v7005 = vmul.f32 %v6934, %v6997
        %v7006 = vmul.f32 %v6935, %v6997
        %v7007 = vmul.f32 %v6936, %v6997
        %v7008 = vmul.f32 %v6937, %v6997
        %v7009 = vmul.f32 %v6938, %v6997
        %v7010 = vmul.f32 %v6939, %v6997
        %v7011 = vmul.f32 %v6940, %v6997
        %v7012 = vmul.f32 %v6941, %v6997
        %v7013 = vmul.f32 %v6942, %v6997
        %v7014 = vmul.f32 %v6943, %v6997
        %v7015 = vmul.f32 %v6944, %v6997
        %v7016 = vmul.f32 %v6945, %v6997
        %v7017 = vmul.f32 %v6946, %v6997
        %v7018 = vmul.f32 %v6947, %v6997
        %v7019 = vmul.f32 %v6948, %v6997
        %v7020 = vmul.f32 %v6949, %v6997
        %v7021 = vmul.f32 %v6950, %v6997
        %v7022 = vmul.f32 %v6951, %v6997
        %v7023 = vmul.f32 %v6952, %v6997
        %v7024 = vmul.f32 %v6953, %v6997
        %v7025 = vmul.f32 %v6954, %v6997
        %v7026 = vmul.f32 %v6955, %v6997
        %v7027 = vmul.f32 %v6956, %v6997
        %v7028 = vmul.f32 %v6957, %v6997
        %v7029 = vmul.f32 %v6958, %v6997
        %v7030 = vmul.f32 %v6959, %v6997
        %v7031 = vld [vmem:[%s6] sm:$0x1]
        %v7033 = vlaneseq
        %v7034 = vshrl.u32 %v7033, 7
        %v7035 = vsub.s32 0, %v7034
        %v7036 = vrot.slane %v7031, %v7035
        %v7038 = vadd.f32 %v6999, %v7036
        %v7039 = vadd.f32 %v7000, %v7036
        %v7040 = vadd.f32 %v7001, %v7036
        %v7041 = vadd.f32 %v7002, %v7036
        %v7042 = vadd.f32 %v7003, %v7036
        %v7043 = vadd.f32 %v7004, %v7036
        %v7044 = vadd.f32 %v7005, %v7036
        %v7045 = vadd.f32 %v7006, %v7036
        %v7046 = vadd.f32 %v7007, %v7036
        %v7047 = vadd.f32 %v7008, %v7036
        %v7048 = vadd.f32 %v7009, %v7036
        %v7049 = vadd.f32 %v7010, %v7036
        %v7050 = vadd.f32 %v7011, %v7036
        %v7051 = vadd.f32 %v7012, %v7036
        %v7052 = vadd.f32 %v7013, %v7036
        %v7053 = vadd.f32 %v7014, %v7036
        %v7054 = vadd.f32 %v7015, %v7036
        %v7055 = vadd.f32 %v7016, %v7036
        %v7056 = vadd.f32 %v7017, %v7036
        %v7057 = vadd.f32 %v7018, %v7036
        %v7058 = vadd.f32 %v7019, %v7036
        %v7059 = vadd.f32 %v7020, %v7036
        %v7060 = vadd.f32 %v7021, %v7036
        %v7061 = vadd.f32 %v7022, %v7036
        %v7062 = vadd.f32 %v7023, %v7036
        %v7063 = vadd.f32 %v7024, %v7036
        %v7064 = vadd.f32 %v7025, %v7036
        %v7065 = vadd.f32 %v7026, %v7036
        %v7066 = vadd.f32 %v7027, %v7036
        %v7067 = vadd.f32 %v7028, %v7036
        %v7068 = vadd.f32 %v7029, %v7036
        %v7069 = vadd.f32 %v7030, %v7036
        %v7070 = vmax.f32 %v7038, 0.0
        %v7071 = vmax.f32 %v7039, 0.0
        %v7072 = vmax.f32 %v7040, 0.0
        %v7073 = vmax.f32 %v7041, 0.0
        %v7074 = vmax.f32 %v7042, 0.0
        %v7075 = vmax.f32 %v7043, 0.0
        %v7076 = vmax.f32 %v7044, 0.0
        %v7077 = vmax.f32 %v7045, 0.0
        %v7078 = vmax.f32 %v7046, 0.0
        %v7079 = vmax.f32 %v7047, 0.0
        %v7080 = vmax.f32 %v7048, 0.0
        %v7081 = vmax.f32 %v7049, 0.0
        %v7082 = vmax.f32 %v7050, 0.0
        %v7083 = vmax.f32 %v7051, 0.0
        %v7084 = vmax.f32 %v7052, 0.0
        %v7085 = vmax.f32 %v7053, 0.0
        %v7086 = vmax.f32 %v7054, 0.0
        %v7087 = vmax.f32 %v7055, 0.0
        %v7088 = vmax.f32 %v7056, 0.0
        %v7089 = vmax.f32 %v7057, 0.0
        %v7090 = vmax.f32 %v7058, 0.0
        %v7091 = vmax.f32 %v7059, 0.0
        %v7092 = vmax.f32 %v7060, 0.0
        %v7093 = vmax.f32 %v7061, 0.0
        %v7094 = vmax.f32 %v7062, 0.0
        %v7095 = vmax.f32 %v7063, 0.0
        %v7096 = vmax.f32 %v7064, 0.0
        %v7097 = vmax.f32 %v7065, 0.0
        %v7098 = vmax.f32 %v7066, 0.0
        %v7099 = vmax.f32 %v7067, 0.0
        %v7100 = vmax.f32 %v7068, 0.0
        %v7101 = vmax.f32 %v7069, 0.0
        %v7102 = vpack.c.bf16 %v7071, %v7070
        %v7103 = vpack.c.bf16 %v7073, %v7072
        %v7104 = vpack.c.bf16 %v7075, %v7074
        %v7105 = vpack.c.bf16 %v7077, %v7076
        %v7106 = vpack.c.bf16 %v7079, %v7078
        %v7107 = vpack.c.bf16 %v7081, %v7080
        %v7108 = vpack.c.bf16 %v7083, %v7082
        %v7109 = vpack.c.bf16 %v7085, %v7084
        %v7110 = vpack.c.bf16 %v7087, %v7086
        %v7111 = vpack.c.bf16 %v7089, %v7088
        %v7112 = vpack.c.bf16 %v7091, %v7090
        %v7113 = vpack.c.bf16 %v7093, %v7092
        %v7114 = vpack.c.bf16 %v7095, %v7094
        %v7115 = vpack.c.bf16 %v7097, %v7096
        %v7116 = vpack.c.bf16 %v7099, %v7098
        %v7117 = vpack.c.bf16 %v7101, %v7100
        %v7118 = vld [vmem:[%s7] sm:$0x1]
        %v7120 = vlaneseq
        %v7121 = vshrl.u32 %v7120, 7
        %v7122 = vsub.s32 0, %v7121
        %v7123 = vrot.slane %v7118, %v7122
        %v7125 = vmul.f32 %v6960, %v7123
        %v7126 = vmul.f32 %v6961, %v7123
        %v7127 = vmul.f32 %v6962, %v7123
        %v7128 = vmul.f32 %v6963, %v7123
        %v7129 = vmul.f32 %v6964, %v7123
        %v7130 = vmul.f32 %v6965, %v7123
        %v7131 = vmul.f32 %v6966, %v7123
        %v7132 = vmul.f32 %v6967, %v7123
        %v7133 = vmul.f32 %v6968, %v7123
        %v7134 = vmul.f32 %v6969, %v7123
        %v7135 = vmul.f32 %v6970, %v7123
        %v7136 = vmul.f32 %v6971, %v7123
        %v7137 = vmul.f32 %v6972, %v7123
        %v7138 = vmul.f32 %v6973, %v7123
        %v7139 = vmul.f32 %v6974, %v7123
        %v7140 = vmul.f32 %v6975, %v7123
        %v7141 = vmul.f32 %v6976, %v7123
        %v7142 = vmul.f32 %v6977, %v7123
        %v7143 = vmul.f32 %v6978, %v7123
        %v7144 = vmul.f32 %v6979, %v7123
        %v7145 = vmul.f32 %v6980, %v7123
        %v7146 = vmul.f32 %v6981, %v7123
        %v7147 = vmul.f32 %v6982, %v7123
        %v7148 = vmul.f32 %v6983, %v7123
        %v7149 = vmul.f32 %v6984, %v7123
        %v7150 = vmul.f32 %v6985, %v7123
        %v7151 = vmul.f32 %v6986, %v7123
        %v7152 = vmul.f32 %v6987, %v7123
        %v7153 = vmul.f32 %v6988, %v7123
        %v7154 = vmul.f32 %v6989, %v7123
        %v7155 = vmul.f32 %v6990, %v7123
        %v7156 = vmul.f32 %v6991, %v7123
        %v7157 = vld [vmem:[%s8] sm:$0x1]
        %v7159 = vlaneseq
        %v7160 = vshrl.u32 %v7159, 7
        %v7161 = vsub.s32 0, %v7160
        %v7162 = vrot.slane %v7157, %v7161
        %v7164 = vadd.f32 %v7125, %v7162
        %v7165 = vadd.f32 %v7126, %v7162
        %v7166 = vadd.f32 %v7127, %v7162
        %v7167 = vadd.f32 %v7128, %v7162
        %v7168 = vadd.f32 %v7129, %v7162
        %v7169 = vadd.f32 %v7130, %v7162
        %v7170 = vadd.f32 %v7131, %v7162
        %v7171 = vadd.f32 %v7132, %v7162
        %v7172 = vadd.f32 %v7133, %v7162
        %v7173 = vadd.f32 %v7134, %v7162
        %v7174 = vadd.f32 %v7135, %v7162
        %v7175 = vadd.f32 %v7136, %v7162
        %v7176 = vadd.f32 %v7137, %v7162
        %v7177 = vadd.f32 %v7138, %v7162
        %v7178 = vadd.f32 %v7139, %v7162
        %v7179 = vadd.f32 %v7140, %v7162
        %v7180 = vadd.f32 %v7141, %v7162
        %v7181 = vadd.f32 %v7142, %v7162
        %v7182 = vadd.f32 %v7143, %v7162
        %v7183 = vadd.f32 %v7144, %v7162
        %v7184 = vadd.f32 %v7145, %v7162
        %v7185 = vadd.f32 %v7146, %v7162
        %v7186 = vadd.f32 %v7147, %v7162
        %v7187 = vadd.f32 %v7148, %v7162
        %v7188 = vadd.f32 %v7149, %v7162
        %v7189 = vadd.f32 %v7150, %v7162
        %v7190 = vadd.f32 %v7151, %v7162
        %v7191 = vadd.f32 %v7152, %v7162
        %v7192 = vadd.f32 %v7153, %v7162
        %v7193 = vadd.f32 %v7154, %v7162
        %v7194 = vadd.f32 %v7155, %v7162
        %v7195 = vadd.f32 %v7156, %v7162
        %v7196 = vmax.f32 %v7164, 0.0
        %v7197 = vmax.f32 %v7165, 0.0
        %v7198 = vmax.f32 %v7166, 0.0
        %v7199 = vmax.f32 %v7167, 0.0
        %v7200 = vmax.f32 %v7168, 0.0
        %v7201 = vmax.f32 %v7169, 0.0
        %v7202 = vmax.f32 %v7170, 0.0
        %v7203 = vmax.f32 %v7171, 0.0
        %v7204 = vmax.f32 %v7172, 0.0
        %v7205 = vmax.f32 %v7173, 0.0
        %v7206 = vmax.f32 %v7174, 0.0
        %v7207 = vmax.f32 %v7175, 0.0
        %v7208 = vmax.f32 %v7176, 0.0
        %v7209 = vmax.f32 %v7177, 0.0
        %v7210 = vmax.f32 %v7178, 0.0
        %v7211 = vmax.f32 %v7179, 0.0
        %v7212 = vmax.f32 %v7180, 0.0
        %v7213 = vmax.f32 %v7181, 0.0
        %v7214 = vmax.f32 %v7182, 0.0
        %v7215 = vmax.f32 %v7183, 0.0
        %v7216 = vmax.f32 %v7184, 0.0
        %v7217 = vmax.f32 %v7185, 0.0
        %v7218 = vmax.f32 %v7186, 0.0
        %v7219 = vmax.f32 %v7187, 0.0
        %v7220 = vmax.f32 %v7188, 0.0
        %v7221 = vmax.f32 %v7189, 0.0
        %v7222 = vmax.f32 %v7190, 0.0
        %v7223 = vmax.f32 %v7191, 0.0
        %v7224 = vmax.f32 %v7192, 0.0
        %v7225 = vmax.f32 %v7193, 0.0
        %v7226 = vmax.f32 %v7194, 0.0
        %v7227 = vmax.f32 %v7195, 0.0
        %v7228 = vpack.c.bf16 %v7197, %v7196
        %v7229 = vpack.c.bf16 %v7199, %v7198
        %v7230 = vpack.c.bf16 %v7201, %v7200
        %v7231 = vpack.c.bf16 %v7203, %v7202
        %v7232 = vpack.c.bf16 %v7205, %v7204
        %v7233 = vpack.c.bf16 %v7207, %v7206
        %v7234 = vpack.c.bf16 %v7209, %v7208
        %v7235 = vpack.c.bf16 %v7211, %v7210
        %v7236 = vpack.c.bf16 %v7213, %v7212
        %v7237 = vpack.c.bf16 %v7215, %v7214
        %v7238 = vpack.c.bf16 %v7217, %v7216
        %v7239 = vpack.c.bf16 %v7219, %v7218
        %v7240 = vpack.c.bf16 %v7221, %v7220
        %v7241 = vpack.c.bf16 %v7223, %v7222
        %v7242 = vpack.c.bf16 %v7225, %v7224
        %v7243 = vpack.c.bf16 %v7227, %v7226
        %v7244 = vld [vmem:[%s9] sm:$0xf]
        %v7245 = vld [vmem:[%s9 + $0x4] sm:$0xf]
        %v7246 = vld [vmem:[%s9 + $0x8] sm:$0xf]
        %v7247 = vld [vmem:[%s9 + $0xc] sm:$0xf]
        %v7248 = vld [vmem:[%s9 + $0x10] sm:$0xf]
        %v7249 = vld [vmem:[%s9 + $0x14] sm:$0xf]
        %v7250 = vld [vmem:[%s9 + $0x18] sm:$0xf]
        %v7251 = vld [vmem:[%s9 + $0x1c] sm:$0xf]
        %v7252 = vld [vmem:[%s9 + $0x20] sm:$0xf]
        %v7253 = vld [vmem:[%s9 + $0x24] sm:$0xf]
        %v7254 = vld [vmem:[%s9 + $0x28] sm:$0xf]
        %v7255 = vld [vmem:[%s9 + $0x2c] sm:$0xf]
        %v7256 = vld [vmem:[%s9 + $0x30] sm:$0xf]
        %v7257 = vld [vmem:[%s9 + $0x34] sm:$0xf]
        %v7258 = vld [vmem:[%s9 + $0x38] sm:$0xf]
        %v7259 = vld [vmem:[%s9 + $0x3c] sm:$0xf]
        %v7260 = vld [vmem:[%s10] sm:$0xf]
        %v7261 = vld [vmem:[%s10 + $0x4] sm:$0xf]
        %v7262 = vld [vmem:[%s10 + $0x8] sm:$0xf]
        %v7263 = vld [vmem:[%s10 + $0xc] sm:$0xf]
        %v7264 = vld [vmem:[%s10 + $0x10] sm:$0xf]
        %v7265 = vld [vmem:[%s10 + $0x14] sm:$0xf]
        %v7266 = vld [vmem:[%s10 + $0x18] sm:$0xf]
        %v7267 = vld [vmem:[%s10 + $0x1c] sm:$0xf]
        %v7268 = vld [vmem:[%s10 + $0x20] sm:$0xf]
        %v7269 = vld [vmem:[%s10 + $0x24] sm:$0xf]
        %v7270 = vld [vmem:[%s10 + $0x28] sm:$0xf]
        %v7271 = vld [vmem:[%s10 + $0x2c] sm:$0xf]
        %v7272 = vld [vmem:[%s10 + $0x30] sm:$0xf]
        %v7273 = vld [vmem:[%s10 + $0x34] sm:$0xf]
        %v7274 = vld [vmem:[%s10 + $0x38] sm:$0xf]
        %v7275 = vld [vmem:[%s10 + $0x3c] sm:$0xf]
        %v7292 = vunpack.c.l.b16 %v7260
        %v7293 = vunpack.c.l.b16 %v7261
        %v7294 = vunpack.c.l.b16 %v7262
        %v7295 = vunpack.c.l.b16 %v7263
        %v7296 = vunpack.c.l.b16 %v7264
        %v7297 = vunpack.c.l.b16 %v7265
        %v7298 = vunpack.c.l.b16 %v7266
        %v7299 = vunpack.c.l.b16 %v7267
        %v7300 = vunpack.c.l.b16 %v7268
        %v7301 = vunpack.c.l.b16 %v7269
        %v7302 = vunpack.c.l.b16 %v7270
        %v7303 = vunpack.c.l.b16 %v7271
        %v7304 = vunpack.c.l.b16 %v7272
        %v7305 = vunpack.c.l.b16 %v7273
        %v7306 = vunpack.c.l.b16 %v7274
        %v7307 = vunpack.c.l.b16 %v7275
        %v7308 = vpack.c.b16 %v7293, %v7292
        %v7309 = vpack.c.b16 %v7295, %v7294
        %v7310 = vpack.c.b16 %v7297, %v7296
        %v7311 = vpack.c.b16 %v7299, %v7298
        %v7312 = vpack.c.b16 %v7301, %v7300
        %v7313 = vpack.c.b16 %v7303, %v7302
        %v7314 = vpack.c.b16 %v7305, %v7304
        %v7315 = vpack.c.b16 %v7307, %v7306
        %7324 = vmatprep.subr.bf16.mxu0 0
        %7325 = vmatpush1.bf16.msra.mxu0 %v7315
        %7326 = vmatprep.subr.bf16.mxu0 0
        %7327 = vmatpush1.bf16.msra.mxu0 %v7314
        %7328 = vmatprep.subr.bf16.mxu0 0
        %7329 = vmatpush1.bf16.msra.mxu0 %v7313
        %7330 = vmatprep.subr.bf16.mxu0 0
        %7331 = vmatpush1.bf16.msra.mxu0 %v7312
        %7332 = vmatprep.subr.bf16.mxu0 0
        %7333 = vmatpush1.bf16.msra.mxu0 %v7311
        %7334 = vmatprep.subr.bf16.mxu0 0
        %7335 = vmatpush1.bf16.msra.mxu0 %v7310
        %7336 = vmatprep.subr.bf16.mxu0 0
        %7337 = vmatpush1.bf16.msra.mxu0 %v7309
        %7338 = vmatprep.subr.bf16.mxu0 0
        %7339 = vmatpush1.bf16.msra.mxu0 %v7308
        %7340 = vmatprep.subr.bf16.mxu0 0
        %7341 = vmatpush2.bf16.msra.mxu0 0
        %7342 = vmatprep.subr.bf16.mxu0 0
        %7343 = vmatpush2.bf16.msra.mxu0 0
        %7344 = vmatprep.subr.bf16.mxu0 0
        %7345 = vmatpush2.bf16.msra.mxu0 0
        %7346 = vmatprep.subr.bf16.mxu0 0
        %7347 = vmatpush2.bf16.msra.mxu0 0
        %7348 = vmatprep.subr.bf16.mxu0 0
        %7349 = vmatpush2.bf16.msra.mxu0 0
        %7350 = vmatprep.subr.bf16.mxu0 0
        %7351 = vmatpush2.bf16.msra.mxu0 0
        %7352 = vmatprep.subr.bf16.mxu0 0
        %7353 = vmatpush2.bf16.msra.mxu0 0
        %7354 = vmatprep.subr.bf16.mxu0 0
        %7355 = vmatpush2.bf16.msra.mxu0 0
        %7356 = vmatprep.mubr.bf16.mxu0 0
        %7357 = vmatmul.mubr.bf16.gmra.mxu0 %v7228
        %v7358 = vpop.f32.mrf.mxu0
        %v7359 = vadd.f32 0.0, %v7358
        %v7360 = vpop.f32.mrf.mxu0
        %v7361 = vpop.f32.mrf.mxu0
        %v7362 = vadd.f32 0.0, %v7361
        %v7363 = vpop.f32.mrf.mxu0
        %7364 = vmatprep.mubr.bf16.mxu0 0
        %7365 = vmatmul.mubr.bf16.gmra.mxu0 %v7229
        %v7366 = vpop.f32.mrf.mxu0
        %v7367 = vadd.f32 0.0, %v7366
        %v7368 = vpop.f32.mrf.mxu0
        %v7369 = vpop.f32.mrf.mxu0
        %v7370 = vadd.f32 0.0, %v7369
        %v7371 = vpop.f32.mrf.mxu0
        %7372 = vmatprep.mubr.bf16.mxu0 0
        %7373 = vmatmul.mubr.bf16.gmra.mxu0 %v7230
        %v7374 = vpop.f32.mrf.mxu0
        %v7375 = vadd.f32 0.0, %v7374
        %v7376 = vpop.f32.mrf.mxu0
        %v7377 = vpop.f32.mrf.mxu0
        %v7378 = vadd.f32 0.0, %v7377
        %v7379 = vpop.f32.mrf.mxu0
        %7380 = vmatprep.mubr.bf16.mxu0 0
        %7381 = vmatmul.mubr.bf16.gmra.mxu0 %v7231
        %v7382 = vpop.f32.mrf.mxu0
        %v7383 = vadd.f32 0.0, %v7382
        %v7384 = vpop.f32.mrf.mxu0
        %v7385 = vpop.f32.mrf.mxu0
        %v7386 = vadd.f32 0.0, %v7385
        %v7387 = vpop.f32.mrf.mxu0
        %7388 = vmatprep.mubr.bf16.mxu0 0
        %7389 = vmatmul.mubr.bf16.gmra.mxu0 %v7232
        %v7390 = vpop.f32.mrf.mxu0
        %v7391 = vadd.f32 0.0, %v7390
        %v7392 = vpop.f32.mrf.mxu0
        %v7393 = vpop.f32.mrf.mxu0
        %v7394 = vadd.f32 0.0, %v7393
        %v7395 = vpop.f32.mrf.mxu0
        %7396 = vmatprep.mubr.bf16.mxu0 0
        %7397 = vmatmul.mubr.bf16.gmra.mxu0 %v7233
        %v7398 = vpop.f32.mrf.mxu0
        %v7399 = vadd.f32 0.0, %v7398
        %v7400 = vpop.f32.mrf.mxu0
        %v7401 = vpop.f32.mrf.mxu0
        %v7402 = vadd.f32 0.0, %v7401
        %v7403 = vpop.f32.mrf.mxu0
        %7404 = vmatprep.mubr.bf16.mxu0 0
        %7405 = vmatmul.mubr.bf16.gmra.mxu0 %v7234
        %v7406 = vpop.f32.mrf.mxu0
        %v7407 = vadd.f32 0.0, %v7406
        %v7408 = vpop.f32.mrf.mxu0
        %v7409 = vpop.f32.mrf.mxu0
        %v7410 = vadd.f32 0.0, %v7409
        %v7411 = vpop.f32.mrf.mxu0
        %7412 = vmatprep.mubr.bf16.mxu0 0
        %7413 = vmatmul.mubr.bf16.gmra.mxu0 %v7235
        %v7414 = vpop.f32.mrf.mxu0
        %v7415 = vadd.f32 0.0, %v7414
        %v7416 = vpop.f32.mrf.mxu0
        %v7417 = vpop.f32.mrf.mxu0
        %v7418 = vadd.f32 0.0, %v7417
        %v7419 = vpop.f32.mrf.mxu0
        %7420 = vmatprep.mubr.bf16.mxu0 0
        %7421 = vmatmul.mubr.bf16.gmra.mxu0 %v7236
        %v7422 = vpop.f32.mrf.mxu0
        %v7423 = vadd.f32 0.0, %v7422
        %v7424 = vpop.f32.mrf.mxu0
        %v7425 = vpop.f32.mrf.mxu0
        %v7426 = vadd.f32 0.0, %v7425
        %v7427 = vpop.f32.mrf.mxu0
        %7428 = vmatprep.mubr.bf16.mxu0 0
        %7429 = vmatmul.mubr.bf16.gmra.mxu0 %v7237
        %v7430 = vpop.f32.mrf.mxu0
        %v7431 = vadd.f32 0.0, %v7430
        %v7432 = vpop.f32.mrf.mxu0
        %v7433 = vpop.f32.mrf.mxu0
        %v7434 = vadd.f32 0.0, %v7433
        %v7435 = vpop.f32.mrf.mxu0
        %7436 = vmatprep.mubr.bf16.mxu0 0
        %7437 = vmatmul.mubr.bf16.gmra.mxu0 %v7238
        %v7438 = vpop.f32.mrf.mxu0
        %v7439 = vadd.f32 0.0, %v7438
        %v7440 = vpop.f32.mrf.mxu0
        %v7441 = vpop.f32.mrf.mxu0
        %v7442 = vadd.f32 0.0, %v7441
        %v7443 = vpop.f32.mrf.mxu0
        %7444 = vmatprep.mubr.bf16.mxu0 0
        %7445 = vmatmul.mubr.bf16.gmra.mxu0 %v7239
        %v7446 = vpop.f32.mrf.mxu0
        %v7447 = vadd.f32 0.0, %v7446
        %v7448 = vpop.f32.mrf.mxu0
        %v7449 = vpop.f32.mrf.mxu0
        %v7450 = vadd.f32 0.0, %v7449
        %v7451 = vpop.f32.mrf.mxu0
        %7452 = vmatprep.mubr.bf16.mxu0 0
        %7453 = vmatmul.mubr.bf16.gmra.mxu0 %v7240
        %v7454 = vpop.f32.mrf.mxu0
        %v7455 = vadd.f32 0.0, %v7454
        %v7456 = vpop.f32.mrf.mxu0
        %v7457 = vpop.f32.mrf.mxu0
        %v7458 = vadd.f32 0.0, %v7457
        %v7459 = vpop.f32.mrf.mxu0
        %7460 = vmatprep.mubr.bf16.mxu0 0
        %7461 = vmatmul.mubr.bf16.gmra.mxu0 %v7241
        %v7462 = vpop.f32.mrf.mxu0
        %v7463 = vadd.f32 0.0, %v7462
        %v7464 = vpop.f32.mrf.mxu0
        %v7465 = vpop.f32.mrf.mxu0
        %v7466 = vadd.f32 0.0, %v7465
        %v7467 = vpop.f32.mrf.mxu0
        %7468 = vmatprep.mubr.bf16.mxu0 0
        %7469 = vmatmul.mubr.bf16.gmra.mxu0 %v7242
        %v7470 = vpop.f32.mrf.mxu0
        %v7471 = vadd.f32 0.0, %v7470
        %v7472 = vpop.f32.mrf.mxu0
        %v7473 = vpop.f32.mrf.mxu0
        %v7474 = vadd.f32 0.0, %v7473
        %v7475 = vpop.f32.mrf.mxu0
        %7476 = vmatprep.mubr.bf16.mxu0 0
        %7477 = vmatmul.mubr.bf16.gmra.mxu0 %v7243
        %v7478 = vpop.f32.mrf.mxu0
        %v7479 = vadd.f32 0.0, %v7478
        %v7480 = vpop.f32.mrf.mxu0
        %v7481 = vpop.f32.mrf.mxu0
        %v7482 = vadd.f32 0.0, %v7481
        %v7483 = vpop.f32.mrf.mxu0
        %7484 = vdwg.mxu0
        %v7501 = vunpack.c.l.b16 %v7244
        %v7502 = vunpack.c.l.b16 %v7245
        %v7503 = vunpack.c.l.b16 %v7246
        %v7504 = vunpack.c.l.b16 %v7247
        %v7505 = vunpack.c.l.b16 %v7248
        %v7506 = vunpack.c.l.b16 %v7249
        %v7507 = vunpack.c.l.b16 %v7250
        %v7508 = vunpack.c.l.b16 %v7251
        %v7509 = vunpack.c.l.b16 %v7252
        %v7510 = vunpack.c.l.b16 %v7253
        %v7511 = vunpack.c.l.b16 %v7254
        %v7512 = vunpack.c.l.b16 %v7255
        %v7513 = vunpack.c.l.b16 %v7256
        %v7514 = vunpack.c.l.b16 %v7257
        %v7515 = vunpack.c.l.b16 %v7258
        %v7516 = vunpack.c.l.b16 %v7259
        %v7517 = vpack.c.b16 %v7502, %v7501
        %v7518 = vpack.c.b16 %v7504, %v7503
        %v7519 = vpack.c.b16 %v7506, %v7505
        %v7520 = vpack.c.b16 %v7508, %v7507
        %v7521 = vpack.c.b16 %v7510, %v7509
        %v7522 = vpack.c.b16 %v7512, %v7511
        %v7523 = vpack.c.b16 %v7514, %v7513
        %v7524 = vpack.c.b16 %v7516, %v7515
        %7533 = vmatprep.subr.bf16.mxu0 0
        %7534 = vmatpush1.bf16.msra.mxu0 %v7524
        %7535 = vmatprep.subr.bf16.mxu0 0
        %7536 = vmatpush1.bf16.msra.mxu0 %v7523
        %7537 = vmatprep.subr.bf16.mxu0 0
        %7538 = vmatpush1.bf16.msra.mxu0 %v7522
        %7539 = vmatprep.subr.bf16.mxu0 0
        %7540 = vmatpush1.bf16.msra.mxu0 %v7521
        %7541 = vmatprep.subr.bf16.mxu0 0
        %7542 = vmatpush1.bf16.msra.mxu0 %v7520
        %7543 = vmatprep.subr.bf16.mxu0 0
        %7544 = vmatpush1.bf16.msra.mxu0 %v7519
        %7545 = vmatprep.subr.bf16.mxu0 0
        %7546 = vmatpush1.bf16.msra.mxu0 %v7518
        %7547 = vmatprep.subr.bf16.mxu0 0
        %7548 = vmatpush1.bf16.msra.mxu0 %v7517
        %7549 = vmatprep.subr.bf16.mxu0 0
        %7550 = vmatpush2.bf16.msra.mxu0 0
        %7551 = vmatprep.subr.bf16.mxu0 0
        %7552 = vmatpush2.bf16.msra.mxu0 0
        %7553 = vmatprep.subr.bf16.mxu0 0
        %7554 = vmatpush2.bf16.msra.mxu0 0
        %7555 = vmatprep.subr.bf16.mxu0 0
        %7556 = vmatpush2.bf16.msra.mxu0 0
        %7557 = vmatprep.subr.bf16.mxu0 0
        %7558 = vmatpush2.bf16.msra.mxu0 0
        %7559 = vmatprep.subr.bf16.mxu0 0
        %7560 = vmatpush2.bf16.msra.mxu0 0
        %7561 = vmatprep.subr.bf16.mxu0 0
        %7562 = vmatpush2.bf16.msra.mxu0 0
        %7563 = vmatprep.subr.bf16.mxu0 0
        %7564 = vmatpush2.bf16.msra.mxu0 0
        %7565 = vmatprep.mubr.bf16.mxu0 0
        %7566 = vmatmul.mubr.bf16.gmra.mxu0 %v7102
        %v7567 = vpop.f32.mrf.mxu0
        %v7568 = vadd.f32 %v7359, %v7567
        %v7569 = vpop.f32.mrf.mxu0
        %v7570 = vpop.f32.mrf.mxu0
        %v7571 = vadd.f32 %v7362, %v7570
        %v7572 = vpop.f32.mrf.mxu0
        %7573 = vmatprep.mubr.bf16.mxu0 0
        %7574 = vmatmul.mubr.bf16.gmra.mxu0 %v7103
        %v7575 = vpop.f32.mrf.mxu0
        %v7576 = vadd.f32 %v7367, %v7575
        %v7577 = vpop.f32.mrf.mxu0
        %v7578 = vpop.f32.mrf.mxu0
        %v7579 = vadd.f32 %v7370, %v7578
        %v7580 = vpop.f32.mrf.mxu0
        %7581 = vmatprep.mubr.bf16.mxu0 0
        %7582 = vmatmul.mubr.bf16.gmra.mxu0 %v7104
        %v7583 = vpop.f32.mrf.mxu0
        %v7584 = vadd.f32 %v7375, %v7583
        %v7585 = vpop.f32.mrf.mxu0
        %v7586 = vpop.f32.mrf.mxu0
        %v7587 = vadd.f32 %v7378, %v7586
        %v7588 = vpop.f32.mrf.mxu0
        %7589 = vmatprep.mubr.bf16.mxu0 0
        %7590 = vmatmul.mubr.bf16.gmra.mxu0 %v7105
        %v7591 = vpop.f32.mrf.mxu0
        %v7592 = vadd.f32 %v7383, %v7591
        %v7593 = vpop.f32.mrf.mxu0
        %v7594 = vpop.f32.mrf.mxu0
        %v7595 = vadd.f32 %v7386, %v7594
        %v7596 = vpop.f32.mrf.mxu0
        %7597 = vmatprep.mubr.bf16.mxu0 0
        %7598 = vmatmul.mubr.bf16.gmra.mxu0 %v7106
        %v7599 = vpop.f32.mrf.mxu0
        %v7600 = vadd.f32 %v7391, %v7599
        %v7601 = vpop.f32.mrf.mxu0
        %v7602 = vpop.f32.mrf.mxu0
        %v7603 = vadd.f32 %v7394, %v7602
        %v7604 = vpop.f32.mrf.mxu0
        %7605 = vmatprep.mubr.bf16.mxu0 0
        %7606 = vmatmul.mubr.bf16.gmra.mxu0 %v7107
        %v7607 = vpop.f32.mrf.mxu0
        %v7608 = vadd.f32 %v7399, %v7607
        %v7609 = vpop.f32.mrf.mxu0
        %v7610 = vpop.f32.mrf.mxu0
        %v7611 = vadd.f32 %v7402, %v7610
        %v7612 = vpop.f32.mrf.mxu0
        %7613 = vmatprep.mubr.bf16.mxu0 0
        %7614 = vmatmul.mubr.bf16.gmra.mxu0 %v7108
        %v7615 = vpop.f32.mrf.mxu0
        %v7616 = vadd.f32 %v7407, %v7615
        %v7617 = vpop.f32.mrf.mxu0
        %v7618 = vpop.f32.mrf.mxu0
        %v7619 = vadd.f32 %v7410, %v7618
        %v7620 = vpop.f32.mrf.mxu0
        %7621 = vmatprep.mubr.bf16.mxu0 0
        %7622 = vmatmul.mubr.bf16.gmra.mxu0 %v7109
        %v7623 = vpop.f32.mrf.mxu0
        %v7624 = vadd.f32 %v7415, %v7623
        %v7625 = vpop.f32.mrf.mxu0
        %v7626 = vpop.f32.mrf.mxu0
        %v7627 = vadd.f32 %v7418, %v7626
        %v7628 = vpop.f32.mrf.mxu0
        %7629 = vmatprep.mubr.bf16.mxu0 0
        %7630 = vmatmul.mubr.bf16.gmra.mxu0 %v7110
        %v7631 = vpop.f32.mrf.mxu0
        %v7632 = vadd.f32 %v7423, %v7631
        %v7633 = vpop.f32.mrf.mxu0
        %v7634 = vpop.f32.mrf.mxu0
        %v7635 = vadd.f32 %v7426, %v7634
        %v7636 = vpop.f32.mrf.mxu0
        %7637 = vmatprep.mubr.bf16.mxu0 0
        %7638 = vmatmul.mubr.bf16.gmra.mxu0 %v7111
        %v7639 = vpop.f32.mrf.mxu0
        %v7640 = vadd.f32 %v7431, %v7639
        %v7641 = vpop.f32.mrf.mxu0
        %v7642 = vpop.f32.mrf.mxu0
        %v7643 = vadd.f32 %v7434, %v7642
        %v7644 = vpop.f32.mrf.mxu0
        %7645 = vmatprep.mubr.bf16.mxu0 0
        %7646 = vmatmul.mubr.bf16.gmra.mxu0 %v7112
        %v7647 = vpop.f32.mrf.mxu0
        %v7648 = vadd.f32 %v7439, %v7647
        %v7649 = vpop.f32.mrf.mxu0
        %v7650 = vpop.f32.mrf.mxu0
        %v7651 = vadd.f32 %v7442, %v7650
        %v7652 = vpop.f32.mrf.mxu0
        %7653 = vmatprep.mubr.bf16.mxu0 0
        %7654 = vmatmul.mubr.bf16.gmra.mxu0 %v7113
        %v7655 = vpop.f32.mrf.mxu0
        %v7656 = vadd.f32 %v7447, %v7655
        %v7657 = vpop.f32.mrf.mxu0
        %v7658 = vpop.f32.mrf.mxu0
        %v7659 = vadd.f32 %v7450, %v7658
        %v7660 = vpop.f32.mrf.mxu0
        %7661 = vmatprep.mubr.bf16.mxu0 0
        %7662 = vmatmul.mubr.bf16.gmra.mxu0 %v7114
        %v7663 = vpop.f32.mrf.mxu0
        %v7664 = vadd.f32 %v7455, %v7663
        %v7665 = vpop.f32.mrf.mxu0
        %v7666 = vpop.f32.mrf.mxu0
        %v7667 = vadd.f32 %v7458, %v7666
        %v7668 = vpop.f32.mrf.mxu0
        %7669 = vmatprep.mubr.bf16.mxu0 0
        %7670 = vmatmul.mubr.bf16.gmra.mxu0 %v7115
        %v7671 = vpop.f32.mrf.mxu0
        %v7672 = vadd.f32 %v7463, %v7671
        %v7673 = vpop.f32.mrf.mxu0
        %v7674 = vpop.f32.mrf.mxu0
        %v7675 = vadd.f32 %v7466, %v7674
        %v7676 = vpop.f32.mrf.mxu0
        %7677 = vmatprep.mubr.bf16.mxu0 0
        %7678 = vmatmul.mubr.bf16.gmra.mxu0 %v7116
        %v7679 = vpop.f32.mrf.mxu0
        %v7680 = vadd.f32 %v7471, %v7679
        %v7681 = vpop.f32.mrf.mxu0
        %v7682 = vpop.f32.mrf.mxu0
        %v7683 = vadd.f32 %v7474, %v7682
        %v7684 = vpop.f32.mrf.mxu0
        %7685 = vmatprep.mubr.bf16.mxu0 0
        %7686 = vmatmul.mubr.bf16.gmra.mxu0 %v7117
        %v7687 = vpop.f32.mrf.mxu0
        %v7688 = vadd.f32 %v7479, %v7687
        %v7689 = vpop.f32.mrf.mxu0
        %v7690 = vpop.f32.mrf.mxu0
        %v7691 = vadd.f32 %v7482, %v7690
        %v7692 = vpop.f32.mrf.mxu0
        %7693 = vdwg.mxu0
        %v7694 = vadd.f32 %v7568, %v5163
        %v7695 = vadd.f32 %v7571, %v5164
        %v7696 = vadd.f32 %v7576, %v5165
        %v7697 = vadd.f32 %v7579, %v5166
        %v7698 = vadd.f32 %v7584, %v5167
        %v7699 = vadd.f32 %v7587, %v5168
        %v7700 = vadd.f32 %v7592, %v5169
        %v7701 = vadd.f32 %v7595, %v5170
        %v7702 = vadd.f32 %v7600, %v5171
        %v7703 = vadd.f32 %v7603, %v5172
        %v7704 = vadd.f32 %v7608, %v5173
        %v7705 = vadd.f32 %v7611, %v5174
        %v7706 = vadd.f32 %v7616, %v5175
        %v7707 = vadd.f32 %v7619, %v5176
        %v7708 = vadd.f32 %v7624, %v5177
        %v7709 = vadd.f32 %v7627, %v5178
        %v7710 = vadd.f32 %v7632, %v5179
        %v7711 = vadd.f32 %v7635, %v5180
        %v7712 = vadd.f32 %v7640, %v5181
        %v7713 = vadd.f32 %v7643, %v5182
        %v7714 = vadd.f32 %v7648, %v5183
        %v7715 = vadd.f32 %v7651, %v5184
        %v7716 = vadd.f32 %v7656, %v5185
        %v7717 = vadd.f32 %v7659, %v5186
        %v7718 = vadd.f32 %v7664, %v5187
        %v7719 = vadd.f32 %v7667, %v5188
        %v7720 = vadd.f32 %v7672, %v5189
        %v7721 = vadd.f32 %v7675, %v5190
        %v7722 = vadd.f32 %v7680, %v5191
        %v7723 = vadd.f32 %v7683, %v5192
        %v7724 = vadd.f32 %v7688, %v5193
        %v7725 = vadd.f32 %v7691, %v5194
        %7726 = vst [vmem:[%s379] sm:$0xff] %v7694
        %7727 = vst [vmem:[%s379 + $0x8] sm:$0xff] %v7695
        %7728 = vst [vmem:[%s379 + $0x10] sm:$0xff] %v7696
        %7729 = vst [vmem:[%s379 + $0x18] sm:$0xff] %v7697
        %7730 = vst [vmem:[%s379 + $0x20] sm:$0xff] %v7698
        %7731 = vst [vmem:[%s379 + $0x28] sm:$0xff] %v7699
        %7732 = vst [vmem:[%s379 + $0x30] sm:$0xff] %v7700
        %7733 = vst [vmem:[%s379 + $0x38] sm:$0xff] %v7701
        %7734 = vst [vmem:[%s379 + $0x40] sm:$0xff] %v7702
        %7735 = vst [vmem:[%s379 + $0x48] sm:$0xff] %v7703
        %7736 = vst [vmem:[%s379 + $0x50] sm:$0xff] %v7704
        %7737 = vst [vmem:[%s379 + $0x58] sm:$0xff] %v7705
        %7738 = vst [vmem:[%s379 + $0x60] sm:$0xff] %v7706
        %7739 = vst [vmem:[%s379 + $0x68] sm:$0xff] %v7707
        %7740 = vst [vmem:[%s379 + $0x70] sm:$0xff] %v7708
        %7741 = vst [vmem:[%s379 + $0x78] sm:$0xff] %v7709
        %7742 = vst [vmem:[%s379 + $0x80] sm:$0xff] %v7710
        %7743 = vst [vmem:[%s379 + $0x88] sm:$0xff] %v7711
        %7744 = vst [vmem:[%s379 + $0x90] sm:$0xff] %v7712
        %7745 = vst [vmem:[%s379 + $0x98] sm:$0xff] %v7713
        %7746 = vst [vmem:[%s379 + $0xa0] sm:$0xff] %v7714
        %7747 = vst [vmem:[%s379 + $0xa8] sm:$0xff] %v7715
        %7748 = vst [vmem:[%s379 + $0xb0] sm:$0xff] %v7716
        %7749 = vst [vmem:[%s379 + $0xb8] sm:$0xff] %v7717
        %7750 = vst [vmem:[%s379 + $0xc0] sm:$0xff] %v7718
        %7751 = vst [vmem:[%s379 + $0xc8] sm:$0xff] %v7719
        %7752 = vst [vmem:[%s379 + $0xd0] sm:$0xff] %v7720
        %7753 = vst [vmem:[%s379 + $0xd8] sm:$0xff] %v7721
        %7754 = vst [vmem:[%s379 + $0xe0] sm:$0xff] %v7722
        %7755 = vst [vmem:[%s379 + $0xe8] sm:$0xff] %v7723
        %7756 = vst [vmem:[%s379 + $0xf0] sm:$0xff] %v7724
        %7757 = vst [vmem:[%s379 + $0xf8] sm:$0xff] %v7725
        %s7758 = sand.u32 %s269, 1
        %s7759 = scalar_lea.sflag [#allocation5], %s7758
        %s7760 = sand.u32 %s269, 1
        %s7761 = smul.addr %s7760, 256
        %s7762 = scalar_lea.vmem [#allocation4], %s7761
        // Predicated region
        $region65: #{tpu_custom_call.1} parent=63 // pred_check
          %p7763 = pneg %p279
        $region66: #{tpu_custom_call.1} parent=63 // pred_check_branch
          %7765 = sbr.rel (%p7763) target = $region68
        $region67: #{tpu_custom_call.1} parent=63 // pred_region
          %s7767 = ssub.s32 4096, 4096
          %7768 = vsyncadd %s7759, %s7767
          %s7769 = smul.addr %s25, 32
          %s7770 = smul.addr %s7769, 128
          %s7771 = scalar_lea.hbm %s11, %s7770
          %s7772 = sshll.u32 %s7762, 4
          %s7773 = int_to_ptr.vmem [resolvable:$true] %s7772
          %7778 = dma.vmem_to_hbm [thread:$0]  %s7773, 4096, %s7771, %s7759, 128, 128, 8
        $region68: #{tpu_custom_call.1} parent=63 // pred_fallthru
          _
      $region64: #{tpu_custom_call.1} parent=5 // pred_fallthru
        _
      %p7779 = scmp.le.s32.totalorder 2, %s20
      // Predicated region
      $region69: #{tpu_custom_call.1} parent=5 // pred_check
        %p7780 = pneg %p7779
      $region70: #{tpu_custom_call.1} parent=5 // pred_check_branch
        %7782 = sbr.rel (%p7780) target = $region72
      $region71: #{tpu_custom_call.1} parent=5 // pred_region
        %s7783 = ssub.s32 %s20, 2
        // Predicated region
        $region73: #{tpu_custom_call.1} parent=71 // pred_check
          %p7784 = pneg %p285
        $region74: #{tpu_custom_call.1} parent=71 // pred_check_branch
          %7786 = sbr.rel (%p7784) target = $region76
        $region75: #{tpu_custom_call.1} parent=71 // pred_region
          %s7787 = sand.u32 %s270, 1
          %s7788 = scalar_lea.sflag [#allocation5], %s7787
          %s7789 = sand.u32 %s270, 1
          %s7790 = smul.addr %s7789, 256
          %s7791 = scalar_lea.vmem [#allocation4], %s7790
          %7792 = dma.done %s7788, 4096
        $region76: #{tpu_custom_call.1} parent=71 // pred_fallthru
          _
      $region72: #{tpu_custom_call.1} parent=5 // pred_fallthru
        _
    $region6: #{tpu_custom_call.1} parent=1 // loop_footer
      %s24 = sadd.s32 1, %s20
    $region7: #{tpu_custom_call.1} parent=1 // loop_footer_branch
      %19 = sbr.rel target = $region3
    $region8: #{tpu_custom_call.1} parent=1 // loop_exit
      _
    %7793 = vsyncpa [#allocation5], 1
    %s7794 = scalar_lea.sflag [#allocation5], 1
    %7795 = vsyncpa %s7794, 1

</llo_original>
